<compile_context>
chip_gen: v7x
topology: tpu7x:2x2x1
jax: 0.10.0
libtpu: 0.0.40
codegen_flags: <defaults>
</compile_context>

<pallas_src>
import functools

import jax
import jax.numpy as jnp
from jax.experimental import pallas as pl
from jax.experimental.pallas import tpu as pltpu


# ----------------------------------------------------------------------------
# In-kernel helpers (operate on traced values)
# ----------------------------------------------------------------------------

def _shift(z, axis, off):
    """result[i] = z[i + off] along spatial `axis` (1=H, 2=W), zero fill; off in {-1,0,+1}.

    Sublane/row moves only -- the lane axis (channels) is untouched."""
    if off == 0:
        return z
    if axis == 1:
        zero = jnp.zeros_like(z[:, :1])
        return (jnp.concatenate([zero, z[:, :-1]], axis=1) if off == -1
                else jnp.concatenate([z[:, 1:], zero], axis=1))
    zero = jnp.zeros_like(z[:, :, :1])
    return (jnp.concatenate([zero, z[:, :, :-1]], axis=2) if off == -1
            else jnp.concatenate([z[:, :, 1:], zero], axis=2))


def _conv3_bias_relu(y, w_ref, b_ref, axis):
    """'same' 1x3 (axis=2) / 3x1 (axis=1) conv + folded-BN bias + ReLU.

    Three per-tap bf16 matmuls on the UN-shifted input; the f32 results are shifted
    and accumulated (no lane-axis im2col concat).  w_ref: [3, Cin, Cout] bf16,
    tap t corresponds to spatial offset t-1."""
    tb, h, w, cin = y.shape
    yb = y.astype(jnp.bfloat16).reshape(tb * h * w, cin)
    acc = None
    for t in range(3):
        z = jnp.dot(yb, w_ref[t], preferred_element_type=jnp.float32)
        z = _shift(z.reshape(tb, h, w, -1), axis, t - 1)
        acc = z if acc is None else acc + z
    return jnp.maximum(acc + b_ref[...], 0.0)


# ----------------------------------------------------------------------------
# Fused Inception-A+ kernel
# ----------------------------------------------------------------------------

def _inception_aplus_kernel(x_ref,
                            w_b1_ref, b_b1_ref, w_b3_ref, b_b3_ref,
                            w_dbl_ref, b_dbl_ref, w_pool_ref, b_pool_ref,
                            w13_1_ref, b13_1_ref, w31_1_ref, b31_1_ref,
                            w13_2_ref, b13_2_ref, w31_2_ref, b31_2_ref,
                            w_aa_ref, b_aa_ref, w_bd_ref, b_bd_ref,
                            o_ref, *, cin, fma_stem):
    x = x_ref[...]                                        # [TB, H, W, Cin] f32
    tb, h, w, _ = x.shape

    if fma_stem:
        # Small Cin: 1x1 convs as Cin broadcast-FMAs on the VPU (no K=Cin MXU pass,
        # no masked 4/128-lane matmul operand).
        def stem_lin(w_ref):
            wt = w_ref[...].astype(jnp.float32)           # [Cin, Cout] (tiny)
            acc = x[..., 0:1] * wt[0:1, :]
            for c in range(1, cin):
                acc = acc + x[..., c:c + 1] * wt[c:c + 1, :]
            return acc                                    # [TB, H, W, Cout] f32
    else:
        xb = x.astype(jnp.bfloat16).reshape(tb * h * w, cin)

        def stem_lin(w_ref):
            z = jnp.dot(xb, w_ref[...], preferred_element_type=jnp.float32)
            return z.reshape(tb, h, w, -1)

    # Per-branch stem accumulators: no sub-128-lane slicing of a fused stem result.
    branch1x1 = jnp.maximum(stem_lin(w_b1_ref) + b_b1_ref[...], 0.0)     # 64 ch
    b3x3 = jnp.maximum(stem_lin(w_b3_ref) + b_b3_ref[...], 0.0)          # 64 ch
    dbl = jnp.maximum(stem_lin(w_dbl_ref) + b_dbl_ref[...], 0.0)         # 48 ch
    pool_lin = stem_lin(w_pool_ref)     # pool-branch 1x1 applied BEFORE pooling

    # Residual factorized-3x3 branch: relu(1x3), relu(3x1), + residual, relu (x2).
    res = b3x3
    t = _conv3_bias_relu(b3x3, w13_1_ref, b13_1_ref, axis=2)
    t = _conv3_bias_relu(t, w31_1_ref, b31_1_ref, axis=1)
    b3x3 = jnp.maximum(t + res, 0.0)
    res = b3x3
    t = _conv3_bias_relu(b3x3, w13_2_ref, b13_2_ref, axis=2)
    t = _conv3_bias_relu(t, w31_2_ref, b31_2_ref, axis=1)
    b3x3 = jnp.maximum(t + res, 0.0)

    # Double branch: 2a|3a fused 1x3 conv (same 48-ch input), then 2b (+) 3b as one
    # block-diagonal 3x1 conv -> d1||d2 already concatenated (96 ch).
    d_a = _conv3_bias_relu(dbl, w_aa_ref, b_aa_ref, axis=2)
    dbl_out = _conv3_bias_relu(d_a, w_bd_ref, b_bd_ref, axis=1)

    # Pool branch: 3x3 avg-pool (stride 1, pad 1, count_include_pad -> /9) of the
    # 1x1-conv result (linear commute), then folded-BN bias + ReLU.
    p = _shift(pool_lin, 2, -1) + pool_lin + _shift(pool_lin, 2, +1)
    p = _shift(p, 1, -1) + p + _shift(p, 1, +1)
    branch_pool = jnp.maximum(p * (1.0 / 9.0) + b_pool_ref[...], 0.0)

    # Write each branch straight into the 256-lane output slab (no lane concat).
    c1 = branch1x1.shape[-1]
    c3 = b3x3.shape[-1]
    cd = dbl_out.shape[-1]
    cp = branch_pool.shape[-1]
    o_ref[:, :, :, 0:c1] = branch1x1.astype(o_ref.dtype)
    o_ref[:, :, :, c1:c1 + c3] = b3x3.astype(o_ref.dtype)
    o_ref[:, :, :, c1 + c3:c1 + c3 + cd] = dbl_out.astype(o_ref.dtype)
    o_ref[:, :, :, c1 + c3 + cd:c1 + c3 + cd + cp] = branch_pool.astype(o_ref.dtype)


# ----------------------------------------------------------------------------
# pallas_call wrapper
# ----------------------------------------------------------------------------

def _const_index_map(ndim):
    def im(n):
        return (0,) * ndim
    return im


def _choose_tb(n, per_image_bytes, *, min_programs=2, act_budget_bytes=8 * 2**20):
    """Largest batch block TB that divides N, keeps >= min_programs grid steps when N
    allows (feeds both TensorCores on v7x), and fits the per-step activation VMEM
    budget (sized conservatively for v7x's 64 MiB VMEM)."""
    best = 1
    for tb in range(1, n + 1):
        if n % tb:
            continue
        if tb * per_image_bytes > act_budget_bytes:
            continue
        if n >= min_programs and n // tb < min_programs:
            continue
        best = tb
    return best


def inception_aplus_forward(x_nchw, operands, *, nchw_output=False):
    """InceptionAplus.forward.  x_nchw: [N, Cin, H, W] (module layout).

    Returns NHWC [N, H, W, 256] by default (avoids the HBM round-trip of a host-side
    NHWC->NCHW writeback transpose); pass nchw_output=True for a drop-in NCHW result."""
    N, cin, H, W = x_nchw.shape
    # Input permute NCHW->NHWC stays host-side: it moves only N*Cin*H*W*4 B
    # (Cin=4 -> 64x smaller than the 256-channel output) and keeps the kernel
    # lane axis = channels throughout.
    x = jnp.transpose(x_nchw, (0, 2, 3, 1)).astype(jnp.float32)

    cp = operands[6].shape[-1]                            # pool_features (w_pool)
    c_out = 64 + 64 + 96 + cp
    fma_stem = cin <= 16

    per_image_bytes = H * W * 4 * (cin + 64 + 64 + 48 + cp + 3 * 96 + c_out)
    tb = _choose_tb(N, per_image_bytes)
    grid = (N // tb,)

    weight_bytes = sum(int(op.size) * op.dtype.itemsize for op in operands)
    io_bytes = 2 * tb * H * W * (cin + c_out) * 4         # double-buffered in/out blocks
    vmem_limit = int(min(48 * 2**20,
                         max(32 * 2**20,
                             2 * tb * per_image_bytes + weight_bytes + io_bytes)))

    kern = functools.partial(_inception_aplus_kernel, cin=cin, fma_stem=fma_stem)
    in_specs = [pl.BlockSpec((tb, H, W, cin), lambda n: (n, 0, 0, 0))]
    in_specs += [pl.BlockSpec(op.shape, _const_index_map(op.ndim)) for op in operands]

    out = pl.pallas_call(
        kern,
        out_shape=jax.ShapeDtypeStruct((N, H, W, c_out), jnp.float32),
        grid=grid,
        in_specs=in_specs,
        out_specs=pl.BlockSpec((tb, H, W, c_out), lambda n: (n, 0, 0, 0)),
        compiler_params=pltpu.CompilerParams(
            dimension_semantics=("parallel",),            # both TCs on v7x; harmless on v5e/v6e
            vmem_limit_bytes=vmem_limit),
    )(x, *operands)

    if nchw_output:
        out = jnp.transpose(out, (0, 3, 1, 2))
    return out


# ----------------------------------------------------------------------------
# Parameter construction (deterministic, synthetic) + host-side operand prep
# ----------------------------------------------------------------------------

def make_basic_conv_params(key, cin, cout, kh, kw):
    kconv, kbn = jax.random.split(key)
    fan_in = cin * kh * kw
    w = jax.random.normal(kconv, (kh * kw, cin, cout), jnp.float32) / jnp.sqrt(fan_in)
    k1, k2, k3, k4 = jax.random.split(kbn, 4)
    gamma = 1.0 + 0.1 * jax.random.normal(k1, (cout,), jnp.float32)
    beta = 0.1 * jax.random.normal(k2, (cout,), jnp.float32)
    running_mean = 0.1 * jax.random.normal(k3, (cout,), jnp.float32)
    running_var = jnp.abs(jax.random.normal(k4, (cout,), jnp.float32)) * 0.1 + 0.5
    scale = gamma / jnp.sqrt(running_var + 1e-3)          # BN eps = 0.001, eval-mode stats
    bias = beta - running_mean * scale
    return w, scale, bias


def make_inception_aplus_params(key, in_channels, pool_features):
    names_specs = [
        ("branch1x1",      (in_channels, 64, 1, 1)),
        ("branch3x3_1",    (in_channels, 64, 1, 1)),
        ("branch1x3_1",    (64, 64, 1, 3)),
        ("branch3x1_1",    (64, 64, 3, 1)),
        ("branch1x3_2",    (64, 64, 1, 3)),
        ("branch3x1_2",    (64, 64, 3, 1)),
        ("branch3x3dbl_1", (in_channels, 48, 1, 1)),
        ("branch3x3_2a",   (48, 48, 1, 3)),
        ("branch3x3_2b",   (48, 48, 3, 1)),
        ("branch3x3_3a",   (48, 48, 1, 3)),
        ("branch3x3_3b",   (48, 48, 3, 1)),
        # TODO(synk): branch3x3dbl_3 (3x3, 96->96) is declared in __init__ but never
        # used in forward(); omitted here.
        ("branch_pool",    (in_channels, pool_features, 1, 1)),
    ]
    keys = jax.random.split(key, len(names_specs))
    params = {}
    for k, (name, (cin, cout, kh, kw)) in zip(keys, names_specs):
        params[name] = make_basic_conv_params(k, cin, cout, kh, kw)
    return params


def _fold(entry):
    """Fold eval-mode BN scale into the conv weight.

    Returns ([taps, Cin, Cout] bf16 weight, [1, Cout] f32 bias)."""
    w, scale, bias = entry
    wf = (w * scale[None, None, :]).astype(jnp.bfloat16)
    return wf, bias.reshape(1, -1).astype(jnp.float32)


def prep_operands(params):
    w_b1, b_b1 = _fold(params["branch1x1"])
    w_b3, b_b3 = _fold(params["branch3x3_1"])
    w_dbl, b_dbl = _fold(params["branch3x3dbl_1"])
    w_pool, b_pool = _fold(params["branch_pool"])
    w_b1, w_b3, w_dbl, w_pool = w_b1[0], w_b3[0], w_dbl[0], w_pool[0]   # [Cin, Cout]

    w13_1, b13_1 = _fold(params["branch1x3_1"])            # [3, 64, 64]
    w31_1, b31_1 = _fold(params["branch3x1_1"])
    w13_2, b13_2 = _fold(params["branch1x3_2"])
    w31_2, b31_2 = _fold(params["branch3x1_2"])

    # 2a | 3a share the same 48-ch input -> fuse along Cout.
    w2a, b2a = _fold(params["branch3x3_2a"])
    w3a, b3a = _fold(params["branch3x3_3a"])
    w_aa = jnp.concatenate([w2a, w3a], axis=2)              # [3, 48, 96]
    b_aa = jnp.concatenate([b2a, b3a], axis=1)               # [1, 96]

    # 2b (+) 3b as one block-diagonal 3x1 conv on the 96-ch (2a|3a) result.
    w2b, b2b = _fold(params["branch3x3_2b"])
    w3b, b3b = _fold(params["branch3x3_3b"])
    zero = jnp.zeros_like(w2b)
    w_bd = jnp.concatenate(
        [jnp.concatenate([w2b, zero], axis=2),
         jnp.concatenate([zero, w3b], axis=2)], axis=1)      # [3, 96, 96]
    b_bd = jnp.concatenate([b2b, b3b], axis=1)               # [1, 96]

    return (w_b1, b_b1, w_b3, b_b3, w_dbl, b_dbl, w_pool, b_pool,
            w13_1, b13_1, w31_1, b31_1, w13_2, b13_2, w31_2, b31_2,
            w_aa, b_aa, w_bd, b_bd)


# ----------------------------------------------------------------------------
# Main
# ----------------------------------------------------------------------------

if __name__ == "__main__":
    in_channels = 4
    pool_features = 32
    N, H, W = 2, 16, 16

    key = jax.random.PRNGKey(0)
    kx, kp = jax.random.split(key)
    x = jax.random.normal(kx, (N, in_channels, H, W), jnp.float32)   # NCHW, as the torch module
    params = make_inception_aplus_params(kp, in_channels, pool_features)
    ops = prep_operands(params)

    # NHWC output by default: skips the host-side NHWC->NCHW writeback transpose.
    fwd = jax.jit(lambda xx: inception_aplus_forward(xx, ops))
    out = jax.block_until_ready(fwd(x))

    expected_channels = 64 + 64 + 96 + pool_features
    assert out.shape == (N, H, W, expected_channels), out.shape
    assert out.dtype == jnp.float32
    assert bool(jnp.all(jnp.isfinite(out)))

    print("KERNEL_OK")
</pallas_src>

<mosaic_0001>
module attributes {stable_mosaic.version = 11 : i64} {
  func.func @_inception_aplus_kernel(%arg0: i32, %arg1: memref<1x16x16x4xf32, #tpu.memory_space<vmem>>, %arg2: memref<4x64xbf16, #tpu.memory_space<vmem>>, %arg3: memref<1x64xf32, #tpu.memory_space<vmem>>, %arg4: memref<4x64xbf16, #tpu.memory_space<vmem>>, %arg5: memref<1x64xf32, #tpu.memory_space<vmem>>, %arg6: memref<4x48xbf16, #tpu.memory_space<vmem>>, %arg7: memref<1x48xf32, #tpu.memory_space<vmem>>, %arg8: memref<4x32xbf16, #tpu.memory_space<vmem>>, %arg9: memref<1x32xf32, #tpu.memory_space<vmem>>, %arg10: memref<3x64x64xbf16, #tpu.memory_space<vmem>>, %arg11: memref<1x64xf32, #tpu.memory_space<vmem>>, %arg12: memref<3x64x64xbf16, #tpu.memory_space<vmem>>, %arg13: memref<1x64xf32, #tpu.memory_space<vmem>>, %arg14: memref<3x64x64xbf16, #tpu.memory_space<vmem>>, %arg15: memref<1x64xf32, #tpu.memory_space<vmem>>, %arg16: memref<3x64x64xbf16, #tpu.memory_space<vmem>>, %arg17: memref<1x64xf32, #tpu.memory_space<vmem>>, %arg18: memref<3x48x96xbf16, #tpu.memory_space<vmem>>, %arg19: memref<1x96xf32, #tpu.memory_space<vmem>>, %arg20: memref<3x96x96xbf16, #tpu.memory_space<vmem>>, %arg21: memref<1x96xf32, #tpu.memory_space<vmem>>, %arg22: memref<1x16x16x256xf32, #tpu.memory_space<vmem>>) attributes {dimension_semantics = [#tpu.dimension_semantics<parallel>], iteration_bounds = array<i64: 2>, scalar_prefetch = 0 : i64, scratch_operands = 0 : i64, tpu.core_type = #tpu.core_type<tc>, window_params = [{transform_indices = @transform_0, window_bounds = array<i64: 1, 16, 16, 4>}, {pipeline_mode = #tpu.pipeline_mode<synchronous>, transform_indices = @transform_1, window_bounds = array<i64: 4, 64>}, {pipeline_mode = #tpu.pipeline_mode<synchronous>, transform_indices = @transform_2, window_bounds = array<i64: 1, 64>}, {pipeline_mode = #tpu.pipeline_mode<synchronous>, transform_indices = @transform_3, window_bounds = array<i64: 4, 64>}, {pipeline_mode = #tpu.pipeline_mode<synchronous>, transform_indices = @transform_4, window_bounds = array<i64: 1, 64>}, {pipeline_mode = #tpu.pipeline_mode<synchronous>, transform_indices = @transform_5, window_bounds = array<i64: 4, 48>}, {pipeline_mode = #tpu.pipeline_mode<synchronous>, transform_indices = @transform_6, window_bounds = array<i64: 1, 48>}, {pipeline_mode = #tpu.pipeline_mode<synchronous>, transform_indices = @transform_7, window_bounds = array<i64: 4, 32>}, {pipeline_mode = #tpu.pipeline_mode<synchronous>, transform_indices = @transform_8, window_bounds = array<i64: 1, 32>}, {pipeline_mode = #tpu.pipeline_mode<synchronous>, transform_indices = @transform_9, window_bounds = array<i64: 3, 64, 64>}, {pipeline_mode = #tpu.pipeline_mode<synchronous>, transform_indices = @transform_10, window_bounds = array<i64: 1, 64>}, {pipeline_mode = #tpu.pipeline_mode<synchronous>, transform_indices = @transform_11, window_bounds = array<i64: 3, 64, 64>}, {pipeline_mode = #tpu.pipeline_mode<synchronous>, transform_indices = @transform_12, window_bounds = array<i64: 1, 64>}, {pipeline_mode = #tpu.pipeline_mode<synchronous>, transform_indices = @transform_13, window_bounds = array<i64: 3, 64, 64>}, {pipeline_mode = #tpu.pipeline_mode<synchronous>, transform_indices = @transform_14, window_bounds = array<i64: 1, 64>}, {pipeline_mode = #tpu.pipeline_mode<synchronous>, transform_indices = @transform_15, window_bounds = array<i64: 3, 64, 64>}, {pipeline_mode = #tpu.pipeline_mode<synchronous>, transform_indices = @transform_16, window_bounds = array<i64: 1, 64>}, {pipeline_mode = #tpu.pipeline_mode<synchronous>, transform_indices = @transform_17, window_bounds = array<i64: 3, 48, 96>}, {pipeline_mode = #tpu.pipeline_mode<synchronous>, transform_indices = @transform_18, window_bounds = array<i64: 1, 96>}, {pipeline_mode = #tpu.pipeline_mode<synchronous>, transform_indices = @transform_19, window_bounds = array<i64: 3, 96, 96>}, {pipeline_mode = #tpu.pipeline_mode<synchronous>, transform_indices = @transform_20, window_bounds = array<i64: 1, 96>}, {transform_indices = @transform_21, window_bounds = array<i64: 1, 16, 16, 256>}]} {
    %c0 = arith.constant 0 : index
    %c0_0 = arith.constant 0 : index
    %c0_1 = arith.constant 0 : index
    %c0_2 = arith.constant 0 : index
    %0 = vector.load %arg1[%c0, %c0_0, %c0_1, %c0_2] : memref<1x16x16x4xf32, #tpu.memory_space<vmem>>, vector<1x16x16x4xf32>
    %c0_3 = arith.constant 0 : index
    %c0_4 = arith.constant 0 : index
    %1 = vector.load %arg2[%c0_3, %c0_4] : memref<4x64xbf16, #tpu.memory_space<vmem>>, vector<4x64xbf16>
    %2 = arith.extf %1 : vector<4x64xbf16> to vector<4x64xf32>
    %3 = vector.extract_strided_slice %0 {offsets = [0, 0, 0, 0], sizes = [1, 16, 16, 1], strides = [1, 1, 1, 1]} : vector<1x16x16x4xf32> to vector<1x16x16x1xf32>
    %4 = vector.extract_strided_slice %2 {offsets = [0, 0], sizes = [1, 64], strides = [1, 1]} : vector<4x64xf32> to vector<1x64xf32>
    %5 = vector.shape_cast %4 : vector<1x64xf32> to vector<1x1x1x64xf32>
    %6 = vector.broadcast %3 : vector<1x16x16x1xf32> to vector<1x16x16x64xf32>
    %7 = vector.broadcast %5 : vector<1x1x1x64xf32> to vector<1x16x16x64xf32>
    %8 = arith.mulf %6, %7 : vector<1x16x16x64xf32>
    %9 = vector.extract_strided_slice %0 {offsets = [0, 0, 0, 1], sizes = [1, 16, 16, 1], strides = [1, 1, 1, 1]} : vector<1x16x16x4xf32> to vector<1x16x16x1xf32>
    %10 = vector.extract_strided_slice %2 {offsets = [1, 0], sizes = [1, 64], strides = [1, 1]} : vector<4x64xf32> to vector<1x64xf32>
    %11 = vector.shape_cast %10 : vector<1x64xf32> to vector<1x1x1x64xf32>
    %12 = vector.broadcast %9 : vector<1x16x16x1xf32> to vector<1x16x16x64xf32>
    %13 = vector.broadcast %11 : vector<1x1x1x64xf32> to vector<1x16x16x64xf32>
    %14 = arith.mulf %12, %13 : vector<1x16x16x64xf32>
    %15 = arith.addf %8, %14 : vector<1x16x16x64xf32>
    %16 = vector.extract_strided_slice %0 {offsets = [0, 0, 0, 2], sizes = [1, 16, 16, 1], strides = [1, 1, 1, 1]} : vector<1x16x16x4xf32> to vector<1x16x16x1xf32>
    %17 = vector.extract_strided_slice %2 {offsets = [2, 0], sizes = [1, 64], strides = [1, 1]} : vector<4x64xf32> to vector<1x64xf32>
    %18 = vector.shape_cast %17 : vector<1x64xf32> to vector<1x1x1x64xf32>
    %19 = vector.broadcast %16 : vector<1x16x16x1xf32> to vector<1x16x16x64xf32>
    %20 = vector.broadcast %18 : vector<1x1x1x64xf32> to vector<1x16x16x64xf32>
    %21 = arith.mulf %19, %20 : vector<1x16x16x64xf32>
    %22 = arith.addf %15, %21 : vector<1x16x16x64xf32>
    %23 = vector.extract_strided_slice %0 {offsets = [0, 0, 0, 3], sizes = [1, 16, 16, 1], strides = [1, 1, 1, 1]} : vector<1x16x16x4xf32> to vector<1x16x16x1xf32>
    %24 = vector.extract_strided_slice %2 {offsets = [3, 0], sizes = [1, 64], strides = [1, 1]} : vector<4x64xf32> to vector<1x64xf32>
    %25 = vector.shape_cast %24 : vector<1x64xf32> to vector<1x1x1x64xf32>
    %26 = vector.broadcast %23 : vector<1x16x16x1xf32> to vector<1x16x16x64xf32>
    %27 = vector.broadcast %25 : vector<1x1x1x64xf32> to vector<1x16x16x64xf32>
    %28 = arith.mulf %26, %27 : vector<1x16x16x64xf32>
    %29 = arith.addf %22, %28 : vector<1x16x16x64xf32>
    %c0_5 = arith.constant 0 : index
    %c0_6 = arith.constant 0 : index
    %30 = vector.load %arg3[%c0_5, %c0_6] : memref<1x64xf32, #tpu.memory_space<vmem>>, vector<1x64xf32>
    %31 = vector.shape_cast %30 : vector<1x64xf32> to vector<1x1x1x64xf32>
    %32 = vector.broadcast %31 : vector<1x1x1x64xf32> to vector<1x16x16x64xf32>
    %33 = arith.addf %29, %32 : vector<1x16x16x64xf32>
    %cst = arith.constant 0.000000e+00 : f32
    %34 = vector.broadcast %cst : f32 to vector<1x16x16x64xf32>
    %35 = arith.maximumf %33, %34 : vector<1x16x16x64xf32>
    %c0_7 = arith.constant 0 : index
    %c0_8 = arith.constant 0 : index
    %36 = vector.load %arg4[%c0_7, %c0_8] : memref<4x64xbf16, #tpu.memory_space<vmem>>, vector<4x64xbf16>
    %37 = arith.extf %36 : vector<4x64xbf16> to vector<4x64xf32>
    %38 = vector.extract_strided_slice %0 {offsets = [0, 0, 0, 0], sizes = [1, 16, 16, 1], strides = [1, 1, 1, 1]} : vector<1x16x16x4xf32> to vector<1x16x16x1xf32>
    %39 = vector.extract_strided_slice %37 {offsets = [0, 0], sizes = [1, 64], strides = [1, 1]} : vector<4x64xf32> to vector<1x64xf32>
    %40 = vector.shape_cast %39 : vector<1x64xf32> to vector<1x1x1x64xf32>
    %41 = vector.broadcast %38 : vector<1x16x16x1xf32> to vector<1x16x16x64xf32>
    %42 = vector.broadcast %40 : vector<1x1x1x64xf32> to vector<1x16x16x64xf32>
    %43 = arith.mulf %41, %42 : vector<1x16x16x64xf32>
    %44 = vector.extract_strided_slice %0 {offsets = [0, 0, 0, 1], sizes = [1, 16, 16, 1], strides = [1, 1, 1, 1]} : vector<1x16x16x4xf32> to vector<1x16x16x1xf32>
    %45 = vector.extract_strided_slice %37 {offsets = [1, 0], sizes = [1, 64], strides = [1, 1]} : vector<4x64xf32> to vector<1x64xf32>
    %46 = vector.shape_cast %45 : vector<1x64xf32> to vector<1x1x1x64xf32>
    %47 = vector.broadcast %44 : vector<1x16x16x1xf32> to vector<1x16x16x64xf32>
    %48 = vector.broadcast %46 : vector<1x1x1x64xf32> to vector<1x16x16x64xf32>
    %49 = arith.mulf %47, %48 : vector<1x16x16x64xf32>
    %50 = arith.addf %43, %49 : vector<1x16x16x64xf32>
    %51 = vector.extract_strided_slice %0 {offsets = [0, 0, 0, 2], sizes = [1, 16, 16, 1], strides = [1, 1, 1, 1]} : vector<1x16x16x4xf32> to vector<1x16x16x1xf32>
    %52 = vector.extract_strided_slice %37 {offsets = [2, 0], sizes = [1, 64], strides = [1, 1]} : vector<4x64xf32> to vector<1x64xf32>
    %53 = vector.shape_cast %52 : vector<1x64xf32> to vector<1x1x1x64xf32>
    %54 = vector.broadcast %51 : vector<1x16x16x1xf32> to vector<1x16x16x64xf32>
    %55 = vector.broadcast %53 : vector<1x1x1x64xf32> to vector<1x16x16x64xf32>
    %56 = arith.mulf %54, %55 : vector<1x16x16x64xf32>
    %57 = arith.addf %50, %56 : vector<1x16x16x64xf32>
    %58 = vector.extract_strided_slice %0 {offsets = [0, 0, 0, 3], sizes = [1, 16, 16, 1], strides = [1, 1, 1, 1]} : vector<1x16x16x4xf32> to vector<1x16x16x1xf32>
    %59 = vector.extract_strided_slice %37 {offsets = [3, 0], sizes = [1, 64], strides = [1, 1]} : vector<4x64xf32> to vector<1x64xf32>
    %60 = vector.shape_cast %59 : vector<1x64xf32> to vector<1x1x1x64xf32>
    %61 = vector.broadcast %58 : vector<1x16x16x1xf32> to vector<1x16x16x64xf32>
    %62 = vector.broadcast %60 : vector<1x1x1x64xf32> to vector<1x16x16x64xf32>
    %63 = arith.mulf %61, %62 : vector<1x16x16x64xf32>
    %64 = arith.addf %57, %63 : vector<1x16x16x64xf32>
    %c0_9 = arith.constant 0 : index
    %c0_10 = arith.constant 0 : index
    %65 = vector.load %arg5[%c0_9, %c0_10] : memref<1x64xf32, #tpu.memory_space<vmem>>, vector<1x64xf32>
    %66 = vector.shape_cast %65 : vector<1x64xf32> to vector<1x1x1x64xf32>
    %67 = vector.broadcast %66 : vector<1x1x1x64xf32> to vector<1x16x16x64xf32>
    %68 = arith.addf %64, %67 : vector<1x16x16x64xf32>
    %cst_11 = arith.constant 0.000000e+00 : f32
    %69 = vector.broadcast %cst_11 : f32 to vector<1x16x16x64xf32>
    %70 = arith.maximumf %68, %69 : vector<1x16x16x64xf32>
    %c0_12 = arith.constant 0 : index
    %c0_13 = arith.constant 0 : index
    %71 = vector.load %arg6[%c0_12, %c0_13] : memref<4x48xbf16, #tpu.memory_space<vmem>>, vector<4x48xbf16>
    %72 = arith.extf %71 : vector<4x48xbf16> to vector<4x48xf32>
    %73 = vector.extract_strided_slice %0 {offsets = [0, 0, 0, 0], sizes = [1, 16, 16, 1], strides = [1, 1, 1, 1]} : vector<1x16x16x4xf32> to vector<1x16x16x1xf32>
    %74 = vector.extract_strided_slice %72 {offsets = [0, 0], sizes = [1, 48], strides = [1, 1]} : vector<4x48xf32> to vector<1x48xf32>
    %75 = vector.shape_cast %74 : vector<1x48xf32> to vector<1x1x1x48xf32>
    %76 = vector.broadcast %73 : vector<1x16x16x1xf32> to vector<1x16x16x48xf32>
    %77 = vector.broadcast %75 : vector<1x1x1x48xf32> to vector<1x16x16x48xf32>
    %78 = arith.mulf %76, %77 : vector<1x16x16x48xf32>
    %79 = vector.extract_strided_slice %0 {offsets = [0, 0, 0, 1], sizes = [1, 16, 16, 1], strides = [1, 1, 1, 1]} : vector<1x16x16x4xf32> to vector<1x16x16x1xf32>
    %80 = vector.extract_strided_slice %72 {offsets = [1, 0], sizes = [1, 48], strides = [1, 1]} : vector<4x48xf32> to vector<1x48xf32>
    %81 = vector.shape_cast %80 : vector<1x48xf32> to vector<1x1x1x48xf32>
    %82 = vector.broadcast %79 : vector<1x16x16x1xf32> to vector<1x16x16x48xf32>
    %83 = vector.broadcast %81 : vector<1x1x1x48xf32> to vector<1x16x16x48xf32>
    %84 = arith.mulf %82, %83 : vector<1x16x16x48xf32>
    %85 = arith.addf %78, %84 : vector<1x16x16x48xf32>
    %86 = vector.extract_strided_slice %0 {offsets = [0, 0, 0, 2], sizes = [1, 16, 16, 1], strides = [1, 1, 1, 1]} : vector<1x16x16x4xf32> to vector<1x16x16x1xf32>
    %87 = vector.extract_strided_slice %72 {offsets = [2, 0], sizes = [1, 48], strides = [1, 1]} : vector<4x48xf32> to vector<1x48xf32>
    %88 = vector.shape_cast %87 : vector<1x48xf32> to vector<1x1x1x48xf32>
    %89 = vector.broadcast %86 : vector<1x16x16x1xf32> to vector<1x16x16x48xf32>
    %90 = vector.broadcast %88 : vector<1x1x1x48xf32> to vector<1x16x16x48xf32>
    %91 = arith.mulf %89, %90 : vector<1x16x16x48xf32>
    %92 = arith.addf %85, %91 : vector<1x16x16x48xf32>
    %93 = vector.extract_strided_slice %0 {offsets = [0, 0, 0, 3], sizes = [1, 16, 16, 1], strides = [1, 1, 1, 1]} : vector<1x16x16x4xf32> to vector<1x16x16x1xf32>
    %94 = vector.extract_strided_slice %72 {offsets = [3, 0], sizes = [1, 48], strides = [1, 1]} : vector<4x48xf32> to vector<1x48xf32>
    %95 = vector.shape_cast %94 : vector<1x48xf32> to vector<1x1x1x48xf32>
    %96 = vector.broadcast %93 : vector<1x16x16x1xf32> to vector<1x16x16x48xf32>
    %97 = vector.broadcast %95 : vector<1x1x1x48xf32> to vector<1x16x16x48xf32>
    %98 = arith.mulf %96, %97 : vector<1x16x16x48xf32>
    %99 = arith.addf %92, %98 : vector<1x16x16x48xf32>
    %c0_14 = arith.constant 0 : index
    %c0_15 = arith.constant 0 : index
    %100 = vector.load %arg7[%c0_14, %c0_15] : memref<1x48xf32, #tpu.memory_space<vmem>>, vector<1x48xf32>
    %101 = vector.shape_cast %100 : vector<1x48xf32> to vector<1x1x1x48xf32>
    %102 = vector.broadcast %101 : vector<1x1x1x48xf32> to vector<1x16x16x48xf32>
    %103 = arith.addf %99, %102 : vector<1x16x16x48xf32>
    %cst_16 = arith.constant 0.000000e+00 : f32
    %104 = vector.broadcast %cst_16 : f32 to vector<1x16x16x48xf32>
    %105 = arith.maximumf %103, %104 : vector<1x16x16x48xf32>
    %c0_17 = arith.constant 0 : index
    %c0_18 = arith.constant 0 : index
    %106 = vector.load %arg8[%c0_17, %c0_18] : memref<4x32xbf16, #tpu.memory_space<vmem>>, vector<4x32xbf16>
    %107 = arith.extf %106 : vector<4x32xbf16> to vector<4x32xf32>
    %108 = vector.extract_strided_slice %0 {offsets = [0, 0, 0, 0], sizes = [1, 16, 16, 1], strides = [1, 1, 1, 1]} : vector<1x16x16x4xf32> to vector<1x16x16x1xf32>
    %109 = vector.extract_strided_slice %107 {offsets = [0, 0], sizes = [1, 32], strides = [1, 1]} : vector<4x32xf32> to vector<1x32xf32>
    %110 = vector.shape_cast %109 : vector<1x32xf32> to vector<1x1x1x32xf32>
    %111 = vector.broadcast %108 : vector<1x16x16x1xf32> to vector<1x16x16x32xf32>
    %112 = vector.broadcast %110 : vector<1x1x1x32xf32> to vector<1x16x16x32xf32>
    %113 = arith.mulf %111, %112 : vector<1x16x16x32xf32>
    %114 = vector.extract_strided_slice %0 {offsets = [0, 0, 0, 1], sizes = [1, 16, 16, 1], strides = [1, 1, 1, 1]} : vector<1x16x16x4xf32> to vector<1x16x16x1xf32>
    %115 = vector.extract_strided_slice %107 {offsets = [1, 0], sizes = [1, 32], strides = [1, 1]} : vector<4x32xf32> to vector<1x32xf32>
    %116 = vector.shape_cast %115 : vector<1x32xf32> to vector<1x1x1x32xf32>
    %117 = vector.broadcast %114 : vector<1x16x16x1xf32> to vector<1x16x16x32xf32>
    %118 = vector.broadcast %116 : vector<1x1x1x32xf32> to vector<1x16x16x32xf32>
    %119 = arith.mulf %117, %118 : vector<1x16x16x32xf32>
    %120 = arith.addf %113, %119 : vector<1x16x16x32xf32>
    %121 = vector.extract_strided_slice %0 {offsets = [0, 0, 0, 2], sizes = [1, 16, 16, 1], strides = [1, 1, 1, 1]} : vector<1x16x16x4xf32> to vector<1x16x16x1xf32>
    %122 = vector.extract_strided_slice %107 {offsets = [2, 0], sizes = [1, 32], strides = [1, 1]} : vector<4x32xf32> to vector<1x32xf32>
    %123 = vector.shape_cast %122 : vector<1x32xf32> to vector<1x1x1x32xf32>
    %124 = vector.broadcast %121 : vector<1x16x16x1xf32> to vector<1x16x16x32xf32>
    %125 = vector.broadcast %123 : vector<1x1x1x32xf32> to vector<1x16x16x32xf32>
    %126 = arith.mulf %124, %125 : vector<1x16x16x32xf32>
    %127 = arith.addf %120, %126 : vector<1x16x16x32xf32>
    %128 = vector.extract_strided_slice %0 {offsets = [0, 0, 0, 3], sizes = [1, 16, 16, 1], strides = [1, 1, 1, 1]} : vector<1x16x16x4xf32> to vector<1x16x16x1xf32>
    %129 = vector.extract_strided_slice %107 {offsets = [3, 0], sizes = [1, 32], strides = [1, 1]} : vector<4x32xf32> to vector<1x32xf32>
    %130 = vector.shape_cast %129 : vector<1x32xf32> to vector<1x1x1x32xf32>
    %131 = vector.broadcast %128 : vector<1x16x16x1xf32> to vector<1x16x16x32xf32>
    %132 = vector.broadcast %130 : vector<1x1x1x32xf32> to vector<1x16x16x32xf32>
    %133 = arith.mulf %131, %132 : vector<1x16x16x32xf32>
    %134 = arith.addf %127, %133 : vector<1x16x16x32xf32>
    %135 = arith.truncf %70 : vector<1x16x16x64xf32> to vector<1x16x16x64xbf16>
    %136 = vector.shape_cast %135 : vector<1x16x16x64xbf16> to vector<256x64xbf16>
    %c0_19 = arith.constant 0 : index
    %c0_20 = arith.constant 0 : index
    %c0_21 = arith.constant 0 : index
    %137 = vector.load %arg10[%c0_19, %c0_20, %c0_21] : memref<3x64x64xbf16, #tpu.memory_space<vmem>>, vector<1x64x64xbf16>
    %138 = vector.shape_cast %137 : vector<1x64x64xbf16> to vector<64x64xbf16>
    %cst_22 = arith.constant dense<0.000000e+00> : vector<256x64xf32>
    %139 = tpu.matmul %136, %138, %cst_22 {dimension_numbers = #tpu.dot_dimension_numbers<[1], [0], [0], [1], [0, 0, 1, 1], [], []>} : vector<256x64xbf16>, vector<64x64xbf16>, vector<256x64xf32> -> vector<256x64xf32>
    %140 = vector.shape_cast %139 : vector<256x64xf32> to vector<1x16x16x64xf32>
    %cst_23 = arith.constant 0.000000e+00 : f32
    %141 = vector.broadcast %cst_23 : f32 to vector<1x16x1x64xf32>
    %142 = vector.extract_strided_slice %140 {offsets = [0, 0, 0, 0], sizes = [1, 16, 15, 64], strides = [1, 1, 1, 1]} : vector<1x16x16x64xf32> to vector<1x16x15x64xf32>
    %143 = tpu.concatenate %141, %142 in 2 : vector<1x16x1x64xf32>, vector<1x16x15x64xf32> -> vector<1x16x16x64xf32>
    %c1 = arith.constant 1 : index
    %c0_24 = arith.constant 0 : index
    %c0_25 = arith.constant 0 : index
    %144 = vector.load %arg10[%c1, %c0_24, %c0_25] : memref<3x64x64xbf16, #tpu.memory_space<vmem>>, vector<1x64x64xbf16>
    %145 = vector.shape_cast %144 : vector<1x64x64xbf16> to vector<64x64xbf16>
    %cst_26 = arith.constant dense<0.000000e+00> : vector<256x64xf32>
    %146 = tpu.matmul %136, %145, %cst_26 {dimension_numbers = #tpu.dot_dimension_numbers<[1], [0], [0], [1], [0, 0, 1, 1], [], []>} : vector<256x64xbf16>, vector<64x64xbf16>, vector<256x64xf32> -> vector<256x64xf32>
    %147 = vector.shape_cast %146 : vector<256x64xf32> to vector<1x16x16x64xf32>
    %148 = arith.addf %143, %147 : vector<1x16x16x64xf32>
    %c2 = arith.constant 2 : index
    %c0_27 = arith.constant 0 : index
    %c0_28 = arith.constant 0 : index
    %149 = vector.load %arg10[%c2, %c0_27, %c0_28] : memref<3x64x64xbf16, #tpu.memory_space<vmem>>, vector<1x64x64xbf16>
    %150 = vector.shape_cast %149 : vector<1x64x64xbf16> to vector<64x64xbf16>
    %cst_29 = arith.constant dense<0.000000e+00> : vector<256x64xf32>
    %151 = tpu.matmul %136, %150, %cst_29 {dimension_numbers = #tpu.dot_dimension_numbers<[1], [0], [0], [1], [0, 0, 1, 1], [], []>} : vector<256x64xbf16>, vector<64x64xbf16>, vector<256x64xf32> -> vector<256x64xf32>
    %152 = vector.shape_cast %151 : vector<256x64xf32> to vector<1x16x16x64xf32>
    %cst_30 = arith.constant 0.000000e+00 : f32
    %153 = vector.broadcast %cst_30 : f32 to vector<1x16x1x64xf32>
    %154 = vector.extract_strided_slice %152 {offsets = [0, 0, 1, 0], sizes = [1, 16, 15, 64], strides = [1, 1, 1, 1]} : vector<1x16x16x64xf32> to vector<1x16x15x64xf32>
    %155 = tpu.concatenate %154, %153 in 2 : vector<1x16x15x64xf32>, vector<1x16x1x64xf32> -> vector<1x16x16x64xf32>
    %156 = arith.addf %148, %155 : vector<1x16x16x64xf32>
    %c0_31 = arith.constant 0 : index
    %c0_32 = arith.constant 0 : index
    %157 = vector.load %arg11[%c0_31, %c0_32] : memref<1x64xf32, #tpu.memory_space<vmem>>, vector<1x64xf32>
    %158 = vector.shape_cast %157 : vector<1x64xf32> to vector<1x1x1x64xf32>
    %159 = vector.broadcast %158 : vector<1x1x1x64xf32> to vector<1x16x16x64xf32>
    %160 = arith.addf %156, %159 : vector<1x16x16x64xf32>
    %cst_33 = arith.constant 0.000000e+00 : f32
    %161 = vector.broadcast %cst_33 : f32 to vector<1x16x16x64xf32>
    %162 = arith.maximumf %160, %161 : vector<1x16x16x64xf32>
    %163 = arith.truncf %162 : vector<1x16x16x64xf32> to vector<1x16x16x64xbf16>
    %164 = vector.shape_cast %163 : vector<1x16x16x64xbf16> to vector<256x64xbf16>
    %c0_34 = arith.constant 0 : index
    %c0_35 = arith.constant 0 : index
    %c0_36 = arith.constant 0 : index
    %165 = vector.load %arg12[%c0_34, %c0_35, %c0_36] : memref<3x64x64xbf16, #tpu.memory_space<vmem>>, vector<1x64x64xbf16>
    %166 = vector.shape_cast %165 : vector<1x64x64xbf16> to vector<64x64xbf16>
    %cst_37 = arith.constant dense<0.000000e+00> : vector<256x64xf32>
    %167 = tpu.matmul %164, %166, %cst_37 {dimension_numbers = #tpu.dot_dimension_numbers<[1], [0], [0], [1], [0, 0, 1, 1], [], []>} : vector<256x64xbf16>, vector<64x64xbf16>, vector<256x64xf32> -> vector<256x64xf32>
    %168 = vector.shape_cast %167 : vector<256x64xf32> to vector<1x16x16x64xf32>
    %cst_38 = arith.constant 0.000000e+00 : f32
    %169 = vector.broadcast %cst_38 : f32 to vector<1x1x16x64xf32>
    %170 = vector.extract_strided_slice %168 {offsets = [0, 0, 0, 0], sizes = [1, 15, 16, 64], strides = [1, 1, 1, 1]} : vector<1x16x16x64xf32> to vector<1x15x16x64xf32>
    %171 = tpu.concatenate %169, %170 in 1 : vector<1x1x16x64xf32>, vector<1x15x16x64xf32> -> vector<1x16x16x64xf32>
    %c1_39 = arith.constant 1 : index
    %c0_40 = arith.constant 0 : index
    %c0_41 = arith.constant 0 : index
    %172 = vector.load %arg12[%c1_39, %c0_40, %c0_41] : memref<3x64x64xbf16, #tpu.memory_space<vmem>>, vector<1x64x64xbf16>
    %173 = vector.shape_cast %172 : vector<1x64x64xbf16> to vector<64x64xbf16>
    %cst_42 = arith.constant dense<0.000000e+00> : vector<256x64xf32>
    %174 = tpu.matmul %164, %173, %cst_42 {dimension_numbers = #tpu.dot_dimension_numbers<[1], [0], [0], [1], [0, 0, 1, 1], [], []>} : vector<256x64xbf16>, vector<64x64xbf16>, vector<256x64xf32> -> vector<256x64xf32>
    %175 = vector.shape_cast %174 : vector<256x64xf32> to vector<1x16x16x64xf32>
    %176 = arith.addf %171, %175 : vector<1x16x16x64xf32>
    %c2_43 = arith.constant 2 : index
    %c0_44 = arith.constant 0 : index
    %c0_45 = arith.constant 0 : index
    %177 = vector.load %arg12[%c2_43, %c0_44, %c0_45] : memref<3x64x64xbf16, #tpu.memory_space<vmem>>, vector<1x64x64xbf16>
    %178 = vector.shape_cast %177 : vector<1x64x64xbf16> to vector<64x64xbf16>
    %cst_46 = arith.constant dense<0.000000e+00> : vector<256x64xf32>
    %179 = tpu.matmul %164, %178, %cst_46 {dimension_numbers = #tpu.dot_dimension_numbers<[1], [0], [0], [1], [0, 0, 1, 1], [], []>} : vector<256x64xbf16>, vector<64x64xbf16>, vector<256x64xf32> -> vector<256x64xf32>
    %180 = vector.shape_cast %179 : vector<256x64xf32> to vector<1x16x16x64xf32>
    %cst_47 = arith.constant 0.000000e+00 : f32
    %181 = vector.broadcast %cst_47 : f32 to vector<1x1x16x64xf32>
    %182 = vector.extract_strided_slice %180 {offsets = [0, 1, 0, 0], sizes = [1, 15, 16, 64], strides = [1, 1, 1, 1]} : vector<1x16x16x64xf32> to vector<1x15x16x64xf32>
    %183 = tpu.concatenate %182, %181 in 1 : vector<1x15x16x64xf32>, vector<1x1x16x64xf32> -> vector<1x16x16x64xf32>
    %184 = arith.addf %176, %183 : vector<1x16x16x64xf32>
    %c0_48 = arith.constant 0 : index
    %c0_49 = arith.constant 0 : index
    %185 = vector.load %arg13[%c0_48, %c0_49] : memref<1x64xf32, #tpu.memory_space<vmem>>, vector<1x64xf32>
    %186 = vector.shape_cast %185 : vector<1x64xf32> to vector<1x1x1x64xf32>
    %187 = vector.broadcast %186 : vector<1x1x1x64xf32> to vector<1x16x16x64xf32>
    %188 = arith.addf %184, %187 : vector<1x16x16x64xf32>
    %cst_50 = arith.constant 0.000000e+00 : f32
    %189 = vector.broadcast %cst_50 : f32 to vector<1x16x16x64xf32>
    %190 = arith.maximumf %188, %189 : vector<1x16x16x64xf32>
    %191 = arith.addf %190, %70 : vector<1x16x16x64xf32>
    %cst_51 = arith.constant 0.000000e+00 : f32
    %192 = vector.broadcast %cst_51 : f32 to vector<1x16x16x64xf32>
    %193 = arith.maximumf %191, %192 : vector<1x16x16x64xf32>
    %194 = arith.truncf %193 : vector<1x16x16x64xf32> to vector<1x16x16x64xbf16>
    %195 = vector.shape_cast %194 : vector<1x16x16x64xbf16> to vector<256x64xbf16>
    %c0_52 = arith.constant 0 : index
    %c0_53 = arith.constant 0 : index
    %c0_54 = arith.constant 0 : index
    %196 = vector.load %arg14[%c0_52, %c0_53, %c0_54] : memref<3x64x64xbf16, #tpu.memory_space<vmem>>, vector<1x64x64xbf16>
    %197 = vector.shape_cast %196 : vector<1x64x64xbf16> to vector<64x64xbf16>
    %cst_55 = arith.constant dense<0.000000e+00> : vector<256x64xf32>
    %198 = tpu.matmul %195, %197, %cst_55 {dimension_numbers = #tpu.dot_dimension_numbers<[1], [0], [0], [1], [0, 0, 1, 1], [], []>} : vector<256x64xbf16>, vector<64x64xbf16>, vector<256x64xf32> -> vector<256x64xf32>
    %199 = vector.shape_cast %198 : vector<256x64xf32> to vector<1x16x16x64xf32>
    %cst_56 = arith.constant 0.000000e+00 : f32
    %200 = vector.broadcast %cst_56 : f32 to vector<1x16x1x64xf32>
    %201 = vector.extract_strided_slice %199 {offsets = [0, 0, 0, 0], sizes = [1, 16, 15, 64], strides = [1, 1, 1, 1]} : vector<1x16x16x64xf32> to vector<1x16x15x64xf32>
    %202 = tpu.concatenate %200, %201 in 2 : vector<1x16x1x64xf32>, vector<1x16x15x64xf32> -> vector<1x16x16x64xf32>
    %c1_57 = arith.constant 1 : index
    %c0_58 = arith.constant 0 : index
    %c0_59 = arith.constant 0 : index
    %203 = vector.load %arg14[%c1_57, %c0_58, %c0_59] : memref<3x64x64xbf16, #tpu.memory_space<vmem>>, vector<1x64x64xbf16>
    %204 = vector.shape_cast %203 : vector<1x64x64xbf16> to vector<64x64xbf16>
    %cst_60 = arith.constant dense<0.000000e+00> : vector<256x64xf32>
    %205 = tpu.matmul %195, %204, %cst_60 {dimension_numbers = #tpu.dot_dimension_numbers<[1], [0], [0], [1], [0, 0, 1, 1], [], []>} : vector<256x64xbf16>, vector<64x64xbf16>, vector<256x64xf32> -> vector<256x64xf32>
    %206 = vector.shape_cast %205 : vector<256x64xf32> to vector<1x16x16x64xf32>
    %207 = arith.addf %202, %206 : vector<1x16x16x64xf32>
    %c2_61 = arith.constant 2 : index
    %c0_62 = arith.constant 0 : index
    %c0_63 = arith.constant 0 : index
    %208 = vector.load %arg14[%c2_61, %c0_62, %c0_63] : memref<3x64x64xbf16, #tpu.memory_space<vmem>>, vector<1x64x64xbf16>
    %209 = vector.shape_cast %208 : vector<1x64x64xbf16> to vector<64x64xbf16>
    %cst_64 = arith.constant dense<0.000000e+00> : vector<256x64xf32>
    %210 = tpu.matmul %195, %209, %cst_64 {dimension_numbers = #tpu.dot_dimension_numbers<[1], [0], [0], [1], [0, 0, 1, 1], [], []>} : vector<256x64xbf16>, vector<64x64xbf16>, vector<256x64xf32> -> vector<256x64xf32>
    %211 = vector.shape_cast %210 : vector<256x64xf32> to vector<1x16x16x64xf32>
    %cst_65 = arith.constant 0.000000e+00 : f32
    %212 = vector.broadcast %cst_65 : f32 to vector<1x16x1x64xf32>
    %213 = vector.extract_strided_slice %211 {offsets = [0, 0, 1, 0], sizes = [1, 16, 15, 64], strides = [1, 1, 1, 1]} : vector<1x16x16x64xf32> to vector<1x16x15x64xf32>
    %214 = tpu.concatenate %213, %212 in 2 : vector<1x16x15x64xf32>, vector<1x16x1x64xf32> -> vector<1x16x16x64xf32>
    %215 = arith.addf %207, %214 : vector<1x16x16x64xf32>
    %c0_66 = arith.constant 0 : index
    %c0_67 = arith.constant 0 : index
    %216 = vector.load %arg15[%c0_66, %c0_67] : memref<1x64xf32, #tpu.memory_space<vmem>>, vector<1x64xf32>
    %217 = vector.shape_cast %216 : vector<1x64xf32> to vector<1x1x1x64xf32>
    %218 = vector.broadcast %217 : vector<1x1x1x64xf32> to vector<1x16x16x64xf32>
    %219 = arith.addf %215, %218 : vector<1x16x16x64xf32>
    %cst_68 = arith.constant 0.000000e+00 : f32
    %220 = vector.broadcast %cst_68 : f32 to vector<1x16x16x64xf32>
    %221 = arith.maximumf %219, %220 : vector<1x16x16x64xf32>
    %222 = arith.truncf %221 : vector<1x16x16x64xf32> to vector<1x16x16x64xbf16>
    %223 = vector.shape_cast %222 : vector<1x16x16x64xbf16> to vector<256x64xbf16>
    %c0_69 = arith.constant 0 : index
    %c0_70 = arith.constant 0 : index
    %c0_71 = arith.constant 0 : index
    %224 = vector.load %arg16[%c0_69, %c0_70, %c0_71] : memref<3x64x64xbf16, #tpu.memory_space<vmem>>, vector<1x64x64xbf16>
    %225 = vector.shape_cast %224 : vector<1x64x64xbf16> to vector<64x64xbf16>
    %cst_72 = arith.constant dense<0.000000e+00> : vector<256x64xf32>
    %226 = tpu.matmul %223, %225, %cst_72 {dimension_numbers = #tpu.dot_dimension_numbers<[1], [0], [0], [1], [0, 0, 1, 1], [], []>} : vector<256x64xbf16>, vector<64x64xbf16>, vector<256x64xf32> -> vector<256x64xf32>
    %227 = vector.shape_cast %226 : vector<256x64xf32> to vector<1x16x16x64xf32>
    %cst_73 = arith.constant 0.000000e+00 : f32
    %228 = vector.broadcast %cst_73 : f32 to vector<1x1x16x64xf32>
    %229 = vector.extract_strided_slice %227 {offsets = [0, 0, 0, 0], sizes = [1, 15, 16, 64], strides = [1, 1, 1, 1]} : vector<1x16x16x64xf32> to vector<1x15x16x64xf32>
    %230 = tpu.concatenate %228, %229 in 1 : vector<1x1x16x64xf32>, vector<1x15x16x64xf32> -> vector<1x16x16x64xf32>
    %c1_74 = arith.constant 1 : index
    %c0_75 = arith.constant 0 : index
    %c0_76 = arith.constant 0 : index
    %231 = vector.load %arg16[%c1_74, %c0_75, %c0_76] : memref<3x64x64xbf16, #tpu.memory_space<vmem>>, vector<1x64x64xbf16>
    %232 = vector.shape_cast %231 : vector<1x64x64xbf16> to vector<64x64xbf16>
    %cst_77 = arith.constant dense<0.000000e+00> : vector<256x64xf32>
    %233 = tpu.matmul %223, %232, %cst_77 {dimension_numbers = #tpu.dot_dimension_numbers<[1], [0], [0], [1], [0, 0, 1, 1], [], []>} : vector<256x64xbf16>, vector<64x64xbf16>, vector<256x64xf32> -> vector<256x64xf32>
    %234 = vector.shape_cast %233 : vector<256x64xf32> to vector<1x16x16x64xf32>
    %235 = arith.addf %230, %234 : vector<1x16x16x64xf32>
    %c2_78 = arith.constant 2 : index
    %c0_79 = arith.constant 0 : index
    %c0_80 = arith.constant 0 : index
    %236 = vector.load %arg16[%c2_78, %c0_79, %c0_80] : memref<3x64x64xbf16, #tpu.memory_space<vmem>>, vector<1x64x64xbf16>
    %237 = vector.shape_cast %236 : vector<1x64x64xbf16> to vector<64x64xbf16>
    %cst_81 = arith.constant dense<0.000000e+00> : vector<256x64xf32>
    %238 = tpu.matmul %223, %237, %cst_81 {dimension_numbers = #tpu.dot_dimension_numbers<[1], [0], [0], [1], [0, 0, 1, 1], [], []>} : vector<256x64xbf16>, vector<64x64xbf16>, vector<256x64xf32> -> vector<256x64xf32>
    %239 = vector.shape_cast %238 : vector<256x64xf32> to vector<1x16x16x64xf32>
    %cst_82 = arith.constant 0.000000e+00 : f32
    %240 = vector.broadcast %cst_82 : f32 to vector<1x1x16x64xf32>
    %241 = vector.extract_strided_slice %239 {offsets = [0, 1, 0, 0], sizes = [1, 15, 16, 64], strides = [1, 1, 1, 1]} : vector<1x16x16x64xf32> to vector<1x15x16x64xf32>
    %242 = tpu.concatenate %241, %240 in 1 : vector<1x15x16x64xf32>, vector<1x1x16x64xf32> -> vector<1x16x16x64xf32>
    %243 = arith.addf %235, %242 : vector<1x16x16x64xf32>
    %c0_83 = arith.constant 0 : index
    %c0_84 = arith.constant 0 : index
    %244 = vector.load %arg17[%c0_83, %c0_84] : memref<1x64xf32, #tpu.memory_space<vmem>>, vector<1x64xf32>
    %245 = vector.shape_cast %244 : vector<1x64xf32> to vector<1x1x1x64xf32>
    %246 = vector.broadcast %245 : vector<1x1x1x64xf32> to vector<1x16x16x64xf32>
    %247 = arith.addf %243, %246 : vector<1x16x16x64xf32>
    %cst_85 = arith.constant 0.000000e+00 : f32
    %248 = vector.broadcast %cst_85 : f32 to vector<1x16x16x64xf32>
    %249 = arith.maximumf %247, %248 : vector<1x16x16x64xf32>
    %250 = arith.addf %249, %193 : vector<1x16x16x64xf32>
    %cst_86 = arith.constant 0.000000e+00 : f32
    %251 = vector.broadcast %cst_86 : f32 to vector<1x16x16x64xf32>
    %252 = arith.maximumf %250, %251 : vector<1x16x16x64xf32>
    %253 = arith.truncf %105 : vector<1x16x16x48xf32> to vector<1x16x16x48xbf16>
    %254 = vector.shape_cast %253 : vector<1x16x16x48xbf16> to vector<256x48xbf16>
    %c0_87 = arith.constant 0 : index
    %c0_88 = arith.constant 0 : index
    %c0_89 = arith.constant 0 : index
    %255 = vector.load %arg18[%c0_87, %c0_88, %c0_89] : memref<3x48x96xbf16, #tpu.memory_space<vmem>>, vector<1x48x96xbf16>
    %256 = vector.shape_cast %255 : vector<1x48x96xbf16> to vector<48x96xbf16>
    %cst_90 = arith.constant dense<0.000000e+00> : vector<256x96xf32>
    %257 = tpu.matmul %254, %256, %cst_90 {dimension_numbers = #tpu.dot_dimension_numbers<[1], [0], [0], [1], [0, 0, 1, 1], [], []>} : vector<256x48xbf16>, vector<48x96xbf16>, vector<256x96xf32> -> vector<256x96xf32>
    %258 = vector.shape_cast %257 : vector<256x96xf32> to vector<1x16x16x96xf32>
    %cst_91 = arith.constant 0.000000e+00 : f32
    %259 = vector.broadcast %cst_91 : f32 to vector<1x16x1x96xf32>
    %260 = vector.extract_strided_slice %258 {offsets = [0, 0, 0, 0], sizes = [1, 16, 15, 96], strides = [1, 1, 1, 1]} : vector<1x16x16x96xf32> to vector<1x16x15x96xf32>
    %261 = tpu.concatenate %259, %260 in 2 : vector<1x16x1x96xf32>, vector<1x16x15x96xf32> -> vector<1x16x16x96xf32>
    %c1_92 = arith.constant 1 : index
    %c0_93 = arith.constant 0 : index
    %c0_94 = arith.constant 0 : index
    %262 = vector.load %arg18[%c1_92, %c0_93, %c0_94] : memref<3x48x96xbf16, #tpu.memory_space<vmem>>, vector<1x48x96xbf16>
    %263 = vector.shape_cast %262 : vector<1x48x96xbf16> to vector<48x96xbf16>
    %cst_95 = arith.constant dense<0.000000e+00> : vector<256x96xf32>
    %264 = tpu.matmul %254, %263, %cst_95 {dimension_numbers = #tpu.dot_dimension_numbers<[1], [0], [0], [1], [0, 0, 1, 1], [], []>} : vector<256x48xbf16>, vector<48x96xbf16>, vector<256x96xf32> -> vector<256x96xf32>
    %265 = vector.shape_cast %264 : vector<256x96xf32> to vector<1x16x16x96xf32>
    %266 = arith.addf %261, %265 : vector<1x16x16x96xf32>
    %c2_96 = arith.constant 2 : index
    %c0_97 = arith.constant 0 : index
    %c0_98 = arith.constant 0 : index
    %267 = vector.load %arg18[%c2_96, %c0_97, %c0_98] : memref<3x48x96xbf16, #tpu.memory_space<vmem>>, vector<1x48x96xbf16>
    %268 = vector.shape_cast %267 : vector<1x48x96xbf16> to vector<48x96xbf16>
    %cst_99 = arith.constant dense<0.000000e+00> : vector<256x96xf32>
    %269 = tpu.matmul %254, %268, %cst_99 {dimension_numbers = #tpu.dot_dimension_numbers<[1], [0], [0], [1], [0, 0, 1, 1], [], []>} : vector<256x48xbf16>, vector<48x96xbf16>, vector<256x96xf32> -> vector<256x96xf32>
    %270 = vector.shape_cast %269 : vector<256x96xf32> to vector<1x16x16x96xf32>
    %cst_100 = arith.constant 0.000000e+00 : f32
    %271 = vector.broadcast %cst_100 : f32 to vector<1x16x1x96xf32>
    %272 = vector.extract_strided_slice %270 {offsets = [0, 0, 1, 0], sizes = [1, 16, 15, 96], strides = [1, 1, 1, 1]} : vector<1x16x16x96xf32> to vector<1x16x15x96xf32>
    %273 = tpu.concatenate %272, %271 in 2 : vector<1x16x15x96xf32>, vector<1x16x1x96xf32> -> vector<1x16x16x96xf32>
    %274 = arith.addf %266, %273 : vector<1x16x16x96xf32>
    %c0_101 = arith.constant 0 : index
    %c0_102 = arith.constant 0 : index
    %275 = vector.load %arg19[%c0_101, %c0_102] : memref<1x96xf32, #tpu.memory_space<vmem>>, vector<1x96xf32>
    %276 = vector.shape_cast %275 : vector<1x96xf32> to vector<1x1x1x96xf32>
    %277 = vector.broadcast %276 : vector<1x1x1x96xf32> to vector<1x16x16x96xf32>
    %278 = arith.addf %274, %277 : vector<1x16x16x96xf32>
    %cst_103 = arith.constant 0.000000e+00 : f32
    %279 = vector.broadcast %cst_103 : f32 to vector<1x16x16x96xf32>
    %280 = arith.maximumf %278, %279 : vector<1x16x16x96xf32>
    %281 = arith.truncf %280 : vector<1x16x16x96xf32> to vector<1x16x16x96xbf16>
    %282 = vector.shape_cast %281 : vector<1x16x16x96xbf16> to vector<256x96xbf16>
    %c0_104 = arith.constant 0 : index
    %c0_105 = arith.constant 0 : index
    %c0_106 = arith.constant 0 : index
    %283 = vector.load %arg20[%c0_104, %c0_105, %c0_106] : memref<3x96x96xbf16, #tpu.memory_space<vmem>>, vector<1x96x96xbf16>
    %284 = vector.shape_cast %283 : vector<1x96x96xbf16> to vector<96x96xbf16>
    %cst_107 = arith.constant dense<0.000000e+00> : vector<256x96xf32>
    %285 = tpu.matmul %282, %284, %cst_107 {dimension_numbers = #tpu.dot_dimension_numbers<[1], [0], [0], [1], [0, 0, 1, 1], [], []>} : vector<256x96xbf16>, vector<96x96xbf16>, vector<256x96xf32> -> vector<256x96xf32>
    %286 = vector.shape_cast %285 : vector<256x96xf32> to vector<1x16x16x96xf32>
    %cst_108 = arith.constant 0.000000e+00 : f32
    %287 = vector.broadcast %cst_108 : f32 to vector<1x1x16x96xf32>
    %288 = vector.extract_strided_slice %286 {offsets = [0, 0, 0, 0], sizes = [1, 15, 16, 96], strides = [1, 1, 1, 1]} : vector<1x16x16x96xf32> to vector<1x15x16x96xf32>
    %289 = tpu.concatenate %287, %288 in 1 : vector<1x1x16x96xf32>, vector<1x15x16x96xf32> -> vector<1x16x16x96xf32>
    %c1_109 = arith.constant 1 : index
    %c0_110 = arith.constant 0 : index
    %c0_111 = arith.constant 0 : index
    %290 = vector.load %arg20[%c1_109, %c0_110, %c0_111] : memref<3x96x96xbf16, #tpu.memory_space<vmem>>, vector<1x96x96xbf16>
    %291 = vector.shape_cast %290 : vector<1x96x96xbf16> to vector<96x96xbf16>
    %cst_112 = arith.constant dense<0.000000e+00> : vector<256x96xf32>
    %292 = tpu.matmul %282, %291, %cst_112 {dimension_numbers = #tpu.dot_dimension_numbers<[1], [0], [0], [1], [0, 0, 1, 1], [], []>} : vector<256x96xbf16>, vector<96x96xbf16>, vector<256x96xf32> -> vector<256x96xf32>
    %293 = vector.shape_cast %292 : vector<256x96xf32> to vector<1x16x16x96xf32>
    %294 = arith.addf %289, %293 : vector<1x16x16x96xf32>
    %c2_113 = arith.constant 2 : index
    %c0_114 = arith.constant 0 : index
    %c0_115 = arith.constant 0 : index
    %295 = vector.load %arg20[%c2_113, %c0_114, %c0_115] : memref<3x96x96xbf16, #tpu.memory_space<vmem>>, vector<1x96x96xbf16>
    %296 = vector.shape_cast %295 : vector<1x96x96xbf16> to vector<96x96xbf16>
    %cst_116 = arith.constant dense<0.000000e+00> : vector<256x96xf32>
    %297 = tpu.matmul %282, %296, %cst_116 {dimension_numbers = #tpu.dot_dimension_numbers<[1], [0], [0], [1], [0, 0, 1, 1], [], []>} : vector<256x96xbf16>, vector<96x96xbf16>, vector<256x96xf32> -> vector<256x96xf32>
    %298 = vector.shape_cast %297 : vector<256x96xf32> to vector<1x16x16x96xf32>
    %cst_117 = arith.constant 0.000000e+00 : f32
    %299 = vector.broadcast %cst_117 : f32 to vector<1x1x16x96xf32>
    %300 = vector.extract_strided_slice %298 {offsets = [0, 1, 0, 0], sizes = [1, 15, 16, 96], strides = [1, 1, 1, 1]} : vector<1x16x16x96xf32> to vector<1x15x16x96xf32>
    %301 = tpu.concatenate %300, %299 in 1 : vector<1x15x16x96xf32>, vector<1x1x16x96xf32> -> vector<1x16x16x96xf32>
    %302 = arith.addf %294, %301 : vector<1x16x16x96xf32>
    %c0_118 = arith.constant 0 : index
    %c0_119 = arith.constant 0 : index
    %303 = vector.load %arg21[%c0_118, %c0_119] : memref<1x96xf32, #tpu.memory_space<vmem>>, vector<1x96xf32>
    %304 = vector.shape_cast %303 : vector<1x96xf32> to vector<1x1x1x96xf32>
    %305 = vector.broadcast %304 : vector<1x1x1x96xf32> to vector<1x16x16x96xf32>
    %306 = arith.addf %302, %305 : vector<1x16x16x96xf32>
    %cst_120 = arith.constant 0.000000e+00 : f32
    %307 = vector.broadcast %cst_120 : f32 to vector<1x16x16x96xf32>
    %308 = arith.maximumf %306, %307 : vector<1x16x16x96xf32>
    %cst_121 = arith.constant 0.000000e+00 : f32
    %309 = vector.broadcast %cst_121 : f32 to vector<1x16x1x32xf32>
    %310 = vector.extract_strided_slice %134 {offsets = [0, 0, 0, 0], sizes = [1, 16, 15, 32], strides = [1, 1, 1, 1]} : vector<1x16x16x32xf32> to vector<1x16x15x32xf32>
    %311 = tpu.concatenate %309, %310 in 2 : vector<1x16x1x32xf32>, vector<1x16x15x32xf32> -> vector<1x16x16x32xf32>
    %312 = arith.addf %311, %134 : vector<1x16x16x32xf32>
    %cst_122 = arith.constant 0.000000e+00 : f32
    %313 = vector.broadcast %cst_122 : f32 to vector<1x16x1x32xf32>
    %314 = vector.extract_strided_slice %134 {offsets = [0, 0, 1, 0], sizes = [1, 16, 15, 32], strides = [1, 1, 1, 1]} : vector<1x16x16x32xf32> to vector<1x16x15x32xf32>
    %315 = tpu.concatenate %314, %313 in 2 : vector<1x16x15x32xf32>, vector<1x16x1x32xf32> -> vector<1x16x16x32xf32>
    %316 = arith.addf %312, %315 : vector<1x16x16x32xf32>
    %cst_123 = arith.constant 0.000000e+00 : f32
    %317 = vector.broadcast %cst_123 : f32 to vector<1x1x16x32xf32>
    %318 = vector.extract_strided_slice %316 {offsets = [0, 0, 0, 0], sizes = [1, 15, 16, 32], strides = [1, 1, 1, 1]} : vector<1x16x16x32xf32> to vector<1x15x16x32xf32>
    %319 = tpu.concatenate %317, %318 in 1 : vector<1x1x16x32xf32>, vector<1x15x16x32xf32> -> vector<1x16x16x32xf32>
    %320 = arith.addf %319, %316 : vector<1x16x16x32xf32>
    %cst_124 = arith.constant 0.000000e+00 : f32
    %321 = vector.broadcast %cst_124 : f32 to vector<1x1x16x32xf32>
    %322 = vector.extract_strided_slice %316 {offsets = [0, 1, 0, 0], sizes = [1, 15, 16, 32], strides = [1, 1, 1, 1]} : vector<1x16x16x32xf32> to vector<1x15x16x32xf32>
    %323 = tpu.concatenate %322, %321 in 1 : vector<1x15x16x32xf32>, vector<1x1x16x32xf32> -> vector<1x16x16x32xf32>
    %324 = arith.addf %320, %323 : vector<1x16x16x32xf32>
    %cst_125 = arith.constant 0.111111112 : f32
    %325 = vector.broadcast %cst_125 : f32 to vector<1x16x16x32xf32>
    %326 = arith.mulf %324, %325 : vector<1x16x16x32xf32>
    %c0_126 = arith.constant 0 : index
    %c0_127 = arith.constant 0 : index
    %327 = vector.load %arg9[%c0_126, %c0_127] : memref<1x32xf32, #tpu.memory_space<vmem>>, vector<1x32xf32>
    %328 = vector.shape_cast %327 : vector<1x32xf32> to vector<1x1x1x32xf32>
    %329 = vector.broadcast %328 : vector<1x1x1x32xf32> to vector<1x16x16x32xf32>
    %330 = arith.addf %326, %329 : vector<1x16x16x32xf32>
    %cst_128 = arith.constant 0.000000e+00 : f32
    %331 = vector.broadcast %cst_128 : f32 to vector<1x16x16x32xf32>
    %332 = arith.maximumf %330, %331 : vector<1x16x16x32xf32>
    %c0_129 = arith.constant 0 : index
    %c0_130 = arith.constant 0 : index
    %c0_131 = arith.constant 0 : index
    %c0_132 = arith.constant 0 : index
    %333 = vector.load %arg22[%c0_129, %c0_130, %c0_131, %c0_132] : memref<1x16x16x256xf32, #tpu.memory_space<vmem>>, vector<1x16x16x64xf32>
    tpu.vector_store %arg22[%c0_129, %c0_130, %c0_131, %c0_132], %35 {strides = array<i32>} : memref<1x16x16x256xf32, #tpu.memory_space<vmem>>, vector<1x16x16x64xf32>,
    %c0_133 = arith.constant 0 : index
    %c0_134 = arith.constant 0 : index
    %c0_135 = arith.constant 0 : index
    %c64 = arith.constant 64 : index
    %334 = vector.load %arg22[%c0_133, %c0_134, %c0_135, %c64] : memref<1x16x16x256xf32, #tpu.memory_space<vmem>>, vector<1x16x16x64xf32>
    tpu.vector_store %arg22[%c0_133, %c0_134, %c0_135, %c64], %252 {strides = array<i32>} : memref<1x16x16x256xf32, #tpu.memory_space<vmem>>, vector<1x16x16x64xf32>,
    %c0_136 = arith.constant 0 : index
    %c0_137 = arith.constant 0 : index
    %c0_138 = arith.constant 0 : index
    %c128 = arith.constant 128 : index
    %335 = vector.load %arg22[%c0_136, %c0_137, %c0_138, %c128] : memref<1x16x16x256xf32, #tpu.memory_space<vmem>>, vector<1x16x16x96xf32>
    tpu.vector_store %arg22[%c0_136, %c0_137, %c0_138, %c128], %308 {strides = array<i32>} : memref<1x16x16x256xf32, #tpu.memory_space<vmem>>, vector<1x16x16x96xf32>,
    %c0_139 = arith.constant 0 : index
    %c0_140 = arith.constant 0 : index
    %c0_141 = arith.constant 0 : index
    %c224 = arith.constant 224 : index
    %336 = vector.load %arg22[%c0_139, %c0_140, %c0_141, %c224] : memref<1x16x16x256xf32, #tpu.memory_space<vmem>>, vector<1x16x16x32xf32>
    tpu.vector_store %arg22[%c0_139, %c0_140, %c0_141, %c224], %332 {strides = array<i32>} : memref<1x16x16x256xf32, #tpu.memory_space<vmem>>, vector<1x16x16x32xf32>,
    return
  }
  func.func @transform_0(%arg0: i32) -> (i32, i32, i32, i32) {
    %c0_i32 = arith.constant 0 : i32
    %c0_i32_0 = arith.constant 0 : i32
    %c0_i32_1 = arith.constant 0 : i32
    %c0_i32_2 = arith.constant 0 : i32
    return %arg0, %c0_i32, %c0_i32_0, %c0_i32_1 : i32, i32, i32, i32
  }
  func.func @transform_1(%arg0: i32) -> (i32, i32) {
    %c0_i32 = arith.constant 0 : i32
    %c0_i32_0 = arith.constant 0 : i32
    %c0_i32_1 = arith.constant 0 : i32
    return %c0_i32, %c0_i32_0 : i32, i32
  }
  func.func @transform_2(%arg0: i32) -> (i32, i32) {
    %c0_i32 = arith.constant 0 : i32
    %c0_i32_0 = arith.constant 0 : i32
    %c0_i32_1 = arith.constant 0 : i32
    return %c0_i32, %c0_i32_0 : i32, i32
  }
  func.func @transform_3(%arg0: i32) -> (i32, i32) {
    %c0_i32 = arith.constant 0 : i32
    %c0_i32_0 = arith.constant 0 : i32
    %c0_i32_1 = arith.constant 0 : i32
    return %c0_i32, %c0_i32_0 : i32, i32
  }
  func.func @transform_4(%arg0: i32) -> (i32, i32) {
    %c0_i32 = arith.constant 0 : i32
    %c0_i32_0 = arith.constant 0 : i32
    %c0_i32_1 = arith.constant 0 : i32
    return %c0_i32, %c0_i32_0 : i32, i32
  }
  func.func @transform_5(%arg0: i32) -> (i32, i32) {
    %c0_i32 = arith.constant 0 : i32
    %c0_i32_0 = arith.constant 0 : i32
    %c0_i32_1 = arith.constant 0 : i32
    return %c0_i32, %c0_i32_0 : i32, i32
  }
  func.func @transform_6(%arg0: i32) -> (i32, i32) {
    %c0_i32 = arith.constant 0 : i32
    %c0_i32_0 = arith.constant 0 : i32
    %c0_i32_1 = arith.constant 0 : i32
    return %c0_i32, %c0_i32_0 : i32, i32
  }
  func.func @transform_7(%arg0: i32) -> (i32, i32) {
    %c0_i32 = arith.constant 0 : i32
    %c0_i32_0 = arith.constant 0 : i32
    %c0_i32_1 = arith.constant 0 : i32
    return %c0_i32, %c0_i32_0 : i32, i32
  }
  func.func @transform_8(%arg0: i32) -> (i32, i32) {
    %c0_i32 = arith.constant 0 : i32
    %c0_i32_0 = arith.constant 0 : i32
    %c0_i32_1 = arith.constant 0 : i32
    return %c0_i32, %c0_i32_0 : i32, i32
  }
  func.func @transform_9(%arg0: i32) -> (i32, i32, i32) {
    %c0_i32 = arith.constant 0 : i32
    %c0_i32_0 = arith.constant 0 : i32
    %c0_i32_1 = arith.constant 0 : i32
    %c0_i32_2 = arith.constant 0 : i32
    return %c0_i32, %c0_i32_0, %c0_i32_1 : i32, i32, i32
  }
  func.func @transform_10(%arg0: i32) -> (i32, i32) {
    %c0_i32 = arith.constant 0 : i32
    %c0_i32_0 = arith.constant 0 : i32
    %c0_i32_1 = arith.constant 0 : i32
    return %c0_i32, %c0_i32_0 : i32, i32
  }
  func.func @transform_11(%arg0: i32) -> (i32, i32, i32) {
    %c0_i32 = arith.constant 0 : i32
    %c0_i32_0 = arith.constant 0 : i32
    %c0_i32_1 = arith.constant 0 : i32
    %c0_i32_2 = arith.constant 0 : i32
    return %c0_i32, %c0_i32_0, %c0_i32_1 : i32, i32, i32
  }
  func.func @transform_12(%arg0: i32) -> (i32, i32) {
    %c0_i32 = arith.constant 0 : i32
    %c0_i32_0 = arith.constant 0 : i32
    %c0_i32_1 = arith.constant 0 : i32
    return %c0_i32, %c0_i32_0 : i32, i32
  }
  func.func @transform_13(%arg0: i32) -> (i32, i32, i32) {
    %c0_i32 = arith.constant 0 : i32
    %c0_i32_0 = arith.constant 0 : i32
    %c0_i32_1 = arith.constant 0 : i32
    %c0_i32_2 = arith.constant 0 : i32
    return %c0_i32, %c0_i32_0, %c0_i32_1 : i32, i32, i32
  }
  func.func @transform_14(%arg0: i32) -> (i32, i32) {
    %c0_i32 = arith.constant 0 : i32
    %c0_i32_0 = arith.constant 0 : i32
    %c0_i32_1 = arith.constant 0 : i32
    return %c0_i32, %c0_i32_0 : i32, i32
  }
  func.func @transform_15(%arg0: i32) -> (i32, i32, i32) {
    %c0_i32 = arith.constant 0 : i32
    %c0_i32_0 = arith.constant 0 : i32
    %c0_i32_1 = arith.constant 0 : i32
    %c0_i32_2 = arith.constant 0 : i32
    return %c0_i32, %c0_i32_0, %c0_i32_1 : i32, i32, i32
  }
  func.func @transform_16(%arg0: i32) -> (i32, i32) {
    %c0_i32 = arith.constant 0 : i32
    %c0_i32_0 = arith.constant 0 : i32
    %c0_i32_1 = arith.constant 0 : i32
    return %c0_i32, %c0_i32_0 : i32, i32
  }
  func.func @transform_17(%arg0: i32) -> (i32, i32, i32) {
    %c0_i32 = arith.constant 0 : i32
    %c0_i32_0 = arith.constant 0 : i32
    %c0_i32_1 = arith.constant 0 : i32
    %c0_i32_2 = arith.constant 0 : i32
    return %c0_i32, %c0_i32_0, %c0_i32_1 : i32, i32, i32
  }
  func.func @transform_18(%arg0: i32) -> (i32, i32) {
    %c0_i32 = arith.constant 0 : i32
    %c0_i32_0 = arith.constant 0 : i32
    %c0_i32_1 = arith.constant 0 : i32
    return %c0_i32, %c0_i32_0 : i32, i32
  }
  func.func @transform_19(%arg0: i32) -> (i32, i32, i32) {
    %c0_i32 = arith.constant 0 : i32
    %c0_i32_0 = arith.constant 0 : i32
    %c0_i32_1 = arith.constant 0 : i32
    %c0_i32_2 = arith.constant 0 : i32
    return %c0_i32, %c0_i32_0, %c0_i32_1 : i32, i32, i32
  }
  func.func @transform_20(%arg0: i32) -> (i32, i32) {
    %c0_i32 = arith.constant 0 : i32
    %c0_i32_0 = arith.constant 0 : i32
    %c0_i32_1 = arith.constant 0 : i32
    return %c0_i32, %c0_i32_0 : i32, i32
  }
  func.func @transform_21(%arg0: i32) -> (i32, i32, i32, i32) {
    %c0_i32 = arith.constant 0 : i32
    %c0_i32_0 = arith.constant 0 : i32
    %c0_i32_1 = arith.constant 0 : i32
    %c0_i32_2 = arith.constant 0 : i32
    return %arg0, %c0_i32, %c0_i32_0, %c0_i32_1 : i32, i32, i32, i32
  }
}

</mosaic_0001>

<llo_original>
// kernel: _lambda_.1
$region0: #{_lambda_.1}
  #allocation0 [shape = 'u32[]', space=smem, size = 0x4, offset = 0x4, fixed_abs, tag = 'smem constant byte address 0x4 - core index']
  #allocation1 [shape = 'u32[144,128]{1,0:T(1,128)}', space=vmem, size = 0x12000, scoped, tag = 'internal scratch']
  %s0 = inlined_call_operand.vmem [shape: f32[2,16,16,4], index: 0, kind: input, shape index: {}]
  %s1 = inlined_call_operand.vmem [shape: bf16[4,64], index: 1, kind: input, shape index: {}]
  %s2 = inlined_call_operand.vmem [shape: f32[1,64], index: 2, kind: input, shape index: {}]
  %s3 = inlined_call_operand.vmem [shape: bf16[4,64], index: 3, kind: input, shape index: {}]
  %s4 = inlined_call_operand.vmem [shape: f32[1,64], index: 4, kind: input, shape index: {}]
  %s5 = inlined_call_operand.vmem [shape: bf16[4,48], index: 5, kind: input, shape index: {}]
  %s6 = inlined_call_operand.vmem [shape: f32[1,48], index: 6, kind: input, shape index: {}]
  %s7 = inlined_call_operand.vmem [shape: bf16[4,32], index: 7, kind: input, shape index: {}]
  %s8 = inlined_call_operand.vmem [shape: f32[1,32], index: 8, kind: input, shape index: {}]
  %s9 = inlined_call_operand.vmem [shape: bf16[3,64,64], index: 9, kind: input, shape index: {}]
  %s10 = inlined_call_operand.vmem [shape: f32[1,64], index: 10, kind: input, shape index: {}]
  %s11 = inlined_call_operand.vmem [shape: bf16[3,64,64], index: 11, kind: input, shape index: {}]
  %s12 = inlined_call_operand.vmem [shape: f32[1,64], index: 12, kind: input, shape index: {}]
  %s13 = inlined_call_operand.vmem [shape: bf16[3,64,64], index: 13, kind: input, shape index: {}]
  %s14 = inlined_call_operand.vmem [shape: f32[1,64], index: 14, kind: input, shape index: {}]
  %s15 = inlined_call_operand.vmem [shape: bf16[3,64,64], index: 15, kind: input, shape index: {}]
  %s16 = inlined_call_operand.vmem [shape: f32[1,64], index: 16, kind: input, shape index: {}]
  %s17 = inlined_call_operand.vmem [shape: bf16[3,48,96], index: 17, kind: input, shape index: {}]
  %s18 = inlined_call_operand.vmem [shape: f32[1,96], index: 18, kind: input, shape index: {}]
  %s19 = inlined_call_operand.vmem [shape: bf16[3,96,96], index: 19, kind: input, shape index: {}]
  %s20 = inlined_call_operand.vmem [shape: f32[1,96], index: 20, kind: input, shape index: {}]
  %s21 = inlined_call_operand.hbm [shape: f32[2,16,16,256], index: 21, kind: output, shape index: {}]
  %s22 = sld [smem:[#allocation0]]
  $region117: #{_lambda_.1} parent=0
    _
  %s24 = ssub.s32 1, %s22
  %s25 = scalar_select 0, %s24, %s22
  $region1: #{_lambda_.1} parent=0
    #allocation2 [shape = 'u8[524288]{0}', space=vmem, size = 0x80000, scoped, tag = 'output window, operand 0']
    #allocation3 [shape = 's32[2]{0}', space=sflag, size = 0x8, scoped, tag = 'scoped memory for _lambda_.1']
    %26 = vsyncpa [#allocation3], 0
    %s27 = scalar_lea.sflag [#allocation3], 1
    %28 = vsyncpa %s27, 0
    loop: start=0, step=1, limit=4
    $region2: #{_lambda_.1} parent=1 // loop_pre_header
      _
    $region3: #{_lambda_.1} parent=1 // loop_header
      %s30 = sphi 0, %s34
      %p31 = scmp.ge.s32.totalorder %s30, 4
      %s40 = sphi 0, %s42
      %s43 = sphi 0, %s40
      %s44 = sphi 0, %s43
      %s60 = sphi 0, %s44
      %s64 = sphi 0, %s64
      %s66 = sphi 0, %s64
      %s67 = sphi 0, %s66
      %s81 = sphi 0, %s67
      %s85 = sphi 0, %s85
      %s87 = sphi 0, %s85
      %s88 = sphi 0, %s87
      %s102 = sphi 0, %s88
      %s106 = sphi 0, %s106
      %s108 = sphi 0, %s106
      %s109 = sphi 0, %s108
      %s123 = sphi 0, %s109
      %s127 = sphi 0, %s127
      %s129 = sphi 0, %s127
      %s130 = sphi 0, %s129
      %s144 = sphi 0, %s130
      %s148 = sphi 0, %s148
      %s150 = sphi 0, %s148
      %s151 = sphi 0, %s150
      %s165 = sphi 0, %s151
      %s169 = sphi 0, %s169
      %s171 = sphi 0, %s169
      %s172 = sphi 0, %s171
      %s186 = sphi 0, %s172
      %s190 = sphi 0, %s190
      %s192 = sphi 0, %s190
      %s193 = sphi 0, %s192
      %s207 = sphi 0, %s193
      %s211 = sphi 0, %s211
      %s213 = sphi 0, %s211
      %s214 = sphi 0, %s213
      %s228 = sphi 0, %s214
      %s232 = sphi 0, %s232
      %s234 = sphi 0, %s232
      %s235 = sphi 0, %s234
      %s249 = sphi 0, %s235
      %s253 = sphi 0, %s253
      %s255 = sphi 0, %s253
      %s256 = sphi 0, %s255
      %s270 = sphi 0, %s256
      %s274 = sphi 0, %s274
      %s276 = sphi 0, %s274
      %s277 = sphi 0, %s276
      %s291 = sphi 0, %s277
      %s295 = sphi 0, %s295
      %s297 = sphi 0, %s295
      %s298 = sphi 0, %s297
      %s312 = sphi 0, %s298
      %s316 = sphi 0, %s316
      %s318 = sphi 0, %s316
      %s319 = sphi 0, %s318
      %s333 = sphi 0, %s319
      %s337 = sphi 0, %s337
      %s339 = sphi 0, %s337
      %s340 = sphi 0, %s339
      %s354 = sphi 0, %s340
      %s358 = sphi 0, %s358
      %s360 = sphi 0, %s358
      %s361 = sphi 0, %s360
      %s375 = sphi 0, %s361
      %s379 = sphi 0, %s379
      %s381 = sphi 0, %s379
      %s382 = sphi 0, %s381
      %s396 = sphi 0, %s382
      %s400 = sphi 0, %s400
      %s402 = sphi 0, %s400
      %s403 = sphi 0, %s402
      %s417 = sphi 0, %s403
      %s421 = sphi 0, %s421
      %s423 = sphi 0, %s421
      %s424 = sphi 0, %s423
      %s438 = sphi 0, %s424
      %s442 = sphi 0, %s442
      %s444 = sphi 0, %s442
      %s445 = sphi 0, %s444
      %s459 = sphi 0, %s445
      %s463 = sphi 0, %s463
      %s465 = sphi 0, %s463
      %s466 = sphi 0, %s465
      %s480 = sphi 0, %s466
      %s486 = sphi 0, %s488
      %s489 = sphi 0, %s486
      %s490 = sphi 0, %s489
      %s506 = sphi 0, %s490
    $region4: #{_lambda_.1} parent=1 // loop_header_branch
      %33 = sbr.rel (%p31) target = $region8
    $region5: #{_lambda_.1} parent=1 // loop_body
      %s35 = ssub.s32 %s30, 1
      %s36 = ssub.s32 %s30, 2
      %s37 = sadd.s32 %s30, 1
      %s38 = ssub.s32 %s30, %s37
      %p39 = scmp.eq.s32.totalorder %s38, 0
      %s41 = sadd.s32 %s40, 1
      %s42 = scalar_select %p39, %s40, %s41
      %p45 = pneg %p39
      %p46 = scmp.eq.s32.totalorder %s30, 1
      %p47 = por %p45, %p46
      %p48 = scmp.ne.s32.totalorder %s40, %s43
      %p49 = scmp.eq.s32.totalorder %s30, 0
      %p50 = por %p48, %p49
      %p51 = scmp.ne.s32.totalorder %s40, %s43
      %p52 = scmp.eq.s32.totalorder %s35, 1
      %p53 = por %p51, %p52
      %p54 = scmp.ne.s32.totalorder %s43, %s44
      %p55 = scmp.eq.s32.totalorder %s35, 0
      %p56 = por %p54, %p55
      %p57 = scmp.ne.s32.totalorder %s43, %s44
      %p58 = scmp.eq.s32.totalorder %s36, 1
      %p59 = por %p57, %p58
      %p61 = scmp.ne.s32.totalorder %s44, %s60
      %p62 = scmp.eq.s32.totalorder %s36, 0
      %p63 = por %p61, %p62
      %s65 = sadd.s32 %s64, 1
      %p68 = scmp.eq.s32.totalorder %s30, 1
      %p69 = scmp.ne.s32.totalorder %s64, %s66
      %p70 = scmp.eq.s32.totalorder %s30, 0
      %p71 = por %p69, %p70
      %p72 = scmp.ne.s32.totalorder %s64, %s66
      %p73 = scmp.eq.s32.totalorder %s35, 1
      %p74 = por %p72, %p73
      %p75 = scmp.ne.s32.totalorder %s66, %s67
      %p76 = scmp.eq.s32.totalorder %s35, 0
      %p77 = por %p75, %p76
      %p78 = scmp.ne.s32.totalorder %s66, %s67
      %p79 = scmp.eq.s32.totalorder %s36, 1
      %p80 = por %p78, %p79
      %p82 = scmp.ne.s32.totalorder %s67, %s81
      %p83 = scmp.eq.s32.totalorder %s36, 0
      %p84 = por %p82, %p83
      %s86 = sadd.s32 %s85, 1
      %p89 = scmp.eq.s32.totalorder %s30, 1
      %p90 = scmp.ne.s32.totalorder %s85, %s87
      %p91 = scmp.eq.s32.totalorder %s30, 0
      %p92 = por %p90, %p91
      %p93 = scmp.ne.s32.totalorder %s85, %s87
      %p94 = scmp.eq.s32.totalorder %s35, 1
      %p95 = por %p93, %p94
      %p96 = scmp.ne.s32.totalorder %s87, %s88
      %p97 = scmp.eq.s32.totalorder %s35, 0
      %p98 = por %p96, %p97
      %p99 = scmp.ne.s32.totalorder %s87, %s88
      %p100 = scmp.eq.s32.totalorder %s36, 1
      %p101 = por %p99, %p100
      %p103 = scmp.ne.s32.totalorder %s88, %s102
      %p104 = scmp.eq.s32.totalorder %s36, 0
      %p105 = por %p103, %p104
      %s107 = sadd.s32 %s106, 1
      %p110 = scmp.eq.s32.totalorder %s30, 1
      %p111 = scmp.ne.s32.totalorder %s106, %s108
      %p112 = scmp.eq.s32.totalorder %s30, 0
      %p113 = por %p111, %p112
      %p114 = scmp.ne.s32.totalorder %s106, %s108
      %p115 = scmp.eq.s32.totalorder %s35, 1
      %p116 = por %p114, %p115
      %p117 = scmp.ne.s32.totalorder %s108, %s109
      %p118 = scmp.eq.s32.totalorder %s35, 0
      %p119 = por %p117, %p118
      %p120 = scmp.ne.s32.totalorder %s108, %s109
      %p121 = scmp.eq.s32.totalorder %s36, 1
      %p122 = por %p120, %p121
      %p124 = scmp.ne.s32.totalorder %s109, %s123
      %p125 = scmp.eq.s32.totalorder %s36, 0
      %p126 = por %p124, %p125
      %s128 = sadd.s32 %s127, 1
      %p131 = scmp.eq.s32.totalorder %s30, 1
      %p132 = scmp.ne.s32.totalorder %s127, %s129
      %p133 = scmp.eq.s32.totalorder %s30, 0
      %p134 = por %p132, %p133
      %p135 = scmp.ne.s32.totalorder %s127, %s129
      %p136 = scmp.eq.s32.totalorder %s35, 1
      %p137 = por %p135, %p136
      %p138 = scmp.ne.s32.totalorder %s129, %s130
      %p139 = scmp.eq.s32.totalorder %s35, 0
      %p140 = por %p138, %p139
      %p141 = scmp.ne.s32.totalorder %s129, %s130
      %p142 = scmp.eq.s32.totalorder %s36, 1
      %p143 = por %p141, %p142
      %p145 = scmp.ne.s32.totalorder %s130, %s144
      %p146 = scmp.eq.s32.totalorder %s36, 0
      %p147 = por %p145, %p146
      %s149 = sadd.s32 %s148, 1
      %p152 = scmp.eq.s32.totalorder %s30, 1
      %p153 = scmp.ne.s32.totalorder %s148, %s150
      %p154 = scmp.eq.s32.totalorder %s30, 0
      %p155 = por %p153, %p154
      %p156 = scmp.ne.s32.totalorder %s148, %s150
      %p157 = scmp.eq.s32.totalorder %s35, 1
      %p158 = por %p156, %p157
      %p159 = scmp.ne.s32.totalorder %s150, %s151
      %p160 = scmp.eq.s32.totalorder %s35, 0
      %p161 = por %p159, %p160
      %p162 = scmp.ne.s32.totalorder %s150, %s151
      %p163 = scmp.eq.s32.totalorder %s36, 1
      %p164 = por %p162, %p163
      %p166 = scmp.ne.s32.totalorder %s151, %s165
      %p167 = scmp.eq.s32.totalorder %s36, 0
      %p168 = por %p166, %p167
      %s170 = sadd.s32 %s169, 1
      %p173 = scmp.eq.s32.totalorder %s30, 1
      %p174 = scmp.ne.s32.totalorder %s169, %s171
      %p175 = scmp.eq.s32.totalorder %s30, 0
      %p176 = por %p174, %p175
      %p177 = scmp.ne.s32.totalorder %s169, %s171
      %p178 = scmp.eq.s32.totalorder %s35, 1
      %p179 = por %p177, %p178
      %p180 = scmp.ne.s32.totalorder %s171, %s172
      %p181 = scmp.eq.s32.totalorder %s35, 0
      %p182 = por %p180, %p181
      %p183 = scmp.ne.s32.totalorder %s171, %s172
      %p184 = scmp.eq.s32.totalorder %s36, 1
      %p185 = por %p183, %p184
      %p187 = scmp.ne.s32.totalorder %s172, %s186
      %p188 = scmp.eq.s32.totalorder %s36, 0
      %p189 = por %p187, %p188
      %s191 = sadd.s32 %s190, 1
      %p194 = scmp.eq.s32.totalorder %s30, 1
      %p195 = scmp.ne.s32.totalorder %s190, %s192
      %p196 = scmp.eq.s32.totalorder %s30, 0
      %p197 = por %p195, %p196
      %p198 = scmp.ne.s32.totalorder %s190, %s192
      %p199 = scmp.eq.s32.totalorder %s35, 1
      %p200 = por %p198, %p199
      %p201 = scmp.ne.s32.totalorder %s192, %s193
      %p202 = scmp.eq.s32.totalorder %s35, 0
      %p203 = por %p201, %p202
      %p204 = scmp.ne.s32.totalorder %s192, %s193
      %p205 = scmp.eq.s32.totalorder %s36, 1
      %p206 = por %p204, %p205
      %p208 = scmp.ne.s32.totalorder %s193, %s207
      %p209 = scmp.eq.s32.totalorder %s36, 0
      %p210 = por %p208, %p209
      %s212 = sadd.s32 %s211, 1
      %p215 = scmp.eq.s32.totalorder %s30, 1
      %p216 = scmp.ne.s32.totalorder %s211, %s213
      %p217 = scmp.eq.s32.totalorder %s30, 0
      %p218 = por %p216, %p217
      %p219 = scmp.ne.s32.totalorder %s211, %s213
      %p220 = scmp.eq.s32.totalorder %s35, 1
      %p221 = por %p219, %p220
      %p222 = scmp.ne.s32.totalorder %s213, %s214
      %p223 = scmp.eq.s32.totalorder %s35, 0
      %p224 = por %p222, %p223
      %p225 = scmp.ne.s32.totalorder %s213, %s214
      %p226 = scmp.eq.s32.totalorder %s36, 1
      %p227 = por %p225, %p226
      %p229 = scmp.ne.s32.totalorder %s214, %s228
      %p230 = scmp.eq.s32.totalorder %s36, 0
      %p231 = por %p229, %p230
      %s233 = sadd.s32 %s232, 1
      %p236 = scmp.eq.s32.totalorder %s30, 1
      %p237 = scmp.ne.s32.totalorder %s232, %s234
      %p238 = scmp.eq.s32.totalorder %s30, 0
      %p239 = por %p237, %p238
      %p240 = scmp.ne.s32.totalorder %s232, %s234
      %p241 = scmp.eq.s32.totalorder %s35, 1
      %p242 = por %p240, %p241
      %p243 = scmp.ne.s32.totalorder %s234, %s235
      %p244 = scmp.eq.s32.totalorder %s35, 0
      %p245 = por %p243, %p244
      %p246 = scmp.ne.s32.totalorder %s234, %s235
      %p247 = scmp.eq.s32.totalorder %s36, 1
      %p248 = por %p246, %p247
      %p250 = scmp.ne.s32.totalorder %s235, %s249
      %p251 = scmp.eq.s32.totalorder %s36, 0
      %p252 = por %p250, %p251
      %s254 = sadd.s32 %s253, 1
      %p257 = scmp.eq.s32.totalorder %s30, 1
      %p258 = scmp.ne.s32.totalorder %s253, %s255
      %p259 = scmp.eq.s32.totalorder %s30, 0
      %p260 = por %p258, %p259
      %p261 = scmp.ne.s32.totalorder %s253, %s255
      %p262 = scmp.eq.s32.totalorder %s35, 1
      %p263 = por %p261, %p262
      %p264 = scmp.ne.s32.totalorder %s255, %s256
      %p265 = scmp.eq.s32.totalorder %s35, 0
      %p266 = por %p264, %p265
      %p267 = scmp.ne.s32.totalorder %s255, %s256
      %p268 = scmp.eq.s32.totalorder %s36, 1
      %p269 = por %p267, %p268
      %p271 = scmp.ne.s32.totalorder %s256, %s270
      %p272 = scmp.eq.s32.totalorder %s36, 0
      %p273 = por %p271, %p272
      %s275 = sadd.s32 %s274, 1
      %p278 = scmp.eq.s32.totalorder %s30, 1
      %p279 = scmp.ne.s32.totalorder %s274, %s276
      %p280 = scmp.eq.s32.totalorder %s30, 0
      %p281 = por %p279, %p280
      %p282 = scmp.ne.s32.totalorder %s274, %s276
      %p283 = scmp.eq.s32.totalorder %s35, 1
      %p284 = por %p282, %p283
      %p285 = scmp.ne.s32.totalorder %s276, %s277
      %p286 = scmp.eq.s32.totalorder %s35, 0
      %p287 = por %p285, %p286
      %p288 = scmp.ne.s32.totalorder %s276, %s277
      %p289 = scmp.eq.s32.totalorder %s36, 1
      %p290 = por %p288, %p289
      %p292 = scmp.ne.s32.totalorder %s277, %s291
      %p293 = scmp.eq.s32.totalorder %s36, 0
      %p294 = por %p292, %p293
      %s296 = sadd.s32 %s295, 1
      %p299 = scmp.eq.s32.totalorder %s30, 1
      %p300 = scmp.ne.s32.totalorder %s295, %s297
      %p301 = scmp.eq.s32.totalorder %s30, 0
      %p302 = por %p300, %p301
      %p303 = scmp.ne.s32.totalorder %s295, %s297
      %p304 = scmp.eq.s32.totalorder %s35, 1
      %p305 = por %p303, %p304
      %p306 = scmp.ne.s32.totalorder %s297, %s298
      %p307 = scmp.eq.s32.totalorder %s35, 0
      %p308 = por %p306, %p307
      %p309 = scmp.ne.s32.totalorder %s297, %s298
      %p310 = scmp.eq.s32.totalorder %s36, 1
      %p311 = por %p309, %p310
      %p313 = scmp.ne.s32.totalorder %s298, %s312
      %p314 = scmp.eq.s32.totalorder %s36, 0
      %p315 = por %p313, %p314
      %s317 = sadd.s32 %s316, 1
      %p320 = scmp.eq.s32.totalorder %s30, 1
      %p321 = scmp.ne.s32.totalorder %s316, %s318
      %p322 = scmp.eq.s32.totalorder %s30, 0
      %p323 = por %p321, %p322
      %p324 = scmp.ne.s32.totalorder %s316, %s318
      %p325 = scmp.eq.s32.totalorder %s35, 1
      %p326 = por %p324, %p325
      %p327 = scmp.ne.s32.totalorder %s318, %s319
      %p328 = scmp.eq.s32.totalorder %s35, 0
      %p329 = por %p327, %p328
      %p330 = scmp.ne.s32.totalorder %s318, %s319
      %p331 = scmp.eq.s32.totalorder %s36, 1
      %p332 = por %p330, %p331
      %p334 = scmp.ne.s32.totalorder %s319, %s333
      %p335 = scmp.eq.s32.totalorder %s36, 0
      %p336 = por %p334, %p335
      %s338 = sadd.s32 %s337, 1
      %p341 = scmp.eq.s32.totalorder %s30, 1
      %p342 = scmp.ne.s32.totalorder %s337, %s339
      %p343 = scmp.eq.s32.totalorder %s30, 0
      %p344 = por %p342, %p343
      %p345 = scmp.ne.s32.totalorder %s337, %s339
      %p346 = scmp.eq.s32.totalorder %s35, 1
      %p347 = por %p345, %p346
      %p348 = scmp.ne.s32.totalorder %s339, %s340
      %p349 = scmp.eq.s32.totalorder %s35, 0
      %p350 = por %p348, %p349
      %p351 = scmp.ne.s32.totalorder %s339, %s340
      %p352 = scmp.eq.s32.totalorder %s36, 1
      %p353 = por %p351, %p352
      %p355 = scmp.ne.s32.totalorder %s340, %s354
      %p356 = scmp.eq.s32.totalorder %s36, 0
      %p357 = por %p355, %p356
      %s359 = sadd.s32 %s358, 1
      %p362 = scmp.eq.s32.totalorder %s30, 1
      %p363 = scmp.ne.s32.totalorder %s358, %s360
      %p364 = scmp.eq.s32.totalorder %s30, 0
      %p365 = por %p363, %p364
      %p366 = scmp.ne.s32.totalorder %s358, %s360
      %p367 = scmp.eq.s32.totalorder %s35, 1
      %p368 = por %p366, %p367
      %p369 = scmp.ne.s32.totalorder %s360, %s361
      %p370 = scmp.eq.s32.totalorder %s35, 0
      %p371 = por %p369, %p370
      %p372 = scmp.ne.s32.totalorder %s360, %s361
      %p373 = scmp.eq.s32.totalorder %s36, 1
      %p374 = por %p372, %p373
      %p376 = scmp.ne.s32.totalorder %s361, %s375
      %p377 = scmp.eq.s32.totalorder %s36, 0
      %p378 = por %p376, %p377
      %s380 = sadd.s32 %s379, 1
      %p383 = scmp.eq.s32.totalorder %s30, 1
      %p384 = scmp.ne.s32.totalorder %s379, %s381
      %p385 = scmp.eq.s32.totalorder %s30, 0
      %p386 = por %p384, %p385
      %p387 = scmp.ne.s32.totalorder %s379, %s381
      %p388 = scmp.eq.s32.totalorder %s35, 1
      %p389 = por %p387, %p388
      %p390 = scmp.ne.s32.totalorder %s381, %s382
      %p391 = scmp.eq.s32.totalorder %s35, 0
      %p392 = por %p390, %p391
      %p393 = scmp.ne.s32.totalorder %s381, %s382
      %p394 = scmp.eq.s32.totalorder %s36, 1
      %p395 = por %p393, %p394
      %p397 = scmp.ne.s32.totalorder %s382, %s396
      %p398 = scmp.eq.s32.totalorder %s36, 0
      %p399 = por %p397, %p398
      %s401 = sadd.s32 %s400, 1
      %p404 = scmp.eq.s32.totalorder %s30, 1
      %p405 = scmp.ne.s32.totalorder %s400, %s402
      %p406 = scmp.eq.s32.totalorder %s30, 0
      %p407 = por %p405, %p406
      %p408 = scmp.ne.s32.totalorder %s400, %s402
      %p409 = scmp.eq.s32.totalorder %s35, 1
      %p410 = por %p408, %p409
      %p411 = scmp.ne.s32.totalorder %s402, %s403
      %p412 = scmp.eq.s32.totalorder %s35, 0
      %p413 = por %p411, %p412
      %p414 = scmp.ne.s32.totalorder %s402, %s403
      %p415 = scmp.eq.s32.totalorder %s36, 1
      %p416 = por %p414, %p415
      %p418 = scmp.ne.s32.totalorder %s403, %s417
      %p419 = scmp.eq.s32.totalorder %s36, 0
      %p420 = por %p418, %p419
      %s422 = sadd.s32 %s421, 1
      %p425 = scmp.eq.s32.totalorder %s30, 1
      %p426 = scmp.ne.s32.totalorder %s421, %s423
      %p427 = scmp.eq.s32.totalorder %s30, 0
      %p428 = por %p426, %p427
      %p429 = scmp.ne.s32.totalorder %s421, %s423
      %p430 = scmp.eq.s32.totalorder %s35, 1
      %p431 = por %p429, %p430
      %p432 = scmp.ne.s32.totalorder %s423, %s424
      %p433 = scmp.eq.s32.totalorder %s35, 0
      %p434 = por %p432, %p433
      %p435 = scmp.ne.s32.totalorder %s423, %s424
      %p436 = scmp.eq.s32.totalorder %s36, 1
      %p437 = por %p435, %p436
      %p439 = scmp.ne.s32.totalorder %s424, %s438
      %p440 = scmp.eq.s32.totalorder %s36, 0
      %p441 = por %p439, %p440
      %s443 = sadd.s32 %s442, 1
      %p446 = scmp.eq.s32.totalorder %s30, 1
      %p447 = scmp.ne.s32.totalorder %s442, %s444
      %p448 = scmp.eq.s32.totalorder %s30, 0
      %p449 = por %p447, %p448
      %p450 = scmp.ne.s32.totalorder %s442, %s444
      %p451 = scmp.eq.s32.totalorder %s35, 1
      %p452 = por %p450, %p451
      %p453 = scmp.ne.s32.totalorder %s444, %s445
      %p454 = scmp.eq.s32.totalorder %s35, 0
      %p455 = por %p453, %p454
      %p456 = scmp.ne.s32.totalorder %s444, %s445
      %p457 = scmp.eq.s32.totalorder %s36, 1
      %p458 = por %p456, %p457
      %p460 = scmp.ne.s32.totalorder %s445, %s459
      %p461 = scmp.eq.s32.totalorder %s36, 0
      %p462 = por %p460, %p461
      %s464 = sadd.s32 %s463, 1
      %p467 = scmp.eq.s32.totalorder %s30, 1
      %p468 = scmp.ne.s32.totalorder %s463, %s465
      %p469 = scmp.eq.s32.totalorder %s30, 0
      %p470 = por %p468, %p469
      %p471 = scmp.ne.s32.totalorder %s463, %s465
      %p472 = scmp.eq.s32.totalorder %s35, 1
      %p473 = por %p471, %p472
      %p474 = scmp.ne.s32.totalorder %s465, %s466
      %p475 = scmp.eq.s32.totalorder %s35, 0
      %p476 = por %p474, %p475
      %p477 = scmp.ne.s32.totalorder %s465, %s466
      %p478 = scmp.eq.s32.totalorder %s36, 1
      %p479 = por %p477, %p478
      %p481 = scmp.ne.s32.totalorder %s466, %s480
      %p482 = scmp.eq.s32.totalorder %s36, 0
      %p483 = por %p481, %p482
      %s484 = ssub.s32 %s30, %s37
      %p485 = scmp.eq.s32.totalorder %s484, 0
      %s487 = sadd.s32 %s486, 1
      %s488 = scalar_select %p485, %s486, %s487
      %p491 = pneg %p485
      %p492 = scmp.eq.s32.totalorder %s30, 1
      %p493 = por %p491, %p492
      %p494 = scmp.ne.s32.totalorder %s486, %s489
      %p495 = scmp.eq.s32.totalorder %s30, 0
      %p496 = por %p494, %p495
      %p497 = scmp.ne.s32.totalorder %s486, %s489
      %p498 = scmp.eq.s32.totalorder %s35, 1
      %p499 = por %p497, %p498
      %p500 = scmp.ne.s32.totalorder %s489, %s490
      %p501 = scmp.eq.s32.totalorder %s35, 0
      %p502 = por %p500, %p501
      %p503 = scmp.ne.s32.totalorder %s489, %s490
      %p504 = scmp.eq.s32.totalorder %s36, 1
      %p505 = por %p503, %p504
      %p507 = scmp.ne.s32.totalorder %s490, %s506
      %p508 = scmp.eq.s32.totalorder %s36, 0
      %p509 = por %p507, %p508
      %p510 = scmp.le.s32.totalorder 1, %s30
      %p511 = scmp.lt.s32.totalorder %s30, 3
      %p512 = pnand %p510, %p511
      %p513 = pneg %p512
      // Predicated region
      $region9: #{_lambda_.1} parent=5 // pred_check
        _
      $region10: #{_lambda_.1} parent=5 // pred_check_branch
        %515 = sbr.rel (%p512) target = $region12
      $region11: #{_lambda_.1} parent=5 // pred_region
        %s516 = ssub.s32 %s30, 1
        // Predicated region
        $region13: #{_lambda_.1} parent=11 // pred_check
          %p517 = pneg %p77
        $region14: #{_lambda_.1} parent=11 // pred_check_branch
          %519 = sbr.rel (%p517) target = $region16
        $region15: #{_lambda_.1} parent=11 // pred_region
          _
        $region16: #{_lambda_.1} parent=11 // pred_fallthru
          _
        // Predicated region
        $region17: #{_lambda_.1} parent=11 // pred_check
          %p520 = pneg %p98
        $region18: #{_lambda_.1} parent=11 // pred_check_branch
          %522 = sbr.rel (%p520) target = $region20
        $region19: #{_lambda_.1} parent=11 // pred_region
          _
        $region20: #{_lambda_.1} parent=11 // pred_fallthru
          _
        // Predicated region
        $region21: #{_lambda_.1} parent=11 // pred_check
          %p523 = pneg %p119
        $region22: #{_lambda_.1} parent=11 // pred_check_branch
          %525 = sbr.rel (%p523) target = $region24
        $region23: #{_lambda_.1} parent=11 // pred_region
          _
        $region24: #{_lambda_.1} parent=11 // pred_fallthru
          _
        // Predicated region
        $region25: #{_lambda_.1} parent=11 // pred_check
          %p526 = pneg %p140
        $region26: #{_lambda_.1} parent=11 // pred_check_branch
          %528 = sbr.rel (%p526) target = $region28
        $region27: #{_lambda_.1} parent=11 // pred_region
          _
        $region28: #{_lambda_.1} parent=11 // pred_fallthru
          _
        // Predicated region
        $region29: #{_lambda_.1} parent=11 // pred_check
          %p529 = pneg %p161
        $region30: #{_lambda_.1} parent=11 // pred_check_branch
          %531 = sbr.rel (%p529) target = $region32
        $region31: #{_lambda_.1} parent=11 // pred_region
          _
        $region32: #{_lambda_.1} parent=11 // pred_fallthru
          _
        // Predicated region
        $region33: #{_lambda_.1} parent=11 // pred_check
          %p532 = pneg %p182
        $region34: #{_lambda_.1} parent=11 // pred_check_branch
          %534 = sbr.rel (%p532) target = $region36
        $region35: #{_lambda_.1} parent=11 // pred_region
          _
        $region36: #{_lambda_.1} parent=11 // pred_fallthru
          _
        // Predicated region
        $region37: #{_lambda_.1} parent=11 // pred_check
          %p535 = pneg %p203
        $region38: #{_lambda_.1} parent=11 // pred_check_branch
          %537 = sbr.rel (%p535) target = $region40
        $region39: #{_lambda_.1} parent=11 // pred_region
          _
        $region40: #{_lambda_.1} parent=11 // pred_fallthru
          _
        // Predicated region
        $region41: #{_lambda_.1} parent=11 // pred_check
          %p538 = pneg %p224
        $region42: #{_lambda_.1} parent=11 // pred_check_branch
          %540 = sbr.rel (%p538) target = $region44
        $region43: #{_lambda_.1} parent=11 // pred_region
          _
        $region44: #{_lambda_.1} parent=11 // pred_fallthru
          _
        // Predicated region
        $region45: #{_lambda_.1} parent=11 // pred_check
          %p541 = pneg %p245
        $region46: #{_lambda_.1} parent=11 // pred_check_branch
          %543 = sbr.rel (%p541) target = $region48
        $region47: #{_lambda_.1} parent=11 // pred_region
          _
        $region48: #{_lambda_.1} parent=11 // pred_fallthru
          _
        // Predicated region
        $region49: #{_lambda_.1} parent=11 // pred_check
          %p544 = pneg %p266
        $region50: #{_lambda_.1} parent=11 // pred_check_branch
          %546 = sbr.rel (%p544) target = $region52
        $region51: #{_lambda_.1} parent=11 // pred_region
          _
        $region52: #{_lambda_.1} parent=11 // pred_fallthru
          _
        // Predicated region
        $region53: #{_lambda_.1} parent=11 // pred_check
          %p547 = pneg %p287
        $region54: #{_lambda_.1} parent=11 // pred_check_branch
          %549 = sbr.rel (%p547) target = $region56
        $region55: #{_lambda_.1} parent=11 // pred_region
          _
        $region56: #{_lambda_.1} parent=11 // pred_fallthru
          _
        // Predicated region
        $region57: #{_lambda_.1} parent=11 // pred_check
          %p550 = pneg %p308
        $region58: #{_lambda_.1} parent=11 // pred_check_branch
          %552 = sbr.rel (%p550) target = $region60
        $region59: #{_lambda_.1} parent=11 // pred_region
          _
        $region60: #{_lambda_.1} parent=11 // pred_fallthru
          _
        // Predicated region
        $region61: #{_lambda_.1} parent=11 // pred_check
          %p553 = pneg %p329
        $region62: #{_lambda_.1} parent=11 // pred_check_branch
          %555 = sbr.rel (%p553) target = $region64
        $region63: #{_lambda_.1} parent=11 // pred_region
          _
        $region64: #{_lambda_.1} parent=11 // pred_fallthru
          _
        // Predicated region
        $region65: #{_lambda_.1} parent=11 // pred_check
          %p556 = pneg %p350
        $region66: #{_lambda_.1} parent=11 // pred_check_branch
          %558 = sbr.rel (%p556) target = $region68
        $region67: #{_lambda_.1} parent=11 // pred_region
          _
        $region68: #{_lambda_.1} parent=11 // pred_fallthru
          _
        // Predicated region
        $region69: #{_lambda_.1} parent=11 // pred_check
          %p559 = pneg %p371
        $region70: #{_lambda_.1} parent=11 // pred_check_branch
          %561 = sbr.rel (%p559) target = $region72
        $region71: #{_lambda_.1} parent=11 // pred_region
          _
        $region72: #{_lambda_.1} parent=11 // pred_fallthru
          _
        // Predicated region
        $region73: #{_lambda_.1} parent=11 // pred_check
          %p562 = pneg %p392
        $region74: #{_lambda_.1} parent=11 // pred_check_branch
          %564 = sbr.rel (%p562) target = $region76
        $region75: #{_lambda_.1} parent=11 // pred_region
          _
        $region76: #{_lambda_.1} parent=11 // pred_fallthru
          _
        // Predicated region
        $region77: #{_lambda_.1} parent=11 // pred_check
          %p565 = pneg %p413
        $region78: #{_lambda_.1} parent=11 // pred_check_branch
          %567 = sbr.rel (%p565) target = $region80
        $region79: #{_lambda_.1} parent=11 // pred_region
          _
        $region80: #{_lambda_.1} parent=11 // pred_fallthru
          _
        // Predicated region
        $region81: #{_lambda_.1} parent=11 // pred_check
          %p568 = pneg %p434
        $region82: #{_lambda_.1} parent=11 // pred_check_branch
          %570 = sbr.rel (%p568) target = $region84
        $region83: #{_lambda_.1} parent=11 // pred_region
          _
        $region84: #{_lambda_.1} parent=11 // pred_fallthru
          _
        // Predicated region
        $region85: #{_lambda_.1} parent=11 // pred_check
          %p571 = pneg %p455
        $region86: #{_lambda_.1} parent=11 // pred_check_branch
          %573 = sbr.rel (%p571) target = $region88
        $region87: #{_lambda_.1} parent=11 // pred_region
          _
        $region88: #{_lambda_.1} parent=11 // pred_fallthru
          _
        // Predicated region
        $region89: #{_lambda_.1} parent=11 // pred_check
          %p574 = pneg %p476
        $region90: #{_lambda_.1} parent=11 // pred_check_branch
          %576 = sbr.rel (%p574) target = $region92
        $region91: #{_lambda_.1} parent=11 // pred_region
          _
        $region92: #{_lambda_.1} parent=11 // pred_fallthru
          _
      $region12: #{_lambda_.1} parent=5 // pred_fallthru
        _
      %p577 = scmp.lt.s32.totalorder %s30, 2
      // Predicated region
      $region93: #{_lambda_.1} parent=5 // pred_check
        %p578 = pneg %p577
      $region94: #{_lambda_.1} parent=5 // pred_check_branch
        %580 = sbr.rel (%p578) target = $region96
      $region95: #{_lambda_.1} parent=5 // pred_region
        // Predicated region
        $region97: #{_lambda_.1} parent=95 // pred_check
          %p581 = pneg %p50
        $region98: #{_lambda_.1} parent=95 // pred_check_branch
          %583 = sbr.rel (%p581) target = $region100
        $region99: #{_lambda_.1} parent=95 // pred_region
          %p584 = scmp.lt.s32.totalorder %s30, 1
          %s585 = scalar_select %p584, %s30, 1
          %s586 = smul.addr %s585, 32
          %s587 = smul.addr %s586, 8
          %s588 = scalar_lea.vmem %s0, %s587
        $region100: #{_lambda_.1} parent=95 // pred_fallthru
          _
      $region96: #{_lambda_.1} parent=5 // pred_fallthru
        _
      %p589 = scmp.le.s32.totalorder 1, %s30
      %p590 = scmp.lt.s32.totalorder %s30, 3
      %p591 = pnand %p589, %p590
      %p592 = pneg %p591
      // Predicated region
      $region101: #{_lambda_.1} parent=5 // pred_check
        _
      $region102: #{_lambda_.1} parent=5 // pred_check_branch
        %594 = sbr.rel (%p591) target = $region104
      $region103: #{_lambda_.1} parent=5 // pred_region
        %s595 = ssub.s32 %s30, 1
        %p596 = scmp.lt.s32.totalorder %s35, 1
        %s597 = scalar_select %p596, %s35, 1
        %s598 = smul.addr %s597, 32
        %s599 = smul.addr %s598, 8
        %s600 = scalar_lea.vmem %s0, %s599
        %p601 = pneg %p56
        %p602 = pneg %p53
        %p603 = pneg %p77
        %p604 = pneg %p74
        %p605 = pneg %p98
        %p606 = pneg %p95
        %p607 = pneg %p119
        %p608 = pneg %p116
        %p609 = pneg %p140
        %p610 = pneg %p137
        %p611 = pneg %p161
        %p612 = pneg %p158
        %p613 = pneg %p182
        %p614 = pneg %p179
        %p615 = pneg %p203
        %p616 = pneg %p200
        %p617 = pneg %p224
        %p618 = pneg %p221
        %p619 = pneg %p245
        %p620 = pneg %p242
        %p621 = pneg %p266
        %p622 = pneg %p263
        %p623 = pneg %p287
        %p624 = pneg %p284
        %p625 = pneg %p308
        %p626 = pneg %p305
        %p627 = pneg %p329
        %p628 = pneg %p326
        %p629 = pneg %p350
        %p630 = pneg %p347
        %p631 = pneg %p371
        %p632 = pneg %p368
        %p633 = pneg %p392
        %p634 = pneg %p389
        %p635 = pneg %p413
        %p636 = pneg %p410
        %p637 = pneg %p434
        %p638 = pneg %p431
        %p639 = pneg %p455
        %p640 = pneg %p452
        %p641 = pneg %p476
        %p642 = pneg %p473
        %p643 = pneg %p502
        %p644 = pneg %p499
        %s645 = sand.u32 %s489, 1
        %s646 = scalar_lea.sflag [#allocation3], %s645
        %s647 = sand.u32 %s489, 1
        %s648 = smul.addr %s647, 512
        %s649 = scalar_lea.vmem [#allocation2], %s648
        %p650 = scmp.lt.s32.totalorder %s35, 1
        %s651 = scalar_select %p650, %s35, 1
        %s652 = smul.addr %s651, 32
        %s653 = smul.addr %s652, 8
        %s654 = scalar_lea.vmem %s0, %s653
        %v656 = vld [vmem:[%s654] sm:$0xff]
        %v657 = vld [vmem:[%s654 + $0x8] sm:$0xff]
        %v658 = vld [vmem:[%s654 + $0x10] sm:$0xff]
        %v659 = vld [vmem:[%s654 + $0x18] sm:$0xff]
        %v660 = vld [vmem:[%s654 + $0x20] sm:$0xff]
        %v661 = vld [vmem:[%s654 + $0x28] sm:$0xff]
        %v662 = vld [vmem:[%s654 + $0x30] sm:$0xff]
        %v663 = vld [vmem:[%s654 + $0x38] sm:$0xff]
        %v664 = vld [vmem:[%s654 + $0x40] sm:$0xff]
        %v665 = vld [vmem:[%s654 + $0x48] sm:$0xff]
        %v666 = vld [vmem:[%s654 + $0x50] sm:$0xff]
        %v667 = vld [vmem:[%s654 + $0x58] sm:$0xff]
        %v668 = vld [vmem:[%s654 + $0x60] sm:$0xff]
        %v669 = vld [vmem:[%s654 + $0x68] sm:$0xff]
        %v670 = vld [vmem:[%s654 + $0x70] sm:$0xff]
        %v671 = vld [vmem:[%s654 + $0x78] sm:$0xff]
        %v672 = vld [vmem:[%s654 + $0x80] sm:$0xff]
        %v673 = vld [vmem:[%s654 + $0x88] sm:$0xff]
        %v674 = vld [vmem:[%s654 + $0x90] sm:$0xff]
        %v675 = vld [vmem:[%s654 + $0x98] sm:$0xff]
        %v676 = vld [vmem:[%s654 + $0xa0] sm:$0xff]
        %v677 = vld [vmem:[%s654 + $0xa8] sm:$0xff]
        %v678 = vld [vmem:[%s654 + $0xb0] sm:$0xff]
        %v679 = vld [vmem:[%s654 + $0xb8] sm:$0xff]
        %v680 = vld [vmem:[%s654 + $0xc0] sm:$0xff]
        %v681 = vld [vmem:[%s654 + $0xc8] sm:$0xff]
        %v682 = vld [vmem:[%s654 + $0xd0] sm:$0xff]
        %v683 = vld [vmem:[%s654 + $0xd8] sm:$0xff]
        %v684 = vld [vmem:[%s654 + $0xe0] sm:$0xff]
        %v685 = vld [vmem:[%s654 + $0xe8] sm:$0xff]
        %v686 = vld [vmem:[%s654 + $0xf0] sm:$0xff]
        %v687 = vld [vmem:[%s654 + $0xf8] sm:$0xff]
        %v688 = vld [vmem:[%s1] sm:$0x3]
        %v689 = vunpack.c.l.bf16 %v688
        %691 = vset.pattern.permute.xlu0 0
        %692 = vperm.xlu0 %691, %v656
        %v693 = vpop.permute.xlu0 %692
        %696 = vset.pattern.permute.xlu0 0
        %697 = vperm.xlu0 %696, %v657
        %v698 = vpop.permute.xlu0 %697
        %701 = vset.pattern.permute.xlu0 0
        %702 = vperm.xlu0 %701, %v658
        %v703 = vpop.permute.xlu0 %702
        %706 = vset.pattern.permute.xlu0 0
        %707 = vperm.xlu0 %706, %v659
        %v708 = vpop.permute.xlu0 %707
        %711 = vset.pattern.permute.xlu0 0
        %712 = vperm.xlu0 %711, %v660
        %v713 = vpop.permute.xlu0 %712
        %716 = vset.pattern.permute.xlu0 0
        %717 = vperm.xlu0 %716, %v661
        %v718 = vpop.permute.xlu0 %717
        %721 = vset.pattern.permute.xlu0 0
        %722 = vperm.xlu0 %721, %v662
        %v723 = vpop.permute.xlu0 %722
        %726 = vset.pattern.permute.xlu0 0
        %727 = vperm.xlu0 %726, %v663
        %v728 = vpop.permute.xlu0 %727
        %731 = vset.pattern.permute.xlu0 0
        %732 = vperm.xlu0 %731, %v664
        %v733 = vpop.permute.xlu0 %732
        %736 = vset.pattern.permute.xlu0 0
        %737 = vperm.xlu0 %736, %v665
        %v738 = vpop.permute.xlu0 %737
        %741 = vset.pattern.permute.xlu0 0
        %742 = vperm.xlu0 %741, %v666
        %v743 = vpop.permute.xlu0 %742
        %746 = vset.pattern.permute.xlu0 0
        %747 = vperm.xlu0 %746, %v667
        %v748 = vpop.permute.xlu0 %747
        %751 = vset.pattern.permute.xlu0 0
        %752 = vperm.xlu0 %751, %v668
        %v753 = vpop.permute.xlu0 %752
        %756 = vset.pattern.permute.xlu0 0
        %757 = vperm.xlu0 %756, %v669
        %v758 = vpop.permute.xlu0 %757
        %761 = vset.pattern.permute.xlu0 0
        %762 = vperm.xlu0 %761, %v670
        %v763 = vpop.permute.xlu0 %762
        %766 = vset.pattern.permute.xlu0 0
        %767 = vperm.xlu0 %766, %v671
        %v768 = vpop.permute.xlu0 %767
        %771 = vset.pattern.permute.xlu0 0
        %772 = vperm.xlu0 %771, %v672
        %v773 = vpop.permute.xlu0 %772
        %776 = vset.pattern.permute.xlu0 0
        %777 = vperm.xlu0 %776, %v673
        %v778 = vpop.permute.xlu0 %777
        %781 = vset.pattern.permute.xlu0 0
        %782 = vperm.xlu0 %781, %v674
        %v783 = vpop.permute.xlu0 %782
        %786 = vset.pattern.permute.xlu0 0
        %787 = vperm.xlu0 %786, %v675
        %v788 = vpop.permute.xlu0 %787
        %791 = vset.pattern.permute.xlu0 0
        %792 = vperm.xlu0 %791, %v676
        %v793 = vpop.permute.xlu0 %792
        %796 = vset.pattern.permute.xlu0 0
        %797 = vperm.xlu0 %796, %v677
        %v798 = vpop.permute.xlu0 %797
        %801 = vset.pattern.permute.xlu0 0
        %802 = vperm.xlu0 %801, %v678
        %v803 = vpop.permute.xlu0 %802
        %806 = vset.pattern.permute.xlu0 0
        %807 = vperm.xlu0 %806, %v679
        %v808 = vpop.permute.xlu0 %807
        %811 = vset.pattern.permute.xlu0 0
        %812 = vperm.xlu0 %811, %v680
        %v813 = vpop.permute.xlu0 %812
        %816 = vset.pattern.permute.xlu0 0
        %817 = vperm.xlu0 %816, %v681
        %v818 = vpop.permute.xlu0 %817
        %821 = vset.pattern.permute.xlu0 0
        %822 = vperm.xlu0 %821, %v682
        %v823 = vpop.permute.xlu0 %822
        %826 = vset.pattern.permute.xlu0 0
        %827 = vperm.xlu0 %826, %v683
        %v828 = vpop.permute.xlu0 %827
        %831 = vset.pattern.permute.xlu0 0
        %832 = vperm.xlu0 %831, %v684
        %v833 = vpop.permute.xlu0 %832
        %836 = vset.pattern.permute.xlu0 0
        %837 = vperm.xlu0 %836, %v685
        %v838 = vpop.permute.xlu0 %837
        %841 = vset.pattern.permute.xlu0 0
        %842 = vperm.xlu0 %841, %v686
        %v843 = vpop.permute.xlu0 %842
        %846 = vset.pattern.permute.xlu0 0
        %847 = vperm.xlu0 %846, %v687
        %v848 = vpop.permute.xlu0 %847
        %v850 = vlaneseq
        %v851 = vshrl.u32 %v850, 7
        %v852 = vsub.s32 0, %v851
        %v853 = vrot.slane %v689, %v852
        %v854 = vmul.f32 %v693, %v853
        %v855 = vmul.f32 %v698, %v853
        %v856 = vmul.f32 %v703, %v853
        %v857 = vmul.f32 %v708, %v853
        %v858 = vmul.f32 %v713, %v853
        %v859 = vmul.f32 %v718, %v853
        %v860 = vmul.f32 %v723, %v853
        %v861 = vmul.f32 %v728, %v853
        %v862 = vmul.f32 %v733, %v853
        %v863 = vmul.f32 %v738, %v853
        %v864 = vmul.f32 %v743, %v853
        %v865 = vmul.f32 %v748, %v853
        %v866 = vmul.f32 %v753, %v853
        %v867 = vmul.f32 %v758, %v853
        %v868 = vmul.f32 %v763, %v853
        %v869 = vmul.f32 %v768, %v853
        %v870 = vmul.f32 %v773, %v853
        %v871 = vmul.f32 %v778, %v853
        %v872 = vmul.f32 %v783, %v853
        %v873 = vmul.f32 %v788, %v853
        %v874 = vmul.f32 %v793, %v853
        %v875 = vmul.f32 %v798, %v853
        %v876 = vmul.f32 %v803, %v853
        %v877 = vmul.f32 %v808, %v853
        %v878 = vmul.f32 %v813, %v853
        %v879 = vmul.f32 %v818, %v853
        %v880 = vmul.f32 %v823, %v853
        %v881 = vmul.f32 %v828, %v853
        %v882 = vmul.f32 %v833, %v853
        %v883 = vmul.f32 %v838, %v853
        %v884 = vmul.f32 %v843, %v853
        %v885 = vmul.f32 %v848, %v853
        %886 = vset.pattern.permute.xlu0 1
        %887 = vperm.xlu0 %886, %v656
        %v888 = vpop.permute.xlu0 %887
        %890 = vset.pattern.permute.xlu0 1
        %891 = vperm.xlu0 %890, %v657
        %v892 = vpop.permute.xlu0 %891
        %894 = vset.pattern.permute.xlu0 1
        %895 = vperm.xlu0 %894, %v658
        %v896 = vpop.permute.xlu0 %895
        %898 = vset.pattern.permute.xlu0 1
        %899 = vperm.xlu0 %898, %v659
        %v900 = vpop.permute.xlu0 %899
        %902 = vset.pattern.permute.xlu0 1
        %903 = vperm.xlu0 %902, %v660
        %v904 = vpop.permute.xlu0 %903
        %906 = vset.pattern.permute.xlu0 1
        %907 = vperm.xlu0 %906, %v661
        %v908 = vpop.permute.xlu0 %907
        %910 = vset.pattern.permute.xlu0 1
        %911 = vperm.xlu0 %910, %v662
        %v912 = vpop.permute.xlu0 %911
        %914 = vset.pattern.permute.xlu0 1
        %915 = vperm.xlu0 %914, %v663
        %v916 = vpop.permute.xlu0 %915
        %918 = vset.pattern.permute.xlu0 1
        %919 = vperm.xlu0 %918, %v664
        %v920 = vpop.permute.xlu0 %919
        %922 = vset.pattern.permute.xlu0 1
        %923 = vperm.xlu0 %922, %v665
        %v924 = vpop.permute.xlu0 %923
        %926 = vset.pattern.permute.xlu0 1
        %927 = vperm.xlu0 %926, %v666
        %v928 = vpop.permute.xlu0 %927
        %930 = vset.pattern.permute.xlu0 1
        %931 = vperm.xlu0 %930, %v667
        %v932 = vpop.permute.xlu0 %931
        %934 = vset.pattern.permute.xlu0 1
        %935 = vperm.xlu0 %934, %v668
        %v936 = vpop.permute.xlu0 %935
        %938 = vset.pattern.permute.xlu0 1
        %939 = vperm.xlu0 %938, %v669
        %v940 = vpop.permute.xlu0 %939
        %942 = vset.pattern.permute.xlu0 1
        %943 = vperm.xlu0 %942, %v670
        %v944 = vpop.permute.xlu0 %943
        %946 = vset.pattern.permute.xlu0 1
        %947 = vperm.xlu0 %946, %v671
        %v948 = vpop.permute.xlu0 %947
        %950 = vset.pattern.permute.xlu0 1
        %951 = vperm.xlu0 %950, %v672
        %v952 = vpop.permute.xlu0 %951
        %954 = vset.pattern.permute.xlu0 1
        %955 = vperm.xlu0 %954, %v673
        %v956 = vpop.permute.xlu0 %955
        %958 = vset.pattern.permute.xlu0 1
        %959 = vperm.xlu0 %958, %v674
        %v960 = vpop.permute.xlu0 %959
        %962 = vset.pattern.permute.xlu0 1
        %963 = vperm.xlu0 %962, %v675
        %v964 = vpop.permute.xlu0 %963
        %966 = vset.pattern.permute.xlu0 1
        %967 = vperm.xlu0 %966, %v676
        %v968 = vpop.permute.xlu0 %967
        %970 = vset.pattern.permute.xlu0 1
        %971 = vperm.xlu0 %970, %v677
        %v972 = vpop.permute.xlu0 %971
        %974 = vset.pattern.permute.xlu0 1
        %975 = vperm.xlu0 %974, %v678
        %v976 = vpop.permute.xlu0 %975
        %978 = vset.pattern.permute.xlu0 1
        %979 = vperm.xlu0 %978, %v679
        %v980 = vpop.permute.xlu0 %979
        %982 = vset.pattern.permute.xlu0 1
        %983 = vperm.xlu0 %982, %v680
        %v984 = vpop.permute.xlu0 %983
        %986 = vset.pattern.permute.xlu0 1
        %987 = vperm.xlu0 %986, %v681
        %v988 = vpop.permute.xlu0 %987
        %990 = vset.pattern.permute.xlu0 1
        %991 = vperm.xlu0 %990, %v682
        %v992 = vpop.permute.xlu0 %991
        %994 = vset.pattern.permute.xlu0 1
        %995 = vperm.xlu0 %994, %v683
        %v996 = vpop.permute.xlu0 %995
        %998 = vset.pattern.permute.xlu0 1
        %999 = vperm.xlu0 %998, %v684
        %v1000 = vpop.permute.xlu0 %999
        %1002 = vset.pattern.permute.xlu0 1
        %1003 = vperm.xlu0 %1002, %v685
        %v1004 = vpop.permute.xlu0 %1003
        %1006 = vset.pattern.permute.xlu0 1
        %1007 = vperm.xlu0 %1006, %v686
        %v1008 = vpop.permute.xlu0 %1007
        %1010 = vset.pattern.permute.xlu0 1
        %1011 = vperm.xlu0 %1010, %v687
        %v1012 = vpop.permute.xlu0 %1011
        %v1014 = vlaneseq
        %v1015 = vshrl.u32 %v1014, 7
        %v1016 = vsub.s32 1, %v1015
        %v1017 = vrot.slane %v689, %v1016
        %v1018 = vmul.f32 %v888, %v1017
        %v1019 = vmul.f32 %v892, %v1017
        %v1020 = vmul.f32 %v896, %v1017
        %v1021 = vmul.f32 %v900, %v1017
        %v1022 = vmul.f32 %v904, %v1017
        %v1023 = vmul.f32 %v908, %v1017
        %v1024 = vmul.f32 %v912, %v1017
        %v1025 = vmul.f32 %v916, %v1017
        %v1026 = vmul.f32 %v920, %v1017
        %v1027 = vmul.f32 %v924, %v1017
        %v1028 = vmul.f32 %v928, %v1017
        %v1029 = vmul.f32 %v932, %v1017
        %v1030 = vmul.f32 %v936, %v1017
        %v1031 = vmul.f32 %v940, %v1017
        %v1032 = vmul.f32 %v944, %v1017
        %v1033 = vmul.f32 %v948, %v1017
        %v1034 = vmul.f32 %v952, %v1017
        %v1035 = vmul.f32 %v956, %v1017
        %v1036 = vmul.f32 %v960, %v1017
        %v1037 = vmul.f32 %v964, %v1017
        %v1038 = vmul.f32 %v968, %v1017
        %v1039 = vmul.f32 %v972, %v1017
        %v1040 = vmul.f32 %v976, %v1017
        %v1041 = vmul.f32 %v980, %v1017
        %v1042 = vmul.f32 %v984, %v1017
        %v1043 = vmul.f32 %v988, %v1017
        %v1044 = vmul.f32 %v992, %v1017
        %v1045 = vmul.f32 %v996, %v1017
        %v1046 = vmul.f32 %v1000, %v1017
        %v1047 = vmul.f32 %v1004, %v1017
        %v1048 = vmul.f32 %v1008, %v1017
        %v1049 = vmul.f32 %v1012, %v1017
        %v1050 = vadd.f32 %v854, %v1018
        %v1051 = vadd.f32 %v855, %v1019
        %v1052 = vadd.f32 %v856, %v1020
        %v1053 = vadd.f32 %v857, %v1021
        %v1054 = vadd.f32 %v858, %v1022
        %v1055 = vadd.f32 %v859, %v1023
        %v1056 = vadd.f32 %v860, %v1024
        %v1057 = vadd.f32 %v861, %v1025
        %v1058 = vadd.f32 %v862, %v1026
        %v1059 = vadd.f32 %v863, %v1027
        %v1060 = vadd.f32 %v864, %v1028
        %v1061 = vadd.f32 %v865, %v1029
        %v1062 = vadd.f32 %v866, %v1030
        %v1063 = vadd.f32 %v867, %v1031
        %v1064 = vadd.f32 %v868, %v1032
        %v1065 = vadd.f32 %v869, %v1033
        %v1066 = vadd.f32 %v870, %v1034
        %v1067 = vadd.f32 %v871, %v1035
        %v1068 = vadd.f32 %v872, %v1036
        %v1069 = vadd.f32 %v873, %v1037
        %v1070 = vadd.f32 %v874, %v1038
        %v1071 = vadd.f32 %v875, %v1039
        %v1072 = vadd.f32 %v876, %v1040
        %v1073 = vadd.f32 %v877, %v1041
        %v1074 = vadd.f32 %v878, %v1042
        %v1075 = vadd.f32 %v879, %v1043
        %v1076 = vadd.f32 %v880, %v1044
        %v1077 = vadd.f32 %v881, %v1045
        %v1078 = vadd.f32 %v882, %v1046
        %v1079 = vadd.f32 %v883, %v1047
        %v1080 = vadd.f32 %v884, %v1048
        %v1081 = vadd.f32 %v885, %v1049
        %1082 = vset.pattern.permute.xlu0 2
        %1083 = vperm.xlu0 %1082, %v656
        %v1084 = vpop.permute.xlu0 %1083
        %1086 = vset.pattern.permute.xlu0 2
        %1087 = vperm.xlu0 %1086, %v657
        %v1088 = vpop.permute.xlu0 %1087
        %1090 = vset.pattern.permute.xlu0 2
        %1091 = vperm.xlu0 %1090, %v658
        %v1092 = vpop.permute.xlu0 %1091
        %1094 = vset.pattern.permute.xlu0 2
        %1095 = vperm.xlu0 %1094, %v659
        %v1096 = vpop.permute.xlu0 %1095
        %1098 = vset.pattern.permute.xlu0 2
        %1099 = vperm.xlu0 %1098, %v660
        %v1100 = vpop.permute.xlu0 %1099
        %1102 = vset.pattern.permute.xlu0 2
        %1103 = vperm.xlu0 %1102, %v661
        %v1104 = vpop.permute.xlu0 %1103
        %1106 = vset.pattern.permute.xlu0 2
        %1107 = vperm.xlu0 %1106, %v662
        %v1108 = vpop.permute.xlu0 %1107
        %1110 = vset.pattern.permute.xlu0 2
        %1111 = vperm.xlu0 %1110, %v663
        %v1112 = vpop.permute.xlu0 %1111
        %1114 = vset.pattern.permute.xlu0 2
        %1115 = vperm.xlu0 %1114, %v664
        %v1116 = vpop.permute.xlu0 %1115
        %1118 = vset.pattern.permute.xlu0 2
        %1119 = vperm.xlu0 %1118, %v665
        %v1120 = vpop.permute.xlu0 %1119
        %1122 = vset.pattern.permute.xlu0 2
        %1123 = vperm.xlu0 %1122, %v666
        %v1124 = vpop.permute.xlu0 %1123
        %1126 = vset.pattern.permute.xlu0 2
        %1127 = vperm.xlu0 %1126, %v667
        %v1128 = vpop.permute.xlu0 %1127
        %1130 = vset.pattern.permute.xlu0 2
        %1131 = vperm.xlu0 %1130, %v668
        %v1132 = vpop.permute.xlu0 %1131
        %1134 = vset.pattern.permute.xlu0 2
        %1135 = vperm.xlu0 %1134, %v669
        %v1136 = vpop.permute.xlu0 %1135
        %1138 = vset.pattern.permute.xlu0 2
        %1139 = vperm.xlu0 %1138, %v670
        %v1140 = vpop.permute.xlu0 %1139
        %1142 = vset.pattern.permute.xlu0 2
        %1143 = vperm.xlu0 %1142, %v671
        %v1144 = vpop.permute.xlu0 %1143
        %1146 = vset.pattern.permute.xlu0 2
        %1147 = vperm.xlu0 %1146, %v672
        %v1148 = vpop.permute.xlu0 %1147
        %1150 = vset.pattern.permute.xlu0 2
        %1151 = vperm.xlu0 %1150, %v673
        %v1152 = vpop.permute.xlu0 %1151
        %1154 = vset.pattern.permute.xlu0 2
        %1155 = vperm.xlu0 %1154, %v674
        %v1156 = vpop.permute.xlu0 %1155
        %1158 = vset.pattern.permute.xlu0 2
        %1159 = vperm.xlu0 %1158, %v675
        %v1160 = vpop.permute.xlu0 %1159
        %1162 = vset.pattern.permute.xlu0 2
        %1163 = vperm.xlu0 %1162, %v676
        %v1164 = vpop.permute.xlu0 %1163
        %1166 = vset.pattern.permute.xlu0 2
        %1167 = vperm.xlu0 %1166, %v677
        %v1168 = vpop.permute.xlu0 %1167
        %1170 = vset.pattern.permute.xlu0 2
        %1171 = vperm.xlu0 %1170, %v678
        %v1172 = vpop.permute.xlu0 %1171
        %1174 = vset.pattern.permute.xlu0 2
        %1175 = vperm.xlu0 %1174, %v679
        %v1176 = vpop.permute.xlu0 %1175
        %1178 = vset.pattern.permute.xlu0 2
        %1179 = vperm.xlu0 %1178, %v680
        %v1180 = vpop.permute.xlu0 %1179
        %1182 = vset.pattern.permute.xlu0 2
        %1183 = vperm.xlu0 %1182, %v681
        %v1184 = vpop.permute.xlu0 %1183
        %1186 = vset.pattern.permute.xlu0 2
        %1187 = vperm.xlu0 %1186, %v682
        %v1188 = vpop.permute.xlu0 %1187
        %1190 = vset.pattern.permute.xlu0 2
        %1191 = vperm.xlu0 %1190, %v683
        %v1192 = vpop.permute.xlu0 %1191
        %1194 = vset.pattern.permute.xlu0 2
        %1195 = vperm.xlu0 %1194, %v684
        %v1196 = vpop.permute.xlu0 %1195
        %1198 = vset.pattern.permute.xlu0 2
        %1199 = vperm.xlu0 %1198, %v685
        %v1200 = vpop.permute.xlu0 %1199
        %1202 = vset.pattern.permute.xlu0 2
        %1203 = vperm.xlu0 %1202, %v686
        %v1204 = vpop.permute.xlu0 %1203
        %1206 = vset.pattern.permute.xlu0 2
        %1207 = vperm.xlu0 %1206, %v687
        %v1208 = vpop.permute.xlu0 %1207
        %v1210 = vlaneseq
        %v1211 = vshrl.u32 %v1210, 7
        %v1212 = vsub.s32 2, %v1211
        %v1213 = vrot.slane %v689, %v1212
        %v1214 = vmul.f32 %v1084, %v1213
        %v1215 = vmul.f32 %v1088, %v1213
        %v1216 = vmul.f32 %v1092, %v1213
        %v1217 = vmul.f32 %v1096, %v1213
        %v1218 = vmul.f32 %v1100, %v1213
        %v1219 = vmul.f32 %v1104, %v1213
        %v1220 = vmul.f32 %v1108, %v1213
        %v1221 = vmul.f32 %v1112, %v1213
        %v1222 = vmul.f32 %v1116, %v1213
        %v1223 = vmul.f32 %v1120, %v1213
        %v1224 = vmul.f32 %v1124, %v1213
        %v1225 = vmul.f32 %v1128, %v1213
        %v1226 = vmul.f32 %v1132, %v1213
        %v1227 = vmul.f32 %v1136, %v1213
        %v1228 = vmul.f32 %v1140, %v1213
        %v1229 = vmul.f32 %v1144, %v1213
        %v1230 = vmul.f32 %v1148, %v1213
        %v1231 = vmul.f32 %v1152, %v1213
        %v1232 = vmul.f32 %v1156, %v1213
        %v1233 = vmul.f32 %v1160, %v1213
        %v1234 = vmul.f32 %v1164, %v1213
        %v1235 = vmul.f32 %v1168, %v1213
        %v1236 = vmul.f32 %v1172, %v1213
        %v1237 = vmul.f32 %v1176, %v1213
        %v1238 = vmul.f32 %v1180, %v1213
        %v1239 = vmul.f32 %v1184, %v1213
        %v1240 = vmul.f32 %v1188, %v1213
        %v1241 = vmul.f32 %v1192, %v1213
        %v1242 = vmul.f32 %v1196, %v1213
        %v1243 = vmul.f32 %v1200, %v1213
        %v1244 = vmul.f32 %v1204, %v1213
        %v1245 = vmul.f32 %v1208, %v1213
        %v1246 = vadd.f32 %v1050, %v1214
        %v1247 = vadd.f32 %v1051, %v1215
        %v1248 = vadd.f32 %v1052, %v1216
        %v1249 = vadd.f32 %v1053, %v1217
        %v1250 = vadd.f32 %v1054, %v1218
        %v1251 = vadd.f32 %v1055, %v1219
        %v1252 = vadd.f32 %v1056, %v1220
        %v1253 = vadd.f32 %v1057, %v1221
        %v1254 = vadd.f32 %v1058, %v1222
        %v1255 = vadd.f32 %v1059, %v1223
        %v1256 = vadd.f32 %v1060, %v1224
        %v1257 = vadd.f32 %v1061, %v1225
        %v1258 = vadd.f32 %v1062, %v1226
        %v1259 = vadd.f32 %v1063, %v1227
        %v1260 = vadd.f32 %v1064, %v1228
        %v1261 = vadd.f32 %v1065, %v1229
        %v1262 = vadd.f32 %v1066, %v1230
        %v1263 = vadd.f32 %v1067, %v1231
        %v1264 = vadd.f32 %v1068, %v1232
        %v1265 = vadd.f32 %v1069, %v1233
        %v1266 = vadd.f32 %v1070, %v1234
        %v1267 = vadd.f32 %v1071, %v1235
        %v1268 = vadd.f32 %v1072, %v1236
        %v1269 = vadd.f32 %v1073, %v1237
        %v1270 = vadd.f32 %v1074, %v1238
        %v1271 = vadd.f32 %v1075, %v1239
        %v1272 = vadd.f32 %v1076, %v1240
        %v1273 = vadd.f32 %v1077, %v1241
        %v1274 = vadd.f32 %v1078, %v1242
        %v1275 = vadd.f32 %v1079, %v1243
        %v1276 = vadd.f32 %v1080, %v1244
        %v1277 = vadd.f32 %v1081, %v1245
        %1278 = vset.pattern.permute.xlu0 3
        %1279 = vperm.xlu0 %1278, %v656
        %v1280 = vpop.permute.xlu0 %1279
        %1282 = vset.pattern.permute.xlu0 3
        %1283 = vperm.xlu0 %1282, %v657
        %v1284 = vpop.permute.xlu0 %1283
        %1286 = vset.pattern.permute.xlu0 3
        %1287 = vperm.xlu0 %1286, %v658
        %v1288 = vpop.permute.xlu0 %1287
        %1290 = vset.pattern.permute.xlu0 3
        %1291 = vperm.xlu0 %1290, %v659
        %v1292 = vpop.permute.xlu0 %1291
        %1294 = vset.pattern.permute.xlu0 3
        %1295 = vperm.xlu0 %1294, %v660
        %v1296 = vpop.permute.xlu0 %1295
        %1298 = vset.pattern.permute.xlu0 3
        %1299 = vperm.xlu0 %1298, %v661
        %v1300 = vpop.permute.xlu0 %1299
        %1302 = vset.pattern.permute.xlu0 3
        %1303 = vperm.xlu0 %1302, %v662
        %v1304 = vpop.permute.xlu0 %1303
        %1306 = vset.pattern.permute.xlu0 3
        %1307 = vperm.xlu0 %1306, %v663
        %v1308 = vpop.permute.xlu0 %1307
        %1310 = vset.pattern.permute.xlu0 3
        %1311 = vperm.xlu0 %1310, %v664
        %v1312 = vpop.permute.xlu0 %1311
        %1314 = vset.pattern.permute.xlu0 3
        %1315 = vperm.xlu0 %1314, %v665
        %v1316 = vpop.permute.xlu0 %1315
        %1318 = vset.pattern.permute.xlu0 3
        %1319 = vperm.xlu0 %1318, %v666
        %v1320 = vpop.permute.xlu0 %1319
        %1322 = vset.pattern.permute.xlu0 3
        %1323 = vperm.xlu0 %1322, %v667
        %v1324 = vpop.permute.xlu0 %1323
        %1326 = vset.pattern.permute.xlu0 3
        %1327 = vperm.xlu0 %1326, %v668
        %v1328 = vpop.permute.xlu0 %1327
        %1330 = vset.pattern.permute.xlu0 3
        %1331 = vperm.xlu0 %1330, %v669
        %v1332 = vpop.permute.xlu0 %1331
        %1334 = vset.pattern.permute.xlu0 3
        %1335 = vperm.xlu0 %1334, %v670
        %v1336 = vpop.permute.xlu0 %1335
        %1338 = vset.pattern.permute.xlu0 3
        %1339 = vperm.xlu0 %1338, %v671
        %v1340 = vpop.permute.xlu0 %1339
        %1342 = vset.pattern.permute.xlu0 3
        %1343 = vperm.xlu0 %1342, %v672
        %v1344 = vpop.permute.xlu0 %1343
        %1346 = vset.pattern.permute.xlu0 3
        %1347 = vperm.xlu0 %1346, %v673
        %v1348 = vpop.permute.xlu0 %1347
        %1350 = vset.pattern.permute.xlu0 3
        %1351 = vperm.xlu0 %1350, %v674
        %v1352 = vpop.permute.xlu0 %1351
        %1354 = vset.pattern.permute.xlu0 3
        %1355 = vperm.xlu0 %1354, %v675
        %v1356 = vpop.permute.xlu0 %1355
        %1358 = vset.pattern.permute.xlu0 3
        %1359 = vperm.xlu0 %1358, %v676
        %v1360 = vpop.permute.xlu0 %1359
        %1362 = vset.pattern.permute.xlu0 3
        %1363 = vperm.xlu0 %1362, %v677
        %v1364 = vpop.permute.xlu0 %1363
        %1366 = vset.pattern.permute.xlu0 3
        %1367 = vperm.xlu0 %1366, %v678
        %v1368 = vpop.permute.xlu0 %1367
        %1370 = vset.pattern.permute.xlu0 3
        %1371 = vperm.xlu0 %1370, %v679
        %v1372 = vpop.permute.xlu0 %1371
        %1374 = vset.pattern.permute.xlu0 3
        %1375 = vperm.xlu0 %1374, %v680
        %v1376 = vpop.permute.xlu0 %1375
        %1378 = vset.pattern.permute.xlu0 3
        %1379 = vperm.xlu0 %1378, %v681
        %v1380 = vpop.permute.xlu0 %1379
        %1382 = vset.pattern.permute.xlu0 3
        %1383 = vperm.xlu0 %1382, %v682
        %v1384 = vpop.permute.xlu0 %1383
        %1386 = vset.pattern.permute.xlu0 3
        %1387 = vperm.xlu0 %1386, %v683
        %v1388 = vpop.permute.xlu0 %1387
        %1390 = vset.pattern.permute.xlu0 3
        %1391 = vperm.xlu0 %1390, %v684
        %v1392 = vpop.permute.xlu0 %1391
        %1394 = vset.pattern.permute.xlu0 3
        %1395 = vperm.xlu0 %1394, %v685
        %v1396 = vpop.permute.xlu0 %1395
        %1398 = vset.pattern.permute.xlu0 3
        %1399 = vperm.xlu0 %1398, %v686
        %v1400 = vpop.permute.xlu0 %1399
        %1402 = vset.pattern.permute.xlu0 3
        %1403 = vperm.xlu0 %1402, %v687
        %v1404 = vpop.permute.xlu0 %1403
        %v1406 = vlaneseq
        %v1407 = vshrl.u32 %v1406, 7
        %v1408 = vsub.s32 3, %v1407
        %v1409 = vrot.slane %v689, %v1408
        %v1410 = vmul.f32 %v1280, %v1409
        %v1411 = vmul.f32 %v1284, %v1409
        %v1412 = vmul.f32 %v1288, %v1409
        %v1413 = vmul.f32 %v1292, %v1409
        %v1414 = vmul.f32 %v1296, %v1409
        %v1415 = vmul.f32 %v1300, %v1409
        %v1416 = vmul.f32 %v1304, %v1409
        %v1417 = vmul.f32 %v1308, %v1409
        %v1418 = vmul.f32 %v1312, %v1409
        %v1419 = vmul.f32 %v1316, %v1409
        %v1420 = vmul.f32 %v1320, %v1409
        %v1421 = vmul.f32 %v1324, %v1409
        %v1422 = vmul.f32 %v1328, %v1409
        %v1423 = vmul.f32 %v1332, %v1409
        %v1424 = vmul.f32 %v1336, %v1409
        %v1425 = vmul.f32 %v1340, %v1409
        %v1426 = vmul.f32 %v1344, %v1409
        %v1427 = vmul.f32 %v1348, %v1409
        %v1428 = vmul.f32 %v1352, %v1409
        %v1429 = vmul.f32 %v1356, %v1409
        %v1430 = vmul.f32 %v1360, %v1409
        %v1431 = vmul.f32 %v1364, %v1409
        %v1432 = vmul.f32 %v1368, %v1409
        %v1433 = vmul.f32 %v1372, %v1409
        %v1434 = vmul.f32 %v1376, %v1409
        %v1435 = vmul.f32 %v1380, %v1409
        %v1436 = vmul.f32 %v1384, %v1409
        %v1437 = vmul.f32 %v1388, %v1409
        %v1438 = vmul.f32 %v1392, %v1409
        %v1439 = vmul.f32 %v1396, %v1409
        %v1440 = vmul.f32 %v1400, %v1409
        %v1441 = vmul.f32 %v1404, %v1409
        %v1442 = vadd.f32 %v1246, %v1410
        %v1443 = vadd.f32 %v1247, %v1411
        %v1444 = vadd.f32 %v1248, %v1412
        %v1445 = vadd.f32 %v1249, %v1413
        %v1446 = vadd.f32 %v1250, %v1414
        %v1447 = vadd.f32 %v1251, %v1415
        %v1448 = vadd.f32 %v1252, %v1416
        %v1449 = vadd.f32 %v1253, %v1417
        %v1450 = vadd.f32 %v1254, %v1418
        %v1451 = vadd.f32 %v1255, %v1419
        %v1452 = vadd.f32 %v1256, %v1420
        %v1453 = vadd.f32 %v1257, %v1421
        %v1454 = vadd.f32 %v1258, %v1422
        %v1455 = vadd.f32 %v1259, %v1423
        %v1456 = vadd.f32 %v1260, %v1424
        %v1457 = vadd.f32 %v1261, %v1425
        %v1458 = vadd.f32 %v1262, %v1426
        %v1459 = vadd.f32 %v1263, %v1427
        %v1460 = vadd.f32 %v1264, %v1428
        %v1461 = vadd.f32 %v1265, %v1429
        %v1462 = vadd.f32 %v1266, %v1430
        %v1463 = vadd.f32 %v1267, %v1431
        %v1464 = vadd.f32 %v1268, %v1432
        %v1465 = vadd.f32 %v1269, %v1433
        %v1466 = vadd.f32 %v1270, %v1434
        %v1467 = vadd.f32 %v1271, %v1435
        %v1468 = vadd.f32 %v1272, %v1436
        %v1469 = vadd.f32 %v1273, %v1437
        %v1470 = vadd.f32 %v1274, %v1438
        %v1471 = vadd.f32 %v1275, %v1439
        %v1472 = vadd.f32 %v1276, %v1440
        %v1473 = vadd.f32 %v1277, %v1441
        %v1474 = vld [vmem:[%s2] sm:$0x1]
        %v1476 = vlaneseq
        %v1477 = vshrl.u32 %v1476, 7
        %v1478 = vsub.s32 0, %v1477
        %v1479 = vrot.slane %v1474, %v1478
        %v1481 = vadd.f32 %v1442, %v1479
        %v1482 = vadd.f32 %v1443, %v1479
        %v1483 = vadd.f32 %v1444, %v1479
        %v1484 = vadd.f32 %v1445, %v1479
        %v1485 = vadd.f32 %v1446, %v1479
        %v1486 = vadd.f32 %v1447, %v1479
        %v1487 = vadd.f32 %v1448, %v1479
        %v1488 = vadd.f32 %v1449, %v1479
        %v1489 = vadd.f32 %v1450, %v1479
        %v1490 = vadd.f32 %v1451, %v1479
        %v1491 = vadd.f32 %v1452, %v1479
        %v1492 = vadd.f32 %v1453, %v1479
        %v1493 = vadd.f32 %v1454, %v1479
        %v1494 = vadd.f32 %v1455, %v1479
        %v1495 = vadd.f32 %v1456, %v1479
        %v1496 = vadd.f32 %v1457, %v1479
        %v1497 = vadd.f32 %v1458, %v1479
        %v1498 = vadd.f32 %v1459, %v1479
        %v1499 = vadd.f32 %v1460, %v1479
        %v1500 = vadd.f32 %v1461, %v1479
        %v1501 = vadd.f32 %v1462, %v1479
        %v1502 = vadd.f32 %v1463, %v1479
        %v1503 = vadd.f32 %v1464, %v1479
        %v1504 = vadd.f32 %v1465, %v1479
        %v1505 = vadd.f32 %v1466, %v1479
        %v1506 = vadd.f32 %v1467, %v1479
        %v1507 = vadd.f32 %v1468, %v1479
        %v1508 = vadd.f32 %v1469, %v1479
        %v1509 = vadd.f32 %v1470, %v1479
        %v1510 = vadd.f32 %v1471, %v1479
        %v1511 = vadd.f32 %v1472, %v1479
        %v1512 = vadd.f32 %v1473, %v1479
        %v1513 = vmax.f32 %v1481, 0.0
        %v1514 = vmax.f32 %v1482, 0.0
        %v1515 = vmax.f32 %v1483, 0.0
        %v1516 = vmax.f32 %v1484, 0.0
        %v1517 = vmax.f32 %v1485, 0.0
        %v1518 = vmax.f32 %v1486, 0.0
        %v1519 = vmax.f32 %v1487, 0.0
        %v1520 = vmax.f32 %v1488, 0.0
        %v1521 = vmax.f32 %v1489, 0.0
        %v1522 = vmax.f32 %v1490, 0.0
        %v1523 = vmax.f32 %v1491, 0.0
        %v1524 = vmax.f32 %v1492, 0.0
        %v1525 = vmax.f32 %v1493, 0.0
        %v1526 = vmax.f32 %v1494, 0.0
        %v1527 = vmax.f32 %v1495, 0.0
        %v1528 = vmax.f32 %v1496, 0.0
        %v1529 = vmax.f32 %v1497, 0.0
        %v1530 = vmax.f32 %v1498, 0.0
        %v1531 = vmax.f32 %v1499, 0.0
        %v1532 = vmax.f32 %v1500, 0.0
        %v1533 = vmax.f32 %v1501, 0.0
        %v1534 = vmax.f32 %v1502, 0.0
        %v1535 = vmax.f32 %v1503, 0.0
        %v1536 = vmax.f32 %v1504, 0.0
        %v1537 = vmax.f32 %v1505, 0.0
        %v1538 = vmax.f32 %v1506, 0.0
        %v1539 = vmax.f32 %v1507, 0.0
        %v1540 = vmax.f32 %v1508, 0.0
        %v1541 = vmax.f32 %v1509, 0.0
        %v1542 = vmax.f32 %v1510, 0.0
        %v1543 = vmax.f32 %v1511, 0.0
        %v1544 = vmax.f32 %v1512, 0.0
        %v1545 = vld [vmem:[%s3] sm:$0x3]
        %v1546 = vunpack.c.l.bf16 %v1545
        %v1547 = vlaneseq
        %v1548 = vshrl.u32 %v1547, 7
        %v1549 = vsub.s32 0, %v1548
        %v1550 = vrot.slane %v1546, %v1549
        %v1551 = vmul.f32 %v693, %v1550
        %v1552 = vmul.f32 %v698, %v1550
        %v1553 = vmul.f32 %v703, %v1550
        %v1554 = vmul.f32 %v708, %v1550
        %v1555 = vmul.f32 %v713, %v1550
        %v1556 = vmul.f32 %v718, %v1550
        %v1557 = vmul.f32 %v723, %v1550
        %v1558 = vmul.f32 %v728, %v1550
        %v1559 = vmul.f32 %v733, %v1550
        %v1560 = vmul.f32 %v738, %v1550
        %v1561 = vmul.f32 %v743, %v1550
        %v1562 = vmul.f32 %v748, %v1550
        %v1563 = vmul.f32 %v753, %v1550
        %v1564 = vmul.f32 %v758, %v1550
        %v1565 = vmul.f32 %v763, %v1550
        %v1566 = vmul.f32 %v768, %v1550
        %v1567 = vmul.f32 %v773, %v1550
        %v1568 = vmul.f32 %v778, %v1550
        %v1569 = vmul.f32 %v783, %v1550
        %v1570 = vmul.f32 %v788, %v1550
        %v1571 = vmul.f32 %v793, %v1550
        %v1572 = vmul.f32 %v798, %v1550
        %v1573 = vmul.f32 %v803, %v1550
        %v1574 = vmul.f32 %v808, %v1550
        %v1575 = vmul.f32 %v813, %v1550
        %v1576 = vmul.f32 %v818, %v1550
        %v1577 = vmul.f32 %v823, %v1550
        %v1578 = vmul.f32 %v828, %v1550
        %v1579 = vmul.f32 %v833, %v1550
        %v1580 = vmul.f32 %v838, %v1550
        %v1581 = vmul.f32 %v843, %v1550
        %v1582 = vmul.f32 %v848, %v1550
        %v1583 = vlaneseq
        %v1584 = vshrl.u32 %v1583, 7
        %v1585 = vsub.s32 1, %v1584
        %v1586 = vrot.slane %v1546, %v1585
        %v1587 = vmul.f32 %v888, %v1586
        %v1588 = vmul.f32 %v892, %v1586
        %v1589 = vmul.f32 %v896, %v1586
        %v1590 = vmul.f32 %v900, %v1586
        %v1591 = vmul.f32 %v904, %v1586
        %v1592 = vmul.f32 %v908, %v1586
        %v1593 = vmul.f32 %v912, %v1586
        %v1594 = vmul.f32 %v916, %v1586
        %v1595 = vmul.f32 %v920, %v1586
        %v1596 = vmul.f32 %v924, %v1586
        %v1597 = vmul.f32 %v928, %v1586
        %v1598 = vmul.f32 %v932, %v1586
        %v1599 = vmul.f32 %v936, %v1586
        %v1600 = vmul.f32 %v940, %v1586
        %v1601 = vmul.f32 %v944, %v1586
        %v1602 = vmul.f32 %v948, %v1586
        %v1603 = vmul.f32 %v952, %v1586
        %v1604 = vmul.f32 %v956, %v1586
        %v1605 = vmul.f32 %v960, %v1586
        %v1606 = vmul.f32 %v964, %v1586
        %v1607 = vmul.f32 %v968, %v1586
        %v1608 = vmul.f32 %v972, %v1586
        %v1609 = vmul.f32 %v976, %v1586
        %v1610 = vmul.f32 %v980, %v1586
        %v1611 = vmul.f32 %v984, %v1586
        %v1612 = vmul.f32 %v988, %v1586
        %v1613 = vmul.f32 %v992, %v1586
        %v1614 = vmul.f32 %v996, %v1586
        %v1615 = vmul.f32 %v1000, %v1586
        %v1616 = vmul.f32 %v1004, %v1586
        %v1617 = vmul.f32 %v1008, %v1586
        %v1618 = vmul.f32 %v1012, %v1586
        %v1619 = vadd.f32 %v1551, %v1587
        %v1620 = vadd.f32 %v1552, %v1588
        %v1621 = vadd.f32 %v1553, %v1589
        %v1622 = vadd.f32 %v1554, %v1590
        %v1623 = vadd.f32 %v1555, %v1591
        %v1624 = vadd.f32 %v1556, %v1592
        %v1625 = vadd.f32 %v1557, %v1593
        %v1626 = vadd.f32 %v1558, %v1594
        %v1627 = vadd.f32 %v1559, %v1595
        %v1628 = vadd.f32 %v1560, %v1596
        %v1629 = vadd.f32 %v1561, %v1597
        %v1630 = vadd.f32 %v1562, %v1598
        %v1631 = vadd.f32 %v1563, %v1599
        %v1632 = vadd.f32 %v1564, %v1600
        %v1633 = vadd.f32 %v1565, %v1601
        %v1634 = vadd.f32 %v1566, %v1602
        %v1635 = vadd.f32 %v1567, %v1603
        %v1636 = vadd.f32 %v1568, %v1604
        %v1637 = vadd.f32 %v1569, %v1605
        %v1638 = vadd.f32 %v1570, %v1606
        %v1639 = vadd.f32 %v1571, %v1607
        %v1640 = vadd.f32 %v1572, %v1608
        %v1641 = vadd.f32 %v1573, %v1609
        %v1642 = vadd.f32 %v1574, %v1610
        %v1643 = vadd.f32 %v1575, %v1611
        %v1644 = vadd.f32 %v1576, %v1612
        %v1645 = vadd.f32 %v1577, %v1613
        %v1646 = vadd.f32 %v1578, %v1614
        %v1647 = vadd.f32 %v1579, %v1615
        %v1648 = vadd.f32 %v1580, %v1616
        %v1649 = vadd.f32 %v1581, %v1617
        %v1650 = vadd.f32 %v1582, %v1618
        %v1651 = vlaneseq
        %v1652 = vshrl.u32 %v1651, 7
        %v1653 = vsub.s32 2, %v1652
        %v1654 = vrot.slane %v1546, %v1653
        %v1655 = vmul.f32 %v1084, %v1654
        %v1656 = vmul.f32 %v1088, %v1654
        %v1657 = vmul.f32 %v1092, %v1654
        %v1658 = vmul.f32 %v1096, %v1654
        %v1659 = vmul.f32 %v1100, %v1654
        %v1660 = vmul.f32 %v1104, %v1654
        %v1661 = vmul.f32 %v1108, %v1654
        %v1662 = vmul.f32 %v1112, %v1654
        %v1663 = vmul.f32 %v1116, %v1654
        %v1664 = vmul.f32 %v1120, %v1654
        %v1665 = vmul.f32 %v1124, %v1654
        %v1666 = vmul.f32 %v1128, %v1654
        %v1667 = vmul.f32 %v1132, %v1654
        %v1668 = vmul.f32 %v1136, %v1654
        %v1669 = vmul.f32 %v1140, %v1654
        %v1670 = vmul.f32 %v1144, %v1654
        %v1671 = vmul.f32 %v1148, %v1654
        %v1672 = vmul.f32 %v1152, %v1654
        %v1673 = vmul.f32 %v1156, %v1654
        %v1674 = vmul.f32 %v1160, %v1654
        %v1675 = vmul.f32 %v1164, %v1654
        %v1676 = vmul.f32 %v1168, %v1654
        %v1677 = vmul.f32 %v1172, %v1654
        %v1678 = vmul.f32 %v1176, %v1654
        %v1679 = vmul.f32 %v1180, %v1654
        %v1680 = vmul.f32 %v1184, %v1654
        %v1681 = vmul.f32 %v1188, %v1654
        %v1682 = vmul.f32 %v1192, %v1654
        %v1683 = vmul.f32 %v1196, %v1654
        %v1684 = vmul.f32 %v1200, %v1654
        %v1685 = vmul.f32 %v1204, %v1654
        %v1686 = vmul.f32 %v1208, %v1654
        %v1687 = vadd.f32 %v1619, %v1655
        %v1688 = vadd.f32 %v1620, %v1656
        %v1689 = vadd.f32 %v1621, %v1657
        %v1690 = vadd.f32 %v1622, %v1658
        %v1691 = vadd.f32 %v1623, %v1659
        %v1692 = vadd.f32 %v1624, %v1660
        %v1693 = vadd.f32 %v1625, %v1661
        %v1694 = vadd.f32 %v1626, %v1662
        %v1695 = vadd.f32 %v1627, %v1663
        %v1696 = vadd.f32 %v1628, %v1664
        %v1697 = vadd.f32 %v1629, %v1665
        %v1698 = vadd.f32 %v1630, %v1666
        %v1699 = vadd.f32 %v1631, %v1667
        %v1700 = vadd.f32 %v1632, %v1668
        %v1701 = vadd.f32 %v1633, %v1669
        %v1702 = vadd.f32 %v1634, %v1670
        %v1703 = vadd.f32 %v1635, %v1671
        %v1704 = vadd.f32 %v1636, %v1672
        %v1705 = vadd.f32 %v1637, %v1673
        %v1706 = vadd.f32 %v1638, %v1674
        %v1707 = vadd.f32 %v1639, %v1675
        %v1708 = vadd.f32 %v1640, %v1676
        %v1709 = vadd.f32 %v1641, %v1677
        %v1710 = vadd.f32 %v1642, %v1678
        %v1711 = vadd.f32 %v1643, %v1679
        %v1712 = vadd.f32 %v1644, %v1680
        %v1713 = vadd.f32 %v1645, %v1681
        %v1714 = vadd.f32 %v1646, %v1682
        %v1715 = vadd.f32 %v1647, %v1683
        %v1716 = vadd.f32 %v1648, %v1684
        %v1717 = vadd.f32 %v1649, %v1685
        %v1718 = vadd.f32 %v1650, %v1686
        %v1719 = vlaneseq
        %v1720 = vshrl.u32 %v1719, 7
        %v1721 = vsub.s32 3, %v1720
        %v1722 = vrot.slane %v1546, %v1721
        %v1723 = vmul.f32 %v1280, %v1722
        %v1724 = vmul.f32 %v1284, %v1722
        %v1725 = vmul.f32 %v1288, %v1722
        %v1726 = vmul.f32 %v1292, %v1722
        %v1727 = vmul.f32 %v1296, %v1722
        %v1728 = vmul.f32 %v1300, %v1722
        %v1729 = vmul.f32 %v1304, %v1722
        %v1730 = vmul.f32 %v1308, %v1722
        %v1731 = vmul.f32 %v1312, %v1722
        %v1732 = vmul.f32 %v1316, %v1722
        %v1733 = vmul.f32 %v1320, %v1722
        %v1734 = vmul.f32 %v1324, %v1722
        %v1735 = vmul.f32 %v1328, %v1722
        %v1736 = vmul.f32 %v1332, %v1722
        %v1737 = vmul.f32 %v1336, %v1722
        %v1738 = vmul.f32 %v1340, %v1722
        %v1739 = vmul.f32 %v1344, %v1722
        %v1740 = vmul.f32 %v1348, %v1722
        %v1741 = vmul.f32 %v1352, %v1722
        %v1742 = vmul.f32 %v1356, %v1722
        %v1743 = vmul.f32 %v1360, %v1722
        %v1744 = vmul.f32 %v1364, %v1722
        %v1745 = vmul.f32 %v1368, %v1722
        %v1746 = vmul.f32 %v1372, %v1722
        %v1747 = vmul.f32 %v1376, %v1722
        %v1748 = vmul.f32 %v1380, %v1722
        %v1749 = vmul.f32 %v1384, %v1722
        %v1750 = vmul.f32 %v1388, %v1722
        %v1751 = vmul.f32 %v1392, %v1722
        %v1752 = vmul.f32 %v1396, %v1722
        %v1753 = vmul.f32 %v1400, %v1722
        %v1754 = vmul.f32 %v1404, %v1722
        %v1755 = vadd.f32 %v1687, %v1723
        %v1756 = vadd.f32 %v1688, %v1724
        %v1757 = vadd.f32 %v1689, %v1725
        %v1758 = vadd.f32 %v1690, %v1726
        %v1759 = vadd.f32 %v1691, %v1727
        %v1760 = vadd.f32 %v1692, %v1728
        %v1761 = vadd.f32 %v1693, %v1729
        %v1762 = vadd.f32 %v1694, %v1730
        %v1763 = vadd.f32 %v1695, %v1731
        %v1764 = vadd.f32 %v1696, %v1732
        %v1765 = vadd.f32 %v1697, %v1733
        %v1766 = vadd.f32 %v1698, %v1734
        %v1767 = vadd.f32 %v1699, %v1735
        %v1768 = vadd.f32 %v1700, %v1736
        %v1769 = vadd.f32 %v1701, %v1737
        %v1770 = vadd.f32 %v1702, %v1738
        %v1771 = vadd.f32 %v1703, %v1739
        %v1772 = vadd.f32 %v1704, %v1740
        %v1773 = vadd.f32 %v1705, %v1741
        %v1774 = vadd.f32 %v1706, %v1742
        %v1775 = vadd.f32 %v1707, %v1743
        %v1776 = vadd.f32 %v1708, %v1744
        %v1777 = vadd.f32 %v1709, %v1745
        %v1778 = vadd.f32 %v1710, %v1746
        %v1779 = vadd.f32 %v1711, %v1747
        %v1780 = vadd.f32 %v1712, %v1748
        %v1781 = vadd.f32 %v1713, %v1749
        %v1782 = vadd.f32 %v1714, %v1750
        %v1783 = vadd.f32 %v1715, %v1751
        %v1784 = vadd.f32 %v1716, %v1752
        %v1785 = vadd.f32 %v1717, %v1753
        %v1786 = vadd.f32 %v1718, %v1754
        %v1787 = vld [vmem:[%s4] sm:$0x1]
        %v1789 = vlaneseq
        %v1790 = vshrl.u32 %v1789, 7
        %v1791 = vsub.s32 0, %v1790
        %v1792 = vrot.slane %v1787, %v1791
        %v1794 = vadd.f32 %v1755, %v1792
        %v1795 = vadd.f32 %v1756, %v1792
        %v1796 = vadd.f32 %v1757, %v1792
        %v1797 = vadd.f32 %v1758, %v1792
        %v1798 = vadd.f32 %v1759, %v1792
        %v1799 = vadd.f32 %v1760, %v1792
        %v1800 = vadd.f32 %v1761, %v1792
        %v1801 = vadd.f32 %v1762, %v1792
        %v1802 = vadd.f32 %v1763, %v1792
        %v1803 = vadd.f32 %v1764, %v1792
        %v1804 = vadd.f32 %v1765, %v1792
        %v1805 = vadd.f32 %v1766, %v1792
        %v1806 = vadd.f32 %v1767, %v1792
        %v1807 = vadd.f32 %v1768, %v1792
        %v1808 = vadd.f32 %v1769, %v1792
        %v1809 = vadd.f32 %v1770, %v1792
        %v1810 = vadd.f32 %v1771, %v1792
        %v1811 = vadd.f32 %v1772, %v1792
        %v1812 = vadd.f32 %v1773, %v1792
        %v1813 = vadd.f32 %v1774, %v1792
        %v1814 = vadd.f32 %v1775, %v1792
        %v1815 = vadd.f32 %v1776, %v1792
        %v1816 = vadd.f32 %v1777, %v1792
        %v1817 = vadd.f32 %v1778, %v1792
        %v1818 = vadd.f32 %v1779, %v1792
        %v1819 = vadd.f32 %v1780, %v1792
        %v1820 = vadd.f32 %v1781, %v1792
        %v1821 = vadd.f32 %v1782, %v1792
        %v1822 = vadd.f32 %v1783, %v1792
        %v1823 = vadd.f32 %v1784, %v1792
        %v1824 = vadd.f32 %v1785, %v1792
        %v1825 = vadd.f32 %v1786, %v1792
        %v1826 = vmax.f32 %v1794, 0.0
        %v1827 = vmax.f32 %v1795, 0.0
        %v1828 = vmax.f32 %v1796, 0.0
        %v1829 = vmax.f32 %v1797, 0.0
        %v1830 = vmax.f32 %v1798, 0.0
        %v1831 = vmax.f32 %v1799, 0.0
        %v1832 = vmax.f32 %v1800, 0.0
        %v1833 = vmax.f32 %v1801, 0.0
        %v1834 = vmax.f32 %v1802, 0.0
        %v1835 = vmax.f32 %v1803, 0.0
        %v1836 = vmax.f32 %v1804, 0.0
        %v1837 = vmax.f32 %v1805, 0.0
        %v1838 = vmax.f32 %v1806, 0.0
        %v1839 = vmax.f32 %v1807, 0.0
        %v1840 = vmax.f32 %v1808, 0.0
        %v1841 = vmax.f32 %v1809, 0.0
        %v1842 = vmax.f32 %v1810, 0.0
        %v1843 = vmax.f32 %v1811, 0.0
        %v1844 = vmax.f32 %v1812, 0.0
        %v1845 = vmax.f32 %v1813, 0.0
        %v1846 = vmax.f32 %v1814, 0.0
        %v1847 = vmax.f32 %v1815, 0.0
        %v1848 = vmax.f32 %v1816, 0.0
        %v1849 = vmax.f32 %v1817, 0.0
        %v1850 = vmax.f32 %v1818, 0.0
        %v1851 = vmax.f32 %v1819, 0.0
        %v1852 = vmax.f32 %v1820, 0.0
        %v1853 = vmax.f32 %v1821, 0.0
        %v1854 = vmax.f32 %v1822, 0.0
        %v1855 = vmax.f32 %v1823, 0.0
        %v1856 = vmax.f32 %v1824, 0.0
        %v1857 = vmax.f32 %v1825, 0.0
        %v1858 = vld [vmem:[%s5] sm:$0x3]
        %v1859 = vunpack.c.l.bf16 %v1858
        %v1860 = vlaneseq
        %v1861 = vshrl.u32 %v1860, 7
        %v1862 = vsub.s32 0, %v1861
        %v1863 = vrot.slane %v1859, %v1862
        %v1864 = vmul.f32 %v693, %v1863
        %v1865 = vmul.f32 %v698, %v1863
        %v1866 = vmul.f32 %v703, %v1863
        %v1867 = vmul.f32 %v708, %v1863
        %v1868 = vmul.f32 %v713, %v1863
        %v1869 = vmul.f32 %v718, %v1863
        %v1870 = vmul.f32 %v723, %v1863
        %v1871 = vmul.f32 %v728, %v1863
        %v1872 = vmul.f32 %v733, %v1863
        %v1873 = vmul.f32 %v738, %v1863
        %v1874 = vmul.f32 %v743, %v1863
        %v1875 = vmul.f32 %v748, %v1863
        %v1876 = vmul.f32 %v753, %v1863
        %v1877 = vmul.f32 %v758, %v1863
        %v1878 = vmul.f32 %v763, %v1863
        %v1879 = vmul.f32 %v768, %v1863
        %v1880 = vmul.f32 %v773, %v1863
        %v1881 = vmul.f32 %v778, %v1863
        %v1882 = vmul.f32 %v783, %v1863
        %v1883 = vmul.f32 %v788, %v1863
        %v1884 = vmul.f32 %v793, %v1863
        %v1885 = vmul.f32 %v798, %v1863
        %v1886 = vmul.f32 %v803, %v1863
        %v1887 = vmul.f32 %v808, %v1863
        %v1888 = vmul.f32 %v813, %v1863
        %v1889 = vmul.f32 %v818, %v1863
        %v1890 = vmul.f32 %v823, %v1863
        %v1891 = vmul.f32 %v828, %v1863
        %v1892 = vmul.f32 %v833, %v1863
        %v1893 = vmul.f32 %v838, %v1863
        %v1894 = vmul.f32 %v843, %v1863
        %v1895 = vmul.f32 %v848, %v1863
        %v1896 = vlaneseq
        %v1897 = vshrl.u32 %v1896, 7
        %v1898 = vsub.s32 1, %v1897
        %v1899 = vrot.slane %v1859, %v1898
        %v1900 = vmul.f32 %v888, %v1899
        %v1901 = vmul.f32 %v892, %v1899
        %v1902 = vmul.f32 %v896, %v1899
        %v1903 = vmul.f32 %v900, %v1899
        %v1904 = vmul.f32 %v904, %v1899
        %v1905 = vmul.f32 %v908, %v1899
        %v1906 = vmul.f32 %v912, %v1899
        %v1907 = vmul.f32 %v916, %v1899
        %v1908 = vmul.f32 %v920, %v1899
        %v1909 = vmul.f32 %v924, %v1899
        %v1910 = vmul.f32 %v928, %v1899
        %v1911 = vmul.f32 %v932, %v1899
        %v1912 = vmul.f32 %v936, %v1899
        %v1913 = vmul.f32 %v940, %v1899
        %v1914 = vmul.f32 %v944, %v1899
        %v1915 = vmul.f32 %v948, %v1899
        %v1916 = vmul.f32 %v952, %v1899
        %v1917 = vmul.f32 %v956, %v1899
        %v1918 = vmul.f32 %v960, %v1899
        %v1919 = vmul.f32 %v964, %v1899
        %v1920 = vmul.f32 %v968, %v1899
        %v1921 = vmul.f32 %v972, %v1899
        %v1922 = vmul.f32 %v976, %v1899
        %v1923 = vmul.f32 %v980, %v1899
        %v1924 = vmul.f32 %v984, %v1899
        %v1925 = vmul.f32 %v988, %v1899
        %v1926 = vmul.f32 %v992, %v1899
        %v1927 = vmul.f32 %v996, %v1899
        %v1928 = vmul.f32 %v1000, %v1899
        %v1929 = vmul.f32 %v1004, %v1899
        %v1930 = vmul.f32 %v1008, %v1899
        %v1931 = vmul.f32 %v1012, %v1899
        %v1932 = vadd.f32 %v1864, %v1900
        %v1933 = vadd.f32 %v1865, %v1901
        %v1934 = vadd.f32 %v1866, %v1902
        %v1935 = vadd.f32 %v1867, %v1903
        %v1936 = vadd.f32 %v1868, %v1904
        %v1937 = vadd.f32 %v1869, %v1905
        %v1938 = vadd.f32 %v1870, %v1906
        %v1939 = vadd.f32 %v1871, %v1907
        %v1940 = vadd.f32 %v1872, %v1908
        %v1941 = vadd.f32 %v1873, %v1909
        %v1942 = vadd.f32 %v1874, %v1910
        %v1943 = vadd.f32 %v1875, %v1911
        %v1944 = vadd.f32 %v1876, %v1912
        %v1945 = vadd.f32 %v1877, %v1913
        %v1946 = vadd.f32 %v1878, %v1914
        %v1947 = vadd.f32 %v1879, %v1915
        %v1948 = vadd.f32 %v1880, %v1916
        %v1949 = vadd.f32 %v1881, %v1917
        %v1950 = vadd.f32 %v1882, %v1918
        %v1951 = vadd.f32 %v1883, %v1919
        %v1952 = vadd.f32 %v1884, %v1920
        %v1953 = vadd.f32 %v1885, %v1921
        %v1954 = vadd.f32 %v1886, %v1922
        %v1955 = vadd.f32 %v1887, %v1923
        %v1956 = vadd.f32 %v1888, %v1924
        %v1957 = vadd.f32 %v1889, %v1925
        %v1958 = vadd.f32 %v1890, %v1926
        %v1959 = vadd.f32 %v1891, %v1927
        %v1960 = vadd.f32 %v1892, %v1928
        %v1961 = vadd.f32 %v1893, %v1929
        %v1962 = vadd.f32 %v1894, %v1930
        %v1963 = vadd.f32 %v1895, %v1931
        %v1964 = vlaneseq
        %v1965 = vshrl.u32 %v1964, 7
        %v1966 = vsub.s32 2, %v1965
        %v1967 = vrot.slane %v1859, %v1966
        %v1968 = vmul.f32 %v1084, %v1967
        %v1969 = vmul.f32 %v1088, %v1967
        %v1970 = vmul.f32 %v1092, %v1967
        %v1971 = vmul.f32 %v1096, %v1967
        %v1972 = vmul.f32 %v1100, %v1967
        %v1973 = vmul.f32 %v1104, %v1967
        %v1974 = vmul.f32 %v1108, %v1967
        %v1975 = vmul.f32 %v1112, %v1967
        %v1976 = vmul.f32 %v1116, %v1967
        %v1977 = vmul.f32 %v1120, %v1967
        %v1978 = vmul.f32 %v1124, %v1967
        %v1979 = vmul.f32 %v1128, %v1967
        %v1980 = vmul.f32 %v1132, %v1967
        %v1981 = vmul.f32 %v1136, %v1967
        %v1982 = vmul.f32 %v1140, %v1967
        %v1983 = vmul.f32 %v1144, %v1967
        %v1984 = vmul.f32 %v1148, %v1967
        %v1985 = vmul.f32 %v1152, %v1967
        %v1986 = vmul.f32 %v1156, %v1967
        %v1987 = vmul.f32 %v1160, %v1967
        %v1988 = vmul.f32 %v1164, %v1967
        %v1989 = vmul.f32 %v1168, %v1967
        %v1990 = vmul.f32 %v1172, %v1967
        %v1991 = vmul.f32 %v1176, %v1967
        %v1992 = vmul.f32 %v1180, %v1967
        %v1993 = vmul.f32 %v1184, %v1967
        %v1994 = vmul.f32 %v1188, %v1967
        %v1995 = vmul.f32 %v1192, %v1967
        %v1996 = vmul.f32 %v1196, %v1967
        %v1997 = vmul.f32 %v1200, %v1967
        %v1998 = vmul.f32 %v1204, %v1967
        %v1999 = vmul.f32 %v1208, %v1967
        %v2000 = vadd.f32 %v1932, %v1968
        %v2001 = vadd.f32 %v1933, %v1969
        %v2002 = vadd.f32 %v1934, %v1970
        %v2003 = vadd.f32 %v1935, %v1971
        %v2004 = vadd.f32 %v1936, %v1972
        %v2005 = vadd.f32 %v1937, %v1973
        %v2006 = vadd.f32 %v1938, %v1974
        %v2007 = vadd.f32 %v1939, %v1975
        %v2008 = vadd.f32 %v1940, %v1976
        %v2009 = vadd.f32 %v1941, %v1977
        %v2010 = vadd.f32 %v1942, %v1978
        %v2011 = vadd.f32 %v1943, %v1979
        %v2012 = vadd.f32 %v1944, %v1980
        %v2013 = vadd.f32 %v1945, %v1981
        %v2014 = vadd.f32 %v1946, %v1982
        %v2015 = vadd.f32 %v1947, %v1983
        %v2016 = vadd.f32 %v1948, %v1984
        %v2017 = vadd.f32 %v1949, %v1985
        %v2018 = vadd.f32 %v1950, %v1986
        %v2019 = vadd.f32 %v1951, %v1987
        %v2020 = vadd.f32 %v1952, %v1988
        %v2021 = vadd.f32 %v1953, %v1989
        %v2022 = vadd.f32 %v1954, %v1990
        %v2023 = vadd.f32 %v1955, %v1991
        %v2024 = vadd.f32 %v1956, %v1992
        %v2025 = vadd.f32 %v1957, %v1993
        %v2026 = vadd.f32 %v1958, %v1994
        %v2027 = vadd.f32 %v1959, %v1995
        %v2028 = vadd.f32 %v1960, %v1996
        %v2029 = vadd.f32 %v1961, %v1997
        %v2030 = vadd.f32 %v1962, %v1998
        %v2031 = vadd.f32 %v1963, %v1999
        %v2032 = vlaneseq
        %v2033 = vshrl.u32 %v2032, 7
        %v2034 = vsub.s32 3, %v2033
        %v2035 = vrot.slane %v1859, %v2034
        %v2036 = vmul.f32 %v1280, %v2035
        %v2037 = vmul.f32 %v1284, %v2035
        %v2038 = vmul.f32 %v1288, %v2035
        %v2039 = vmul.f32 %v1292, %v2035
        %v2040 = vmul.f32 %v1296, %v2035
        %v2041 = vmul.f32 %v1300, %v2035
        %v2042 = vmul.f32 %v1304, %v2035
        %v2043 = vmul.f32 %v1308, %v2035
        %v2044 = vmul.f32 %v1312, %v2035
        %v2045 = vmul.f32 %v1316, %v2035
        %v2046 = vmul.f32 %v1320, %v2035
        %v2047 = vmul.f32 %v1324, %v2035
        %v2048 = vmul.f32 %v1328, %v2035
        %v2049 = vmul.f32 %v1332, %v2035
        %v2050 = vmul.f32 %v1336, %v2035
        %v2051 = vmul.f32 %v1340, %v2035
        %v2052 = vmul.f32 %v1344, %v2035
        %v2053 = vmul.f32 %v1348, %v2035
        %v2054 = vmul.f32 %v1352, %v2035
        %v2055 = vmul.f32 %v1356, %v2035
        %v2056 = vmul.f32 %v1360, %v2035
        %v2057 = vmul.f32 %v1364, %v2035
        %v2058 = vmul.f32 %v1368, %v2035
        %v2059 = vmul.f32 %v1372, %v2035
        %v2060 = vmul.f32 %v1376, %v2035
        %v2061 = vmul.f32 %v1380, %v2035
        %v2062 = vmul.f32 %v1384, %v2035
        %v2063 = vmul.f32 %v1388, %v2035
        %v2064 = vmul.f32 %v1392, %v2035
        %v2065 = vmul.f32 %v1396, %v2035
        %v2066 = vmul.f32 %v1400, %v2035
        %v2067 = vmul.f32 %v1404, %v2035
        %v2068 = vadd.f32 %v2000, %v2036
        %v2069 = vadd.f32 %v2001, %v2037
        %v2070 = vadd.f32 %v2002, %v2038
        %v2071 = vadd.f32 %v2003, %v2039
        %v2072 = vadd.f32 %v2004, %v2040
        %v2073 = vadd.f32 %v2005, %v2041
        %v2074 = vadd.f32 %v2006, %v2042
        %v2075 = vadd.f32 %v2007, %v2043
        %v2076 = vadd.f32 %v2008, %v2044
        %v2077 = vadd.f32 %v2009, %v2045
        %v2078 = vadd.f32 %v2010, %v2046
        %v2079 = vadd.f32 %v2011, %v2047
        %v2080 = vadd.f32 %v2012, %v2048
        %v2081 = vadd.f32 %v2013, %v2049
        %v2082 = vadd.f32 %v2014, %v2050
        %v2083 = vadd.f32 %v2015, %v2051
        %v2084 = vadd.f32 %v2016, %v2052
        %v2085 = vadd.f32 %v2017, %v2053
        %v2086 = vadd.f32 %v2018, %v2054
        %v2087 = vadd.f32 %v2019, %v2055
        %v2088 = vadd.f32 %v2020, %v2056
        %v2089 = vadd.f32 %v2021, %v2057
        %v2090 = vadd.f32 %v2022, %v2058
        %v2091 = vadd.f32 %v2023, %v2059
        %v2092 = vadd.f32 %v2024, %v2060
        %v2093 = vadd.f32 %v2025, %v2061
        %v2094 = vadd.f32 %v2026, %v2062
        %v2095 = vadd.f32 %v2027, %v2063
        %v2096 = vadd.f32 %v2028, %v2064
        %v2097 = vadd.f32 %v2029, %v2065
        %v2098 = vadd.f32 %v2030, %v2066
        %v2099 = vadd.f32 %v2031, %v2067
        %v2100 = vld [vmem:[%s6] sm:$0x1]
        %v2102 = vlaneseq
        %v2103 = vshrl.u32 %v2102, 7
        %v2104 = vsub.s32 0, %v2103
        %v2105 = vrot.slane %v2100, %v2104
        %v2107 = vadd.f32 %v2068, %v2105
        %v2108 = vadd.f32 %v2069, %v2105
        %v2109 = vadd.f32 %v2070, %v2105
        %v2110 = vadd.f32 %v2071, %v2105
        %v2111 = vadd.f32 %v2072, %v2105
        %v2112 = vadd.f32 %v2073, %v2105
        %v2113 = vadd.f32 %v2074, %v2105
        %v2114 = vadd.f32 %v2075, %v2105
        %v2115 = vadd.f32 %v2076, %v2105
        %v2116 = vadd.f32 %v2077, %v2105
        %v2117 = vadd.f32 %v2078, %v2105
        %v2118 = vadd.f32 %v2079, %v2105
        %v2119 = vadd.f32 %v2080, %v2105
        %v2120 = vadd.f32 %v2081, %v2105
        %v2121 = vadd.f32 %v2082, %v2105
        %v2122 = vadd.f32 %v2083, %v2105
        %v2123 = vadd.f32 %v2084, %v2105
        %v2124 = vadd.f32 %v2085, %v2105
        %v2125 = vadd.f32 %v2086, %v2105
        %v2126 = vadd.f32 %v2087, %v2105
        %v2127 = vadd.f32 %v2088, %v2105
        %v2128 = vadd.f32 %v2089, %v2105
        %v2129 = vadd.f32 %v2090, %v2105
        %v2130 = vadd.f32 %v2091, %v2105
        %v2131 = vadd.f32 %v2092, %v2105
        %v2132 = vadd.f32 %v2093, %v2105
        %v2133 = vadd.f32 %v2094, %v2105
        %v2134 = vadd.f32 %v2095, %v2105
        %v2135 = vadd.f32 %v2096, %v2105
        %v2136 = vadd.f32 %v2097, %v2105
        %v2137 = vadd.f32 %v2098, %v2105
        %v2138 = vadd.f32 %v2099, %v2105
        %v2139 = vmax.f32 %v2107, 0.0
        %v2140 = vmax.f32 %v2108, 0.0
        %v2141 = vmax.f32 %v2109, 0.0
        %v2142 = vmax.f32 %v2110, 0.0
        %v2143 = vmax.f32 %v2111, 0.0
        %v2144 = vmax.f32 %v2112, 0.0
        %v2145 = vmax.f32 %v2113, 0.0
        %v2146 = vmax.f32 %v2114, 0.0
        %v2147 = vmax.f32 %v2115, 0.0
        %v2148 = vmax.f32 %v2116, 0.0
        %v2149 = vmax.f32 %v2117, 0.0
        %v2150 = vmax.f32 %v2118, 0.0
        %v2151 = vmax.f32 %v2119, 0.0
        %v2152 = vmax.f32 %v2120, 0.0
        %v2153 = vmax.f32 %v2121, 0.0
        %v2154 = vmax.f32 %v2122, 0.0
        %v2155 = vmax.f32 %v2123, 0.0
        %v2156 = vmax.f32 %v2124, 0.0
        %v2157 = vmax.f32 %v2125, 0.0
        %v2158 = vmax.f32 %v2126, 0.0
        %v2159 = vmax.f32 %v2127, 0.0
        %v2160 = vmax.f32 %v2128, 0.0
        %v2161 = vmax.f32 %v2129, 0.0
        %v2162 = vmax.f32 %v2130, 0.0
        %v2163 = vmax.f32 %v2131, 0.0
        %v2164 = vmax.f32 %v2132, 0.0
        %v2165 = vmax.f32 %v2133, 0.0
        %v2166 = vmax.f32 %v2134, 0.0
        %v2167 = vmax.f32 %v2135, 0.0
        %v2168 = vmax.f32 %v2136, 0.0
        %v2169 = vmax.f32 %v2137, 0.0
        %v2170 = vmax.f32 %v2138, 0.0
        %v2171 = vld [vmem:[%s7] sm:$0x3]
        %v2172 = vunpack.c.l.bf16 %v2171
        %v2173 = vlaneseq
        %v2174 = vshrl.u32 %v2173, 7
        %v2175 = vsub.s32 0, %v2174
        %v2176 = vrot.slane %v2172, %v2175
        %v2177 = vmul.f32 %v693, %v2176
        %v2178 = vmul.f32 %v698, %v2176
        %v2179 = vmul.f32 %v703, %v2176
        %v2180 = vmul.f32 %v708, %v2176
        %v2181 = vmul.f32 %v713, %v2176
        %v2182 = vmul.f32 %v718, %v2176
        %v2183 = vmul.f32 %v723, %v2176
        %v2184 = vmul.f32 %v728, %v2176
        %v2185 = vmul.f32 %v733, %v2176
        %v2186 = vmul.f32 %v738, %v2176
        %v2187 = vmul.f32 %v743, %v2176
        %v2188 = vmul.f32 %v748, %v2176
        %v2189 = vmul.f32 %v753, %v2176
        %v2190 = vmul.f32 %v758, %v2176
        %v2191 = vmul.f32 %v763, %v2176
        %v2192 = vmul.f32 %v768, %v2176
        %v2193 = vmul.f32 %v773, %v2176
        %v2194 = vmul.f32 %v778, %v2176
        %v2195 = vmul.f32 %v783, %v2176
        %v2196 = vmul.f32 %v788, %v2176
        %v2197 = vmul.f32 %v793, %v2176
        %v2198 = vmul.f32 %v798, %v2176
        %v2199 = vmul.f32 %v803, %v2176
        %v2200 = vmul.f32 %v808, %v2176
        %v2201 = vmul.f32 %v813, %v2176
        %v2202 = vmul.f32 %v818, %v2176
        %v2203 = vmul.f32 %v823, %v2176
        %v2204 = vmul.f32 %v828, %v2176
        %v2205 = vmul.f32 %v833, %v2176
        %v2206 = vmul.f32 %v838, %v2176
        %v2207 = vmul.f32 %v843, %v2176
        %v2208 = vmul.f32 %v848, %v2176
        %v2209 = vlaneseq
        %v2210 = vshrl.u32 %v2209, 7
        %v2211 = vsub.s32 1, %v2210
        %v2212 = vrot.slane %v2172, %v2211
        %v2213 = vmul.f32 %v888, %v2212
        %v2214 = vmul.f32 %v892, %v2212
        %v2215 = vmul.f32 %v896, %v2212
        %v2216 = vmul.f32 %v900, %v2212
        %v2217 = vmul.f32 %v904, %v2212
        %v2218 = vmul.f32 %v908, %v2212
        %v2219 = vmul.f32 %v912, %v2212
        %v2220 = vmul.f32 %v916, %v2212
        %v2221 = vmul.f32 %v920, %v2212
        %v2222 = vmul.f32 %v924, %v2212
        %v2223 = vmul.f32 %v928, %v2212
        %v2224 = vmul.f32 %v932, %v2212
        %v2225 = vmul.f32 %v936, %v2212
        %v2226 = vmul.f32 %v940, %v2212
        %v2227 = vmul.f32 %v944, %v2212
        %v2228 = vmul.f32 %v948, %v2212
        %v2229 = vmul.f32 %v952, %v2212
        %v2230 = vmul.f32 %v956, %v2212
        %v2231 = vmul.f32 %v960, %v2212
        %v2232 = vmul.f32 %v964, %v2212
        %v2233 = vmul.f32 %v968, %v2212
        %v2234 = vmul.f32 %v972, %v2212
        %v2235 = vmul.f32 %v976, %v2212
        %v2236 = vmul.f32 %v980, %v2212
        %v2237 = vmul.f32 %v984, %v2212
        %v2238 = vmul.f32 %v988, %v2212
        %v2239 = vmul.f32 %v992, %v2212
        %v2240 = vmul.f32 %v996, %v2212
        %v2241 = vmul.f32 %v1000, %v2212
        %v2242 = vmul.f32 %v1004, %v2212
        %v2243 = vmul.f32 %v1008, %v2212
        %v2244 = vmul.f32 %v1012, %v2212
        %v2245 = vadd.f32 %v2177, %v2213
        %v2246 = vadd.f32 %v2178, %v2214
        %v2247 = vadd.f32 %v2179, %v2215
        %v2248 = vadd.f32 %v2180, %v2216
        %v2249 = vadd.f32 %v2181, %v2217
        %v2250 = vadd.f32 %v2182, %v2218
        %v2251 = vadd.f32 %v2183, %v2219
        %v2252 = vadd.f32 %v2184, %v2220
        %v2253 = vadd.f32 %v2185, %v2221
        %v2254 = vadd.f32 %v2186, %v2222
        %v2255 = vadd.f32 %v2187, %v2223
        %v2256 = vadd.f32 %v2188, %v2224
        %v2257 = vadd.f32 %v2189, %v2225
        %v2258 = vadd.f32 %v2190, %v2226
        %v2259 = vadd.f32 %v2191, %v2227
        %v2260 = vadd.f32 %v2192, %v2228
        %v2261 = vadd.f32 %v2193, %v2229
        %v2262 = vadd.f32 %v2194, %v2230
        %v2263 = vadd.f32 %v2195, %v2231
        %v2264 = vadd.f32 %v2196, %v2232
        %v2265 = vadd.f32 %v2197, %v2233
        %v2266 = vadd.f32 %v2198, %v2234
        %v2267 = vadd.f32 %v2199, %v2235
        %v2268 = vadd.f32 %v2200, %v2236
        %v2269 = vadd.f32 %v2201, %v2237
        %v2270 = vadd.f32 %v2202, %v2238
        %v2271 = vadd.f32 %v2203, %v2239
        %v2272 = vadd.f32 %v2204, %v2240
        %v2273 = vadd.f32 %v2205, %v2241
        %v2274 = vadd.f32 %v2206, %v2242
        %v2275 = vadd.f32 %v2207, %v2243
        %v2276 = vadd.f32 %v2208, %v2244
        %v2277 = vlaneseq
        %v2278 = vshrl.u32 %v2277, 7
        %v2279 = vsub.s32 2, %v2278
        %v2280 = vrot.slane %v2172, %v2279
        %v2281 = vmul.f32 %v1084, %v2280
        %v2282 = vmul.f32 %v1088, %v2280
        %v2283 = vmul.f32 %v1092, %v2280
        %v2284 = vmul.f32 %v1096, %v2280
        %v2285 = vmul.f32 %v1100, %v2280
        %v2286 = vmul.f32 %v1104, %v2280
        %v2287 = vmul.f32 %v1108, %v2280
        %v2288 = vmul.f32 %v1112, %v2280
        %v2289 = vmul.f32 %v1116, %v2280
        %v2290 = vmul.f32 %v1120, %v2280
        %v2291 = vmul.f32 %v1124, %v2280
        %v2292 = vmul.f32 %v1128, %v2280
        %v2293 = vmul.f32 %v1132, %v2280
        %v2294 = vmul.f32 %v1136, %v2280
        %v2295 = vmul.f32 %v1140, %v2280
        %v2296 = vmul.f32 %v1144, %v2280
        %v2297 = vmul.f32 %v1148, %v2280
        %v2298 = vmul.f32 %v1152, %v2280
        %v2299 = vmul.f32 %v1156, %v2280
        %v2300 = vmul.f32 %v1160, %v2280
        %v2301 = vmul.f32 %v1164, %v2280
        %v2302 = vmul.f32 %v1168, %v2280
        %v2303 = vmul.f32 %v1172, %v2280
        %v2304 = vmul.f32 %v1176, %v2280
        %v2305 = vmul.f32 %v1180, %v2280
        %v2306 = vmul.f32 %v1184, %v2280
        %v2307 = vmul.f32 %v1188, %v2280
        %v2308 = vmul.f32 %v1192, %v2280
        %v2309 = vmul.f32 %v1196, %v2280
        %v2310 = vmul.f32 %v1200, %v2280
        %v2311 = vmul.f32 %v1204, %v2280
        %v2312 = vmul.f32 %v1208, %v2280
        %v2313 = vadd.f32 %v2245, %v2281
        %v2314 = vadd.f32 %v2246, %v2282
        %v2315 = vadd.f32 %v2247, %v2283
        %v2316 = vadd.f32 %v2248, %v2284
        %v2317 = vadd.f32 %v2249, %v2285
        %v2318 = vadd.f32 %v2250, %v2286
        %v2319 = vadd.f32 %v2251, %v2287
        %v2320 = vadd.f32 %v2252, %v2288
        %v2321 = vadd.f32 %v2253, %v2289
        %v2322 = vadd.f32 %v2254, %v2290
        %v2323 = vadd.f32 %v2255, %v2291
        %v2324 = vadd.f32 %v2256, %v2292
        %v2325 = vadd.f32 %v2257, %v2293
        %v2326 = vadd.f32 %v2258, %v2294
        %v2327 = vadd.f32 %v2259, %v2295
        %v2328 = vadd.f32 %v2260, %v2296
        %v2329 = vadd.f32 %v2261, %v2297
        %v2330 = vadd.f32 %v2262, %v2298
        %v2331 = vadd.f32 %v2263, %v2299
        %v2332 = vadd.f32 %v2264, %v2300
        %v2333 = vadd.f32 %v2265, %v2301
        %v2334 = vadd.f32 %v2266, %v2302
        %v2335 = vadd.f32 %v2267, %v2303
        %v2336 = vadd.f32 %v2268, %v2304
        %v2337 = vadd.f32 %v2269, %v2305
        %v2338 = vadd.f32 %v2270, %v2306
        %v2339 = vadd.f32 %v2271, %v2307
        %v2340 = vadd.f32 %v2272, %v2308
        %v2341 = vadd.f32 %v2273, %v2309
        %v2342 = vadd.f32 %v2274, %v2310
        %v2343 = vadd.f32 %v2275, %v2311
        %v2344 = vadd.f32 %v2276, %v2312
        %v2345 = vlaneseq
        %v2346 = vshrl.u32 %v2345, 7
        %v2347 = vsub.s32 3, %v2346
        %v2348 = vrot.slane %v2172, %v2347
        %v2349 = vmul.f32 %v1280, %v2348
        %v2350 = vmul.f32 %v1284, %v2348
        %v2351 = vmul.f32 %v1288, %v2348
        %v2352 = vmul.f32 %v1292, %v2348
        %v2353 = vmul.f32 %v1296, %v2348
        %v2354 = vmul.f32 %v1300, %v2348
        %v2355 = vmul.f32 %v1304, %v2348
        %v2356 = vmul.f32 %v1308, %v2348
        %v2357 = vmul.f32 %v1312, %v2348
        %v2358 = vmul.f32 %v1316, %v2348
        %v2359 = vmul.f32 %v1320, %v2348
        %v2360 = vmul.f32 %v1324, %v2348
        %v2361 = vmul.f32 %v1328, %v2348
        %v2362 = vmul.f32 %v1332, %v2348
        %v2363 = vmul.f32 %v1336, %v2348
        %v2364 = vmul.f32 %v1340, %v2348
        %v2365 = vmul.f32 %v1344, %v2348
        %v2366 = vmul.f32 %v1348, %v2348
        %v2367 = vmul.f32 %v1352, %v2348
        %v2368 = vmul.f32 %v1356, %v2348
        %v2369 = vmul.f32 %v1360, %v2348
        %v2370 = vmul.f32 %v1364, %v2348
        %v2371 = vmul.f32 %v1368, %v2348
        %v2372 = vmul.f32 %v1372, %v2348
        %v2373 = vmul.f32 %v1376, %v2348
        %v2374 = vmul.f32 %v1380, %v2348
        %v2375 = vmul.f32 %v1384, %v2348
        %v2376 = vmul.f32 %v1388, %v2348
        %v2377 = vmul.f32 %v1392, %v2348
        %v2378 = vmul.f32 %v1396, %v2348
        %v2379 = vmul.f32 %v1400, %v2348
        %v2380 = vmul.f32 %v1404, %v2348
        %v2381 = vadd.f32 %v2313, %v2349
        %v2382 = vadd.f32 %v2314, %v2350
        %v2383 = vadd.f32 %v2315, %v2351
        %v2384 = vadd.f32 %v2316, %v2352
        %v2385 = vadd.f32 %v2317, %v2353
        %v2386 = vadd.f32 %v2318, %v2354
        %v2387 = vadd.f32 %v2319, %v2355
        %v2388 = vadd.f32 %v2320, %v2356
        %v2389 = vadd.f32 %v2321, %v2357
        %v2390 = vadd.f32 %v2322, %v2358
        %v2391 = vadd.f32 %v2323, %v2359
        %v2392 = vadd.f32 %v2324, %v2360
        %v2393 = vadd.f32 %v2325, %v2361
        %v2394 = vadd.f32 %v2326, %v2362
        %v2395 = vadd.f32 %v2327, %v2363
        %v2396 = vadd.f32 %v2328, %v2364
        %v2397 = vadd.f32 %v2329, %v2365
        %v2398 = vadd.f32 %v2330, %v2366
        %v2399 = vadd.f32 %v2331, %v2367
        %v2400 = vadd.f32 %v2332, %v2368
        %v2401 = vadd.f32 %v2333, %v2369
        %v2402 = vadd.f32 %v2334, %v2370
        %v2403 = vadd.f32 %v2335, %v2371
        %v2404 = vadd.f32 %v2336, %v2372
        %v2405 = vadd.f32 %v2337, %v2373
        %v2406 = vadd.f32 %v2338, %v2374
        %v2407 = vadd.f32 %v2339, %v2375
        %v2408 = vadd.f32 %v2340, %v2376
        %v2409 = vadd.f32 %v2341, %v2377
        %v2410 = vadd.f32 %v2342, %v2378
        %v2411 = vadd.f32 %v2343, %v2379
        %v2412 = vadd.f32 %v2344, %v2380
        %v2413 = vpack.c.bf16 %v1827, %v1826
        %v2414 = vpack.c.bf16 %v1829, %v1828
        %v2415 = vpack.c.bf16 %v1831, %v1830
        %v2416 = vpack.c.bf16 %v1833, %v1832
        %v2417 = vpack.c.bf16 %v1835, %v1834
        %v2418 = vpack.c.bf16 %v1837, %v1836
        %v2419 = vpack.c.bf16 %v1839, %v1838
        %v2420 = vpack.c.bf16 %v1841, %v1840
        %v2421 = vpack.c.bf16 %v1843, %v1842
        %v2422 = vpack.c.bf16 %v1845, %v1844
        %v2423 = vpack.c.bf16 %v1847, %v1846
        %v2424 = vpack.c.bf16 %v1849, %v1848
        %v2425 = vpack.c.bf16 %v1851, %v1850
        %v2426 = vpack.c.bf16 %v1853, %v1852
        %v2427 = vpack.c.bf16 %v1855, %v1854
        %v2428 = vpack.c.bf16 %v1857, %v1856
        %v2429 = vld [vmem:[%s9] sm:$0xf]
        %v2430 = vld [vmem:[%s9 + $0x4] sm:$0xf]
        %v2431 = vld [vmem:[%s9 + $0x8] sm:$0xf]
        %v2432 = vld [vmem:[%s9 + $0xc] sm:$0xf]
        %v2433 = vld [vmem:[%s9 + $0x10] sm:$0xf]
        %v2434 = vld [vmem:[%s9 + $0x14] sm:$0xf]
        %v2435 = vld [vmem:[%s9 + $0x18] sm:$0xf]
        %v2436 = vld [vmem:[%s9 + $0x1c] sm:$0xf]
        %v2445 = vunpack.c.l.b16 %v2429
        %v2446 = vunpack.c.l.b16 %v2430
        %v2447 = vunpack.c.l.b16 %v2431
        %v2448 = vunpack.c.l.b16 %v2432
        %v2449 = vunpack.c.l.b16 %v2433
        %v2450 = vunpack.c.l.b16 %v2434
        %v2451 = vunpack.c.l.b16 %v2435
        %v2452 = vunpack.c.l.b16 %v2436
        %v2453 = vpack.c.b16 %v2446, %v2445
        %v2454 = vpack.c.b16 %v2448, %v2447
        %v2455 = vpack.c.b16 %v2450, %v2449
        %v2456 = vpack.c.b16 %v2452, %v2451
        %vm2461 = vcmask 523264
        %v2463 = vsel %vm2461, %v2413, 0
        %v2466 = vsel %vm2461, %v2414, 0
        %v2469 = vsel %vm2461, %v2415, 0
        %v2472 = vsel %vm2461, %v2416, 0
        %v2475 = vsel %vm2461, %v2417, 0
        %v2478 = vsel %vm2461, %v2418, 0
        %v2481 = vsel %vm2461, %v2419, 0
        %v2484 = vsel %vm2461, %v2420, 0
        %v2487 = vsel %vm2461, %v2421, 0
        %v2490 = vsel %vm2461, %v2422, 0
        %v2493 = vsel %vm2461, %v2423, 0
        %v2496 = vsel %vm2461, %v2424, 0
        %v2499 = vsel %vm2461, %v2425, 0
        %v2502 = vsel %vm2461, %v2426, 0
        %v2505 = vsel %vm2461, %v2427, 0
        %v2508 = vsel %vm2461, %v2428, 0
        %2510 = vmatprep.subr.bf16.mxu0 0
        %2511 = vmatpush1.bf16.msra.mxu0 %v2453
        %2512 = vmatprep.subr.bf16.mxu0 0
        %2513 = vmatpush1.bf16.msra.mxu0 %v2454
        %2514 = vmatprep.subr.bf16.mxu0 0
        %2515 = vmatpush1.bf16.msra.mxu0 %v2455
        %2516 = vmatprep.subr.bf16.mxu0 0
        %2517 = vmatpush1.bf16.msra.mxu0 %v2456
        %2518 = vmatprep.subr.bf16.mxu0 0
        %2519 = vmatpush1.bf16.msra.mxu0 0
        %2520 = vmatprep.subr.bf16.mxu0 0
        %2521 = vmatpush1.bf16.msra.mxu0 0
        %2522 = vmatprep.subr.bf16.mxu0 0
        %2523 = vmatpush1.bf16.msra.mxu0 0
        %2524 = vmatprep.subr.bf16.mxu0 0
        %2525 = vmatpush1.bf16.msra.mxu0 0
        %2526 = vmatprep.subr.bf16.mxu0 0
        %2527 = vmatpush1.bf16.msra.mxu0 0
        %2528 = vmatprep.subr.bf16.mxu0 0
        %2529 = vmatpush1.bf16.msra.mxu0 0
        %2530 = vmatprep.subr.bf16.mxu0 0
        %2531 = vmatpush1.bf16.msra.mxu0 0
        %2532 = vmatprep.subr.bf16.mxu0 0
        %2533 = vmatpush1.bf16.msra.mxu0 0
        %2534 = vmatprep.subr.bf16.mxu0 0
        %2535 = vmatpush1.bf16.msra.mxu0 0
        %2536 = vmatprep.subr.bf16.mxu0 0
        %2537 = vmatpush1.bf16.msra.mxu0 0
        %2538 = vmatprep.subr.bf16.mxu0 0
        %2539 = vmatpush1.bf16.msra.mxu0 0
        %2540 = vmatprep.subr.bf16.mxu0 0
        %2541 = vmatpush1.bf16.msra.mxu0 0
        %2542 = vmatprep.mubr.bf16.mxu0 0
        %2543 = vmatmul.mubr.bf16.gmra.mrb[0].mxu0 %v2463
        %v2544 = vpop.f32.mrb[0].mxu0
        %v2545 = vadd.f32 0.0, %v2544
        %v2546 = vpop.f32.mrb[0].mxu0
        %v2547 = vpop.f32.mrb[0].mxu0
        %v2548 = vadd.f32 0.0, %v2547
        %v2549 = vpop.f32.mrb[0].mxu0
        %2550 = vmatprep.mubr.bf16.mxu0 0
        %2551 = vmatmul.mubr.bf16.gmra.mrb[0].mxu0 %v2466
        %v2552 = vpop.f32.mrb[0].mxu0
        %v2553 = vadd.f32 0.0, %v2552
        %v2554 = vpop.f32.mrb[0].mxu0
        %v2555 = vpop.f32.mrb[0].mxu0
        %v2556 = vadd.f32 0.0, %v2555
        %v2557 = vpop.f32.mrb[0].mxu0
        %2558 = vmatprep.mubr.bf16.mxu0 0
        %2559 = vmatmul.mubr.bf16.gmra.mrb[0].mxu0 %v2469
        %v2560 = vpop.f32.mrb[0].mxu0
        %v2561 = vadd.f32 0.0, %v2560
        %v2562 = vpop.f32.mrb[0].mxu0
        %v2563 = vpop.f32.mrb[0].mxu0
        %v2564 = vadd.f32 0.0, %v2563
        %v2565 = vpop.f32.mrb[0].mxu0
        %2566 = vmatprep.mubr.bf16.mxu0 0
        %2567 = vmatmul.mubr.bf16.gmra.mrb[0].mxu0 %v2472
        %v2568 = vpop.f32.mrb[0].mxu0
        %v2569 = vadd.f32 0.0, %v2568
        %v2570 = vpop.f32.mrb[0].mxu0
        %v2571 = vpop.f32.mrb[0].mxu0
        %v2572 = vadd.f32 0.0, %v2571
        %v2573 = vpop.f32.mrb[0].mxu0
        %2574 = vmatprep.mubr.bf16.mxu0 0
        %2575 = vmatmul.mubr.bf16.gmra.mrb[0].mxu0 %v2475
        %v2576 = vpop.f32.mrb[0].mxu0
        %v2577 = vadd.f32 0.0, %v2576
        %v2578 = vpop.f32.mrb[0].mxu0
        %v2579 = vpop.f32.mrb[0].mxu0
        %v2580 = vadd.f32 0.0, %v2579
        %v2581 = vpop.f32.mrb[0].mxu0
        %2582 = vmatprep.mubr.bf16.mxu0 0
        %2583 = vmatmul.mubr.bf16.gmra.mrb[0].mxu0 %v2478
        %v2584 = vpop.f32.mrb[0].mxu0
        %v2585 = vadd.f32 0.0, %v2584
        %v2586 = vpop.f32.mrb[0].mxu0
        %v2587 = vpop.f32.mrb[0].mxu0
        %v2588 = vadd.f32 0.0, %v2587
        %v2589 = vpop.f32.mrb[0].mxu0
        %2590 = vmatprep.mubr.bf16.mxu0 0
        %2591 = vmatmul.mubr.bf16.gmra.mrb[0].mxu0 %v2481
        %v2592 = vpop.f32.mrb[0].mxu0
        %v2593 = vadd.f32 0.0, %v2592
        %v2594 = vpop.f32.mrb[0].mxu0
        %v2595 = vpop.f32.mrb[0].mxu0
        %v2596 = vadd.f32 0.0, %v2595
        %v2597 = vpop.f32.mrb[0].mxu0
        %2598 = vmatprep.mubr.bf16.mxu0 0
        %2599 = vmatmul.mubr.bf16.gmra.mrb[0].mxu0 %v2484
        %v2600 = vpop.f32.mrb[0].mxu0
        %v2601 = vadd.f32 0.0, %v2600
        %v2602 = vpop.f32.mrb[0].mxu0
        %v2603 = vpop.f32.mrb[0].mxu0
        %v2604 = vadd.f32 0.0, %v2603
        %v2605 = vpop.f32.mrb[0].mxu0
        %2606 = vmatprep.mubr.bf16.mxu0 0
        %2607 = vmatmul.mubr.bf16.gmra.mrb[0].mxu0 %v2487
        %v2608 = vpop.f32.mrb[0].mxu0
        %v2609 = vadd.f32 0.0, %v2608
        %v2610 = vpop.f32.mrb[0].mxu0
        %v2611 = vpop.f32.mrb[0].mxu0
        %v2612 = vadd.f32 0.0, %v2611
        %v2613 = vpop.f32.mrb[0].mxu0
        %2614 = vmatprep.mubr.bf16.mxu0 0
        %2615 = vmatmul.mubr.bf16.gmra.mrb[0].mxu0 %v2490
        %v2616 = vpop.f32.mrb[0].mxu0
        %v2617 = vadd.f32 0.0, %v2616
        %v2618 = vpop.f32.mrb[0].mxu0
        %v2619 = vpop.f32.mrb[0].mxu0
        %v2620 = vadd.f32 0.0, %v2619
        %v2621 = vpop.f32.mrb[0].mxu0
        %2622 = vmatprep.mubr.bf16.mxu0 0
        %2623 = vmatmul.mubr.bf16.gmra.mrb[0].mxu0 %v2493
        %v2624 = vpop.f32.mrb[0].mxu0
        %v2625 = vadd.f32 0.0, %v2624
        %v2626 = vpop.f32.mrb[0].mxu0
        %v2627 = vpop.f32.mrb[0].mxu0
        %v2628 = vadd.f32 0.0, %v2627
        %v2629 = vpop.f32.mrb[0].mxu0
        %2630 = vmatprep.mubr.bf16.mxu0 0
        %2631 = vmatmul.mubr.bf16.gmra.mrb[0].mxu0 %v2496
        %v2632 = vpop.f32.mrb[0].mxu0
        %v2633 = vadd.f32 0.0, %v2632
        %v2634 = vpop.f32.mrb[0].mxu0
        %v2635 = vpop.f32.mrb[0].mxu0
        %v2636 = vadd.f32 0.0, %v2635
        %v2637 = vpop.f32.mrb[0].mxu0
        %2638 = vmatprep.mubr.bf16.mxu0 0
        %2639 = vmatmul.mubr.bf16.gmra.mrb[0].mxu0 %v2499
        %v2640 = vpop.f32.mrb[0].mxu0
        %v2641 = vadd.f32 0.0, %v2640
        %v2642 = vpop.f32.mrb[0].mxu0
        %v2643 = vpop.f32.mrb[0].mxu0
        %v2644 = vadd.f32 0.0, %v2643
        %v2645 = vpop.f32.mrb[0].mxu0
        %2646 = vmatprep.mubr.bf16.mxu0 0
        %2647 = vmatmul.mubr.bf16.gmra.mrb[0].mxu0 %v2502
        %v2648 = vpop.f32.mrb[0].mxu0
        %v2649 = vadd.f32 0.0, %v2648
        %v2650 = vpop.f32.mrb[0].mxu0
        %v2651 = vpop.f32.mrb[0].mxu0
        %v2652 = vadd.f32 0.0, %v2651
        %v2653 = vpop.f32.mrb[0].mxu0
        %2654 = vmatprep.mubr.bf16.mxu0 0
        %2655 = vmatmul.mubr.bf16.gmra.mrb[0].mxu0 %v2505
        %v2656 = vpop.f32.mrb[0].mxu0
        %v2657 = vadd.f32 0.0, %v2656
        %v2658 = vpop.f32.mrb[0].mxu0
        %v2659 = vpop.f32.mrb[0].mxu0
        %v2660 = vadd.f32 0.0, %v2659
        %v2661 = vpop.f32.mrb[0].mxu0
        %2662 = vmatprep.mubr.bf16.mxu0 0
        %2663 = vmatmul.mubr.bf16.gmra.mrb[0].mxu0 %v2508
        %v2664 = vpop.f32.mrb[0].mxu0
        %v2665 = vadd.f32 0.0, %v2664
        %v2666 = vpop.f32.mrb[0].mxu0
        %v2667 = vpop.f32.mrb[0].mxu0
        %v2668 = vadd.f32 0.0, %v2667
        %v2669 = vpop.f32.mrb[0].mxu0
        %2670 = vdwg.mxu0
        %vm2703 = vcmask 1040384
        %v2704 = vrot.slane %v2545, 7
        %v2705 = vrot.slane %v2548, 7
        %v2706 = vsel %vm2703, %v2704, %v2705
        %v2707 = vrot.slane %v2553, 7
        %v2708 = vrot.slane %v2556, 7
        %v2709 = vsel %vm2703, %v2707, %v2708
        %v2710 = vrot.slane %v2561, 7
        %v2711 = vrot.slane %v2564, 7
        %v2712 = vsel %vm2703, %v2710, %v2711
        %v2713 = vrot.slane %v2569, 7
        %v2714 = vrot.slane %v2572, 7
        %v2715 = vsel %vm2703, %v2713, %v2714
        %v2716 = vrot.slane %v2577, 7
        %v2717 = vrot.slane %v2580, 7
        %v2718 = vsel %vm2703, %v2716, %v2717
        %v2719 = vrot.slane %v2585, 7
        %v2720 = vrot.slane %v2588, 7
        %v2721 = vsel %vm2703, %v2719, %v2720
        %v2722 = vrot.slane %v2593, 7
        %v2723 = vrot.slane %v2596, 7
        %v2724 = vsel %vm2703, %v2722, %v2723
        %v2725 = vrot.slane %v2601, 7
        %v2726 = vrot.slane %v2604, 7
        %v2727 = vsel %vm2703, %v2725, %v2726
        %v2728 = vrot.slane %v2609, 7
        %v2729 = vrot.slane %v2612, 7
        %v2730 = vsel %vm2703, %v2728, %v2729
        %v2731 = vrot.slane %v2617, 7
        %v2732 = vrot.slane %v2620, 7
        %v2733 = vsel %vm2703, %v2731, %v2732
        %v2734 = vrot.slane %v2625, 7
        %v2735 = vrot.slane %v2628, 7
        %v2736 = vsel %vm2703, %v2734, %v2735
        %v2737 = vrot.slane %v2633, 7
        %v2738 = vrot.slane %v2636, 7
        %v2739 = vsel %vm2703, %v2737, %v2738
        %v2740 = vrot.slane %v2641, 7
        %v2741 = vrot.slane %v2644, 7
        %v2742 = vsel %vm2703, %v2740, %v2741
        %v2743 = vrot.slane %v2649, 7
        %v2744 = vrot.slane %v2652, 7
        %v2745 = vsel %vm2703, %v2743, %v2744
        %v2746 = vrot.slane %v2657, 7
        %v2747 = vrot.slane %v2660, 7
        %v2748 = vsel %vm2703, %v2746, %v2747
        %v2749 = vrot.slane %v2665, 7
        %v2750 = vrot.slane %v2668, 7
        %v2751 = vsel %vm2703, %v2749, %v2750
        %v2784 = vsel %vm2703, 0.0, %v2704
        %v2785 = vsel %vm2703, 0.0, %v2707
        %v2786 = vsel %vm2703, 0.0, %v2710
        %v2787 = vsel %vm2703, 0.0, %v2713
        %v2788 = vsel %vm2703, 0.0, %v2716
        %v2789 = vsel %vm2703, 0.0, %v2719
        %v2790 = vsel %vm2703, 0.0, %v2722
        %v2791 = vsel %vm2703, 0.0, %v2725
        %v2792 = vsel %vm2703, 0.0, %v2728
        %v2793 = vsel %vm2703, 0.0, %v2731
        %v2794 = vsel %vm2703, 0.0, %v2734
        %v2795 = vsel %vm2703, 0.0, %v2737
        %v2796 = vsel %vm2703, 0.0, %v2740
        %v2797 = vsel %vm2703, 0.0, %v2743
        %v2798 = vsel %vm2703, 0.0, %v2746
        %v2799 = vsel %vm2703, 0.0, %v2749
        %s2800 = scalar_lea.vmem %s9, 32
        %v2801 = vld [vmem:[%s2800] sm:$0xf]
        %v2802 = vld [vmem:[%s2800 + $0x4] sm:$0xf]
        %v2803 = vld [vmem:[%s2800 + $0x8] sm:$0xf]
        %v2804 = vld [vmem:[%s2800 + $0xc] sm:$0xf]
        %v2805 = vld [vmem:[%s2800 + $0x10] sm:$0xf]
        %v2806 = vld [vmem:[%s2800 + $0x14] sm:$0xf]
        %v2807 = vld [vmem:[%s2800 + $0x18] sm:$0xf]
        %v2808 = vld [vmem:[%s2800 + $0x1c] sm:$0xf]
        %v2817 = vunpack.c.l.b16 %v2801
        %v2818 = vunpack.c.l.b16 %v2802
        %v2819 = vunpack.c.l.b16 %v2803
        %v2820 = vunpack.c.l.b16 %v2804
        %v2821 = vunpack.c.l.b16 %v2805
        %v2822 = vunpack.c.l.b16 %v2806
        %v2823 = vunpack.c.l.b16 %v2807
        %v2824 = vunpack.c.l.b16 %v2808
        %v2825 = vpack.c.b16 %v2818, %v2817
        %v2826 = vpack.c.b16 %v2820, %v2819
        %v2827 = vpack.c.b16 %v2822, %v2821
        %v2828 = vpack.c.b16 %v2824, %v2823
        %2833 = vmatprep.subr.bf16.mxu0 0
        %2834 = vmatpush1.bf16.msra.mxu0 %v2825
        %2835 = vmatprep.subr.bf16.mxu0 0
        %2836 = vmatpush1.bf16.msra.mxu0 %v2826
        %2837 = vmatprep.subr.bf16.mxu0 0
        %2838 = vmatpush1.bf16.msra.mxu0 %v2827
        %2839 = vmatprep.subr.bf16.mxu0 0
        %2840 = vmatpush1.bf16.msra.mxu0 %v2828
        %2841 = vmatprep.subr.bf16.mxu0 0
        %2842 = vmatpush1.bf16.msra.mxu0 0
        %2843 = vmatprep.subr.bf16.mxu0 0
        %2844 = vmatpush1.bf16.msra.mxu0 0
        %2845 = vmatprep.subr.bf16.mxu0 0
        %2846 = vmatpush1.bf16.msra.mxu0 0
        %2847 = vmatprep.subr.bf16.mxu0 0
        %2848 = vmatpush1.bf16.msra.mxu0 0
        %2849 = vmatprep.subr.bf16.mxu0 0
        %2850 = vmatpush1.bf16.msra.mxu0 0
        %2851 = vmatprep.subr.bf16.mxu0 0
        %2852 = vmatpush1.bf16.msra.mxu0 0
        %2853 = vmatprep.subr.bf16.mxu0 0
        %2854 = vmatpush1.bf16.msra.mxu0 0
        %2855 = vmatprep.subr.bf16.mxu0 0
        %2856 = vmatpush1.bf16.msra.mxu0 0
        %2857 = vmatprep.subr.bf16.mxu0 0
        %2858 = vmatpush1.bf16.msra.mxu0 0
        %2859 = vmatprep.subr.bf16.mxu0 0
        %2860 = vmatpush1.bf16.msra.mxu0 0
        %2861 = vmatprep.subr.bf16.mxu0 0
        %2862 = vmatpush1.bf16.msra.mxu0 0
        %2863 = vmatprep.subr.bf16.mxu0 0
        %2864 = vmatpush1.bf16.msra.mxu0 0
        %2865 = vmatprep.mubr.bf16.mxu0 0
        %2866 = vmatmul.mubr.bf16.gmra.mrb[0].mxu0 %v2463
        %v2867 = vpop.f32.mrb[0].mxu0
        %v2868 = vadd.f32 0.0, %v2867
        %v2869 = vpop.f32.mrb[0].mxu0
        %v2870 = vpop.f32.mrb[0].mxu0
        %v2871 = vadd.f32 0.0, %v2870
        %v2872 = vpop.f32.mrb[0].mxu0
        %2873 = vmatprep.mubr.bf16.mxu0 0
        %2874 = vmatmul.mubr.bf16.gmra.mrb[0].mxu0 %v2466
        %v2875 = vpop.f32.mrb[0].mxu0
        %v2876 = vadd.f32 0.0, %v2875
        %v2877 = vpop.f32.mrb[0].mxu0
        %v2878 = vpop.f32.mrb[0].mxu0
        %v2879 = vadd.f32 0.0, %v2878
        %v2880 = vpop.f32.mrb[0].mxu0
        %2881 = vmatprep.mubr.bf16.mxu0 0
        %2882 = vmatmul.mubr.bf16.gmra.mrb[0].mxu0 %v2469
        %v2883 = vpop.f32.mrb[0].mxu0
        %v2884 = vadd.f32 0.0, %v2883
        %v2885 = vpop.f32.mrb[0].mxu0
        %v2886 = vpop.f32.mrb[0].mxu0
        %v2887 = vadd.f32 0.0, %v2886
        %v2888 = vpop.f32.mrb[0].mxu0
        %2889 = vmatprep.mubr.bf16.mxu0 0
        %2890 = vmatmul.mubr.bf16.gmra.mrb[0].mxu0 %v2472
        %v2891 = vpop.f32.mrb[0].mxu0
        %v2892 = vadd.f32 0.0, %v2891
        %v2893 = vpop.f32.mrb[0].mxu0
        %v2894 = vpop.f32.mrb[0].mxu0
        %v2895 = vadd.f32 0.0, %v2894
        %v2896 = vpop.f32.mrb[0].mxu0
        %2897 = vmatprep.mubr.bf16.mxu0 0
        %2898 = vmatmul.mubr.bf16.gmra.mrb[0].mxu0 %v2475
        %v2899 = vpop.f32.mrb[0].mxu0
        %v2900 = vadd.f32 0.0, %v2899
        %v2901 = vpop.f32.mrb[0].mxu0
        %v2902 = vpop.f32.mrb[0].mxu0
        %v2903 = vadd.f32 0.0, %v2902
        %v2904 = vpop.f32.mrb[0].mxu0
        %2905 = vmatprep.mubr.bf16.mxu0 0
        %2906 = vmatmul.mubr.bf16.gmra.mrb[0].mxu0 %v2478
        %v2907 = vpop.f32.mrb[0].mxu0
        %v2908 = vadd.f32 0.0, %v2907
        %v2909 = vpop.f32.mrb[0].mxu0
        %v2910 = vpop.f32.mrb[0].mxu0
        %v2911 = vadd.f32 0.0, %v2910
        %v2912 = vpop.f32.mrb[0].mxu0
        %2913 = vmatprep.mubr.bf16.mxu0 0
        %2914 = vmatmul.mubr.bf16.gmra.mrb[0].mxu0 %v2481
        %v2915 = vpop.f32.mrb[0].mxu0
        %v2916 = vadd.f32 0.0, %v2915
        %v2917 = vpop.f32.mrb[0].mxu0
        %v2918 = vpop.f32.mrb[0].mxu0
        %v2919 = vadd.f32 0.0, %v2918
        %v2920 = vpop.f32.mrb[0].mxu0
        %2921 = vmatprep.mubr.bf16.mxu0 0
        %2922 = vmatmul.mubr.bf16.gmra.mrb[0].mxu0 %v2484
        %v2923 = vpop.f32.mrb[0].mxu0
        %v2924 = vadd.f32 0.0, %v2923
        %v2925 = vpop.f32.mrb[0].mxu0
        %v2926 = vpop.f32.mrb[0].mxu0
        %v2927 = vadd.f32 0.0, %v2926
        %v2928 = vpop.f32.mrb[0].mxu0
        %2929 = vmatprep.mubr.bf16.mxu0 0
        %2930 = vmatmul.mubr.bf16.gmra.mrb[0].mxu0 %v2487
        %v2931 = vpop.f32.mrb[0].mxu0
        %v2932 = vadd.f32 0.0, %v2931
        %v2933 = vpop.f32.mrb[0].mxu0
        %v2934 = vpop.f32.mrb[0].mxu0
        %v2935 = vadd.f32 0.0, %v2934
        %v2936 = vpop.f32.mrb[0].mxu0
        %2937 = vmatprep.mubr.bf16.mxu0 0
        %2938 = vmatmul.mubr.bf16.gmra.mrb[0].mxu0 %v2490
        %v2939 = vpop.f32.mrb[0].mxu0
        %v2940 = vadd.f32 0.0, %v2939
        %v2941 = vpop.f32.mrb[0].mxu0
        %v2942 = vpop.f32.mrb[0].mxu0
        %v2943 = vadd.f32 0.0, %v2942
        %v2944 = vpop.f32.mrb[0].mxu0
        %2945 = vmatprep.mubr.bf16.mxu0 0
        %2946 = vmatmul.mubr.bf16.gmra.mrb[0].mxu0 %v2493
        %v2947 = vpop.f32.mrb[0].mxu0
        %v2948 = vadd.f32 0.0, %v2947
        %v2949 = vpop.f32.mrb[0].mxu0
        %v2950 = vpop.f32.mrb[0].mxu0
        %v2951 = vadd.f32 0.0, %v2950
        %v2952 = vpop.f32.mrb[0].mxu0
        %2953 = vmatprep.mubr.bf16.mxu0 0
        %2954 = vmatmul.mubr.bf16.gmra.mrb[0].mxu0 %v2496
        %v2955 = vpop.f32.mrb[0].mxu0
        %v2956 = vadd.f32 0.0, %v2955
        %v2957 = vpop.f32.mrb[0].mxu0
        %v2958 = vpop.f32.mrb[0].mxu0
        %v2959 = vadd.f32 0.0, %v2958
        %v2960 = vpop.f32.mrb[0].mxu0
        %2961 = vmatprep.mubr.bf16.mxu0 0
        %2962 = vmatmul.mubr.bf16.gmra.mrb[0].mxu0 %v2499
        %v2963 = vpop.f32.mrb[0].mxu0
        %v2964 = vadd.f32 0.0, %v2963
        %v2965 = vpop.f32.mrb[0].mxu0
        %v2966 = vpop.f32.mrb[0].mxu0
        %v2967 = vadd.f32 0.0, %v2966
        %v2968 = vpop.f32.mrb[0].mxu0
        %2969 = vmatprep.mubr.bf16.mxu0 0
        %2970 = vmatmul.mubr.bf16.gmra.mrb[0].mxu0 %v2502
        %v2971 = vpop.f32.mrb[0].mxu0
        %v2972 = vadd.f32 0.0, %v2971
        %v2973 = vpop.f32.mrb[0].mxu0
        %v2974 = vpop.f32.mrb[0].mxu0
        %v2975 = vadd.f32 0.0, %v2974
        %v2976 = vpop.f32.mrb[0].mxu0
        %2977 = vmatprep.mubr.bf16.mxu0 0
        %2978 = vmatmul.mubr.bf16.gmra.mrb[0].mxu0 %v2505
        %v2979 = vpop.f32.mrb[0].mxu0
        %v2980 = vadd.f32 0.0, %v2979
        %v2981 = vpop.f32.mrb[0].mxu0
        %v2982 = vpop.f32.mrb[0].mxu0
        %v2983 = vadd.f32 0.0, %v2982
        %v2984 = vpop.f32.mrb[0].mxu0
        %2985 = vmatprep.mubr.bf16.mxu0 0
        %2986 = vmatmul.mubr.bf16.gmra.mrb[0].mxu0 %v2508
        %v2987 = vpop.f32.mrb[0].mxu0
        %v2988 = vadd.f32 0.0, %v2987
        %v2989 = vpop.f32.mrb[0].mxu0
        %v2990 = vpop.f32.mrb[0].mxu0
        %v2991 = vadd.f32 0.0, %v2990
        %v2992 = vpop.f32.mrb[0].mxu0
        %2993 = vdwg.mxu0
        %v2994 = vadd.f32 %v2784, %v2868
        %v2995 = vadd.f32 %v2706, %v2871
        %v2996 = vadd.f32 %v2785, %v2876
        %v2997 = vadd.f32 %v2709, %v2879
        %v2998 = vadd.f32 %v2786, %v2884
        %v2999 = vadd.f32 %v2712, %v2887
        %v3000 = vadd.f32 %v2787, %v2892
        %v3001 = vadd.f32 %v2715, %v2895
        %v3002 = vadd.f32 %v2788, %v2900
        %v3003 = vadd.f32 %v2718, %v2903
        %v3004 = vadd.f32 %v2789, %v2908
        %v3005 = vadd.f32 %v2721, %v2911
        %v3006 = vadd.f32 %v2790, %v2916
        %v3007 = vadd.f32 %v2724, %v2919
        %v3008 = vadd.f32 %v2791, %v2924
        %v3009 = vadd.f32 %v2727, %v2927
        %v3010 = vadd.f32 %v2792, %v2932
        %v3011 = vadd.f32 %v2730, %v2935
        %v3012 = vadd.f32 %v2793, %v2940
        %v3013 = vadd.f32 %v2733, %v2943
        %v3014 = vadd.f32 %v2794, %v2948
        %v3015 = vadd.f32 %v2736, %v2951
        %v3016 = vadd.f32 %v2795, %v2956
        %v3017 = vadd.f32 %v2739, %v2959
        %v3018 = vadd.f32 %v2796, %v2964
        %v3019 = vadd.f32 %v2742, %v2967
        %v3020 = vadd.f32 %v2797, %v2972
        %v3021 = vadd.f32 %v2745, %v2975
        %v3022 = vadd.f32 %v2798, %v2980
        %v3023 = vadd.f32 %v2748, %v2983
        %v3024 = vadd.f32 %v2799, %v2988
        %v3025 = vadd.f32 %v2751, %v2991
        %s3026 = scalar_lea.vmem %s9, 64
        %v3027 = vld [vmem:[%s3026] sm:$0xf]
        %v3028 = vld [vmem:[%s3026 + $0x4] sm:$0xf]
        %v3029 = vld [vmem:[%s3026 + $0x8] sm:$0xf]
        %v3030 = vld [vmem:[%s3026 + $0xc] sm:$0xf]
        %v3031 = vld [vmem:[%s3026 + $0x10] sm:$0xf]
        %v3032 = vld [vmem:[%s3026 + $0x14] sm:$0xf]
        %v3033 = vld [vmem:[%s3026 + $0x18] sm:$0xf]
        %v3034 = vld [vmem:[%s3026 + $0x1c] sm:$0xf]
        %v3043 = vunpack.c.l.b16 %v3027
        %v3044 = vunpack.c.l.b16 %v3028
        %v3045 = vunpack.c.l.b16 %v3029
        %v3046 = vunpack.c.l.b16 %v3030
        %v3047 = vunpack.c.l.b16 %v3031
        %v3048 = vunpack.c.l.b16 %v3032
        %v3049 = vunpack.c.l.b16 %v3033
        %v3050 = vunpack.c.l.b16 %v3034
        %v3051 = vpack.c.b16 %v3044, %v3043
        %v3052 = vpack.c.b16 %v3046, %v3045
        %v3053 = vpack.c.b16 %v3048, %v3047
        %v3054 = vpack.c.b16 %v3050, %v3049
        %3059 = vmatprep.subr.bf16.mxu0 0
        %3060 = vmatpush1.bf16.msra.mxu0 %v3051
        %3061 = vmatprep.subr.bf16.mxu0 0
        %3062 = vmatpush1.bf16.msra.mxu0 %v3052
        %3063 = vmatprep.subr.bf16.mxu0 0
        %3064 = vmatpush1.bf16.msra.mxu0 %v3053
        %3065 = vmatprep.subr.bf16.mxu0 0
        %3066 = vmatpush1.bf16.msra.mxu0 %v3054
        %3067 = vmatprep.subr.bf16.mxu0 0
        %3068 = vmatpush1.bf16.msra.mxu0 0
        %3069 = vmatprep.subr.bf16.mxu0 0
        %3070 = vmatpush1.bf16.msra.mxu0 0
        %3071 = vmatprep.subr.bf16.mxu0 0
        %3072 = vmatpush1.bf16.msra.mxu0 0
        %3073 = vmatprep.subr.bf16.mxu0 0
        %3074 = vmatpush1.bf16.msra.mxu0 0
        %3075 = vmatprep.subr.bf16.mxu0 0
        %3076 = vmatpush1.bf16.msra.mxu0 0
        %3077 = vmatprep.subr.bf16.mxu0 0
        %3078 = vmatpush1.bf16.msra.mxu0 0
        %3079 = vmatprep.subr.bf16.mxu0 0
        %3080 = vmatpush1.bf16.msra.mxu0 0
        %3081 = vmatprep.subr.bf16.mxu0 0
        %3082 = vmatpush1.bf16.msra.mxu0 0
        %3083 = vmatprep.subr.bf16.mxu0 0
        %3084 = vmatpush1.bf16.msra.mxu0 0
        %3085 = vmatprep.subr.bf16.mxu0 0
        %3086 = vmatpush1.bf16.msra.mxu0 0
        %3087 = vmatprep.subr.bf16.mxu0 0
        %3088 = vmatpush1.bf16.msra.mxu0 0
        %3089 = vmatprep.subr.bf16.mxu0 0
        %3090 = vmatpush1.bf16.msra.mxu0 0
        %3091 = vmatprep.mubr.bf16.mxu0 0
        %3092 = vmatmul.mubr.bf16.gmra.mrb[0].mxu0 %v2463
        %v3093 = vpop.f32.mrb[0].mxu0
        %v3094 = vadd.f32 0.0, %v3093
        %v3095 = vpop.f32.mrb[0].mxu0
        %v3096 = vpop.f32.mrb[0].mxu0
        %v3097 = vadd.f32 0.0, %v3096
        %v3098 = vpop.f32.mrb[0].mxu0
        %3099 = vmatprep.mubr.bf16.mxu0 0
        %3100 = vmatmul.mubr.bf16.gmra.mrb[0].mxu0 %v2466
        %v3101 = vpop.f32.mrb[0].mxu0
        %v3102 = vadd.f32 0.0, %v3101
        %v3103 = vpop.f32.mrb[0].mxu0
        %v3104 = vpop.f32.mrb[0].mxu0
        %v3105 = vadd.f32 0.0, %v3104
        %v3106 = vpop.f32.mrb[0].mxu0
        %3107 = vmatprep.mubr.bf16.mxu0 0
        %3108 = vmatmul.mubr.bf16.gmra.mrb[0].mxu0 %v2469
        %v3109 = vpop.f32.mrb[0].mxu0
        %v3110 = vadd.f32 0.0, %v3109
        %v3111 = vpop.f32.mrb[0].mxu0
        %v3112 = vpop.f32.mrb[0].mxu0
        %v3113 = vadd.f32 0.0, %v3112
        %v3114 = vpop.f32.mrb[0].mxu0
        %3115 = vmatprep.mubr.bf16.mxu0 0
        %3116 = vmatmul.mubr.bf16.gmra.mrb[0].mxu0 %v2472
        %v3117 = vpop.f32.mrb[0].mxu0
        %v3118 = vadd.f32 0.0, %v3117
        %v3119 = vpop.f32.mrb[0].mxu0
        %v3120 = vpop.f32.mrb[0].mxu0
        %v3121 = vadd.f32 0.0, %v3120
        %v3122 = vpop.f32.mrb[0].mxu0
        %3123 = vmatprep.mubr.bf16.mxu0 0
        %3124 = vmatmul.mubr.bf16.gmra.mrb[0].mxu0 %v2475
        %v3125 = vpop.f32.mrb[0].mxu0
        %v3126 = vadd.f32 0.0, %v3125
        %v3127 = vpop.f32.mrb[0].mxu0
        %v3128 = vpop.f32.mrb[0].mxu0
        %v3129 = vadd.f32 0.0, %v3128
        %v3130 = vpop.f32.mrb[0].mxu0
        %3131 = vmatprep.mubr.bf16.mxu0 0
        %3132 = vmatmul.mubr.bf16.gmra.mrb[0].mxu0 %v2478
        %v3133 = vpop.f32.mrb[0].mxu0
        %v3134 = vadd.f32 0.0, %v3133
        %v3135 = vpop.f32.mrb[0].mxu0
        %v3136 = vpop.f32.mrb[0].mxu0
        %v3137 = vadd.f32 0.0, %v3136
        %v3138 = vpop.f32.mrb[0].mxu0
        %3139 = vmatprep.mubr.bf16.mxu0 0
        %3140 = vmatmul.mubr.bf16.gmra.mrb[0].mxu0 %v2481
        %v3141 = vpop.f32.mrb[0].mxu0
        %v3142 = vadd.f32 0.0, %v3141
        %v3143 = vpop.f32.mrb[0].mxu0
        %v3144 = vpop.f32.mrb[0].mxu0
        %v3145 = vadd.f32 0.0, %v3144
        %v3146 = vpop.f32.mrb[0].mxu0
        %3147 = vmatprep.mubr.bf16.mxu0 0
        %3148 = vmatmul.mubr.bf16.gmra.mrb[0].mxu0 %v2484
        %v3149 = vpop.f32.mrb[0].mxu0
        %v3150 = vadd.f32 0.0, %v3149
        %v3151 = vpop.f32.mrb[0].mxu0
        %v3152 = vpop.f32.mrb[0].mxu0
        %v3153 = vadd.f32 0.0, %v3152
        %v3154 = vpop.f32.mrb[0].mxu0
        %3155 = vmatprep.mubr.bf16.mxu0 0
        %3156 = vmatmul.mubr.bf16.gmra.mrb[0].mxu0 %v2487
        %v3157 = vpop.f32.mrb[0].mxu0
        %v3158 = vadd.f32 0.0, %v3157
        %v3159 = vpop.f32.mrb[0].mxu0
        %v3160 = vpop.f32.mrb[0].mxu0
        %v3161 = vadd.f32 0.0, %v3160
        %v3162 = vpop.f32.mrb[0].mxu0
        %3163 = vmatprep.mubr.bf16.mxu0 0
        %3164 = vmatmul.mubr.bf16.gmra.mrb[0].mxu0 %v2490
        %v3165 = vpop.f32.mrb[0].mxu0
        %v3166 = vadd.f32 0.0, %v3165
        %v3167 = vpop.f32.mrb[0].mxu0
        %v3168 = vpop.f32.mrb[0].mxu0
        %v3169 = vadd.f32 0.0, %v3168
        %v3170 = vpop.f32.mrb[0].mxu0
        %3171 = vmatprep.mubr.bf16.mxu0 0
        %3172 = vmatmul.mubr.bf16.gmra.mrb[0].mxu0 %v2493
        %v3173 = vpop.f32.mrb[0].mxu0
        %v3174 = vadd.f32 0.0, %v3173
        %v3175 = vpop.f32.mrb[0].mxu0
        %v3176 = vpop.f32.mrb[0].mxu0
        %v3177 = vadd.f32 0.0, %v3176
        %v3178 = vpop.f32.mrb[0].mxu0
        %3179 = vmatprep.mubr.bf16.mxu0 0
        %3180 = vmatmul.mubr.bf16.gmra.mrb[0].mxu0 %v2496
        %v3181 = vpop.f32.mrb[0].mxu0
        %v3182 = vadd.f32 0.0, %v3181
        %v3183 = vpop.f32.mrb[0].mxu0
        %v3184 = vpop.f32.mrb[0].mxu0
        %v3185 = vadd.f32 0.0, %v3184
        %v3186 = vpop.f32.mrb[0].mxu0
        %3187 = vmatprep.mubr.bf16.mxu0 0
        %3188 = vmatmul.mubr.bf16.gmra.mrb[0].mxu0 %v2499
        %v3189 = vpop.f32.mrb[0].mxu0
        %v3190 = vadd.f32 0.0, %v3189
        %v3191 = vpop.f32.mrb[0].mxu0
        %v3192 = vpop.f32.mrb[0].mxu0
        %v3193 = vadd.f32 0.0, %v3192
        %v3194 = vpop.f32.mrb[0].mxu0
        %3195 = vmatprep.mubr.bf16.mxu0 0
        %3196 = vmatmul.mubr.bf16.gmra.mrb[0].mxu0 %v2502
        %v3197 = vpop.f32.mrb[0].mxu0
        %v3198 = vadd.f32 0.0, %v3197
        %v3199 = vpop.f32.mrb[0].mxu0
        %v3200 = vpop.f32.mrb[0].mxu0
        %v3201 = vadd.f32 0.0, %v3200
        %v3202 = vpop.f32.mrb[0].mxu0
        %3203 = vmatprep.mubr.bf16.mxu0 0
        %3204 = vmatmul.mubr.bf16.gmra.mrb[0].mxu0 %v2505
        %v3205 = vpop.f32.mrb[0].mxu0
        %v3206 = vadd.f32 0.0, %v3205
        %v3207 = vpop.f32.mrb[0].mxu0
        %v3208 = vpop.f32.mrb[0].mxu0
        %v3209 = vadd.f32 0.0, %v3208
        %v3210 = vpop.f32.mrb[0].mxu0
        %3211 = vmatprep.mubr.bf16.mxu0 0
        %3212 = vmatmul.mubr.bf16.gmra.mrb[0].mxu0 %v2508
        %v3213 = vpop.f32.mrb[0].mxu0
        %v3214 = vadd.f32 0.0, %v3213
        %v3215 = vpop.f32.mrb[0].mxu0
        %v3216 = vpop.f32.mrb[0].mxu0
        %v3217 = vadd.f32 0.0, %v3216
        %v3218 = vpop.f32.mrb[0].mxu0
        %3219 = vdwg.mxu0
        %vm3252 = vcmask 1046528
        %v3253 = vrot.slane %v3094, 1
        %v3254 = vrot.slane %v3097, 1
        %v3255 = vsel %vm3252, %v3253, %v3254
        %v3256 = vrot.slane %v3102, 1
        %v3257 = vrot.slane %v3105, 1
        %v3258 = vsel %vm3252, %v3256, %v3257
        %v3259 = vrot.slane %v3110, 1
        %v3260 = vrot.slane %v3113, 1
        %v3261 = vsel %vm3252, %v3259, %v3260
        %v3262 = vrot.slane %v3118, 1
        %v3263 = vrot.slane %v3121, 1
        %v3264 = vsel %vm3252, %v3262, %v3263
        %v3265 = vrot.slane %v3126, 1
        %v3266 = vrot.slane %v3129, 1
        %v3267 = vsel %vm3252, %v3265, %v3266
        %v3268 = vrot.slane %v3134, 1
        %v3269 = vrot.slane %v3137, 1
        %v3270 = vsel %vm3252, %v3268, %v3269
        %v3271 = vrot.slane %v3142, 1
        %v3272 = vrot.slane %v3145, 1
        %v3273 = vsel %vm3252, %v3271, %v3272
        %v3274 = vrot.slane %v3150, 1
        %v3275 = vrot.slane %v3153, 1
        %v3276 = vsel %vm3252, %v3274, %v3275
        %v3277 = vrot.slane %v3158, 1
        %v3278 = vrot.slane %v3161, 1
        %v3279 = vsel %vm3252, %v3277, %v3278
        %v3280 = vrot.slane %v3166, 1
        %v3281 = vrot.slane %v3169, 1
        %v3282 = vsel %vm3252, %v3280, %v3281
        %v3283 = vrot.slane %v3174, 1
        %v3284 = vrot.slane %v3177, 1
        %v3285 = vsel %vm3252, %v3283, %v3284
        %v3286 = vrot.slane %v3182, 1
        %v3287 = vrot.slane %v3185, 1
        %v3288 = vsel %vm3252, %v3286, %v3287
        %v3289 = vrot.slane %v3190, 1
        %v3290 = vrot.slane %v3193, 1
        %v3291 = vsel %vm3252, %v3289, %v3290
        %v3292 = vrot.slane %v3198, 1
        %v3293 = vrot.slane %v3201, 1
        %v3294 = vsel %vm3252, %v3292, %v3293
        %v3295 = vrot.slane %v3206, 1
        %v3296 = vrot.slane %v3209, 1
        %v3297 = vsel %vm3252, %v3295, %v3296
        %v3298 = vrot.slane %v3214, 1
        %v3299 = vrot.slane %v3217, 1
        %v3300 = vsel %vm3252, %v3298, %v3299
        %v3333 = vsel %vm3252, %v3254, 0.0
        %v3334 = vsel %vm3252, %v3257, 0.0
        %v3335 = vsel %vm3252, %v3260, 0.0
        %v3336 = vsel %vm3252, %v3263, 0.0
        %v3337 = vsel %vm3252, %v3266, 0.0
        %v3338 = vsel %vm3252, %v3269, 0.0
        %v3339 = vsel %vm3252, %v3272, 0.0
        %v3340 = vsel %vm3252, %v3275, 0.0
        %v3341 = vsel %vm3252, %v3278, 0.0
        %v3342 = vsel %vm3252, %v3281, 0.0
        %v3343 = vsel %vm3252, %v3284, 0.0
        %v3344 = vsel %vm3252, %v3287, 0.0
        %v3345 = vsel %vm3252, %v3290, 0.0
        %v3346 = vsel %vm3252, %v3293, 0.0
        %v3347 = vsel %vm3252, %v3296, 0.0
        %v3348 = vsel %vm3252, %v3299, 0.0
        %v3349 = vadd.f32 %v2994, %v3255
        %v3350 = vadd.f32 %v2995, %v3333
        %v3351 = vadd.f32 %v2996, %v3258
        %v3352 = vadd.f32 %v2997, %v3334
        %v3353 = vadd.f32 %v2998, %v3261
        %v3354 = vadd.f32 %v2999, %v3335
        %v3355 = vadd.f32 %v3000, %v3264
        %v3356 = vadd.f32 %v3001, %v3336
        %v3357 = vadd.f32 %v3002, %v3267
        %v3358 = vadd.f32 %v3003, %v3337
        %v3359 = vadd.f32 %v3004, %v3270
        %v3360 = vadd.f32 %v3005, %v3338
        %v3361 = vadd.f32 %v3006, %v3273
        %v3362 = vadd.f32 %v3007, %v3339
        %v3363 = vadd.f32 %v3008, %v3276
        %v3364 = vadd.f32 %v3009, %v3340
        %v3365 = vadd.f32 %v3010, %v3279
        %v3366 = vadd.f32 %v3011, %v3341
        %v3367 = vadd.f32 %v3012, %v3282
        %v3368 = vadd.f32 %v3013, %v3342
        %v3369 = vadd.f32 %v3014, %v3285
        %v3370 = vadd.f32 %v3015, %v3343
        %v3371 = vadd.f32 %v3016, %v3288
        %v3372 = vadd.f32 %v3017, %v3344
        %v3373 = vadd.f32 %v3018, %v3291
        %v3374 = vadd.f32 %v3019, %v3345
        %v3375 = vadd.f32 %v3020, %v3294
        %v3376 = vadd.f32 %v3021, %v3346
        %v3377 = vadd.f32 %v3022, %v3297
        %v3378 = vadd.f32 %v3023, %v3347
        %v3379 = vadd.f32 %v3024, %v3300
        %v3380 = vadd.f32 %v3025, %v3348
        %v3381 = vld [vmem:[%s10] sm:$0x1]
        %v3383 = vlaneseq
        %v3384 = vshrl.u32 %v3383, 7
        %v3385 = vsub.s32 0, %v3384
        %v3386 = vrot.slane %v3381, %v3385
        %v3388 = vadd.f32 %v3349, %v3386
        %v3389 = vadd.f32 %v3350, %v3386
        %v3390 = vadd.f32 %v3351, %v3386
        %v3391 = vadd.f32 %v3352, %v3386
        %v3392 = vadd.f32 %v3353, %v3386
        %v3393 = vadd.f32 %v3354, %v3386
        %v3394 = vadd.f32 %v3355, %v3386
        %v3395 = vadd.f32 %v3356, %v3386
        %v3396 = vadd.f32 %v3357, %v3386
        %v3397 = vadd.f32 %v3358, %v3386
        %v3398 = vadd.f32 %v3359, %v3386
        %v3399 = vadd.f32 %v3360, %v3386
        %v3400 = vadd.f32 %v3361, %v3386
        %v3401 = vadd.f32 %v3362, %v3386
        %v3402 = vadd.f32 %v3363, %v3386
        %v3403 = vadd.f32 %v3364, %v3386
        %v3404 = vadd.f32 %v3365, %v3386
        %v3405 = vadd.f32 %v3366, %v3386
        %v3406 = vadd.f32 %v3367, %v3386
        %v3407 = vadd.f32 %v3368, %v3386
        %v3408 = vadd.f32 %v3369, %v3386
        %v3409 = vadd.f32 %v3370, %v3386
        %v3410 = vadd.f32 %v3371, %v3386
        %v3411 = vadd.f32 %v3372, %v3386
        %v3412 = vadd.f32 %v3373, %v3386
        %v3413 = vadd.f32 %v3374, %v3386
        %v3414 = vadd.f32 %v3375, %v3386
        %v3415 = vadd.f32 %v3376, %v3386
        %v3416 = vadd.f32 %v3377, %v3386
        %v3417 = vadd.f32 %v3378, %v3386
        %v3418 = vadd.f32 %v3379, %v3386
        %v3419 = vadd.f32 %v3380, %v3386
        %v3420 = vmax.f32 %v3388, 0.0
        %v3421 = vmax.f32 %v3389, 0.0
        %v3422 = vmax.f32 %v3390, 0.0
        %v3423 = vmax.f32 %v3391, 0.0
        %v3424 = vmax.f32 %v3392, 0.0
        %v3425 = vmax.f32 %v3393, 0.0
        %v3426 = vmax.f32 %v3394, 0.0
        %v3427 = vmax.f32 %v3395, 0.0
        %v3428 = vmax.f32 %v3396, 0.0
        %v3429 = vmax.f32 %v3397, 0.0
        %v3430 = vmax.f32 %v3398, 0.0
        %v3431 = vmax.f32 %v3399, 0.0
        %v3432 = vmax.f32 %v3400, 0.0
        %v3433 = vmax.f32 %v3401, 0.0
        %v3434 = vmax.f32 %v3402, 0.0
        %v3435 = vmax.f32 %v3403, 0.0
        %v3436 = vmax.f32 %v3404, 0.0
        %v3437 = vmax.f32 %v3405, 0.0
        %v3438 = vmax.f32 %v3406, 0.0
        %v3439 = vmax.f32 %v3407, 0.0
        %v3440 = vmax.f32 %v3408, 0.0
        %v3441 = vmax.f32 %v3409, 0.0
        %v3442 = vmax.f32 %v3410, 0.0
        %v3443 = vmax.f32 %v3411, 0.0
        %v3444 = vmax.f32 %v3412, 0.0
        %v3445 = vmax.f32 %v3413, 0.0
        %v3446 = vmax.f32 %v3414, 0.0
        %v3447 = vmax.f32 %v3415, 0.0
        %v3448 = vmax.f32 %v3416, 0.0
        %v3449 = vmax.f32 %v3417, 0.0
        %v3450 = vmax.f32 %v3418, 0.0
        %v3451 = vmax.f32 %v3419, 0.0
        %v3452 = vpack.c.bf16 %v3421, %v3420
        %v3453 = vpack.c.bf16 %v3423, %v3422
        %v3454 = vpack.c.bf16 %v3425, %v3424
        %v3455 = vpack.c.bf16 %v3427, %v3426
        %v3456 = vpack.c.bf16 %v3429, %v3428
        %v3457 = vpack.c.bf16 %v3431, %v3430
        %v3458 = vpack.c.bf16 %v3433, %v3432
        %v3459 = vpack.c.bf16 %v3435, %v3434
        %v3460 = vpack.c.bf16 %v3437, %v3436
        %v3461 = vpack.c.bf16 %v3439, %v3438
        %v3462 = vpack.c.bf16 %v3441, %v3440
        %v3463 = vpack.c.bf16 %v3443, %v3442
        %v3464 = vpack.c.bf16 %v3445, %v3444
        %v3465 = vpack.c.bf16 %v3447, %v3446
        %v3466 = vpack.c.bf16 %v3449, %v3448
        %v3467 = vpack.c.bf16 %v3451, %v3450
        %v3468 = vld [vmem:[%s11] sm:$0xf]
        %v3469 = vld [vmem:[%s11 + $0x4] sm:$0xf]
        %v3470 = vld [vmem:[%s11 + $0x8] sm:$0xf]
        %v3471 = vld [vmem:[%s11 + $0xc] sm:$0xf]
        %v3472 = vld [vmem:[%s11 + $0x10] sm:$0xf]
        %v3473 = vld [vmem:[%s11 + $0x14] sm:$0xf]
        %v3474 = vld [vmem:[%s11 + $0x18] sm:$0xf]
        %v3475 = vld [vmem:[%s11 + $0x1c] sm:$0xf]
        %v3484 = vunpack.c.l.b16 %v3468
        %v3485 = vunpack.c.l.b16 %v3469
        %v3486 = vunpack.c.l.b16 %v3470
        %v3487 = vunpack.c.l.b16 %v3471
        %v3488 = vunpack.c.l.b16 %v3472
        %v3489 = vunpack.c.l.b16 %v3473
        %v3490 = vunpack.c.l.b16 %v3474
        %v3491 = vunpack.c.l.b16 %v3475
        %v3492 = vpack.c.b16 %v3485, %v3484
        %v3493 = vpack.c.b16 %v3487, %v3486
        %v3494 = vpack.c.b16 %v3489, %v3488
        %v3495 = vpack.c.b16 %v3491, %v3490
        %v3501 = vsel %vm2461, %v3452, 0
        %v3504 = vsel %vm2461, %v3453, 0
        %v3507 = vsel %vm2461, %v3454, 0
        %v3510 = vsel %vm2461, %v3455, 0
        %v3513 = vsel %vm2461, %v3456, 0
        %v3516 = vsel %vm2461, %v3457, 0
        %v3519 = vsel %vm2461, %v3458, 0
        %v3522 = vsel %vm2461, %v3459, 0
        %v3525 = vsel %vm2461, %v3460, 0
        %v3528 = vsel %vm2461, %v3461, 0
        %v3531 = vsel %vm2461, %v3462, 0
        %v3534 = vsel %vm2461, %v3463, 0
        %v3537 = vsel %vm2461, %v3464, 0
        %v3540 = vsel %vm2461, %v3465, 0
        %v3543 = vsel %vm2461, %v3466, 0
        %v3546 = vsel %vm2461, %v3467, 0
        %3548 = vmatprep.subr.bf16.mxu0 0
        %3549 = vmatpush1.bf16.msra.mxu0 %v3492
        %3550 = vmatprep.subr.bf16.mxu0 0
        %3551 = vmatpush1.bf16.msra.mxu0 %v3493
        %3552 = vmatprep.subr.bf16.mxu0 0
        %3553 = vmatpush1.bf16.msra.mxu0 %v3494
        %3554 = vmatprep.subr.bf16.mxu0 0
        %3555 = vmatpush1.bf16.msra.mxu0 %v3495
        %3556 = vmatprep.subr.bf16.mxu0 0
        %3557 = vmatpush1.bf16.msra.mxu0 0
        %3558 = vmatprep.subr.bf16.mxu0 0
        %3559 = vmatpush1.bf16.msra.mxu0 0
        %3560 = vmatprep.subr.bf16.mxu0 0
        %3561 = vmatpush1.bf16.msra.mxu0 0
        %3562 = vmatprep.subr.bf16.mxu0 0
        %3563 = vmatpush1.bf16.msra.mxu0 0
        %3564 = vmatprep.subr.bf16.mxu0 0
        %3565 = vmatpush1.bf16.msra.mxu0 0
        %3566 = vmatprep.subr.bf16.mxu0 0
        %3567 = vmatpush1.bf16.msra.mxu0 0
        %3568 = vmatprep.subr.bf16.mxu0 0
        %3569 = vmatpush1.bf16.msra.mxu0 0
        %3570 = vmatprep.subr.bf16.mxu0 0
        %3571 = vmatpush1.bf16.msra.mxu0 0
        %3572 = vmatprep.subr.bf16.mxu0 0
        %3573 = vmatpush1.bf16.msra.mxu0 0
        %3574 = vmatprep.subr.bf16.mxu0 0
        %3575 = vmatpush1.bf16.msra.mxu0 0
        %3576 = vmatprep.subr.bf16.mxu0 0
        %3577 = vmatpush1.bf16.msra.mxu0 0
        %3578 = vmatprep.subr.bf16.mxu0 0
        %3579 = vmatpush1.bf16.msra.mxu0 0
        %3580 = vmatprep.mubr.bf16.mxu0 0
        %3581 = vmatmul.mubr.bf16.gmra.mrb[0].mxu0 %v3501
        %v3582 = vpop.f32.mrb[0].mxu0
        %v3583 = vadd.f32 0.0, %v3582
        %v3584 = vpop.f32.mrb[0].mxu0
        %v3585 = vpop.f32.mrb[0].mxu0
        %v3586 = vadd.f32 0.0, %v3585
        %v3587 = vpop.f32.mrb[0].mxu0
        %3588 = vmatprep.mubr.bf16.mxu0 0
        %3589 = vmatmul.mubr.bf16.gmra.mrb[0].mxu0 %v3504
        %v3590 = vpop.f32.mrb[0].mxu0
        %v3591 = vadd.f32 0.0, %v3590
        %v3592 = vpop.f32.mrb[0].mxu0
        %v3593 = vpop.f32.mrb[0].mxu0
        %v3594 = vadd.f32 0.0, %v3593
        %v3595 = vpop.f32.mrb[0].mxu0
        %3596 = vmatprep.mubr.bf16.mxu0 0
        %3597 = vmatmul.mubr.bf16.gmra.mrb[0].mxu0 %v3507
        %v3598 = vpop.f32.mrb[0].mxu0
        %v3599 = vadd.f32 0.0, %v3598
        %v3600 = vpop.f32.mrb[0].mxu0
        %v3601 = vpop.f32.mrb[0].mxu0
        %v3602 = vadd.f32 0.0, %v3601
        %v3603 = vpop.f32.mrb[0].mxu0
        %3604 = vmatprep.mubr.bf16.mxu0 0
        %3605 = vmatmul.mubr.bf16.gmra.mrb[0].mxu0 %v3510
        %v3606 = vpop.f32.mrb[0].mxu0
        %v3607 = vadd.f32 0.0, %v3606
        %v3608 = vpop.f32.mrb[0].mxu0
        %v3609 = vpop.f32.mrb[0].mxu0
        %v3610 = vadd.f32 0.0, %v3609
        %v3611 = vpop.f32.mrb[0].mxu0
        %3612 = vmatprep.mubr.bf16.mxu0 0
        %3613 = vmatmul.mubr.bf16.gmra.mrb[0].mxu0 %v3513
        %v3614 = vpop.f32.mrb[0].mxu0
        %v3615 = vadd.f32 0.0, %v3614
        %v3616 = vpop.f32.mrb[0].mxu0
        %v3617 = vpop.f32.mrb[0].mxu0
        %v3618 = vadd.f32 0.0, %v3617
        %v3619 = vpop.f32.mrb[0].mxu0
        %3620 = vmatprep.mubr.bf16.mxu0 0
        %3621 = vmatmul.mubr.bf16.gmra.mrb[0].mxu0 %v3516
        %v3622 = vpop.f32.mrb[0].mxu0
        %v3623 = vadd.f32 0.0, %v3622
        %v3624 = vpop.f32.mrb[0].mxu0
        %v3625 = vpop.f32.mrb[0].mxu0
        %v3626 = vadd.f32 0.0, %v3625
        %v3627 = vpop.f32.mrb[0].mxu0
        %3628 = vmatprep.mubr.bf16.mxu0 0
        %3629 = vmatmul.mubr.bf16.gmra.mrb[0].mxu0 %v3519
        %v3630 = vpop.f32.mrb[0].mxu0
        %v3631 = vadd.f32 0.0, %v3630
        %v3632 = vpop.f32.mrb[0].mxu0
        %v3633 = vpop.f32.mrb[0].mxu0
        %v3634 = vadd.f32 0.0, %v3633
        %v3635 = vpop.f32.mrb[0].mxu0
        %3636 = vmatprep.mubr.bf16.mxu0 0
        %3637 = vmatmul.mubr.bf16.gmra.mrb[0].mxu0 %v3522
        %v3638 = vpop.f32.mrb[0].mxu0
        %v3639 = vadd.f32 0.0, %v3638
        %v3640 = vpop.f32.mrb[0].mxu0
        %v3641 = vpop.f32.mrb[0].mxu0
        %v3642 = vadd.f32 0.0, %v3641
        %v3643 = vpop.f32.mrb[0].mxu0
        %3644 = vmatprep.mubr.bf16.mxu0 0
        %3645 = vmatmul.mubr.bf16.gmra.mrb[0].mxu0 %v3525
        %v3646 = vpop.f32.mrb[0].mxu0
        %v3647 = vadd.f32 0.0, %v3646
        %v3648 = vpop.f32.mrb[0].mxu0
        %v3649 = vpop.f32.mrb[0].mxu0
        %v3650 = vadd.f32 0.0, %v3649
        %v3651 = vpop.f32.mrb[0].mxu0
        %3652 = vmatprep.mubr.bf16.mxu0 0
        %3653 = vmatmul.mubr.bf16.gmra.mrb[0].mxu0 %v3528
        %v3654 = vpop.f32.mrb[0].mxu0
        %v3655 = vadd.f32 0.0, %v3654
        %v3656 = vpop.f32.mrb[0].mxu0
        %v3657 = vpop.f32.mrb[0].mxu0
        %v3658 = vadd.f32 0.0, %v3657
        %v3659 = vpop.f32.mrb[0].mxu0
        %3660 = vmatprep.mubr.bf16.mxu0 0
        %3661 = vmatmul.mubr.bf16.gmra.mrb[0].mxu0 %v3531
        %v3662 = vpop.f32.mrb[0].mxu0
        %v3663 = vadd.f32 0.0, %v3662
        %v3664 = vpop.f32.mrb[0].mxu0
        %v3665 = vpop.f32.mrb[0].mxu0
        %v3666 = vadd.f32 0.0, %v3665
        %v3667 = vpop.f32.mrb[0].mxu0
        %3668 = vmatprep.mubr.bf16.mxu0 0
        %3669 = vmatmul.mubr.bf16.gmra.mrb[0].mxu0 %v3534
        %v3670 = vpop.f32.mrb[0].mxu0
        %v3671 = vadd.f32 0.0, %v3670
        %v3672 = vpop.f32.mrb[0].mxu0
        %v3673 = vpop.f32.mrb[0].mxu0
        %v3674 = vadd.f32 0.0, %v3673
        %v3675 = vpop.f32.mrb[0].mxu0
        %3676 = vmatprep.mubr.bf16.mxu0 0
        %3677 = vmatmul.mubr.bf16.gmra.mrb[0].mxu0 %v3537
        %v3678 = vpop.f32.mrb[0].mxu0
        %v3679 = vadd.f32 0.0, %v3678
        %v3680 = vpop.f32.mrb[0].mxu0
        %v3681 = vpop.f32.mrb[0].mxu0
        %v3682 = vadd.f32 0.0, %v3681
        %v3683 = vpop.f32.mrb[0].mxu0
        %3684 = vmatprep.mubr.bf16.mxu0 0
        %3685 = vmatmul.mubr.bf16.gmra.mrb[0].mxu0 %v3540
        %v3686 = vpop.f32.mrb[0].mxu0
        %v3687 = vadd.f32 0.0, %v3686
        %v3688 = vpop.f32.mrb[0].mxu0
        %v3689 = vpop.f32.mrb[0].mxu0
        %v3690 = vadd.f32 0.0, %v3689
        %v3691 = vpop.f32.mrb[0].mxu0
        %3692 = vmatprep.mubr.bf16.mxu0 0
        %3693 = vmatmul.mubr.bf16.gmra.mrb[0].mxu0 %v3543
        %v3694 = vpop.f32.mrb[0].mxu0
        %v3695 = vadd.f32 0.0, %v3694
        %v3696 = vpop.f32.mrb[0].mxu0
        %v3697 = vpop.f32.mrb[0].mxu0
        %v3698 = vadd.f32 0.0, %v3697
        %v3699 = vpop.f32.mrb[0].mxu0
        %3700 = vmatprep.mubr.bf16.mxu0 0
        %3701 = vmatmul.mubr.bf16.gmra.mrb[0].mxu0 %v3546
        %v3702 = vpop.f32.mrb[0].mxu0
        %v3703 = vpop.f32.mrb[0].mxu0
        %v3704 = vpop.f32.mrb[0].mxu0
        %v3705 = vpop.f32.mrb[0].mxu0
        %3706 = vdwg.mxu0
        %s3707 = scalar_lea.vmem %s11, 32
        %v3708 = vld [vmem:[%s3707] sm:$0xf]
        %v3709 = vld [vmem:[%s3707 + $0x4] sm:$0xf]
        %v3710 = vld [vmem:[%s3707 + $0x8] sm:$0xf]
        %v3711 = vld [vmem:[%s3707 + $0xc] sm:$0xf]
        %v3712 = vld [vmem:[%s3707 + $0x10] sm:$0xf]
        %v3713 = vld [vmem:[%s3707 + $0x14] sm:$0xf]
        %v3714 = vld [vmem:[%s3707 + $0x18] sm:$0xf]
        %v3715 = vld [vmem:[%s3707 + $0x1c] sm:$0xf]
        %v3724 = vunpack.c.l.b16 %v3708
        %v3725 = vunpack.c.l.b16 %v3709
        %v3726 = vunpack.c.l.b16 %v3710
        %v3727 = vunpack.c.l.b16 %v3711
        %v3728 = vunpack.c.l.b16 %v3712
        %v3729 = vunpack.c.l.b16 %v3713
        %v3730 = vunpack.c.l.b16 %v3714
        %v3731 = vunpack.c.l.b16 %v3715
        %v3732 = vpack.c.b16 %v3725, %v3724
        %v3733 = vpack.c.b16 %v3727, %v3726
        %v3734 = vpack.c.b16 %v3729, %v3728
        %v3735 = vpack.c.b16 %v3731, %v3730
        %3740 = vmatprep.subr.bf16.mxu0 0
        %3741 = vmatpush1.bf16.msra.mxu0 %v3732
        %3742 = vmatprep.subr.bf16.mxu0 0
        %3743 = vmatpush1.bf16.msra.mxu0 %v3733
        %3744 = vmatprep.subr.bf16.mxu0 0
        %3745 = vmatpush1.bf16.msra.mxu0 %v3734
        %3746 = vmatprep.subr.bf16.mxu0 0
        %3747 = vmatpush1.bf16.msra.mxu0 %v3735
        %3748 = vmatprep.subr.bf16.mxu0 0
        %3749 = vmatpush1.bf16.msra.mxu0 0
        %3750 = vmatprep.subr.bf16.mxu0 0
        %3751 = vmatpush1.bf16.msra.mxu0 0
        %3752 = vmatprep.subr.bf16.mxu0 0
        %3753 = vmatpush1.bf16.msra.mxu0 0
        %3754 = vmatprep.subr.bf16.mxu0 0
        %3755 = vmatpush1.bf16.msra.mxu0 0
        %3756 = vmatprep.subr.bf16.mxu0 0
        %3757 = vmatpush1.bf16.msra.mxu0 0
        %3758 = vmatprep.subr.bf16.mxu0 0
        %3759 = vmatpush1.bf16.msra.mxu0 0
        %3760 = vmatprep.subr.bf16.mxu0 0
        %3761 = vmatpush1.bf16.msra.mxu0 0
        %3762 = vmatprep.subr.bf16.mxu0 0
        %3763 = vmatpush1.bf16.msra.mxu0 0
        %3764 = vmatprep.subr.bf16.mxu0 0
        %3765 = vmatpush1.bf16.msra.mxu0 0
        %3766 = vmatprep.subr.bf16.mxu0 0
        %3767 = vmatpush1.bf16.msra.mxu0 0
        %3768 = vmatprep.subr.bf16.mxu0 0
        %3769 = vmatpush1.bf16.msra.mxu0 0
        %3770 = vmatprep.subr.bf16.mxu0 0
        %3771 = vmatpush1.bf16.msra.mxu0 0
        %3772 = vmatprep.mubr.bf16.mxu0 0
        %3773 = vmatmul.mubr.bf16.gmra.mrb[0].mxu0 %v3501
        %v3774 = vpop.f32.mrb[0].mxu0
        %v3775 = vadd.f32 0.0, %v3774
        %v3776 = vpop.f32.mrb[0].mxu0
        %v3777 = vpop.f32.mrb[0].mxu0
        %v3778 = vadd.f32 0.0, %v3777
        %v3779 = vpop.f32.mrb[0].mxu0
        %3780 = vmatprep.mubr.bf16.mxu0 0
        %3781 = vmatmul.mubr.bf16.gmra.mrb[0].mxu0 %v3504
        %v3782 = vpop.f32.mrb[0].mxu0
        %v3783 = vadd.f32 0.0, %v3782
        %v3784 = vpop.f32.mrb[0].mxu0
        %v3785 = vpop.f32.mrb[0].mxu0
        %v3786 = vadd.f32 0.0, %v3785
        %v3787 = vpop.f32.mrb[0].mxu0
        %3788 = vmatprep.mubr.bf16.mxu0 0
        %3789 = vmatmul.mubr.bf16.gmra.mrb[0].mxu0 %v3507
        %v3790 = vpop.f32.mrb[0].mxu0
        %v3791 = vadd.f32 0.0, %v3790
        %v3792 = vpop.f32.mrb[0].mxu0
        %v3793 = vpop.f32.mrb[0].mxu0
        %v3794 = vadd.f32 0.0, %v3793
        %v3795 = vpop.f32.mrb[0].mxu0
        %3796 = vmatprep.mubr.bf16.mxu0 0
        %3797 = vmatmul.mubr.bf16.gmra.mrb[0].mxu0 %v3510
        %v3798 = vpop.f32.mrb[0].mxu0
        %v3799 = vadd.f32 0.0, %v3798
        %v3800 = vpop.f32.mrb[0].mxu0
        %v3801 = vpop.f32.mrb[0].mxu0
        %v3802 = vadd.f32 0.0, %v3801
        %v3803 = vpop.f32.mrb[0].mxu0
        %3804 = vmatprep.mubr.bf16.mxu0 0
        %3805 = vmatmul.mubr.bf16.gmra.mrb[0].mxu0 %v3513
        %v3806 = vpop.f32.mrb[0].mxu0
        %v3807 = vadd.f32 0.0, %v3806
        %v3808 = vpop.f32.mrb[0].mxu0
        %v3809 = vpop.f32.mrb[0].mxu0
        %v3810 = vadd.f32 0.0, %v3809
        %v3811 = vpop.f32.mrb[0].mxu0
        %3812 = vmatprep.mubr.bf16.mxu0 0
        %3813 = vmatmul.mubr.bf16.gmra.mrb[0].mxu0 %v3516
        %v3814 = vpop.f32.mrb[0].mxu0
        %v3815 = vadd.f32 0.0, %v3814
        %v3816 = vpop.f32.mrb[0].mxu0
        %v3817 = vpop.f32.mrb[0].mxu0
        %v3818 = vadd.f32 0.0, %v3817
        %v3819 = vpop.f32.mrb[0].mxu0
        %3820 = vmatprep.mubr.bf16.mxu0 0
        %3821 = vmatmul.mubr.bf16.gmra.mrb[0].mxu0 %v3519
        %v3822 = vpop.f32.mrb[0].mxu0
        %v3823 = vadd.f32 0.0, %v3822
        %v3824 = vpop.f32.mrb[0].mxu0
        %v3825 = vpop.f32.mrb[0].mxu0
        %v3826 = vadd.f32 0.0, %v3825
        %v3827 = vpop.f32.mrb[0].mxu0
        %3828 = vmatprep.mubr.bf16.mxu0 0
        %3829 = vmatmul.mubr.bf16.gmra.mrb[0].mxu0 %v3522
        %v3830 = vpop.f32.mrb[0].mxu0
        %v3831 = vadd.f32 0.0, %v3830
        %v3832 = vpop.f32.mrb[0].mxu0
        %v3833 = vpop.f32.mrb[0].mxu0
        %v3834 = vadd.f32 0.0, %v3833
        %v3835 = vpop.f32.mrb[0].mxu0
        %3836 = vmatprep.mubr.bf16.mxu0 0
        %3837 = vmatmul.mubr.bf16.gmra.mrb[0].mxu0 %v3525
        %v3838 = vpop.f32.mrb[0].mxu0
        %v3839 = vadd.f32 0.0, %v3838
        %v3840 = vpop.f32.mrb[0].mxu0
        %v3841 = vpop.f32.mrb[0].mxu0
        %v3842 = vadd.f32 0.0, %v3841
        %v3843 = vpop.f32.mrb[0].mxu0
        %3844 = vmatprep.mubr.bf16.mxu0 0
        %3845 = vmatmul.mubr.bf16.gmra.mrb[0].mxu0 %v3528
        %v3846 = vpop.f32.mrb[0].mxu0
        %v3847 = vadd.f32 0.0, %v3846
        %v3848 = vpop.f32.mrb[0].mxu0
        %v3849 = vpop.f32.mrb[0].mxu0
        %v3850 = vadd.f32 0.0, %v3849
        %v3851 = vpop.f32.mrb[0].mxu0
        %3852 = vmatprep.mubr.bf16.mxu0 0
        %3853 = vmatmul.mubr.bf16.gmra.mrb[0].mxu0 %v3531
        %v3854 = vpop.f32.mrb[0].mxu0
        %v3855 = vadd.f32 0.0, %v3854
        %v3856 = vpop.f32.mrb[0].mxu0
        %v3857 = vpop.f32.mrb[0].mxu0
        %v3858 = vadd.f32 0.0, %v3857
        %v3859 = vpop.f32.mrb[0].mxu0
        %3860 = vmatprep.mubr.bf16.mxu0 0
        %3861 = vmatmul.mubr.bf16.gmra.mrb[0].mxu0 %v3534
        %v3862 = vpop.f32.mrb[0].mxu0
        %v3863 = vadd.f32 0.0, %v3862
        %v3864 = vpop.f32.mrb[0].mxu0
        %v3865 = vpop.f32.mrb[0].mxu0
        %v3866 = vadd.f32 0.0, %v3865
        %v3867 = vpop.f32.mrb[0].mxu0
        %3868 = vmatprep.mubr.bf16.mxu0 0
        %3869 = vmatmul.mubr.bf16.gmra.mrb[0].mxu0 %v3537
        %v3870 = vpop.f32.mrb[0].mxu0
        %v3871 = vadd.f32 0.0, %v3870
        %v3872 = vpop.f32.mrb[0].mxu0
        %v3873 = vpop.f32.mrb[0].mxu0
        %v3874 = vadd.f32 0.0, %v3873
        %v3875 = vpop.f32.mrb[0].mxu0
        %3876 = vmatprep.mubr.bf16.mxu0 0
        %3877 = vmatmul.mubr.bf16.gmra.mrb[0].mxu0 %v3540
        %v3878 = vpop.f32.mrb[0].mxu0
        %v3879 = vadd.f32 0.0, %v3878
        %v3880 = vpop.f32.mrb[0].mxu0
        %v3881 = vpop.f32.mrb[0].mxu0
        %v3882 = vadd.f32 0.0, %v3881
        %v3883 = vpop.f32.mrb[0].mxu0
        %3884 = vmatprep.mubr.bf16.mxu0 0
        %3885 = vmatmul.mubr.bf16.gmra.mrb[0].mxu0 %v3543
        %v3886 = vpop.f32.mrb[0].mxu0
        %v3887 = vadd.f32 0.0, %v3886
        %v3888 = vpop.f32.mrb[0].mxu0
        %v3889 = vpop.f32.mrb[0].mxu0
        %v3890 = vadd.f32 0.0, %v3889
        %v3891 = vpop.f32.mrb[0].mxu0
        %3892 = vmatprep.mubr.bf16.mxu0 0
        %3893 = vmatmul.mubr.bf16.gmra.mrb[0].mxu0 %v3546
        %v3894 = vpop.f32.mrb[0].mxu0
        %v3895 = vadd.f32 0.0, %v3894
        %v3896 = vpop.f32.mrb[0].mxu0
        %v3897 = vpop.f32.mrb[0].mxu0
        %v3898 = vadd.f32 0.0, %v3897
        %v3899 = vpop.f32.mrb[0].mxu0
        %3900 = vdwg.mxu0
        %v3901 = vadd.f32 %v3775, 0.0
        %v3902 = vadd.f32 %v3778, 0.0
        %v3903 = vadd.f32 %v3583, %v3783
        %v3904 = vadd.f32 %v3586, %v3786
        %v3905 = vadd.f32 %v3591, %v3791
        %v3906 = vadd.f32 %v3594, %v3794
        %v3907 = vadd.f32 %v3599, %v3799
        %v3908 = vadd.f32 %v3602, %v3802
        %v3909 = vadd.f32 %v3607, %v3807
        %v3910 = vadd.f32 %v3610, %v3810
        %v3911 = vadd.f32 %v3615, %v3815
        %v3912 = vadd.f32 %v3618, %v3818
        %v3913 = vadd.f32 %v3623, %v3823
        %v3914 = vadd.f32 %v3626, %v3826
        %v3915 = vadd.f32 %v3631, %v3831
        %v3916 = vadd.f32 %v3634, %v3834
        %v3917 = vadd.f32 %v3639, %v3839
        %v3918 = vadd.f32 %v3642, %v3842
        %v3919 = vadd.f32 %v3647, %v3847
        %v3920 = vadd.f32 %v3650, %v3850
        %v3921 = vadd.f32 %v3655, %v3855
        %v3922 = vadd.f32 %v3658, %v3858
        %v3923 = vadd.f32 %v3663, %v3863
        %v3924 = vadd.f32 %v3666, %v3866
        %v3925 = vadd.f32 %v3671, %v3871
        %v3926 = vadd.f32 %v3674, %v3874
        %v3927 = vadd.f32 %v3679, %v3879
        %v3928 = vadd.f32 %v3682, %v3882
        %v3929 = vadd.f32 %v3687, %v3887
        %v3930 = vadd.f32 %v3690, %v3890
        %v3931 = vadd.f32 %v3695, %v3895
        %v3932 = vadd.f32 %v3698, %v3898
        %s3933 = scalar_lea.vmem %s11, 64
        %v3934 = vld [vmem:[%s3933] sm:$0xf]
        %v3935 = vld [vmem:[%s3933 + $0x4] sm:$0xf]
        %v3936 = vld [vmem:[%s3933 + $0x8] sm:$0xf]
        %v3937 = vld [vmem:[%s3933 + $0xc] sm:$0xf]
        %v3938 = vld [vmem:[%s3933 + $0x10] sm:$0xf]
        %v3939 = vld [vmem:[%s3933 + $0x14] sm:$0xf]
        %v3940 = vld [vmem:[%s3933 + $0x18] sm:$0xf]
        %v3941 = vld [vmem:[%s3933 + $0x1c] sm:$0xf]
        %v3950 = vunpack.c.l.b16 %v3934
        %v3951 = vunpack.c.l.b16 %v3935
        %v3952 = vunpack.c.l.b16 %v3936
        %v3953 = vunpack.c.l.b16 %v3937
        %v3954 = vunpack.c.l.b16 %v3938
        %v3955 = vunpack.c.l.b16 %v3939
        %v3956 = vunpack.c.l.b16 %v3940
        %v3957 = vunpack.c.l.b16 %v3941
        %v3958 = vpack.c.b16 %v3951, %v3950
        %v3959 = vpack.c.b16 %v3953, %v3952
        %v3960 = vpack.c.b16 %v3955, %v3954
        %v3961 = vpack.c.b16 %v3957, %v3956
        %3966 = vmatprep.subr.bf16.mxu0 0
        %3967 = vmatpush1.bf16.msra.mxu0 %v3958
        %3968 = vmatprep.subr.bf16.mxu0 0
        %3969 = vmatpush1.bf16.msra.mxu0 %v3959
        %3970 = vmatprep.subr.bf16.mxu0 0
        %3971 = vmatpush1.bf16.msra.mxu0 %v3960
        %3972 = vmatprep.subr.bf16.mxu0 0
        %3973 = vmatpush1.bf16.msra.mxu0 %v3961
        %3974 = vmatprep.subr.bf16.mxu0 0
        %3975 = vmatpush1.bf16.msra.mxu0 0
        %3976 = vmatprep.subr.bf16.mxu0 0
        %3977 = vmatpush1.bf16.msra.mxu0 0
        %3978 = vmatprep.subr.bf16.mxu0 0
        %3979 = vmatpush1.bf16.msra.mxu0 0
        %3980 = vmatprep.subr.bf16.mxu0 0
        %3981 = vmatpush1.bf16.msra.mxu0 0
        %3982 = vmatprep.subr.bf16.mxu0 0
        %3983 = vmatpush1.bf16.msra.mxu0 0
        %3984 = vmatprep.subr.bf16.mxu0 0
        %3985 = vmatpush1.bf16.msra.mxu0 0
        %3986 = vmatprep.subr.bf16.mxu0 0
        %3987 = vmatpush1.bf16.msra.mxu0 0
        %3988 = vmatprep.subr.bf16.mxu0 0
        %3989 = vmatpush1.bf16.msra.mxu0 0
        %3990 = vmatprep.subr.bf16.mxu0 0
        %3991 = vmatpush1.bf16.msra.mxu0 0
        %3992 = vmatprep.subr.bf16.mxu0 0
        %3993 = vmatpush1.bf16.msra.mxu0 0
        %3994 = vmatprep.subr.bf16.mxu0 0
        %3995 = vmatpush1.bf16.msra.mxu0 0
        %3996 = vmatprep.subr.bf16.mxu0 0
        %3997 = vmatpush1.bf16.msra.mxu0 0
        %3998 = vmatprep.mubr.bf16.mxu0 0
        %3999 = vmatmul.mubr.bf16.gmra.mrb[0].mxu0 %v3501
        %v4000 = vpop.f32.mrb[0].mxu0
        %v4001 = vpop.f32.mrb[0].mxu0
        %v4002 = vpop.f32.mrb[0].mxu0
        %v4003 = vpop.f32.mrb[0].mxu0
        %4004 = vmatprep.mubr.bf16.mxu0 0
        %4005 = vmatmul.mubr.bf16.gmra.mrb[0].mxu0 %v3504
        %v4006 = vpop.f32.mrb[0].mxu0
        %v4007 = vadd.f32 0.0, %v4006
        %v4008 = vpop.f32.mrb[0].mxu0
        %v4009 = vpop.f32.mrb[0].mxu0
        %v4010 = vadd.f32 0.0, %v4009
        %v4011 = vpop.f32.mrb[0].mxu0
        %4012 = vmatprep.mubr.bf16.mxu0 0
        %4013 = vmatmul.mubr.bf16.gmra.mrb[0].mxu0 %v3507
        %v4014 = vpop.f32.mrb[0].mxu0
        %v4015 = vadd.f32 0.0, %v4014
        %v4016 = vpop.f32.mrb[0].mxu0
        %v4017 = vpop.f32.mrb[0].mxu0
        %v4018 = vadd.f32 0.0, %v4017
        %v4019 = vpop.f32.mrb[0].mxu0
        %4020 = vmatprep.mubr.bf16.mxu0 0
        %4021 = vmatmul.mubr.bf16.gmra.mrb[0].mxu0 %v3510
        %v4022 = vpop.f32.mrb[0].mxu0
        %v4023 = vadd.f32 0.0, %v4022
        %v4024 = vpop.f32.mrb[0].mxu0
        %v4025 = vpop.f32.mrb[0].mxu0
        %v4026 = vadd.f32 0.0, %v4025
        %v4027 = vpop.f32.mrb[0].mxu0
        %4028 = vmatprep.mubr.bf16.mxu0 0
        %4029 = vmatmul.mubr.bf16.gmra.mrb[0].mxu0 %v3513
        %v4030 = vpop.f32.mrb[0].mxu0
        %v4031 = vadd.f32 0.0, %v4030
        %v4032 = vpop.f32.mrb[0].mxu0
        %v4033 = vpop.f32.mrb[0].mxu0
        %v4034 = vadd.f32 0.0, %v4033
        %v4035 = vpop.f32.mrb[0].mxu0
        %4036 = vmatprep.mubr.bf16.mxu0 0
        %4037 = vmatmul.mubr.bf16.gmra.mrb[0].mxu0 %v3516
        %v4038 = vpop.f32.mrb[0].mxu0
        %v4039 = vadd.f32 0.0, %v4038
        %v4040 = vpop.f32.mrb[0].mxu0
        %v4041 = vpop.f32.mrb[0].mxu0
        %v4042 = vadd.f32 0.0, %v4041
        %v4043 = vpop.f32.mrb[0].mxu0
        %4044 = vmatprep.mubr.bf16.mxu0 0
        %4045 = vmatmul.mubr.bf16.gmra.mrb[0].mxu0 %v3519
        %v4046 = vpop.f32.mrb[0].mxu0
        %v4047 = vadd.f32 0.0, %v4046
        %v4048 = vpop.f32.mrb[0].mxu0
        %v4049 = vpop.f32.mrb[0].mxu0
        %v4050 = vadd.f32 0.0, %v4049
        %v4051 = vpop.f32.mrb[0].mxu0
        %4052 = vmatprep.mubr.bf16.mxu0 0
        %4053 = vmatmul.mubr.bf16.gmra.mrb[0].mxu0 %v3522
        %v4054 = vpop.f32.mrb[0].mxu0
        %v4055 = vadd.f32 0.0, %v4054
        %v4056 = vpop.f32.mrb[0].mxu0
        %v4057 = vpop.f32.mrb[0].mxu0
        %v4058 = vadd.f32 0.0, %v4057
        %v4059 = vpop.f32.mrb[0].mxu0
        %4060 = vmatprep.mubr.bf16.mxu0 0
        %4061 = vmatmul.mubr.bf16.gmra.mrb[0].mxu0 %v3525
        %v4062 = vpop.f32.mrb[0].mxu0
        %v4063 = vadd.f32 0.0, %v4062
        %v4064 = vpop.f32.mrb[0].mxu0
        %v4065 = vpop.f32.mrb[0].mxu0
        %v4066 = vadd.f32 0.0, %v4065
        %v4067 = vpop.f32.mrb[0].mxu0
        %4068 = vmatprep.mubr.bf16.mxu0 0
        %4069 = vmatmul.mubr.bf16.gmra.mrb[0].mxu0 %v3528
        %v4070 = vpop.f32.mrb[0].mxu0
        %v4071 = vadd.f32 0.0, %v4070
        %v4072 = vpop.f32.mrb[0].mxu0
        %v4073 = vpop.f32.mrb[0].mxu0
        %v4074 = vadd.f32 0.0, %v4073
        %v4075 = vpop.f32.mrb[0].mxu0
        %4076 = vmatprep.mubr.bf16.mxu0 0
        %4077 = vmatmul.mubr.bf16.gmra.mrb[0].mxu0 %v3531
        %v4078 = vpop.f32.mrb[0].mxu0
        %v4079 = vadd.f32 0.0, %v4078
        %v4080 = vpop.f32.mrb[0].mxu0
        %v4081 = vpop.f32.mrb[0].mxu0
        %v4082 = vadd.f32 0.0, %v4081
        %v4083 = vpop.f32.mrb[0].mxu0
        %4084 = vmatprep.mubr.bf16.mxu0 0
        %4085 = vmatmul.mubr.bf16.gmra.mrb[0].mxu0 %v3534
        %v4086 = vpop.f32.mrb[0].mxu0
        %v4087 = vadd.f32 0.0, %v4086
        %v4088 = vpop.f32.mrb[0].mxu0
        %v4089 = vpop.f32.mrb[0].mxu0
        %v4090 = vadd.f32 0.0, %v4089
        %v4091 = vpop.f32.mrb[0].mxu0
        %4092 = vmatprep.mubr.bf16.mxu0 0
        %4093 = vmatmul.mubr.bf16.gmra.mrb[0].mxu0 %v3537
        %v4094 = vpop.f32.mrb[0].mxu0
        %v4095 = vadd.f32 0.0, %v4094
        %v4096 = vpop.f32.mrb[0].mxu0
        %v4097 = vpop.f32.mrb[0].mxu0
        %v4098 = vadd.f32 0.0, %v4097
        %v4099 = vpop.f32.mrb[0].mxu0
        %4100 = vmatprep.mubr.bf16.mxu0 0
        %4101 = vmatmul.mubr.bf16.gmra.mrb[0].mxu0 %v3540
        %v4102 = vpop.f32.mrb[0].mxu0
        %v4103 = vadd.f32 0.0, %v4102
        %v4104 = vpop.f32.mrb[0].mxu0
        %v4105 = vpop.f32.mrb[0].mxu0
        %v4106 = vadd.f32 0.0, %v4105
        %v4107 = vpop.f32.mrb[0].mxu0
        %4108 = vmatprep.mubr.bf16.mxu0 0
        %4109 = vmatmul.mubr.bf16.gmra.mrb[0].mxu0 %v3543
        %v4110 = vpop.f32.mrb[0].mxu0
        %v4111 = vadd.f32 0.0, %v4110
        %v4112 = vpop.f32.mrb[0].mxu0
        %v4113 = vpop.f32.mrb[0].mxu0
        %v4114 = vadd.f32 0.0, %v4113
        %v4115 = vpop.f32.mrb[0].mxu0
        %4116 = vmatprep.mubr.bf16.mxu0 0
        %4117 = vmatmul.mubr.bf16.gmra.mrb[0].mxu0 %v3546
        %v4118 = vpop.f32.mrb[0].mxu0
        %v4119 = vadd.f32 0.0, %v4118
        %v4120 = vpop.f32.mrb[0].mxu0
        %v4121 = vpop.f32.mrb[0].mxu0
        %v4122 = vadd.f32 0.0, %v4121
        %v4123 = vpop.f32.mrb[0].mxu0
        %4124 = vdwg.mxu0
        %v4125 = vadd.f32 %v3901, %v4007
        %v4126 = vadd.f32 %v3902, %v4010
        %v4127 = vadd.f32 %v3903, %v4015
        %v4128 = vadd.f32 %v3904, %v4018
        %v4129 = vadd.f32 %v3905, %v4023
        %v4130 = vadd.f32 %v3906, %v4026
        %v4131 = vadd.f32 %v3907, %v4031
        %v4132 = vadd.f32 %v3908, %v4034
        %v4133 = vadd.f32 %v3909, %v4039
        %v4134 = vadd.f32 %v3910, %v4042
        %v4135 = vadd.f32 %v3911, %v4047
        %v4136 = vadd.f32 %v3912, %v4050
        %v4137 = vadd.f32 %v3913, %v4055
        %v4138 = vadd.f32 %v3914, %v4058
        %v4139 = vadd.f32 %v3915, %v4063
        %v4140 = vadd.f32 %v3916, %v4066
        %v4141 = vadd.f32 %v3917, %v4071
        %v4142 = vadd.f32 %v3918, %v4074
        %v4143 = vadd.f32 %v3919, %v4079
        %v4144 = vadd.f32 %v3920, %v4082
        %v4145 = vadd.f32 %v3921, %v4087
        %v4146 = vadd.f32 %v3922, %v4090
        %v4147 = vadd.f32 %v3923, %v4095
        %v4148 = vadd.f32 %v3924, %v4098
        %v4149 = vadd.f32 %v3925, %v4103
        %v4150 = vadd.f32 %v3926, %v4106
        %v4151 = vadd.f32 %v3927, %v4111
        %v4152 = vadd.f32 %v3928, %v4114
        %v4153 = vadd.f32 %v3929, %v4119
        %v4154 = vadd.f32 %v3930, %v4122
        %v4155 = vadd.f32 %v3931, 0.0
        %v4156 = vadd.f32 %v3932, 0.0
        %v4157 = vld [vmem:[%s12] sm:$0x1]
        %v4159 = vlaneseq
        %v4160 = vshrl.u32 %v4159, 7
        %v4161 = vsub.s32 0, %v4160
        %v4162 = vrot.slane %v4157, %v4161
        %v4164 = vadd.f32 %v4125, %v4162
        %v4165 = vadd.f32 %v4126, %v4162
        %v4166 = vadd.f32 %v4127, %v4162
        %v4167 = vadd.f32 %v4128, %v4162
        %v4168 = vadd.f32 %v4129, %v4162
        %v4169 = vadd.f32 %v4130, %v4162
        %v4170 = vadd.f32 %v4131, %v4162
        %v4171 = vadd.f32 %v4132, %v4162
        %v4172 = vadd.f32 %v4133, %v4162
        %v4173 = vadd.f32 %v4134, %v4162
        %v4174 = vadd.f32 %v4135, %v4162
        %v4175 = vadd.f32 %v4136, %v4162
        %v4176 = vadd.f32 %v4137, %v4162
        %v4177 = vadd.f32 %v4138, %v4162
        %v4178 = vadd.f32 %v4139, %v4162
        %v4179 = vadd.f32 %v4140, %v4162
        %v4180 = vadd.f32 %v4141, %v4162
        %v4181 = vadd.f32 %v4142, %v4162
        %v4182 = vadd.f32 %v4143, %v4162
        %v4183 = vadd.f32 %v4144, %v4162
        %v4184 = vadd.f32 %v4145, %v4162
        %v4185 = vadd.f32 %v4146, %v4162
        %v4186 = vadd.f32 %v4147, %v4162
        %v4187 = vadd.f32 %v4148, %v4162
        %v4188 = vadd.f32 %v4149, %v4162
        %v4189 = vadd.f32 %v4150, %v4162
        %v4190 = vadd.f32 %v4151, %v4162
        %v4191 = vadd.f32 %v4152, %v4162
        %v4192 = vadd.f32 %v4153, %v4162
        %v4193 = vadd.f32 %v4154, %v4162
        %v4194 = vadd.f32 %v4155, %v4162
        %v4195 = vadd.f32 %v4156, %v4162
        %v4196 = vmax.f32 %v4164, 0.0
        %v4197 = vmax.f32 %v4165, 0.0
        %v4198 = vmax.f32 %v4166, 0.0
        %v4199 = vmax.f32 %v4167, 0.0
        %v4200 = vmax.f32 %v4168, 0.0
        %v4201 = vmax.f32 %v4169, 0.0
        %v4202 = vmax.f32 %v4170, 0.0
        %v4203 = vmax.f32 %v4171, 0.0
        %v4204 = vmax.f32 %v4172, 0.0
        %v4205 = vmax.f32 %v4173, 0.0
        %v4206 = vmax.f32 %v4174, 0.0
        %v4207 = vmax.f32 %v4175, 0.0
        %v4208 = vmax.f32 %v4176, 0.0
        %v4209 = vmax.f32 %v4177, 0.0
        %v4210 = vmax.f32 %v4178, 0.0
        %v4211 = vmax.f32 %v4179, 0.0
        %v4212 = vmax.f32 %v4180, 0.0
        %v4213 = vmax.f32 %v4181, 0.0
        %v4214 = vmax.f32 %v4182, 0.0
        %v4215 = vmax.f32 %v4183, 0.0
        %v4216 = vmax.f32 %v4184, 0.0
        %v4217 = vmax.f32 %v4185, 0.0
        %v4218 = vmax.f32 %v4186, 0.0
        %v4219 = vmax.f32 %v4187, 0.0
        %v4220 = vmax.f32 %v4188, 0.0
        %v4221 = vmax.f32 %v4189, 0.0
        %v4222 = vmax.f32 %v4190, 0.0
        %v4223 = vmax.f32 %v4191, 0.0
        %v4224 = vmax.f32 %v4192, 0.0
        %v4225 = vmax.f32 %v4193, 0.0
        %v4226 = vmax.f32 %v4194, 0.0
        %v4227 = vmax.f32 %v4195, 0.0
        %v4228 = vadd.f32 %v4196, %v1826
        %v4229 = vadd.f32 %v4197, %v1827
        %v4230 = vadd.f32 %v4198, %v1828
        %v4231 = vadd.f32 %v4199, %v1829
        %v4232 = vadd.f32 %v4200, %v1830
        %v4233 = vadd.f32 %v4201, %v1831
        %v4234 = vadd.f32 %v4202, %v1832
        %v4235 = vadd.f32 %v4203, %v1833
        %v4236 = vadd.f32 %v4204, %v1834
        %v4237 = vadd.f32 %v4205, %v1835
        %v4238 = vadd.f32 %v4206, %v1836
        %v4239 = vadd.f32 %v4207, %v1837
        %v4240 = vadd.f32 %v4208, %v1838
        %v4241 = vadd.f32 %v4209, %v1839
        %v4242 = vadd.f32 %v4210, %v1840
        %v4243 = vadd.f32 %v4211, %v1841
        %v4244 = vadd.f32 %v4212, %v1842
        %v4245 = vadd.f32 %v4213, %v1843
        %v4246 = vadd.f32 %v4214, %v1844
        %v4247 = vadd.f32 %v4215, %v1845
        %v4248 = vadd.f32 %v4216, %v1846
        %v4249 = vadd.f32 %v4217, %v1847
        %v4250 = vadd.f32 %v4218, %v1848
        %v4251 = vadd.f32 %v4219, %v1849
        %v4252 = vadd.f32 %v4220, %v1850
        %v4253 = vadd.f32 %v4221, %v1851
        %v4254 = vadd.f32 %v4222, %v1852
        %v4255 = vadd.f32 %v4223, %v1853
        %v4256 = vadd.f32 %v4224, %v1854
        %v4257 = vadd.f32 %v4225, %v1855
        %v4258 = vadd.f32 %v4226, %v1856
        %v4259 = vadd.f32 %v4227, %v1857
        %v4260 = vmax.f32 %v4228, 0.0
        %v4261 = vmax.f32 %v4229, 0.0
        %v4262 = vmax.f32 %v4230, 0.0
        %v4263 = vmax.f32 %v4231, 0.0
        %v4264 = vmax.f32 %v4232, 0.0
        %v4265 = vmax.f32 %v4233, 0.0
        %v4266 = vmax.f32 %v4234, 0.0
        %v4267 = vmax.f32 %v4235, 0.0
        %v4268 = vmax.f32 %v4236, 0.0
        %v4269 = vmax.f32 %v4237, 0.0
        %v4270 = vmax.f32 %v4238, 0.0
        %v4271 = vmax.f32 %v4239, 0.0
        %v4272 = vmax.f32 %v4240, 0.0
        %v4273 = vmax.f32 %v4241, 0.0
        %v4274 = vmax.f32 %v4242, 0.0
        %v4275 = vmax.f32 %v4243, 0.0
        %v4276 = vmax.f32 %v4244, 0.0
        %v4277 = vmax.f32 %v4245, 0.0
        %v4278 = vmax.f32 %v4246, 0.0
        %v4279 = vmax.f32 %v4247, 0.0
        %v4280 = vmax.f32 %v4248, 0.0
        %v4281 = vmax.f32 %v4249, 0.0
        %v4282 = vmax.f32 %v4250, 0.0
        %v4283 = vmax.f32 %v4251, 0.0
        %v4284 = vmax.f32 %v4252, 0.0
        %v4285 = vmax.f32 %v4253, 0.0
        %v4286 = vmax.f32 %v4254, 0.0
        %v4287 = vmax.f32 %v4255, 0.0
        %v4288 = vmax.f32 %v4256, 0.0
        %v4289 = vmax.f32 %v4257, 0.0
        %v4290 = vmax.f32 %v4258, 0.0
        %v4291 = vmax.f32 %v4259, 0.0
        %v4292 = vpack.c.bf16 %v4261, %v4260
        %v4293 = vpack.c.bf16 %v4263, %v4262
        %v4294 = vpack.c.bf16 %v4265, %v4264
        %v4295 = vpack.c.bf16 %v4267, %v4266
        %v4296 = vpack.c.bf16 %v4269, %v4268
        %v4297 = vpack.c.bf16 %v4271, %v4270
        %v4298 = vpack.c.bf16 %v4273, %v4272
        %v4299 = vpack.c.bf16 %v4275, %v4274
        %v4300 = vpack.c.bf16 %v4277, %v4276
        %v4301 = vpack.c.bf16 %v4279, %v4278
        %v4302 = vpack.c.bf16 %v4281, %v4280
        %v4303 = vpack.c.bf16 %v4283, %v4282
        %v4304 = vpack.c.bf16 %v4285, %v4284
        %v4305 = vpack.c.bf16 %v4287, %v4286
        %v4306 = vpack.c.bf16 %v4289, %v4288
        %v4307 = vpack.c.bf16 %v4291, %v4290
        %v4308 = vld [vmem:[%s13] sm:$0xf]
        %v4309 = vld [vmem:[%s13 + $0x4] sm:$0xf]
        %v4310 = vld [vmem:[%s13 + $0x8] sm:$0xf]
        %v4311 = vld [vmem:[%s13 + $0xc] sm:$0xf]
        %v4312 = vld [vmem:[%s13 + $0x10] sm:$0xf]
        %v4313 = vld [vmem:[%s13 + $0x14] sm:$0xf]
        %v4314 = vld [vmem:[%s13 + $0x18] sm:$0xf]
        %v4315 = vld [vmem:[%s13 + $0x1c] sm:$0xf]
        %v4324 = vunpack.c.l.b16 %v4308
        %v4325 = vunpack.c.l.b16 %v4309
        %v4326 = vunpack.c.l.b16 %v4310
        %v4327 = vunpack.c.l.b16 %v4311
        %v4328 = vunpack.c.l.b16 %v4312
        %v4329 = vunpack.c.l.b16 %v4313
        %v4330 = vunpack.c.l.b16 %v4314
        %v4331 = vunpack.c.l.b16 %v4315
        %v4332 = vpack.c.b16 %v4325, %v4324
        %v4333 = vpack.c.b16 %v4327, %v4326
        %v4334 = vpack.c.b16 %v4329, %v4328
        %v4335 = vpack.c.b16 %v4331, %v4330
        %v4341 = vsel %vm2461, %v4292, 0
        %v4344 = vsel %vm2461, %v4293, 0
        %v4347 = vsel %vm2461, %v4294, 0
        %v4350 = vsel %vm2461, %v4295, 0
        %v4353 = vsel %vm2461, %v4296, 0
        %v4356 = vsel %vm2461, %v4297, 0
        %v4359 = vsel %vm2461, %v4298, 0
        %v4362 = vsel %vm2461, %v4299, 0
        %v4365 = vsel %vm2461, %v4300, 0
        %v4368 = vsel %vm2461, %v4301, 0
        %v4371 = vsel %vm2461, %v4302, 0
        %v4374 = vsel %vm2461, %v4303, 0
        %v4377 = vsel %vm2461, %v4304, 0
        %v4380 = vsel %vm2461, %v4305, 0
        %v4383 = vsel %vm2461, %v4306, 0
        %v4386 = vsel %vm2461, %v4307, 0
        %4388 = vmatprep.subr.bf16.mxu0 0
        %4389 = vmatpush1.bf16.msra.mxu0 %v4332
        %4390 = vmatprep.subr.bf16.mxu0 0
        %4391 = vmatpush1.bf16.msra.mxu0 %v4333
        %4392 = vmatprep.subr.bf16.mxu0 0
        %4393 = vmatpush1.bf16.msra.mxu0 %v4334
        %4394 = vmatprep.subr.bf16.mxu0 0
        %4395 = vmatpush1.bf16.msra.mxu0 %v4335
        %4396 = vmatprep.subr.bf16.mxu0 0
        %4397 = vmatpush1.bf16.msra.mxu0 0
        %4398 = vmatprep.subr.bf16.mxu0 0
        %4399 = vmatpush1.bf16.msra.mxu0 0
        %4400 = vmatprep.subr.bf16.mxu0 0
        %4401 = vmatpush1.bf16.msra.mxu0 0
        %4402 = vmatprep.subr.bf16.mxu0 0
        %4403 = vmatpush1.bf16.msra.mxu0 0
        %4404 = vmatprep.subr.bf16.mxu0 0
        %4405 = vmatpush1.bf16.msra.mxu0 0
        %4406 = vmatprep.subr.bf16.mxu0 0
        %4407 = vmatpush1.bf16.msra.mxu0 0
        %4408 = vmatprep.subr.bf16.mxu0 0
        %4409 = vmatpush1.bf16.msra.mxu0 0
        %4410 = vmatprep.subr.bf16.mxu0 0
        %4411 = vmatpush1.bf16.msra.mxu0 0
        %4412 = vmatprep.subr.bf16.mxu0 0
        %4413 = vmatpush1.bf16.msra.mxu0 0
        %4414 = vmatprep.subr.bf16.mxu0 0
        %4415 = vmatpush1.bf16.msra.mxu0 0
        %4416 = vmatprep.subr.bf16.mxu0 0
        %4417 = vmatpush1.bf16.msra.mxu0 0
        %4418 = vmatprep.subr.bf16.mxu0 0
        %4419 = vmatpush1.bf16.msra.mxu0 0
        %4420 = vmatprep.mubr.bf16.mxu0 0
        %4421 = vmatmul.mubr.bf16.gmra.mrb[0].mxu0 %v4341
        %v4422 = vpop.f32.mrb[0].mxu0
        %v4423 = vadd.f32 0.0, %v4422
        %v4424 = vpop.f32.mrb[0].mxu0
        %v4425 = vpop.f32.mrb[0].mxu0
        %v4426 = vadd.f32 0.0, %v4425
        %v4427 = vpop.f32.mrb[0].mxu0
        %4428 = vmatprep.mubr.bf16.mxu0 0
        %4429 = vmatmul.mubr.bf16.gmra.mrb[0].mxu0 %v4344
        %v4430 = vpop.f32.mrb[0].mxu0
        %v4431 = vadd.f32 0.0, %v4430
        %v4432 = vpop.f32.mrb[0].mxu0
        %v4433 = vpop.f32.mrb[0].mxu0
        %v4434 = vadd.f32 0.0, %v4433
        %v4435 = vpop.f32.mrb[0].mxu0
        %4436 = vmatprep.mubr.bf16.mxu0 0
        %4437 = vmatmul.mubr.bf16.gmra.mrb[0].mxu0 %v4347
        %v4438 = vpop.f32.mrb[0].mxu0
        %v4439 = vadd.f32 0.0, %v4438
        %v4440 = vpop.f32.mrb[0].mxu0
        %v4441 = vpop.f32.mrb[0].mxu0
        %v4442 = vadd.f32 0.0, %v4441
        %v4443 = vpop.f32.mrb[0].mxu0
        %4444 = vmatprep.mubr.bf16.mxu0 0
        %4445 = vmatmul.mubr.bf16.gmra.mrb[0].mxu0 %v4350
        %v4446 = vpop.f32.mrb[0].mxu0
        %v4447 = vadd.f32 0.0, %v4446
        %v4448 = vpop.f32.mrb[0].mxu0
        %v4449 = vpop.f32.mrb[0].mxu0
        %v4450 = vadd.f32 0.0, %v4449
        %v4451 = vpop.f32.mrb[0].mxu0
        %4452 = vmatprep.mubr.bf16.mxu0 0
        %4453 = vmatmul.mubr.bf16.gmra.mrb[0].mxu0 %v4353
        %v4454 = vpop.f32.mrb[0].mxu0
        %v4455 = vadd.f32 0.0, %v4454
        %v4456 = vpop.f32.mrb[0].mxu0
        %v4457 = vpop.f32.mrb[0].mxu0
        %v4458 = vadd.f32 0.0, %v4457
        %v4459 = vpop.f32.mrb[0].mxu0
        %4460 = vmatprep.mubr.bf16.mxu0 0
        %4461 = vmatmul.mubr.bf16.gmra.mrb[0].mxu0 %v4356
        %v4462 = vpop.f32.mrb[0].mxu0
        %v4463 = vadd.f32 0.0, %v4462
        %v4464 = vpop.f32.mrb[0].mxu0
        %v4465 = vpop.f32.mrb[0].mxu0
        %v4466 = vadd.f32 0.0, %v4465
        %v4467 = vpop.f32.mrb[0].mxu0
        %4468 = vmatprep.mubr.bf16.mxu0 0
        %4469 = vmatmul.mubr.bf16.gmra.mrb[0].mxu0 %v4359
        %v4470 = vpop.f32.mrb[0].mxu0
        %v4471 = vadd.f32 0.0, %v4470
        %v4472 = vpop.f32.mrb[0].mxu0
        %v4473 = vpop.f32.mrb[0].mxu0
        %v4474 = vadd.f32 0.0, %v4473
        %v4475 = vpop.f32.mrb[0].mxu0
        %4476 = vmatprep.mubr.bf16.mxu0 0
        %4477 = vmatmul.mubr.bf16.gmra.mrb[0].mxu0 %v4362
        %v4478 = vpop.f32.mrb[0].mxu0
        %v4479 = vadd.f32 0.0, %v4478
        %v4480 = vpop.f32.mrb[0].mxu0
        %v4481 = vpop.f32.mrb[0].mxu0
        %v4482 = vadd.f32 0.0, %v4481
        %v4483 = vpop.f32.mrb[0].mxu0
        %4484 = vmatprep.mubr.bf16.mxu0 0
        %4485 = vmatmul.mubr.bf16.gmra.mrb[0].mxu0 %v4365
        %v4486 = vpop.f32.mrb[0].mxu0
        %v4487 = vadd.f32 0.0, %v4486
        %v4488 = vpop.f32.mrb[0].mxu0
        %v4489 = vpop.f32.mrb[0].mxu0
        %v4490 = vadd.f32 0.0, %v4489
        %v4491 = vpop.f32.mrb[0].mxu0
        %4492 = vmatprep.mubr.bf16.mxu0 0
        %4493 = vmatmul.mubr.bf16.gmra.mrb[0].mxu0 %v4368
        %v4494 = vpop.f32.mrb[0].mxu0
        %v4495 = vadd.f32 0.0, %v4494
        %v4496 = vpop.f32.mrb[0].mxu0
        %v4497 = vpop.f32.mrb[0].mxu0
        %v4498 = vadd.f32 0.0, %v4497
        %v4499 = vpop.f32.mrb[0].mxu0
        %4500 = vmatprep.mubr.bf16.mxu0 0
        %4501 = vmatmul.mubr.bf16.gmra.mrb[0].mxu0 %v4371
        %v4502 = vpop.f32.mrb[0].mxu0
        %v4503 = vadd.f32 0.0, %v4502
        %v4504 = vpop.f32.mrb[0].mxu0
        %v4505 = vpop.f32.mrb[0].mxu0
        %v4506 = vadd.f32 0.0, %v4505
        %v4507 = vpop.f32.mrb[0].mxu0
        %4508 = vmatprep.mubr.bf16.mxu0 0
        %4509 = vmatmul.mubr.bf16.gmra.mrb[0].mxu0 %v4374
        %v4510 = vpop.f32.mrb[0].mxu0
        %v4511 = vadd.f32 0.0, %v4510
        %v4512 = vpop.f32.mrb[0].mxu0
        %v4513 = vpop.f32.mrb[0].mxu0
        %v4514 = vadd.f32 0.0, %v4513
        %v4515 = vpop.f32.mrb[0].mxu0
        %4516 = vmatprep.mubr.bf16.mxu0 0
        %4517 = vmatmul.mubr.bf16.gmra.mrb[0].mxu0 %v4377
        %v4518 = vpop.f32.mrb[0].mxu0
        %v4519 = vadd.f32 0.0, %v4518
        %v4520 = vpop.f32.mrb[0].mxu0
        %v4521 = vpop.f32.mrb[0].mxu0
        %v4522 = vadd.f32 0.0, %v4521
        %v4523 = vpop.f32.mrb[0].mxu0
        %4524 = vmatprep.mubr.bf16.mxu0 0
        %4525 = vmatmul.mubr.bf16.gmra.mrb[0].mxu0 %v4380
        %v4526 = vpop.f32.mrb[0].mxu0
        %v4527 = vadd.f32 0.0, %v4526
        %v4528 = vpop.f32.mrb[0].mxu0
        %v4529 = vpop.f32.mrb[0].mxu0
        %v4530 = vadd.f32 0.0, %v4529
        %v4531 = vpop.f32.mrb[0].mxu0
        %4532 = vmatprep.mubr.bf16.mxu0 0
        %4533 = vmatmul.mubr.bf16.gmra.mrb[0].mxu0 %v4383
        %v4534 = vpop.f32.mrb[0].mxu0
        %v4535 = vadd.f32 0.0, %v4534
        %v4536 = vpop.f32.mrb[0].mxu0
        %v4537 = vpop.f32.mrb[0].mxu0
        %v4538 = vadd.f32 0.0, %v4537
        %v4539 = vpop.f32.mrb[0].mxu0
        %4540 = vmatprep.mubr.bf16.mxu0 0
        %4541 = vmatmul.mubr.bf16.gmra.mrb[0].mxu0 %v4386
        %v4542 = vpop.f32.mrb[0].mxu0
        %v4543 = vadd.f32 0.0, %v4542
        %v4544 = vpop.f32.mrb[0].mxu0
        %v4545 = vpop.f32.mrb[0].mxu0
        %v4546 = vadd.f32 0.0, %v4545
        %v4547 = vpop.f32.mrb[0].mxu0
        %4548 = vdwg.mxu0
        %v4581 = vrot.slane %v4423, 7
        %v4582 = vrot.slane %v4426, 7
        %v4583 = vsel %vm2703, %v4581, %v4582
        %v4584 = vrot.slane %v4431, 7
        %v4585 = vrot.slane %v4434, 7
        %v4586 = vsel %vm2703, %v4584, %v4585
        %v4587 = vrot.slane %v4439, 7
        %v4588 = vrot.slane %v4442, 7
        %v4589 = vsel %vm2703, %v4587, %v4588
        %v4590 = vrot.slane %v4447, 7
        %v4591 = vrot.slane %v4450, 7
        %v4592 = vsel %vm2703, %v4590, %v4591
        %v4593 = vrot.slane %v4455, 7
        %v4594 = vrot.slane %v4458, 7
        %v4595 = vsel %vm2703, %v4593, %v4594
        %v4596 = vrot.slane %v4463, 7
        %v4597 = vrot.slane %v4466, 7
        %v4598 = vsel %vm2703, %v4596, %v4597
        %v4599 = vrot.slane %v4471, 7
        %v4600 = vrot.slane %v4474, 7
        %v4601 = vsel %vm2703, %v4599, %v4600
        %v4602 = vrot.slane %v4479, 7
        %v4603 = vrot.slane %v4482, 7
        %v4604 = vsel %vm2703, %v4602, %v4603
        %v4605 = vrot.slane %v4487, 7
        %v4606 = vrot.slane %v4490, 7
        %v4607 = vsel %vm2703, %v4605, %v4606
        %v4608 = vrot.slane %v4495, 7
        %v4609 = vrot.slane %v4498, 7
        %v4610 = vsel %vm2703, %v4608, %v4609
        %v4611 = vrot.slane %v4503, 7
        %v4612 = vrot.slane %v4506, 7
        %v4613 = vsel %vm2703, %v4611, %v4612
        %v4614 = vrot.slane %v4511, 7
        %v4615 = vrot.slane %v4514, 7
        %v4616 = vsel %vm2703, %v4614, %v4615
        %v4617 = vrot.slane %v4519, 7
        %v4618 = vrot.slane %v4522, 7
        %v4619 = vsel %vm2703, %v4617, %v4618
        %v4620 = vrot.slane %v4527, 7
        %v4621 = vrot.slane %v4530, 7
        %v4622 = vsel %vm2703, %v4620, %v4621
        %v4623 = vrot.slane %v4535, 7
        %v4624 = vrot.slane %v4538, 7
        %v4625 = vsel %vm2703, %v4623, %v4624
        %v4626 = vrot.slane %v4543, 7
        %v4627 = vrot.slane %v4546, 7
        %v4628 = vsel %vm2703, %v4626, %v4627
        %v4661 = vsel %vm2703, 0.0, %v4581
        %v4662 = vsel %vm2703, 0.0, %v4584
        %v4663 = vsel %vm2703, 0.0, %v4587
        %v4664 = vsel %vm2703, 0.0, %v4590
        %v4665 = vsel %vm2703, 0.0, %v4593
        %v4666 = vsel %vm2703, 0.0, %v4596
        %v4667 = vsel %vm2703, 0.0, %v4599
        %v4668 = vsel %vm2703, 0.0, %v4602
        %v4669 = vsel %vm2703, 0.0, %v4605
        %v4670 = vsel %vm2703, 0.0, %v4608
        %v4671 = vsel %vm2703, 0.0, %v4611
        %v4672 = vsel %vm2703, 0.0, %v4614
        %v4673 = vsel %vm2703, 0.0, %v4617
        %v4674 = vsel %vm2703, 0.0, %v4620
        %v4675 = vsel %vm2703, 0.0, %v4623
        %v4676 = vsel %vm2703, 0.0, %v4626
        %s4677 = scalar_lea.vmem %s13, 32
        %v4678 = vld [vmem:[%s4677] sm:$0xf]
        %v4679 = vld [vmem:[%s4677 + $0x4] sm:$0xf]
        %v4680 = vld [vmem:[%s4677 + $0x8] sm:$0xf]
        %v4681 = vld [vmem:[%s4677 + $0xc] sm:$0xf]
        %v4682 = vld [vmem:[%s4677 + $0x10] sm:$0xf]
        %v4683 = vld [vmem:[%s4677 + $0x14] sm:$0xf]
        %v4684 = vld [vmem:[%s4677 + $0x18] sm:$0xf]
        %v4685 = vld [vmem:[%s4677 + $0x1c] sm:$0xf]
        %v4694 = vunpack.c.l.b16 %v4678
        %v4695 = vunpack.c.l.b16 %v4679
        %v4696 = vunpack.c.l.b16 %v4680
        %v4697 = vunpack.c.l.b16 %v4681
        %v4698 = vunpack.c.l.b16 %v4682
        %v4699 = vunpack.c.l.b16 %v4683
        %v4700 = vunpack.c.l.b16 %v4684
        %v4701 = vunpack.c.l.b16 %v4685
        %v4702 = vpack.c.b16 %v4695, %v4694
        %v4703 = vpack.c.b16 %v4697, %v4696
        %v4704 = vpack.c.b16 %v4699, %v4698
        %v4705 = vpack.c.b16 %v4701, %v4700
        %4710 = vmatprep.subr.bf16.mxu0 0
        %4711 = vmatpush1.bf16.msra.mxu0 %v4702
        %4712 = vmatprep.subr.bf16.mxu0 0
        %4713 = vmatpush1.bf16.msra.mxu0 %v4703
        %4714 = vmatprep.subr.bf16.mxu0 0
        %4715 = vmatpush1.bf16.msra.mxu0 %v4704
        %4716 = vmatprep.subr.bf16.mxu0 0
        %4717 = vmatpush1.bf16.msra.mxu0 %v4705
        %4718 = vmatprep.subr.bf16.mxu0 0
        %4719 = vmatpush1.bf16.msra.mxu0 0
        %4720 = vmatprep.subr.bf16.mxu0 0
        %4721 = vmatpush1.bf16.msra.mxu0 0
        %4722 = vmatprep.subr.bf16.mxu0 0
        %4723 = vmatpush1.bf16.msra.mxu0 0
        %4724 = vmatprep.subr.bf16.mxu0 0
        %4725 = vmatpush1.bf16.msra.mxu0 0
        %4726 = vmatprep.subr.bf16.mxu0 0
        %4727 = vmatpush1.bf16.msra.mxu0 0
        %4728 = vmatprep.subr.bf16.mxu0 0
        %4729 = vmatpush1.bf16.msra.mxu0 0
        %4730 = vmatprep.subr.bf16.mxu0 0
        %4731 = vmatpush1.bf16.msra.mxu0 0
        %4732 = vmatprep.subr.bf16.mxu0 0
        %4733 = vmatpush1.bf16.msra.mxu0 0
        %4734 = vmatprep.subr.bf16.mxu0 0
        %4735 = vmatpush1.bf16.msra.mxu0 0
        %4736 = vmatprep.subr.bf16.mxu0 0
        %4737 = vmatpush1.bf16.msra.mxu0 0
        %4738 = vmatprep.subr.bf16.mxu0 0
        %4739 = vmatpush1.bf16.msra.mxu0 0
        %4740 = vmatprep.subr.bf16.mxu0 0
        %4741 = vmatpush1.bf16.msra.mxu0 0
        %4742 = vmatprep.mubr.bf16.mxu0 0
        %4743 = vmatmul.mubr.bf16.gmra.mrb[0].mxu0 %v4341
        %v4744 = vpop.f32.mrb[0].mxu0
        %v4745 = vadd.f32 0.0, %v4744
        %v4746 = vpop.f32.mrb[0].mxu0
        %v4747 = vpop.f32.mrb[0].mxu0
        %v4748 = vadd.f32 0.0, %v4747
        %v4749 = vpop.f32.mrb[0].mxu0
        %4750 = vmatprep.mubr.bf16.mxu0 0
        %4751 = vmatmul.mubr.bf16.gmra.mrb[0].mxu0 %v4344
        %v4752 = vpop.f32.mrb[0].mxu0
        %v4753 = vadd.f32 0.0, %v4752
        %v4754 = vpop.f32.mrb[0].mxu0
        %v4755 = vpop.f32.mrb[0].mxu0
        %v4756 = vadd.f32 0.0, %v4755
        %v4757 = vpop.f32.mrb[0].mxu0
        %4758 = vmatprep.mubr.bf16.mxu0 0
        %4759 = vmatmul.mubr.bf16.gmra.mrb[0].mxu0 %v4347
        %v4760 = vpop.f32.mrb[0].mxu0
        %v4761 = vadd.f32 0.0, %v4760
        %v4762 = vpop.f32.mrb[0].mxu0
        %v4763 = vpop.f32.mrb[0].mxu0
        %v4764 = vadd.f32 0.0, %v4763
        %v4765 = vpop.f32.mrb[0].mxu0
        %4766 = vmatprep.mubr.bf16.mxu0 0
        %4767 = vmatmul.mubr.bf16.gmra.mrb[0].mxu0 %v4350
        %v4768 = vpop.f32.mrb[0].mxu0
        %v4769 = vadd.f32 0.0, %v4768
        %v4770 = vpop.f32.mrb[0].mxu0
        %v4771 = vpop.f32.mrb[0].mxu0
        %v4772 = vadd.f32 0.0, %v4771
        %v4773 = vpop.f32.mrb[0].mxu0
        %4774 = vmatprep.mubr.bf16.mxu0 0
        %4775 = vmatmul.mubr.bf16.gmra.mrb[0].mxu0 %v4353
        %v4776 = vpop.f32.mrb[0].mxu0
        %v4777 = vadd.f32 0.0, %v4776
        %v4778 = vpop.f32.mrb[0].mxu0
        %v4779 = vpop.f32.mrb[0].mxu0
        %v4780 = vadd.f32 0.0, %v4779
        %v4781 = vpop.f32.mrb[0].mxu0
        %4782 = vmatprep.mubr.bf16.mxu0 0
        %4783 = vmatmul.mubr.bf16.gmra.mrb[0].mxu0 %v4356
        %v4784 = vpop.f32.mrb[0].mxu0
        %v4785 = vadd.f32 0.0, %v4784
        %v4786 = vpop.f32.mrb[0].mxu0
        %v4787 = vpop.f32.mrb[0].mxu0
        %v4788 = vadd.f32 0.0, %v4787
        %v4789 = vpop.f32.mrb[0].mxu0
        %4790 = vmatprep.mubr.bf16.mxu0 0
        %4791 = vmatmul.mubr.bf16.gmra.mrb[0].mxu0 %v4359
        %v4792 = vpop.f32.mrb[0].mxu0
        %v4793 = vadd.f32 0.0, %v4792
        %v4794 = vpop.f32.mrb[0].mxu0
        %v4795 = vpop.f32.mrb[0].mxu0
        %v4796 = vadd.f32 0.0, %v4795
        %v4797 = vpop.f32.mrb[0].mxu0
        %4798 = vmatprep.mubr.bf16.mxu0 0
        %4799 = vmatmul.mubr.bf16.gmra.mrb[0].mxu0 %v4362
        %v4800 = vpop.f32.mrb[0].mxu0
        %v4801 = vadd.f32 0.0, %v4800
        %v4802 = vpop.f32.mrb[0].mxu0
        %v4803 = vpop.f32.mrb[0].mxu0
        %v4804 = vadd.f32 0.0, %v4803
        %v4805 = vpop.f32.mrb[0].mxu0
        %4806 = vmatprep.mubr.bf16.mxu0 0
        %4807 = vmatmul.mubr.bf16.gmra.mrb[0].mxu0 %v4365
        %v4808 = vpop.f32.mrb[0].mxu0
        %v4809 = vadd.f32 0.0, %v4808
        %v4810 = vpop.f32.mrb[0].mxu0
        %v4811 = vpop.f32.mrb[0].mxu0
        %v4812 = vadd.f32 0.0, %v4811
        %v4813 = vpop.f32.mrb[0].mxu0
        %4814 = vmatprep.mubr.bf16.mxu0 0
        %4815 = vmatmul.mubr.bf16.gmra.mrb[0].mxu0 %v4368
        %v4816 = vpop.f32.mrb[0].mxu0
        %v4817 = vadd.f32 0.0, %v4816
        %v4818 = vpop.f32.mrb[0].mxu0
        %v4819 = vpop.f32.mrb[0].mxu0
        %v4820 = vadd.f32 0.0, %v4819
        %v4821 = vpop.f32.mrb[0].mxu0
        %4822 = vmatprep.mubr.bf16.mxu0 0
        %4823 = vmatmul.mubr.bf16.gmra.mrb[0].mxu0 %v4371
        %v4824 = vpop.f32.mrb[0].mxu0
        %v4825 = vadd.f32 0.0, %v4824
        %v4826 = vpop.f32.mrb[0].mxu0
        %v4827 = vpop.f32.mrb[0].mxu0
        %v4828 = vadd.f32 0.0, %v4827
        %v4829 = vpop.f32.mrb[0].mxu0
        %4830 = vmatprep.mubr.bf16.mxu0 0
        %4831 = vmatmul.mubr.bf16.gmra.mrb[0].mxu0 %v4374
        %v4832 = vpop.f32.mrb[0].mxu0
        %v4833 = vadd.f32 0.0, %v4832
        %v4834 = vpop.f32.mrb[0].mxu0
        %v4835 = vpop.f32.mrb[0].mxu0
        %v4836 = vadd.f32 0.0, %v4835
        %v4837 = vpop.f32.mrb[0].mxu0
        %4838 = vmatprep.mubr.bf16.mxu0 0
        %4839 = vmatmul.mubr.bf16.gmra.mrb[0].mxu0 %v4377
        %v4840 = vpop.f32.mrb[0].mxu0
        %v4841 = vadd.f32 0.0, %v4840
        %v4842 = vpop.f32.mrb[0].mxu0
        %v4843 = vpop.f32.mrb[0].mxu0
        %v4844 = vadd.f32 0.0, %v4843
        %v4845 = vpop.f32.mrb[0].mxu0
        %4846 = vmatprep.mubr.bf16.mxu0 0
        %4847 = vmatmul.mubr.bf16.gmra.mrb[0].mxu0 %v4380
        %v4848 = vpop.f32.mrb[0].mxu0
        %v4849 = vadd.f32 0.0, %v4848
        %v4850 = vpop.f32.mrb[0].mxu0
        %v4851 = vpop.f32.mrb[0].mxu0
        %v4852 = vadd.f32 0.0, %v4851
        %v4853 = vpop.f32.mrb[0].mxu0
        %4854 = vmatprep.mubr.bf16.mxu0 0
        %4855 = vmatmul.mubr.bf16.gmra.mrb[0].mxu0 %v4383
        %v4856 = vpop.f32.mrb[0].mxu0
        %v4857 = vadd.f32 0.0, %v4856
        %v4858 = vpop.f32.mrb[0].mxu0
        %v4859 = vpop.f32.mrb[0].mxu0
        %v4860 = vadd.f32 0.0, %v4859
        %v4861 = vpop.f32.mrb[0].mxu0
        %4862 = vmatprep.mubr.bf16.mxu0 0
        %4863 = vmatmul.mubr.bf16.gmra.mrb[0].mxu0 %v4386
        %v4864 = vpop.f32.mrb[0].mxu0
        %v4865 = vadd.f32 0.0, %v4864
        %v4866 = vpop.f32.mrb[0].mxu0
        %v4867 = vpop.f32.mrb[0].mxu0
        %v4868 = vadd.f32 0.0, %v4867
        %v4869 = vpop.f32.mrb[0].mxu0
        %4870 = vdwg.mxu0
        %v4871 = vadd.f32 %v4661, %v4745
        %v4872 = vadd.f32 %v4583, %v4748
        %v4873 = vadd.f32 %v4662, %v4753
        %v4874 = vadd.f32 %v4586, %v4756
        %v4875 = vadd.f32 %v4663, %v4761
        %v4876 = vadd.f32 %v4589, %v4764
        %v4877 = vadd.f32 %v4664, %v4769
        %v4878 = vadd.f32 %v4592, %v4772
        %v4879 = vadd.f32 %v4665, %v4777
        %v4880 = vadd.f32 %v4595, %v4780
        %v4881 = vadd.f32 %v4666, %v4785
        %v4882 = vadd.f32 %v4598, %v4788
        %v4883 = vadd.f32 %v4667, %v4793
        %v4884 = vadd.f32 %v4601, %v4796
        %v4885 = vadd.f32 %v4668, %v4801
        %v4886 = vadd.f32 %v4604, %v4804
        %v4887 = vadd.f32 %v4669, %v4809
        %v4888 = vadd.f32 %v4607, %v4812
        %v4889 = vadd.f32 %v4670, %v4817
        %v4890 = vadd.f32 %v4610, %v4820
        %v4891 = vadd.f32 %v4671, %v4825
        %v4892 = vadd.f32 %v4613, %v4828
        %v4893 = vadd.f32 %v4672, %v4833
        %v4894 = vadd.f32 %v4616, %v4836
        %v4895 = vadd.f32 %v4673, %v4841
        %v4896 = vadd.f32 %v4619, %v4844
        %v4897 = vadd.f32 %v4674, %v4849
        %v4898 = vadd.f32 %v4622, %v4852
        %v4899 = vadd.f32 %v4675, %v4857
        %v4900 = vadd.f32 %v4625, %v4860
        %v4901 = vadd.f32 %v4676, %v4865
        %v4902 = vadd.f32 %v4628, %v4868
        %s4903 = scalar_lea.vmem %s13, 64
        %v4904 = vld [vmem:[%s4903] sm:$0xf]
        %v4905 = vld [vmem:[%s4903 + $0x4] sm:$0xf]
        %v4906 = vld [vmem:[%s4903 + $0x8] sm:$0xf]
        %v4907 = vld [vmem:[%s4903 + $0xc] sm:$0xf]
        %v4908 = vld [vmem:[%s4903 + $0x10] sm:$0xf]
        %v4909 = vld [vmem:[%s4903 + $0x14] sm:$0xf]
        %v4910 = vld [vmem:[%s4903 + $0x18] sm:$0xf]
        %v4911 = vld [vmem:[%s4903 + $0x1c] sm:$0xf]
        %v4920 = vunpack.c.l.b16 %v4904
        %v4921 = vunpack.c.l.b16 %v4905
        %v4922 = vunpack.c.l.b16 %v4906
        %v4923 = vunpack.c.l.b16 %v4907
        %v4924 = vunpack.c.l.b16 %v4908
        %v4925 = vunpack.c.l.b16 %v4909
        %v4926 = vunpack.c.l.b16 %v4910
        %v4927 = vunpack.c.l.b16 %v4911
        %v4928 = vpack.c.b16 %v4921, %v4920
        %v4929 = vpack.c.b16 %v4923, %v4922
        %v4930 = vpack.c.b16 %v4925, %v4924
        %v4931 = vpack.c.b16 %v4927, %v4926
        %4936 = vmatprep.subr.bf16.mxu0 0
        %4937 = vmatpush1.bf16.msra.mxu0 %v4928
        %4938 = vmatprep.subr.bf16.mxu0 0
        %4939 = vmatpush1.bf16.msra.mxu0 %v4929
        %4940 = vmatprep.subr.bf16.mxu0 0
        %4941 = vmatpush1.bf16.msra.mxu0 %v4930
        %4942 = vmatprep.subr.bf16.mxu0 0
        %4943 = vmatpush1.bf16.msra.mxu0 %v4931
        %4944 = vmatprep.subr.bf16.mxu0 0
        %4945 = vmatpush1.bf16.msra.mxu0 0
        %4946 = vmatprep.subr.bf16.mxu0 0
        %4947 = vmatpush1.bf16.msra.mxu0 0
        %4948 = vmatprep.subr.bf16.mxu0 0
        %4949 = vmatpush1.bf16.msra.mxu0 0
        %4950 = vmatprep.subr.bf16.mxu0 0
        %4951 = vmatpush1.bf16.msra.mxu0 0
        %4952 = vmatprep.subr.bf16.mxu0 0
        %4953 = vmatpush1.bf16.msra.mxu0 0
        %4954 = vmatprep.subr.bf16.mxu0 0
        %4955 = vmatpush1.bf16.msra.mxu0 0
        %4956 = vmatprep.subr.bf16.mxu0 0
        %4957 = vmatpush1.bf16.msra.mxu0 0
        %4958 = vmatprep.subr.bf16.mxu0 0
        %4959 = vmatpush1.bf16.msra.mxu0 0
        %4960 = vmatprep.subr.bf16.mxu0 0
        %4961 = vmatpush1.bf16.msra.mxu0 0
        %4962 = vmatprep.subr.bf16.mxu0 0
        %4963 = vmatpush1.bf16.msra.mxu0 0
        %4964 = vmatprep.subr.bf16.mxu0 0
        %4965 = vmatpush1.bf16.msra.mxu0 0
        %4966 = vmatprep.subr.bf16.mxu0 0
        %4967 = vmatpush1.bf16.msra.mxu0 0
        %4968 = vmatprep.mubr.bf16.mxu0 0
        %4969 = vmatmul.mubr.bf16.gmra.mrb[0].mxu0 %v4341
        %v4970 = vpop.f32.mrb[0].mxu0
        %v4971 = vadd.f32 0.0, %v4970
        %v4972 = vpop.f32.mrb[0].mxu0
        %v4973 = vpop.f32.mrb[0].mxu0
        %v4974 = vadd.f32 0.0, %v4973
        %v4975 = vpop.f32.mrb[0].mxu0
        %4976 = vmatprep.mubr.bf16.mxu0 0
        %4977 = vmatmul.mubr.bf16.gmra.mrb[0].mxu0 %v4344
        %v4978 = vpop.f32.mrb[0].mxu0
        %v4979 = vadd.f32 0.0, %v4978
        %v4980 = vpop.f32.mrb[0].mxu0
        %v4981 = vpop.f32.mrb[0].mxu0
        %v4982 = vadd.f32 0.0, %v4981
        %v4983 = vpop.f32.mrb[0].mxu0
        %4984 = vmatprep.mubr.bf16.mxu0 0
        %4985 = vmatmul.mubr.bf16.gmra.mrb[0].mxu0 %v4347
        %v4986 = vpop.f32.mrb[0].mxu0
        %v4987 = vadd.f32 0.0, %v4986
        %v4988 = vpop.f32.mrb[0].mxu0
        %v4989 = vpop.f32.mrb[0].mxu0
        %v4990 = vadd.f32 0.0, %v4989
        %v4991 = vpop.f32.mrb[0].mxu0
        %4992 = vmatprep.mubr.bf16.mxu0 0
        %4993 = vmatmul.mubr.bf16.gmra.mrb[0].mxu0 %v4350
        %v4994 = vpop.f32.mrb[0].mxu0
        %v4995 = vadd.f32 0.0, %v4994
        %v4996 = vpop.f32.mrb[0].mxu0
        %v4997 = vpop.f32.mrb[0].mxu0
        %v4998 = vadd.f32 0.0, %v4997
        %v4999 = vpop.f32.mrb[0].mxu0
        %5000 = vmatprep.mubr.bf16.mxu0 0
        %5001 = vmatmul.mubr.bf16.gmra.mrb[0].mxu0 %v4353
        %v5002 = vpop.f32.mrb[0].mxu0
        %v5003 = vadd.f32 0.0, %v5002
        %v5004 = vpop.f32.mrb[0].mxu0
        %v5005 = vpop.f32.mrb[0].mxu0
        %v5006 = vadd.f32 0.0, %v5005
        %v5007 = vpop.f32.mrb[0].mxu0
        %5008 = vmatprep.mubr.bf16.mxu0 0
        %5009 = vmatmul.mubr.bf16.gmra.mrb[0].mxu0 %v4356
        %v5010 = vpop.f32.mrb[0].mxu0
        %v5011 = vadd.f32 0.0, %v5010
        %v5012 = vpop.f32.mrb[0].mxu0
        %v5013 = vpop.f32.mrb[0].mxu0
        %v5014 = vadd.f32 0.0, %v5013
        %v5015 = vpop.f32.mrb[0].mxu0
        %5016 = vmatprep.mubr.bf16.mxu0 0
        %5017 = vmatmul.mubr.bf16.gmra.mrb[0].mxu0 %v4359
        %v5018 = vpop.f32.mrb[0].mxu0
        %v5019 = vadd.f32 0.0, %v5018
        %v5020 = vpop.f32.mrb[0].mxu0
        %v5021 = vpop.f32.mrb[0].mxu0
        %v5022 = vadd.f32 0.0, %v5021
        %v5023 = vpop.f32.mrb[0].mxu0
        %5024 = vmatprep.mubr.bf16.mxu0 0
        %5025 = vmatmul.mubr.bf16.gmra.mrb[0].mxu0 %v4362
        %v5026 = vpop.f32.mrb[0].mxu0
        %v5027 = vadd.f32 0.0, %v5026
        %v5028 = vpop.f32.mrb[0].mxu0
        %v5029 = vpop.f32.mrb[0].mxu0
        %v5030 = vadd.f32 0.0, %v5029
        %v5031 = vpop.f32.mrb[0].mxu0
        %5032 = vmatprep.mubr.bf16.mxu0 0
        %5033 = vmatmul.mubr.bf16.gmra.mrb[0].mxu0 %v4365
        %v5034 = vpop.f32.mrb[0].mxu0
        %v5035 = vadd.f32 0.0, %v5034
        %v5036 = vpop.f32.mrb[0].mxu0
        %v5037 = vpop.f32.mrb[0].mxu0
        %v5038 = vadd.f32 0.0, %v5037
        %v5039 = vpop.f32.mrb[0].mxu0
        %5040 = vmatprep.mubr.bf16.mxu0 0
        %5041 = vmatmul.mubr.bf16.gmra.mrb[0].mxu0 %v4368
        %v5042 = vpop.f32.mrb[0].mxu0
        %v5043 = vadd.f32 0.0, %v5042
        %v5044 = vpop.f32.mrb[0].mxu0
        %v5045 = vpop.f32.mrb[0].mxu0
        %v5046 = vadd.f32 0.0, %v5045
        %v5047 = vpop.f32.mrb[0].mxu0
        %5048 = vmatprep.mubr.bf16.mxu0 0
        %5049 = vmatmul.mubr.bf16.gmra.mrb[0].mxu0 %v4371
        %v5050 = vpop.f32.mrb[0].mxu0
        %v5051 = vadd.f32 0.0, %v5050
        %v5052 = vpop.f32.mrb[0].mxu0
        %v5053 = vpop.f32.mrb[0].mxu0
        %v5054 = vadd.f32 0.0, %v5053
        %v5055 = vpop.f32.mrb[0].mxu0
        %5056 = vmatprep.mubr.bf16.mxu0 0
        %5057 = vmatmul.mubr.bf16.gmra.mrb[0].mxu0 %v4374
        %v5058 = vpop.f32.mrb[0].mxu0
        %v5059 = vadd.f32 0.0, %v5058
        %v5060 = vpop.f32.mrb[0].mxu0
        %v5061 = vpop.f32.mrb[0].mxu0
        %v5062 = vadd.f32 0.0, %v5061
        %v5063 = vpop.f32.mrb[0].mxu0
        %5064 = vmatprep.mubr.bf16.mxu0 0
        %5065 = vmatmul.mubr.bf16.gmra.mrb[0].mxu0 %v4377
        %v5066 = vpop.f32.mrb[0].mxu0
        %v5067 = vadd.f32 0.0, %v5066
        %v5068 = vpop.f32.mrb[0].mxu0
        %v5069 = vpop.f32.mrb[0].mxu0
        %v5070 = vadd.f32 0.0, %v5069
        %v5071 = vpop.f32.mrb[0].mxu0
        %5072 = vmatprep.mubr.bf16.mxu0 0
        %5073 = vmatmul.mubr.bf16.gmra.mrb[0].mxu0 %v4380
        %v5074 = vpop.f32.mrb[0].mxu0
        %v5075 = vadd.f32 0.0, %v5074
        %v5076 = vpop.f32.mrb[0].mxu0
        %v5077 = vpop.f32.mrb[0].mxu0
        %v5078 = vadd.f32 0.0, %v5077
        %v5079 = vpop.f32.mrb[0].mxu0
        %5080 = vmatprep.mubr.bf16.mxu0 0
        %5081 = vmatmul.mubr.bf16.gmra.mrb[0].mxu0 %v4383
        %v5082 = vpop.f32.mrb[0].mxu0
        %v5083 = vadd.f32 0.0, %v5082
        %v5084 = vpop.f32.mrb[0].mxu0
        %v5085 = vpop.f32.mrb[0].mxu0
        %v5086 = vadd.f32 0.0, %v5085
        %v5087 = vpop.f32.mrb[0].mxu0
        %5088 = vmatprep.mubr.bf16.mxu0 0
        %5089 = vmatmul.mubr.bf16.gmra.mrb[0].mxu0 %v4386
        %v5090 = vpop.f32.mrb[0].mxu0
        %v5091 = vadd.f32 0.0, %v5090
        %v5092 = vpop.f32.mrb[0].mxu0
        %v5093 = vpop.f32.mrb[0].mxu0
        %v5094 = vadd.f32 0.0, %v5093
        %v5095 = vpop.f32.mrb[0].mxu0
        %5096 = vdwg.mxu0
        %v5129 = vrot.slane %v4971, 1
        %v5130 = vrot.slane %v4974, 1
        %v5131 = vsel %vm3252, %v5129, %v5130
        %v5132 = vrot.slane %v4979, 1
        %v5133 = vrot.slane %v4982, 1
        %v5134 = vsel %vm3252, %v5132, %v5133
        %v5135 = vrot.slane %v4987, 1
        %v5136 = vrot.slane %v4990, 1
        %v5137 = vsel %vm3252, %v5135, %v5136
        %v5138 = vrot.slane %v4995, 1
        %v5139 = vrot.slane %v4998, 1
        %v5140 = vsel %vm3252, %v5138, %v5139
        %v5141 = vrot.slane %v5003, 1
        %v5142 = vrot.slane %v5006, 1
        %v5143 = vsel %vm3252, %v5141, %v5142
        %v5144 = vrot.slane %v5011, 1
        %v5145 = vrot.slane %v5014, 1
        %v5146 = vsel %vm3252, %v5144, %v5145
        %v5147 = vrot.slane %v5019, 1
        %v5148 = vrot.slane %v5022, 1
        %v5149 = vsel %vm3252, %v5147, %v5148
        %v5150 = vrot.slane %v5027, 1
        %v5151 = vrot.slane %v5030, 1
        %v5152 = vsel %vm3252, %v5150, %v5151
        %v5153 = vrot.slane %v5035, 1
        %v5154 = vrot.slane %v5038, 1
        %v5155 = vsel %vm3252, %v5153, %v5154
        %v5156 = vrot.slane %v5043, 1
        %v5157 = vrot.slane %v5046, 1
        %v5158 = vsel %vm3252, %v5156, %v5157
        %v5159 = vrot.slane %v5051, 1
        %v5160 = vrot.slane %v5054, 1
        %v5161 = vsel %vm3252, %v5159, %v5160
        %v5162 = vrot.slane %v5059, 1
        %v5163 = vrot.slane %v5062, 1
        %v5164 = vsel %vm3252, %v5162, %v5163
        %v5165 = vrot.slane %v5067, 1
        %v5166 = vrot.slane %v5070, 1
        %v5167 = vsel %vm3252, %v5165, %v5166
        %v5168 = vrot.slane %v5075, 1
        %v5169 = vrot.slane %v5078, 1
        %v5170 = vsel %vm3252, %v5168, %v5169
        %v5171 = vrot.slane %v5083, 1
        %v5172 = vrot.slane %v5086, 1
        %v5173 = vsel %vm3252, %v5171, %v5172
        %v5174 = vrot.slane %v5091, 1
        %v5175 = vrot.slane %v5094, 1
        %v5176 = vsel %vm3252, %v5174, %v5175
        %v5209 = vsel %vm3252, %v5130, 0.0
        %v5210 = vsel %vm3252, %v5133, 0.0
        %v5211 = vsel %vm3252, %v5136, 0.0
        %v5212 = vsel %vm3252, %v5139, 0.0
        %v5213 = vsel %vm3252, %v5142, 0.0
        %v5214 = vsel %vm3252, %v5145, 0.0
        %v5215 = vsel %vm3252, %v5148, 0.0
        %v5216 = vsel %vm3252, %v5151, 0.0
        %v5217 = vsel %vm3252, %v5154, 0.0
        %v5218 = vsel %vm3252, %v5157, 0.0
        %v5219 = vsel %vm3252, %v5160, 0.0
        %v5220 = vsel %vm3252, %v5163, 0.0
        %v5221 = vsel %vm3252, %v5166, 0.0
        %v5222 = vsel %vm3252, %v5169, 0.0
        %v5223 = vsel %vm3252, %v5172, 0.0
        %v5224 = vsel %vm3252, %v5175, 0.0
        %v5225 = vadd.f32 %v4871, %v5131
        %v5226 = vadd.f32 %v4872, %v5209
        %v5227 = vadd.f32 %v4873, %v5134
        %v5228 = vadd.f32 %v4874, %v5210
        %v5229 = vadd.f32 %v4875, %v5137
        %v5230 = vadd.f32 %v4876, %v5211
        %v5231 = vadd.f32 %v4877, %v5140
        %v5232 = vadd.f32 %v4878, %v5212
        %v5233 = vadd.f32 %v4879, %v5143
        %v5234 = vadd.f32 %v4880, %v5213
        %v5235 = vadd.f32 %v4881, %v5146
        %v5236 = vadd.f32 %v4882, %v5214
        %v5237 = vadd.f32 %v4883, %v5149
        %v5238 = vadd.f32 %v4884, %v5215
        %v5239 = vadd.f32 %v4885, %v5152
        %v5240 = vadd.f32 %v4886, %v5216
        %v5241 = vadd.f32 %v4887, %v5155
        %v5242 = vadd.f32 %v4888, %v5217
        %v5243 = vadd.f32 %v4889, %v5158
        %v5244 = vadd.f32 %v4890, %v5218
        %v5245 = vadd.f32 %v4891, %v5161
        %v5246 = vadd.f32 %v4892, %v5219
        %v5247 = vadd.f32 %v4893, %v5164
        %v5248 = vadd.f32 %v4894, %v5220
        %v5249 = vadd.f32 %v4895, %v5167
        %v5250 = vadd.f32 %v4896, %v5221
        %v5251 = vadd.f32 %v4897, %v5170
        %v5252 = vadd.f32 %v4898, %v5222
        %v5253 = vadd.f32 %v4899, %v5173
        %v5254 = vadd.f32 %v4900, %v5223
        %v5255 = vadd.f32 %v4901, %v5176
        %v5256 = vadd.f32 %v4902, %v5224
        %v5257 = vld [vmem:[%s14] sm:$0x1]
        %v5259 = vlaneseq
        %v5260 = vshrl.u32 %v5259, 7
        %v5261 = vsub.s32 0, %v5260
        %v5262 = vrot.slane %v5257, %v5261
        %v5264 = vadd.f32 %v5225, %v5262
        %v5265 = vadd.f32 %v5226, %v5262
        %v5266 = vadd.f32 %v5227, %v5262
        %v5267 = vadd.f32 %v5228, %v5262
        %v5268 = vadd.f32 %v5229, %v5262
        %v5269 = vadd.f32 %v5230, %v5262
        %v5270 = vadd.f32 %v5231, %v5262
        %v5271 = vadd.f32 %v5232, %v5262
        %v5272 = vadd.f32 %v5233, %v5262
        %v5273 = vadd.f32 %v5234, %v5262
        %v5274 = vadd.f32 %v5235, %v5262
        %v5275 = vadd.f32 %v5236, %v5262
        %v5276 = vadd.f32 %v5237, %v5262
        %v5277 = vadd.f32 %v5238, %v5262
        %v5278 = vadd.f32 %v5239, %v5262
        %v5279 = vadd.f32 %v5240, %v5262
        %v5280 = vadd.f32 %v5241, %v5262
        %v5281 = vadd.f32 %v5242, %v5262
        %v5282 = vadd.f32 %v5243, %v5262
        %v5283 = vadd.f32 %v5244, %v5262
        %v5284 = vadd.f32 %v5245, %v5262
        %v5285 = vadd.f32 %v5246, %v5262
        %v5286 = vadd.f32 %v5247, %v5262
        %v5287 = vadd.f32 %v5248, %v5262
        %v5288 = vadd.f32 %v5249, %v5262
        %v5289 = vadd.f32 %v5250, %v5262
        %v5290 = vadd.f32 %v5251, %v5262
        %v5291 = vadd.f32 %v5252, %v5262
        %v5292 = vadd.f32 %v5253, %v5262
        %v5293 = vadd.f32 %v5254, %v5262
        %v5294 = vadd.f32 %v5255, %v5262
        %v5295 = vadd.f32 %v5256, %v5262
        %v5296 = vmax.f32 %v5264, 0.0
        %v5297 = vmax.f32 %v5265, 0.0
        %v5298 = vmax.f32 %v5266, 0.0
        %v5299 = vmax.f32 %v5267, 0.0
        %v5300 = vmax.f32 %v5268, 0.0
        %v5301 = vmax.f32 %v5269, 0.0
        %v5302 = vmax.f32 %v5270, 0.0
        %v5303 = vmax.f32 %v5271, 0.0
        %v5304 = vmax.f32 %v5272, 0.0
        %v5305 = vmax.f32 %v5273, 0.0
        %v5306 = vmax.f32 %v5274, 0.0
        %v5307 = vmax.f32 %v5275, 0.0
        %v5308 = vmax.f32 %v5276, 0.0
        %v5309 = vmax.f32 %v5277, 0.0
        %v5310 = vmax.f32 %v5278, 0.0
        %v5311 = vmax.f32 %v5279, 0.0
        %v5312 = vmax.f32 %v5280, 0.0
        %v5313 = vmax.f32 %v5281, 0.0
        %v5314 = vmax.f32 %v5282, 0.0
        %v5315 = vmax.f32 %v5283, 0.0
        %v5316 = vmax.f32 %v5284, 0.0
        %v5317 = vmax.f32 %v5285, 0.0
        %v5318 = vmax.f32 %v5286, 0.0
        %v5319 = vmax.f32 %v5287, 0.0
        %v5320 = vmax.f32 %v5288, 0.0
        %v5321 = vmax.f32 %v5289, 0.0
        %v5322 = vmax.f32 %v5290, 0.0
        %v5323 = vmax.f32 %v5291, 0.0
        %v5324 = vmax.f32 %v5292, 0.0
        %v5325 = vmax.f32 %v5293, 0.0
        %v5326 = vmax.f32 %v5294, 0.0
        %v5327 = vmax.f32 %v5295, 0.0
        %v5328 = vpack.c.bf16 %v5297, %v5296
        %v5329 = vpack.c.bf16 %v5299, %v5298
        %v5330 = vpack.c.bf16 %v5301, %v5300
        %v5331 = vpack.c.bf16 %v5303, %v5302
        %v5332 = vpack.c.bf16 %v5305, %v5304
        %v5333 = vpack.c.bf16 %v5307, %v5306
        %v5334 = vpack.c.bf16 %v5309, %v5308
        %v5335 = vpack.c.bf16 %v5311, %v5310
        %v5336 = vpack.c.bf16 %v5313, %v5312
        %v5337 = vpack.c.bf16 %v5315, %v5314
        %v5338 = vpack.c.bf16 %v5317, %v5316
        %v5339 = vpack.c.bf16 %v5319, %v5318
        %v5340 = vpack.c.bf16 %v5321, %v5320
        %v5341 = vpack.c.bf16 %v5323, %v5322
        %v5342 = vpack.c.bf16 %v5325, %v5324
        %v5343 = vpack.c.bf16 %v5327, %v5326
        %v5344 = vld [vmem:[%s15] sm:$0xf]
        %v5345 = vld [vmem:[%s15 + $0x4] sm:$0xf]
        %v5346 = vld [vmem:[%s15 + $0x8] sm:$0xf]
        %v5347 = vld [vmem:[%s15 + $0xc] sm:$0xf]
        %v5348 = vld [vmem:[%s15 + $0x10] sm:$0xf]
        %v5349 = vld [vmem:[%s15 + $0x14] sm:$0xf]
        %v5350 = vld [vmem:[%s15 + $0x18] sm:$0xf]
        %v5351 = vld [vmem:[%s15 + $0x1c] sm:$0xf]
        %v5360 = vunpack.c.l.b16 %v5344
        %v5361 = vunpack.c.l.b16 %v5345
        %v5362 = vunpack.c.l.b16 %v5346
        %v5363 = vunpack.c.l.b16 %v5347
        %v5364 = vunpack.c.l.b16 %v5348
        %v5365 = vunpack.c.l.b16 %v5349
        %v5366 = vunpack.c.l.b16 %v5350
        %v5367 = vunpack.c.l.b16 %v5351
        %v5368 = vpack.c.b16 %v5361, %v5360
        %v5369 = vpack.c.b16 %v5363, %v5362
        %v5370 = vpack.c.b16 %v5365, %v5364
        %v5371 = vpack.c.b16 %v5367, %v5366
        %v5377 = vsel %vm2461, %v5328, 0
        %v5380 = vsel %vm2461, %v5329, 0
        %v5383 = vsel %vm2461, %v5330, 0
        %v5386 = vsel %vm2461, %v5331, 0
        %v5389 = vsel %vm2461, %v5332, 0
        %v5392 = vsel %vm2461, %v5333, 0
        %v5395 = vsel %vm2461, %v5334, 0
        %v5398 = vsel %vm2461, %v5335, 0
        %v5401 = vsel %vm2461, %v5336, 0
        %v5404 = vsel %vm2461, %v5337, 0
        %v5407 = vsel %vm2461, %v5338, 0
        %v5410 = vsel %vm2461, %v5339, 0
        %v5413 = vsel %vm2461, %v5340, 0
        %v5416 = vsel %vm2461, %v5341, 0
        %v5419 = vsel %vm2461, %v5342, 0
        %v5422 = vsel %vm2461, %v5343, 0
        %5424 = vmatprep.subr.bf16.mxu0 0
        %5425 = vmatpush1.bf16.msra.mxu0 %v5368
        %5426 = vmatprep.subr.bf16.mxu0 0
        %5427 = vmatpush1.bf16.msra.mxu0 %v5369
        %5428 = vmatprep.subr.bf16.mxu0 0
        %5429 = vmatpush1.bf16.msra.mxu0 %v5370
        %5430 = vmatprep.subr.bf16.mxu0 0
        %5431 = vmatpush1.bf16.msra.mxu0 %v5371
        %5432 = vmatprep.subr.bf16.mxu0 0
        %5433 = vmatpush1.bf16.msra.mxu0 0
        %5434 = vmatprep.subr.bf16.mxu0 0
        %5435 = vmatpush1.bf16.msra.mxu0 0
        %5436 = vmatprep.subr.bf16.mxu0 0
        %5437 = vmatpush1.bf16.msra.mxu0 0
        %5438 = vmatprep.subr.bf16.mxu0 0
        %5439 = vmatpush1.bf16.msra.mxu0 0
        %5440 = vmatprep.subr.bf16.mxu0 0
        %5441 = vmatpush1.bf16.msra.mxu0 0
        %5442 = vmatprep.subr.bf16.mxu0 0
        %5443 = vmatpush1.bf16.msra.mxu0 0
        %5444 = vmatprep.subr.bf16.mxu0 0
        %5445 = vmatpush1.bf16.msra.mxu0 0
        %5446 = vmatprep.subr.bf16.mxu0 0
        %5447 = vmatpush1.bf16.msra.mxu0 0
        %5448 = vmatprep.subr.bf16.mxu0 0
        %5449 = vmatpush1.bf16.msra.mxu0 0
        %5450 = vmatprep.subr.bf16.mxu0 0
        %5451 = vmatpush1.bf16.msra.mxu0 0
        %5452 = vmatprep.subr.bf16.mxu0 0
        %5453 = vmatpush1.bf16.msra.mxu0 0
        %5454 = vmatprep.subr.bf16.mxu0 0
        %5455 = vmatpush1.bf16.msra.mxu0 0
        %5456 = vmatprep.mubr.bf16.mxu0 0
        %5457 = vmatmul.mubr.bf16.gmra.mrb[0].mxu0 %v5377
        %v5458 = vpop.f32.mrb[0].mxu0
        %v5459 = vadd.f32 0.0, %v5458
        %v5460 = vpop.f32.mrb[0].mxu0
        %v5461 = vpop.f32.mrb[0].mxu0
        %v5462 = vadd.f32 0.0, %v5461
        %v5463 = vpop.f32.mrb[0].mxu0
        %5464 = vmatprep.mubr.bf16.mxu0 0
        %5465 = vmatmul.mubr.bf16.gmra.mrb[0].mxu0 %v5380
        %v5466 = vpop.f32.mrb[0].mxu0
        %v5467 = vadd.f32 0.0, %v5466
        %v5468 = vpop.f32.mrb[0].mxu0
        %v5469 = vpop.f32.mrb[0].mxu0
        %v5470 = vadd.f32 0.0, %v5469
        %v5471 = vpop.f32.mrb[0].mxu0
        %5472 = vmatprep.mubr.bf16.mxu0 0
        %5473 = vmatmul.mubr.bf16.gmra.mrb[0].mxu0 %v5383
        %v5474 = vpop.f32.mrb[0].mxu0
        %v5475 = vadd.f32 0.0, %v5474
        %v5476 = vpop.f32.mrb[0].mxu0
        %v5477 = vpop.f32.mrb[0].mxu0
        %v5478 = vadd.f32 0.0, %v5477
        %v5479 = vpop.f32.mrb[0].mxu0
        %5480 = vmatprep.mubr.bf16.mxu0 0
        %5481 = vmatmul.mubr.bf16.gmra.mrb[0].mxu0 %v5386
        %v5482 = vpop.f32.mrb[0].mxu0
        %v5483 = vadd.f32 0.0, %v5482
        %v5484 = vpop.f32.mrb[0].mxu0
        %v5485 = vpop.f32.mrb[0].mxu0
        %v5486 = vadd.f32 0.0, %v5485
        %v5487 = vpop.f32.mrb[0].mxu0
        %5488 = vmatprep.mubr.bf16.mxu0 0
        %5489 = vmatmul.mubr.bf16.gmra.mrb[0].mxu0 %v5389
        %v5490 = vpop.f32.mrb[0].mxu0
        %v5491 = vadd.f32 0.0, %v5490
        %v5492 = vpop.f32.mrb[0].mxu0
        %v5493 = vpop.f32.mrb[0].mxu0
        %v5494 = vadd.f32 0.0, %v5493
        %v5495 = vpop.f32.mrb[0].mxu0
        %5496 = vmatprep.mubr.bf16.mxu0 0
        %5497 = vmatmul.mubr.bf16.gmra.mrb[0].mxu0 %v5392
        %v5498 = vpop.f32.mrb[0].mxu0
        %v5499 = vadd.f32 0.0, %v5498
        %v5500 = vpop.f32.mrb[0].mxu0
        %v5501 = vpop.f32.mrb[0].mxu0
        %v5502 = vadd.f32 0.0, %v5501
        %v5503 = vpop.f32.mrb[0].mxu0
        %5504 = vmatprep.mubr.bf16.mxu0 0
        %5505 = vmatmul.mubr.bf16.gmra.mrb[0].mxu0 %v5395
        %v5506 = vpop.f32.mrb[0].mxu0
        %v5507 = vadd.f32 0.0, %v5506
        %v5508 = vpop.f32.mrb[0].mxu0
        %v5509 = vpop.f32.mrb[0].mxu0
        %v5510 = vadd.f32 0.0, %v5509
        %v5511 = vpop.f32.mrb[0].mxu0
        %5512 = vmatprep.mubr.bf16.mxu0 0
        %5513 = vmatmul.mubr.bf16.gmra.mrb[0].mxu0 %v5398
        %v5514 = vpop.f32.mrb[0].mxu0
        %v5515 = vadd.f32 0.0, %v5514
        %v5516 = vpop.f32.mrb[0].mxu0
        %v5517 = vpop.f32.mrb[0].mxu0
        %v5518 = vadd.f32 0.0, %v5517
        %v5519 = vpop.f32.mrb[0].mxu0
        %5520 = vmatprep.mubr.bf16.mxu0 0
        %5521 = vmatmul.mubr.bf16.gmra.mrb[0].mxu0 %v5401
        %v5522 = vpop.f32.mrb[0].mxu0
        %v5523 = vadd.f32 0.0, %v5522
        %v5524 = vpop.f32.mrb[0].mxu0
        %v5525 = vpop.f32.mrb[0].mxu0
        %v5526 = vadd.f32 0.0, %v5525
        %v5527 = vpop.f32.mrb[0].mxu0
        %5528 = vmatprep.mubr.bf16.mxu0 0
        %5529 = vmatmul.mubr.bf16.gmra.mrb[0].mxu0 %v5404
        %v5530 = vpop.f32.mrb[0].mxu0
        %v5531 = vadd.f32 0.0, %v5530
        %v5532 = vpop.f32.mrb[0].mxu0
        %v5533 = vpop.f32.mrb[0].mxu0
        %v5534 = vadd.f32 0.0, %v5533
        %v5535 = vpop.f32.mrb[0].mxu0
        %5536 = vmatprep.mubr.bf16.mxu0 0
        %5537 = vmatmul.mubr.bf16.gmra.mrb[0].mxu0 %v5407
        %v5538 = vpop.f32.mrb[0].mxu0
        %v5539 = vadd.f32 0.0, %v5538
        %v5540 = vpop.f32.mrb[0].mxu0
        %v5541 = vpop.f32.mrb[0].mxu0
        %v5542 = vadd.f32 0.0, %v5541
        %v5543 = vpop.f32.mrb[0].mxu0
        %5544 = vmatprep.mubr.bf16.mxu0 0
        %5545 = vmatmul.mubr.bf16.gmra.mrb[0].mxu0 %v5410
        %v5546 = vpop.f32.mrb[0].mxu0
        %v5547 = vadd.f32 0.0, %v5546
        %v5548 = vpop.f32.mrb[0].mxu0
        %v5549 = vpop.f32.mrb[0].mxu0
        %v5550 = vadd.f32 0.0, %v5549
        %v5551 = vpop.f32.mrb[0].mxu0
        %5552 = vmatprep.mubr.bf16.mxu0 0
        %5553 = vmatmul.mubr.bf16.gmra.mrb[0].mxu0 %v5413
        %v5554 = vpop.f32.mrb[0].mxu0
        %v5555 = vadd.f32 0.0, %v5554
        %v5556 = vpop.f32.mrb[0].mxu0
        %v5557 = vpop.f32.mrb[0].mxu0
        %v5558 = vadd.f32 0.0, %v5557
        %v5559 = vpop.f32.mrb[0].mxu0
        %5560 = vmatprep.mubr.bf16.mxu0 0
        %5561 = vmatmul.mubr.bf16.gmra.mrb[0].mxu0 %v5416
        %v5562 = vpop.f32.mrb[0].mxu0
        %v5563 = vadd.f32 0.0, %v5562
        %v5564 = vpop.f32.mrb[0].mxu0
        %v5565 = vpop.f32.mrb[0].mxu0
        %v5566 = vadd.f32 0.0, %v5565
        %v5567 = vpop.f32.mrb[0].mxu0
        %5568 = vmatprep.mubr.bf16.mxu0 0
        %5569 = vmatmul.mubr.bf16.gmra.mrb[0].mxu0 %v5419
        %v5570 = vpop.f32.mrb[0].mxu0
        %v5571 = vadd.f32 0.0, %v5570
        %v5572 = vpop.f32.mrb[0].mxu0
        %v5573 = vpop.f32.mrb[0].mxu0
        %v5574 = vadd.f32 0.0, %v5573
        %v5575 = vpop.f32.mrb[0].mxu0
        %5576 = vmatprep.mubr.bf16.mxu0 0
        %5577 = vmatmul.mubr.bf16.gmra.mrb[0].mxu0 %v5422
        %v5578 = vpop.f32.mrb[0].mxu0
        %v5579 = vpop.f32.mrb[0].mxu0
        %v5580 = vpop.f32.mrb[0].mxu0
        %v5581 = vpop.f32.mrb[0].mxu0
        %5582 = vdwg.mxu0
        %s5583 = scalar_lea.vmem %s15, 32
        %v5584 = vld [vmem:[%s5583] sm:$0xf]
        %v5585 = vld [vmem:[%s5583 + $0x4] sm:$0xf]
        %v5586 = vld [vmem:[%s5583 + $0x8] sm:$0xf]
        %v5587 = vld [vmem:[%s5583 + $0xc] sm:$0xf]
        %v5588 = vld [vmem:[%s5583 + $0x10] sm:$0xf]
        %v5589 = vld [vmem:[%s5583 + $0x14] sm:$0xf]
        %v5590 = vld [vmem:[%s5583 + $0x18] sm:$0xf]
        %v5591 = vld [vmem:[%s5583 + $0x1c] sm:$0xf]
        %v5600 = vunpack.c.l.b16 %v5584
        %v5601 = vunpack.c.l.b16 %v5585
        %v5602 = vunpack.c.l.b16 %v5586
        %v5603 = vunpack.c.l.b16 %v5587
        %v5604 = vunpack.c.l.b16 %v5588
        %v5605 = vunpack.c.l.b16 %v5589
        %v5606 = vunpack.c.l.b16 %v5590
        %v5607 = vunpack.c.l.b16 %v5591
        %v5608 = vpack.c.b16 %v5601, %v5600
        %v5609 = vpack.c.b16 %v5603, %v5602
        %v5610 = vpack.c.b16 %v5605, %v5604
        %v5611 = vpack.c.b16 %v5607, %v5606
        %5616 = vmatprep.subr.bf16.mxu0 0
        %5617 = vmatpush1.bf16.msra.mxu0 %v5608
        %5618 = vmatprep.subr.bf16.mxu0 0
        %5619 = vmatpush1.bf16.msra.mxu0 %v5609
        %5620 = vmatprep.subr.bf16.mxu0 0
        %5621 = vmatpush1.bf16.msra.mxu0 %v5610
        %5622 = vmatprep.subr.bf16.mxu0 0
        %5623 = vmatpush1.bf16.msra.mxu0 %v5611
        %5624 = vmatprep.subr.bf16.mxu0 0
        %5625 = vmatpush1.bf16.msra.mxu0 0
        %5626 = vmatprep.subr.bf16.mxu0 0
        %5627 = vmatpush1.bf16.msra.mxu0 0
        %5628 = vmatprep.subr.bf16.mxu0 0
        %5629 = vmatpush1.bf16.msra.mxu0 0
        %5630 = vmatprep.subr.bf16.mxu0 0
        %5631 = vmatpush1.bf16.msra.mxu0 0
        %5632 = vmatprep.subr.bf16.mxu0 0
        %5633 = vmatpush1.bf16.msra.mxu0 0
        %5634 = vmatprep.subr.bf16.mxu0 0
        %5635 = vmatpush1.bf16.msra.mxu0 0
        %5636 = vmatprep.subr.bf16.mxu0 0
        %5637 = vmatpush1.bf16.msra.mxu0 0
        %5638 = vmatprep.subr.bf16.mxu0 0
        %5639 = vmatpush1.bf16.msra.mxu0 0
        %5640 = vmatprep.subr.bf16.mxu0 0
        %5641 = vmatpush1.bf16.msra.mxu0 0
        %5642 = vmatprep.subr.bf16.mxu0 0
        %5643 = vmatpush1.bf16.msra.mxu0 0
        %5644 = vmatprep.subr.bf16.mxu0 0
        %5645 = vmatpush1.bf16.msra.mxu0 0
        %5646 = vmatprep.subr.bf16.mxu0 0
        %5647 = vmatpush1.bf16.msra.mxu0 0
        %5648 = vmatprep.mubr.bf16.mxu0 0
        %5649 = vmatmul.mubr.bf16.gmra.mrb[0].mxu0 %v5377
        %v5650 = vpop.f32.mrb[0].mxu0
        %v5651 = vadd.f32 0.0, %v5650
        %v5652 = vpop.f32.mrb[0].mxu0
        %v5653 = vpop.f32.mrb[0].mxu0
        %v5654 = vadd.f32 0.0, %v5653
        %v5655 = vpop.f32.mrb[0].mxu0
        %5656 = vmatprep.mubr.bf16.mxu0 0
        %5657 = vmatmul.mubr.bf16.gmra.mrb[0].mxu0 %v5380
        %v5658 = vpop.f32.mrb[0].mxu0
        %v5659 = vadd.f32 0.0, %v5658
        %v5660 = vpop.f32.mrb[0].mxu0
        %v5661 = vpop.f32.mrb[0].mxu0
        %v5662 = vadd.f32 0.0, %v5661
        %v5663 = vpop.f32.mrb[0].mxu0
        %5664 = vmatprep.mubr.bf16.mxu0 0
        %5665 = vmatmul.mubr.bf16.gmra.mrb[0].mxu0 %v5383
        %v5666 = vpop.f32.mrb[0].mxu0
        %v5667 = vadd.f32 0.0, %v5666
        %v5668 = vpop.f32.mrb[0].mxu0
        %v5669 = vpop.f32.mrb[0].mxu0
        %v5670 = vadd.f32 0.0, %v5669
        %v5671 = vpop.f32.mrb[0].mxu0
        %5672 = vmatprep.mubr.bf16.mxu0 0
        %5673 = vmatmul.mubr.bf16.gmra.mrb[0].mxu0 %v5386
        %v5674 = vpop.f32.mrb[0].mxu0
        %v5675 = vadd.f32 0.0, %v5674
        %v5676 = vpop.f32.mrb[0].mxu0
        %v5677 = vpop.f32.mrb[0].mxu0
        %v5678 = vadd.f32 0.0, %v5677
        %v5679 = vpop.f32.mrb[0].mxu0
        %5680 = vmatprep.mubr.bf16.mxu0 0
        %5681 = vmatmul.mubr.bf16.gmra.mrb[0].mxu0 %v5389
        %v5682 = vpop.f32.mrb[0].mxu0
        %v5683 = vadd.f32 0.0, %v5682
        %v5684 = vpop.f32.mrb[0].mxu0
        %v5685 = vpop.f32.mrb[0].mxu0
        %v5686 = vadd.f32 0.0, %v5685
        %v5687 = vpop.f32.mrb[0].mxu0
        %5688 = vmatprep.mubr.bf16.mxu0 0
        %5689 = vmatmul.mubr.bf16.gmra.mrb[0].mxu0 %v5392
        %v5690 = vpop.f32.mrb[0].mxu0
        %v5691 = vadd.f32 0.0, %v5690
        %v5692 = vpop.f32.mrb[0].mxu0
        %v5693 = vpop.f32.mrb[0].mxu0
        %v5694 = vadd.f32 0.0, %v5693
        %v5695 = vpop.f32.mrb[0].mxu0
        %5696 = vmatprep.mubr.bf16.mxu0 0
        %5697 = vmatmul.mubr.bf16.gmra.mrb[0].mxu0 %v5395
        %v5698 = vpop.f32.mrb[0].mxu0
        %v5699 = vadd.f32 0.0, %v5698
        %v5700 = vpop.f32.mrb[0].mxu0
        %v5701 = vpop.f32.mrb[0].mxu0
        %v5702 = vadd.f32 0.0, %v5701
        %v5703 = vpop.f32.mrb[0].mxu0
        %5704 = vmatprep.mubr.bf16.mxu0 0
        %5705 = vmatmul.mubr.bf16.gmra.mrb[0].mxu0 %v5398
        %v5706 = vpop.f32.mrb[0].mxu0
        %v5707 = vadd.f32 0.0, %v5706
        %v5708 = vpop.f32.mrb[0].mxu0
        %v5709 = vpop.f32.mrb[0].mxu0
        %v5710 = vadd.f32 0.0, %v5709
        %v5711 = vpop.f32.mrb[0].mxu0
        %5712 = vmatprep.mubr.bf16.mxu0 0
        %5713 = vmatmul.mubr.bf16.gmra.mrb[0].mxu0 %v5401
        %v5714 = vpop.f32.mrb[0].mxu0
        %v5715 = vadd.f32 0.0, %v5714
        %v5716 = vpop.f32.mrb[0].mxu0
        %v5717 = vpop.f32.mrb[0].mxu0
        %v5718 = vadd.f32 0.0, %v5717
        %v5719 = vpop.f32.mrb[0].mxu0
        %5720 = vmatprep.mubr.bf16.mxu0 0
        %5721 = vmatmul.mubr.bf16.gmra.mrb[0].mxu0 %v5404
        %v5722 = vpop.f32.mrb[0].mxu0
        %v5723 = vadd.f32 0.0, %v5722
        %v5724 = vpop.f32.mrb[0].mxu0
        %v5725 = vpop.f32.mrb[0].mxu0
        %v5726 = vadd.f32 0.0, %v5725
        %v5727 = vpop.f32.mrb[0].mxu0
        %5728 = vmatprep.mubr.bf16.mxu0 0
        %5729 = vmatmul.mubr.bf16.gmra.mrb[0].mxu0 %v5407
        %v5730 = vpop.f32.mrb[0].mxu0
        %v5731 = vadd.f32 0.0, %v5730
        %v5732 = vpop.f32.mrb[0].mxu0
        %v5733 = vpop.f32.mrb[0].mxu0
        %v5734 = vadd.f32 0.0, %v5733
        %v5735 = vpop.f32.mrb[0].mxu0
        %5736 = vmatprep.mubr.bf16.mxu0 0
        %5737 = vmatmul.mubr.bf16.gmra.mrb[0].mxu0 %v5410
        %v5738 = vpop.f32.mrb[0].mxu0
        %v5739 = vadd.f32 0.0, %v5738
        %v5740 = vpop.f32.mrb[0].mxu0
        %v5741 = vpop.f32.mrb[0].mxu0
        %v5742 = vadd.f32 0.0, %v5741
        %v5743 = vpop.f32.mrb[0].mxu0
        %5744 = vmatprep.mubr.bf16.mxu0 0
        %5745 = vmatmul.mubr.bf16.gmra.mrb[0].mxu0 %v5413
        %v5746 = vpop.f32.mrb[0].mxu0
        %v5747 = vadd.f32 0.0, %v5746
        %v5748 = vpop.f32.mrb[0].mxu0
        %v5749 = vpop.f32.mrb[0].mxu0
        %v5750 = vadd.f32 0.0, %v5749
        %v5751 = vpop.f32.mrb[0].mxu0
        %5752 = vmatprep.mubr.bf16.mxu0 0
        %5753 = vmatmul.mubr.bf16.gmra.mrb[0].mxu0 %v5416
        %v5754 = vpop.f32.mrb[0].mxu0
        %v5755 = vadd.f32 0.0, %v5754
        %v5756 = vpop.f32.mrb[0].mxu0
        %v5757 = vpop.f32.mrb[0].mxu0
        %v5758 = vadd.f32 0.0, %v5757
        %v5759 = vpop.f32.mrb[0].mxu0
        %5760 = vmatprep.mubr.bf16.mxu0 0
        %5761 = vmatmul.mubr.bf16.gmra.mrb[0].mxu0 %v5419
        %v5762 = vpop.f32.mrb[0].mxu0
        %v5763 = vadd.f32 0.0, %v5762
        %v5764 = vpop.f32.mrb[0].mxu0
        %v5765 = vpop.f32.mrb[0].mxu0
        %v5766 = vadd.f32 0.0, %v5765
        %v5767 = vpop.f32.mrb[0].mxu0
        %5768 = vmatprep.mubr.bf16.mxu0 0
        %5769 = vmatmul.mubr.bf16.gmra.mrb[0].mxu0 %v5422
        %v5770 = vpop.f32.mrb[0].mxu0
        %v5771 = vadd.f32 0.0, %v5770
        %v5772 = vpop.f32.mrb[0].mxu0
        %v5773 = vpop.f32.mrb[0].mxu0
        %v5774 = vadd.f32 0.0, %v5773
        %v5775 = vpop.f32.mrb[0].mxu0
        %5776 = vdwg.mxu0
        %v5777 = vadd.f32 %v5651, 0.0
        %v5778 = vadd.f32 %v5654, 0.0
        %v5779 = vadd.f32 %v5459, %v5659
        %v5780 = vadd.f32 %v5462, %v5662
        %v5781 = vadd.f32 %v5467, %v5667
        %v5782 = vadd.f32 %v5470, %v5670
        %v5783 = vadd.f32 %v5475, %v5675
        %v5784 = vadd.f32 %v5478, %v5678
        %v5785 = vadd.f32 %v5483, %v5683
        %v5786 = vadd.f32 %v5486, %v5686
        %v5787 = vadd.f32 %v5491, %v5691
        %v5788 = vadd.f32 %v5494, %v5694
        %v5789 = vadd.f32 %v5499, %v5699
        %v5790 = vadd.f32 %v5502, %v5702
        %v5791 = vadd.f32 %v5507, %v5707
        %v5792 = vadd.f32 %v5510, %v5710
        %v5793 = vadd.f32 %v5515, %v5715
        %v5794 = vadd.f32 %v5518, %v5718
        %v5795 = vadd.f32 %v5523, %v5723
        %v5796 = vadd.f32 %v5526, %v5726
        %v5797 = vadd.f32 %v5531, %v5731
        %v5798 = vadd.f32 %v5534, %v5734
        %v5799 = vadd.f32 %v5539, %v5739
        %v5800 = vadd.f32 %v5542, %v5742
        %v5801 = vadd.f32 %v5547, %v5747
        %v5802 = vadd.f32 %v5550, %v5750
        %v5803 = vadd.f32 %v5555, %v5755
        %v5804 = vadd.f32 %v5558, %v5758
        %v5805 = vadd.f32 %v5563, %v5763
        %v5806 = vadd.f32 %v5566, %v5766
        %v5807 = vadd.f32 %v5571, %v5771
        %v5808 = vadd.f32 %v5574, %v5774
        %s5809 = scalar_lea.vmem %s15, 64
        %v5810 = vld [vmem:[%s5809] sm:$0xf]
        %v5811 = vld [vmem:[%s5809 + $0x4] sm:$0xf]
        %v5812 = vld [vmem:[%s5809 + $0x8] sm:$0xf]
        %v5813 = vld [vmem:[%s5809 + $0xc] sm:$0xf]
        %v5814 = vld [vmem:[%s5809 + $0x10] sm:$0xf]
        %v5815 = vld [vmem:[%s5809 + $0x14] sm:$0xf]
        %v5816 = vld [vmem:[%s5809 + $0x18] sm:$0xf]
        %v5817 = vld [vmem:[%s5809 + $0x1c] sm:$0xf]
        %v5826 = vunpack.c.l.b16 %v5810
        %v5827 = vunpack.c.l.b16 %v5811
        %v5828 = vunpack.c.l.b16 %v5812
        %v5829 = vunpack.c.l.b16 %v5813
        %v5830 = vunpack.c.l.b16 %v5814
        %v5831 = vunpack.c.l.b16 %v5815
        %v5832 = vunpack.c.l.b16 %v5816
        %v5833 = vunpack.c.l.b16 %v5817
        %v5834 = vpack.c.b16 %v5827, %v5826
        %v5835 = vpack.c.b16 %v5829, %v5828
        %v5836 = vpack.c.b16 %v5831, %v5830
        %v5837 = vpack.c.b16 %v5833, %v5832
        %5842 = vmatprep.subr.bf16.mxu0 0
        %5843 = vmatpush1.bf16.msra.mxu0 %v5834
        %5844 = vmatprep.subr.bf16.mxu0 0
        %5845 = vmatpush1.bf16.msra.mxu0 %v5835
        %5846 = vmatprep.subr.bf16.mxu0 0
        %5847 = vmatpush1.bf16.msra.mxu0 %v5836
        %5848 = vmatprep.subr.bf16.mxu0 0
        %5849 = vmatpush1.bf16.msra.mxu0 %v5837
        %5850 = vmatprep.subr.bf16.mxu0 0
        %5851 = vmatpush1.bf16.msra.mxu0 0
        %5852 = vmatprep.subr.bf16.mxu0 0
        %5853 = vmatpush1.bf16.msra.mxu0 0
        %5854 = vmatprep.subr.bf16.mxu0 0
        %5855 = vmatpush1.bf16.msra.mxu0 0
        %5856 = vmatprep.subr.bf16.mxu0 0
        %5857 = vmatpush1.bf16.msra.mxu0 0
        %5858 = vmatprep.subr.bf16.mxu0 0
        %5859 = vmatpush1.bf16.msra.mxu0 0
        %5860 = vmatprep.subr.bf16.mxu0 0
        %5861 = vmatpush1.bf16.msra.mxu0 0
        %5862 = vmatprep.subr.bf16.mxu0 0
        %5863 = vmatpush1.bf16.msra.mxu0 0
        %5864 = vmatprep.subr.bf16.mxu0 0
        %5865 = vmatpush1.bf16.msra.mxu0 0
        %5866 = vmatprep.subr.bf16.mxu0 0
        %5867 = vmatpush1.bf16.msra.mxu0 0
        %5868 = vmatprep.subr.bf16.mxu0 0
        %5869 = vmatpush1.bf16.msra.mxu0 0
        %5870 = vmatprep.subr.bf16.mxu0 0
        %5871 = vmatpush1.bf16.msra.mxu0 0
        %5872 = vmatprep.subr.bf16.mxu0 0
        %5873 = vmatpush1.bf16.msra.mxu0 0
        %5874 = vmatprep.mubr.bf16.mxu0 0
        %5875 = vmatmul.mubr.bf16.gmra.mrb[0].mxu0 %v5377
        %v5876 = vpop.f32.mrb[0].mxu0
        %v5877 = vpop.f32.mrb[0].mxu0
        %v5878 = vpop.f32.mrb[0].mxu0
        %v5879 = vpop.f32.mrb[0].mxu0
        %5880 = vmatprep.mubr.bf16.mxu0 0
        %5881 = vmatmul.mubr.bf16.gmra.mrb[0].mxu0 %v5380
        %v5882 = vpop.f32.mrb[0].mxu0
        %v5883 = vadd.f32 0.0, %v5882
        %v5884 = vpop.f32.mrb[0].mxu0
        %v5885 = vpop.f32.mrb[0].mxu0
        %v5886 = vadd.f32 0.0, %v5885
        %v5887 = vpop.f32.mrb[0].mxu0
        %5888 = vmatprep.mubr.bf16.mxu0 0
        %5889 = vmatmul.mubr.bf16.gmra.mrb[0].mxu0 %v5383
        %v5890 = vpop.f32.mrb[0].mxu0
        %v5891 = vadd.f32 0.0, %v5890
        %v5892 = vpop.f32.mrb[0].mxu0
        %v5893 = vpop.f32.mrb[0].mxu0
        %v5894 = vadd.f32 0.0, %v5893
        %v5895 = vpop.f32.mrb[0].mxu0
        %5896 = vmatprep.mubr.bf16.mxu0 0
        %5897 = vmatmul.mubr.bf16.gmra.mrb[0].mxu0 %v5386
        %v5898 = vpop.f32.mrb[0].mxu0
        %v5899 = vadd.f32 0.0, %v5898
        %v5900 = vpop.f32.mrb[0].mxu0
        %v5901 = vpop.f32.mrb[0].mxu0
        %v5902 = vadd.f32 0.0, %v5901
        %v5903 = vpop.f32.mrb[0].mxu0
        %5904 = vmatprep.mubr.bf16.mxu0 0
        %5905 = vmatmul.mubr.bf16.gmra.mrb[0].mxu0 %v5389
        %v5906 = vpop.f32.mrb[0].mxu0
        %v5907 = vadd.f32 0.0, %v5906
        %v5908 = vpop.f32.mrb[0].mxu0
        %v5909 = vpop.f32.mrb[0].mxu0
        %v5910 = vadd.f32 0.0, %v5909
        %v5911 = vpop.f32.mrb[0].mxu0
        %5912 = vmatprep.mubr.bf16.mxu0 0
        %5913 = vmatmul.mubr.bf16.gmra.mrb[0].mxu0 %v5392
        %v5914 = vpop.f32.mrb[0].mxu0
        %v5915 = vadd.f32 0.0, %v5914
        %v5916 = vpop.f32.mrb[0].mxu0
        %v5917 = vpop.f32.mrb[0].mxu0
        %v5918 = vadd.f32 0.0, %v5917
        %v5919 = vpop.f32.mrb[0].mxu0
        %5920 = vmatprep.mubr.bf16.mxu0 0
        %5921 = vmatmul.mubr.bf16.gmra.mrb[0].mxu0 %v5395
        %v5922 = vpop.f32.mrb[0].mxu0
        %v5923 = vadd.f32 0.0, %v5922
        %v5924 = vpop.f32.mrb[0].mxu0
        %v5925 = vpop.f32.mrb[0].mxu0
        %v5926 = vadd.f32 0.0, %v5925
        %v5927 = vpop.f32.mrb[0].mxu0
        %5928 = vmatprep.mubr.bf16.mxu0 0
        %5929 = vmatmul.mubr.bf16.gmra.mrb[0].mxu0 %v5398
        %v5930 = vpop.f32.mrb[0].mxu0
        %v5931 = vadd.f32 0.0, %v5930
        %v5932 = vpop.f32.mrb[0].mxu0
        %v5933 = vpop.f32.mrb[0].mxu0
        %v5934 = vadd.f32 0.0, %v5933
        %v5935 = vpop.f32.mrb[0].mxu0
        %5936 = vmatprep.mubr.bf16.mxu0 0
        %5937 = vmatmul.mubr.bf16.gmra.mrb[0].mxu0 %v5401
        %v5938 = vpop.f32.mrb[0].mxu0
        %v5939 = vadd.f32 0.0, %v5938
        %v5940 = vpop.f32.mrb[0].mxu0
        %v5941 = vpop.f32.mrb[0].mxu0
        %v5942 = vadd.f32 0.0, %v5941
        %v5943 = vpop.f32.mrb[0].mxu0
        %5944 = vmatprep.mubr.bf16.mxu0 0
        %5945 = vmatmul.mubr.bf16.gmra.mrb[0].mxu0 %v5404
        %v5946 = vpop.f32.mrb[0].mxu0
        %v5947 = vadd.f32 0.0, %v5946
        %v5948 = vpop.f32.mrb[0].mxu0
        %v5949 = vpop.f32.mrb[0].mxu0
        %v5950 = vadd.f32 0.0, %v5949
        %v5951 = vpop.f32.mrb[0].mxu0
        %5952 = vmatprep.mubr.bf16.mxu0 0
        %5953 = vmatmul.mubr.bf16.gmra.mrb[0].mxu0 %v5407
        %v5954 = vpop.f32.mrb[0].mxu0
        %v5955 = vadd.f32 0.0, %v5954
        %v5956 = vpop.f32.mrb[0].mxu0
        %v5957 = vpop.f32.mrb[0].mxu0
        %v5958 = vadd.f32 0.0, %v5957
        %v5959 = vpop.f32.mrb[0].mxu0
        %5960 = vmatprep.mubr.bf16.mxu0 0
        %5961 = vmatmul.mubr.bf16.gmra.mrb[0].mxu0 %v5410
        %v5962 = vpop.f32.mrb[0].mxu0
        %v5963 = vadd.f32 0.0, %v5962
        %v5964 = vpop.f32.mrb[0].mxu0
        %v5965 = vpop.f32.mrb[0].mxu0
        %v5966 = vadd.f32 0.0, %v5965
        %v5967 = vpop.f32.mrb[0].mxu0
        %5968 = vmatprep.mubr.bf16.mxu0 0
        %5969 = vmatmul.mubr.bf16.gmra.mrb[0].mxu0 %v5413
        %v5970 = vpop.f32.mrb[0].mxu0
        %v5971 = vadd.f32 0.0, %v5970
        %v5972 = vpop.f32.mrb[0].mxu0
        %v5973 = vpop.f32.mrb[0].mxu0
        %v5974 = vadd.f32 0.0, %v5973
        %v5975 = vpop.f32.mrb[0].mxu0
        %5976 = vmatprep.mubr.bf16.mxu0 0
        %5977 = vmatmul.mubr.bf16.gmra.mrb[0].mxu0 %v5416
        %v5978 = vpop.f32.mrb[0].mxu0
        %v5979 = vadd.f32 0.0, %v5978
        %v5980 = vpop.f32.mrb[0].mxu0
        %v5981 = vpop.f32.mrb[0].mxu0
        %v5982 = vadd.f32 0.0, %v5981
        %v5983 = vpop.f32.mrb[0].mxu0
        %5984 = vmatprep.mubr.bf16.mxu0 0
        %5985 = vmatmul.mubr.bf16.gmra.mrb[0].mxu0 %v5419
        %v5986 = vpop.f32.mrb[0].mxu0
        %v5987 = vadd.f32 0.0, %v5986
        %v5988 = vpop.f32.mrb[0].mxu0
        %v5989 = vpop.f32.mrb[0].mxu0
        %v5990 = vadd.f32 0.0, %v5989
        %v5991 = vpop.f32.mrb[0].mxu0
        %5992 = vmatprep.mubr.bf16.mxu0 0
        %5993 = vmatmul.mubr.bf16.gmra.mrb[0].mxu0 %v5422
        %v5994 = vpop.f32.mrb[0].mxu0
        %v5995 = vadd.f32 0.0, %v5994
        %v5996 = vpop.f32.mrb[0].mxu0
        %v5997 = vpop.f32.mrb[0].mxu0
        %v5998 = vadd.f32 0.0, %v5997
        %v5999 = vpop.f32.mrb[0].mxu0
        %6000 = vdwg.mxu0
        %v6001 = vadd.f32 %v5777, %v5883
        %v6002 = vadd.f32 %v5778, %v5886
        %v6003 = vadd.f32 %v5779, %v5891
        %v6004 = vadd.f32 %v5780, %v5894
        %v6005 = vadd.f32 %v5781, %v5899
        %v6006 = vadd.f32 %v5782, %v5902
        %v6007 = vadd.f32 %v5783, %v5907
        %v6008 = vadd.f32 %v5784, %v5910
        %v6009 = vadd.f32 %v5785, %v5915
        %v6010 = vadd.f32 %v5786, %v5918
        %v6011 = vadd.f32 %v5787, %v5923
        %v6012 = vadd.f32 %v5788, %v5926
        %v6013 = vadd.f32 %v5789, %v5931
        %v6014 = vadd.f32 %v5790, %v5934
        %v6015 = vadd.f32 %v5791, %v5939
        %v6016 = vadd.f32 %v5792, %v5942
        %v6017 = vadd.f32 %v5793, %v5947
        %v6018 = vadd.f32 %v5794, %v5950
        %v6019 = vadd.f32 %v5795, %v5955
        %v6020 = vadd.f32 %v5796, %v5958
        %v6021 = vadd.f32 %v5797, %v5963
        %v6022 = vadd.f32 %v5798, %v5966
        %v6023 = vadd.f32 %v5799, %v5971
        %v6024 = vadd.f32 %v5800, %v5974
        %v6025 = vadd.f32 %v5801, %v5979
        %v6026 = vadd.f32 %v5802, %v5982
        %v6027 = vadd.f32 %v5803, %v5987
        %v6028 = vadd.f32 %v5804, %v5990
        %v6029 = vadd.f32 %v5805, %v5995
        %v6030 = vadd.f32 %v5806, %v5998
        %v6031 = vadd.f32 %v5807, 0.0
        %v6032 = vadd.f32 %v5808, 0.0
        %v6033 = vld [vmem:[%s16] sm:$0x1]
        %v6035 = vlaneseq
        %v6036 = vshrl.u32 %v6035, 7
        %v6037 = vsub.s32 0, %v6036
        %v6038 = vrot.slane %v6033, %v6037
        %v6040 = vadd.f32 %v6001, %v6038
        %v6041 = vadd.f32 %v6002, %v6038
        %v6042 = vadd.f32 %v6003, %v6038
        %v6043 = vadd.f32 %v6004, %v6038
        %v6044 = vadd.f32 %v6005, %v6038
        %v6045 = vadd.f32 %v6006, %v6038
        %v6046 = vadd.f32 %v6007, %v6038
        %v6047 = vadd.f32 %v6008, %v6038
        %v6048 = vadd.f32 %v6009, %v6038
        %v6049 = vadd.f32 %v6010, %v6038
        %v6050 = vadd.f32 %v6011, %v6038
        %v6051 = vadd.f32 %v6012, %v6038
        %v6052 = vadd.f32 %v6013, %v6038
        %v6053 = vadd.f32 %v6014, %v6038
        %v6054 = vadd.f32 %v6015, %v6038
        %v6055 = vadd.f32 %v6016, %v6038
        %v6056 = vadd.f32 %v6017, %v6038
        %v6057 = vadd.f32 %v6018, %v6038
        %v6058 = vadd.f32 %v6019, %v6038
        %v6059 = vadd.f32 %v6020, %v6038
        %v6060 = vadd.f32 %v6021, %v6038
        %v6061 = vadd.f32 %v6022, %v6038
        %v6062 = vadd.f32 %v6023, %v6038
        %v6063 = vadd.f32 %v6024, %v6038
        %v6064 = vadd.f32 %v6025, %v6038
        %v6065 = vadd.f32 %v6026, %v6038
        %v6066 = vadd.f32 %v6027, %v6038
        %v6067 = vadd.f32 %v6028, %v6038
        %v6068 = vadd.f32 %v6029, %v6038
        %v6069 = vadd.f32 %v6030, %v6038
        %v6070 = vadd.f32 %v6031, %v6038
        %v6071 = vadd.f32 %v6032, %v6038
        %v6072 = vmax.f32 %v6040, 0.0
        %v6073 = vmax.f32 %v6041, 0.0
        %v6074 = vmax.f32 %v6042, 0.0
        %v6075 = vmax.f32 %v6043, 0.0
        %v6076 = vmax.f32 %v6044, 0.0
        %v6077 = vmax.f32 %v6045, 0.0
        %v6078 = vmax.f32 %v6046, 0.0
        %v6079 = vmax.f32 %v6047, 0.0
        %v6080 = vmax.f32 %v6048, 0.0
        %v6081 = vmax.f32 %v6049, 0.0
        %v6082 = vmax.f32 %v6050, 0.0
        %v6083 = vmax.f32 %v6051, 0.0
        %v6084 = vmax.f32 %v6052, 0.0
        %v6085 = vmax.f32 %v6053, 0.0
        %v6086 = vmax.f32 %v6054, 0.0
        %v6087 = vmax.f32 %v6055, 0.0
        %v6088 = vmax.f32 %v6056, 0.0
        %v6089 = vmax.f32 %v6057, 0.0
        %v6090 = vmax.f32 %v6058, 0.0
        %v6091 = vmax.f32 %v6059, 0.0
        %v6092 = vmax.f32 %v6060, 0.0
        %v6093 = vmax.f32 %v6061, 0.0
        %v6094 = vmax.f32 %v6062, 0.0
        %v6095 = vmax.f32 %v6063, 0.0
        %v6096 = vmax.f32 %v6064, 0.0
        %v6097 = vmax.f32 %v6065, 0.0
        %v6098 = vmax.f32 %v6066, 0.0
        %v6099 = vmax.f32 %v6067, 0.0
        %v6100 = vmax.f32 %v6068, 0.0
        %v6101 = vmax.f32 %v6069, 0.0
        %v6102 = vmax.f32 %v6070, 0.0
        %v6103 = vmax.f32 %v6071, 0.0
        %v6104 = vadd.f32 %v6072, %v4260
        %v6105 = vadd.f32 %v6073, %v4261
        %v6106 = vadd.f32 %v6074, %v4262
        %v6107 = vadd.f32 %v6075, %v4263
        %v6108 = vadd.f32 %v6076, %v4264
        %v6109 = vadd.f32 %v6077, %v4265
        %v6110 = vadd.f32 %v6078, %v4266
        %v6111 = vadd.f32 %v6079, %v4267
        %v6112 = vadd.f32 %v6080, %v4268
        %v6113 = vadd.f32 %v6081, %v4269
        %v6114 = vadd.f32 %v6082, %v4270
        %v6115 = vadd.f32 %v6083, %v4271
        %v6116 = vadd.f32 %v6084, %v4272
        %v6117 = vadd.f32 %v6085, %v4273
        %v6118 = vadd.f32 %v6086, %v4274
        %v6119 = vadd.f32 %v6087, %v4275
        %v6120 = vadd.f32 %v6088, %v4276
        %v6121 = vadd.f32 %v6089, %v4277
        %v6122 = vadd.f32 %v6090, %v4278
        %v6123 = vadd.f32 %v6091, %v4279
        %v6124 = vadd.f32 %v6092, %v4280
        %v6125 = vadd.f32 %v6093, %v4281
        %v6126 = vadd.f32 %v6094, %v4282
        %v6127 = vadd.f32 %v6095, %v4283
        %v6128 = vadd.f32 %v6096, %v4284
        %v6129 = vadd.f32 %v6097, %v4285
        %v6130 = vadd.f32 %v6098, %v4286
        %v6131 = vadd.f32 %v6099, %v4287
        %v6132 = vadd.f32 %v6100, %v4288
        %v6133 = vadd.f32 %v6101, %v4289
        %v6134 = vadd.f32 %v6102, %v4290
        %v6135 = vadd.f32 %v6103, %v4291
        %v6136 = vmax.f32 %v6104, 0.0
        %v6137 = vmax.f32 %v6105, 0.0
        %v6138 = vmax.f32 %v6106, 0.0
        %v6139 = vmax.f32 %v6107, 0.0
        %v6140 = vmax.f32 %v6108, 0.0
        %v6141 = vmax.f32 %v6109, 0.0
        %v6142 = vmax.f32 %v6110, 0.0
        %v6143 = vmax.f32 %v6111, 0.0
        %v6144 = vmax.f32 %v6112, 0.0
        %v6145 = vmax.f32 %v6113, 0.0
        %v6146 = vmax.f32 %v6114, 0.0
        %v6147 = vmax.f32 %v6115, 0.0
        %v6148 = vmax.f32 %v6116, 0.0
        %v6149 = vmax.f32 %v6117, 0.0
        %v6150 = vmax.f32 %v6118, 0.0
        %v6151 = vmax.f32 %v6119, 0.0
        %v6152 = vmax.f32 %v6120, 0.0
        %v6153 = vmax.f32 %v6121, 0.0
        %v6154 = vmax.f32 %v6122, 0.0
        %v6155 = vmax.f32 %v6123, 0.0
        %v6156 = vmax.f32 %v6124, 0.0
        %v6157 = vmax.f32 %v6125, 0.0
        %v6158 = vmax.f32 %v6126, 0.0
        %v6159 = vmax.f32 %v6127, 0.0
        %v6160 = vmax.f32 %v6128, 0.0
        %v6161 = vmax.f32 %v6129, 0.0
        %v6162 = vmax.f32 %v6130, 0.0
        %v6163 = vmax.f32 %v6131, 0.0
        %v6164 = vmax.f32 %v6132, 0.0
        %v6165 = vmax.f32 %v6133, 0.0
        %v6166 = vmax.f32 %v6134, 0.0
        %v6167 = vmax.f32 %v6135, 0.0
        %v6168 = vpack.c.bf16 %v2140, %v2139
        %v6169 = vpack.c.bf16 %v2142, %v2141
        %v6170 = vpack.c.bf16 %v2144, %v2143
        %v6171 = vpack.c.bf16 %v2146, %v2145
        %v6172 = vpack.c.bf16 %v2148, %v2147
        %v6173 = vpack.c.bf16 %v2150, %v2149
        %v6174 = vpack.c.bf16 %v2152, %v2151
        %v6175 = vpack.c.bf16 %v2154, %v2153
        %v6176 = vpack.c.bf16 %v2156, %v2155
        %v6177 = vpack.c.bf16 %v2158, %v2157
        %v6178 = vpack.c.bf16 %v2160, %v2159
        %v6179 = vpack.c.bf16 %v2162, %v2161
        %v6180 = vpack.c.bf16 %v2164, %v2163
        %v6181 = vpack.c.bf16 %v2166, %v2165
        %v6182 = vpack.c.bf16 %v2168, %v2167
        %v6183 = vpack.c.bf16 %v2170, %v2169
        %v6184 = vld [vmem:[%s17] sm:$0xf]
        %v6185 = vld [vmem:[%s17 + $0x4] sm:$0xf]
        %v6186 = vld [vmem:[%s17 + $0x8] sm:$0xf]
        %v6187 = vld [vmem:[%s17 + $0xc] sm:$0xf]
        %v6188 = vld [vmem:[%s17 + $0x10] sm:$0xf]
        %v6189 = vld [vmem:[%s17 + $0x14] sm:$0xf]
        %v6196 = vunpack.c.l.b16 %v6184
        %v6197 = vunpack.c.l.b16 %v6185
        %v6198 = vunpack.c.l.b16 %v6186
        %v6199 = vunpack.c.l.b16 %v6187
        %v6200 = vunpack.c.l.b16 %v6188
        %v6201 = vunpack.c.l.b16 %v6189
        %v6202 = vpack.c.b16 %v6197, %v6196
        %v6203 = vpack.c.b16 %v6199, %v6198
        %v6204 = vpack.c.b16 %v6201, %v6200
        %vm6208 = vcmask 392192
        %v6210 = vsel %vm6208, %v6168, 0
        %v6213 = vsel %vm6208, %v6169, 0
        %v6216 = vsel %vm6208, %v6170, 0
        %v6219 = vsel %vm6208, %v6171, 0
        %v6222 = vsel %vm6208, %v6172, 0
        %v6225 = vsel %vm6208, %v6173, 0
        %v6228 = vsel %vm6208, %v6174, 0
        %v6231 = vsel %vm6208, %v6175, 0
        %v6234 = vsel %vm6208, %v6176, 0
        %v6237 = vsel %vm6208, %v6177, 0
        %v6240 = vsel %vm6208, %v6178, 0
        %v6243 = vsel %vm6208, %v6179, 0
        %v6246 = vsel %vm6208, %v6180, 0
        %v6249 = vsel %vm6208, %v6181, 0
        %v6252 = vsel %vm6208, %v6182, 0
        %v6255 = vsel %vm6208, %v6183, 0
        %6257 = vmatprep.subr.bf16.mxu0 0
        %6258 = vmatpush1.bf16.msra.mxu0 %v6202
        %6259 = vmatprep.subr.bf16.mxu0 0
        %6260 = vmatpush1.bf16.msra.mxu0 %v6203
        %6261 = vmatprep.subr.bf16.mxu0 0
        %6262 = vmatpush1.bf16.msra.mxu0 %v6204
        %6263 = vmatprep.subr.bf16.mxu0 0
        %6264 = vmatpush1.bf16.msra.mxu0 0
        %6265 = vmatprep.subr.bf16.mxu0 0
        %6266 = vmatpush1.bf16.msra.mxu0 0
        %6267 = vmatprep.subr.bf16.mxu0 0
        %6268 = vmatpush1.bf16.msra.mxu0 0
        %6269 = vmatprep.subr.bf16.mxu0 0
        %6270 = vmatpush1.bf16.msra.mxu0 0
        %6271 = vmatprep.subr.bf16.mxu0 0
        %6272 = vmatpush1.bf16.msra.mxu0 0
        %6273 = vmatprep.subr.bf16.mxu0 0
        %6274 = vmatpush1.bf16.msra.mxu0 0
        %6275 = vmatprep.subr.bf16.mxu0 0
        %6276 = vmatpush1.bf16.msra.mxu0 0
        %6277 = vmatprep.subr.bf16.mxu0 0
        %6278 = vmatpush1.bf16.msra.mxu0 0
        %6279 = vmatprep.subr.bf16.mxu0 0
        %6280 = vmatpush1.bf16.msra.mxu0 0
        %6281 = vmatprep.subr.bf16.mxu0 0
        %6282 = vmatpush1.bf16.msra.mxu0 0
        %6283 = vmatprep.subr.bf16.mxu0 0
        %6284 = vmatpush1.bf16.msra.mxu0 0
        %6285 = vmatprep.subr.bf16.mxu0 0
        %6286 = vmatpush1.bf16.msra.mxu0 0
        %6287 = vmatprep.subr.bf16.mxu0 0
        %6288 = vmatpush1.bf16.msra.mxu0 0
        %6289 = vmatprep.mubr.bf16.mxu0 0
        %6290 = vmatmul.mubr.bf16.gmra.mrb[0].mxu0 %v6210
        %v6291 = vpop.f32.mrb[0].mxu0
        %v6292 = vadd.f32 0.0, %v6291
        %v6293 = vpop.f32.mrb[0].mxu0
        %v6294 = vpop.f32.mrb[0].mxu0
        %v6295 = vadd.f32 0.0, %v6294
        %v6296 = vpop.f32.mrb[0].mxu0
        %6297 = vmatprep.mubr.bf16.mxu0 0
        %6298 = vmatmul.mubr.bf16.gmra.mrb[0].mxu0 %v6213
        %v6299 = vpop.f32.mrb[0].mxu0
        %v6300 = vadd.f32 0.0, %v6299
        %v6301 = vpop.f32.mrb[0].mxu0
        %v6302 = vpop.f32.mrb[0].mxu0
        %v6303 = vadd.f32 0.0, %v6302
        %v6304 = vpop.f32.mrb[0].mxu0
        %6305 = vmatprep.mubr.bf16.mxu0 0
        %6306 = vmatmul.mubr.bf16.gmra.mrb[0].mxu0 %v6216
        %v6307 = vpop.f32.mrb[0].mxu0
        %v6308 = vadd.f32 0.0, %v6307
        %v6309 = vpop.f32.mrb[0].mxu0
        %v6310 = vpop.f32.mrb[0].mxu0
        %v6311 = vadd.f32 0.0, %v6310
        %v6312 = vpop.f32.mrb[0].mxu0
        %6313 = vmatprep.mubr.bf16.mxu0 0
        %6314 = vmatmul.mubr.bf16.gmra.mrb[0].mxu0 %v6219
        %v6315 = vpop.f32.mrb[0].mxu0
        %v6316 = vadd.f32 0.0, %v6315
        %v6317 = vpop.f32.mrb[0].mxu0
        %v6318 = vpop.f32.mrb[0].mxu0
        %v6319 = vadd.f32 0.0, %v6318
        %v6320 = vpop.f32.mrb[0].mxu0
        %6321 = vmatprep.mubr.bf16.mxu0 0
        %6322 = vmatmul.mubr.bf16.gmra.mrb[0].mxu0 %v6222
        %v6323 = vpop.f32.mrb[0].mxu0
        %v6324 = vadd.f32 0.0, %v6323
        %v6325 = vpop.f32.mrb[0].mxu0
        %v6326 = vpop.f32.mrb[0].mxu0
        %v6327 = vadd.f32 0.0, %v6326
        %v6328 = vpop.f32.mrb[0].mxu0
        %6329 = vmatprep.mubr.bf16.mxu0 0
        %6330 = vmatmul.mubr.bf16.gmra.mrb[0].mxu0 %v6225
        %v6331 = vpop.f32.mrb[0].mxu0
        %v6332 = vadd.f32 0.0, %v6331
        %v6333 = vpop.f32.mrb[0].mxu0
        %v6334 = vpop.f32.mrb[0].mxu0
        %v6335 = vadd.f32 0.0, %v6334
        %v6336 = vpop.f32.mrb[0].mxu0
        %6337 = vmatprep.mubr.bf16.mxu0 0
        %6338 = vmatmul.mubr.bf16.gmra.mrb[0].mxu0 %v6228
        %v6339 = vpop.f32.mrb[0].mxu0
        %v6340 = vadd.f32 0.0, %v6339
        %v6341 = vpop.f32.mrb[0].mxu0
        %v6342 = vpop.f32.mrb[0].mxu0
        %v6343 = vadd.f32 0.0, %v6342
        %v6344 = vpop.f32.mrb[0].mxu0
        %6345 = vmatprep.mubr.bf16.mxu0 0
        %6346 = vmatmul.mubr.bf16.gmra.mrb[0].mxu0 %v6231
        %v6347 = vpop.f32.mrb[0].mxu0
        %v6348 = vadd.f32 0.0, %v6347
        %v6349 = vpop.f32.mrb[0].mxu0
        %v6350 = vpop.f32.mrb[0].mxu0
        %v6351 = vadd.f32 0.0, %v6350
        %v6352 = vpop.f32.mrb[0].mxu0
        %6353 = vmatprep.mubr.bf16.mxu0 0
        %6354 = vmatmul.mubr.bf16.gmra.mrb[0].mxu0 %v6234
        %v6355 = vpop.f32.mrb[0].mxu0
        %v6356 = vadd.f32 0.0, %v6355
        %v6357 = vpop.f32.mrb[0].mxu0
        %v6358 = vpop.f32.mrb[0].mxu0
        %v6359 = vadd.f32 0.0, %v6358
        %v6360 = vpop.f32.mrb[0].mxu0
        %6361 = vmatprep.mubr.bf16.mxu0 0
        %6362 = vmatmul.mubr.bf16.gmra.mrb[0].mxu0 %v6237
        %v6363 = vpop.f32.mrb[0].mxu0
        %v6364 = vadd.f32 0.0, %v6363
        %v6365 = vpop.f32.mrb[0].mxu0
        %v6366 = vpop.f32.mrb[0].mxu0
        %v6367 = vadd.f32 0.0, %v6366
        %v6368 = vpop.f32.mrb[0].mxu0
        %6369 = vmatprep.mubr.bf16.mxu0 0
        %6370 = vmatmul.mubr.bf16.gmra.mrb[0].mxu0 %v6240
        %v6371 = vpop.f32.mrb[0].mxu0
        %v6372 = vadd.f32 0.0, %v6371
        %v6373 = vpop.f32.mrb[0].mxu0
        %v6374 = vpop.f32.mrb[0].mxu0
        %v6375 = vadd.f32 0.0, %v6374
        %v6376 = vpop.f32.mrb[0].mxu0
        %6377 = vmatprep.mubr.bf16.mxu0 0
        %6378 = vmatmul.mubr.bf16.gmra.mrb[0].mxu0 %v6243
        %v6379 = vpop.f32.mrb[0].mxu0
        %v6380 = vadd.f32 0.0, %v6379
        %v6381 = vpop.f32.mrb[0].mxu0
        %v6382 = vpop.f32.mrb[0].mxu0
        %v6383 = vadd.f32 0.0, %v6382
        %v6384 = vpop.f32.mrb[0].mxu0
        %6385 = vmatprep.mubr.bf16.mxu0 0
        %6386 = vmatmul.mubr.bf16.gmra.mrb[0].mxu0 %v6246
        %v6387 = vpop.f32.mrb[0].mxu0
        %v6388 = vadd.f32 0.0, %v6387
        %v6389 = vpop.f32.mrb[0].mxu0
        %v6390 = vpop.f32.mrb[0].mxu0
        %v6391 = vadd.f32 0.0, %v6390
        %v6392 = vpop.f32.mrb[0].mxu0
        %6393 = vmatprep.mubr.bf16.mxu0 0
        %6394 = vmatmul.mubr.bf16.gmra.mrb[0].mxu0 %v6249
        %v6395 = vpop.f32.mrb[0].mxu0
        %v6396 = vadd.f32 0.0, %v6395
        %v6397 = vpop.f32.mrb[0].mxu0
        %v6398 = vpop.f32.mrb[0].mxu0
        %v6399 = vadd.f32 0.0, %v6398
        %v6400 = vpop.f32.mrb[0].mxu0
        %6401 = vmatprep.mubr.bf16.mxu0 0
        %6402 = vmatmul.mubr.bf16.gmra.mrb[0].mxu0 %v6252
        %v6403 = vpop.f32.mrb[0].mxu0
        %v6404 = vadd.f32 0.0, %v6403
        %v6405 = vpop.f32.mrb[0].mxu0
        %v6406 = vpop.f32.mrb[0].mxu0
        %v6407 = vadd.f32 0.0, %v6406
        %v6408 = vpop.f32.mrb[0].mxu0
        %6409 = vmatprep.mubr.bf16.mxu0 0
        %6410 = vmatmul.mubr.bf16.gmra.mrb[0].mxu0 %v6255
        %v6411 = vpop.f32.mrb[0].mxu0
        %v6412 = vadd.f32 0.0, %v6411
        %v6413 = vpop.f32.mrb[0].mxu0
        %v6414 = vpop.f32.mrb[0].mxu0
        %v6415 = vadd.f32 0.0, %v6414
        %v6416 = vpop.f32.mrb[0].mxu0
        %6417 = vdwg.mxu0
        %v6450 = vrot.slane %v6292, 7
        %v6451 = vrot.slane %v6295, 7
        %v6452 = vsel %vm2703, %v6450, %v6451
        %v6453 = vrot.slane %v6300, 7
        %v6454 = vrot.slane %v6303, 7
        %v6455 = vsel %vm2703, %v6453, %v6454
        %v6456 = vrot.slane %v6308, 7
        %v6457 = vrot.slane %v6311, 7
        %v6458 = vsel %vm2703, %v6456, %v6457
        %v6459 = vrot.slane %v6316, 7
        %v6460 = vrot.slane %v6319, 7
        %v6461 = vsel %vm2703, %v6459, %v6460
        %v6462 = vrot.slane %v6324, 7
        %v6463 = vrot.slane %v6327, 7
        %v6464 = vsel %vm2703, %v6462, %v6463
        %v6465 = vrot.slane %v6332, 7
        %v6466 = vrot.slane %v6335, 7
        %v6467 = vsel %vm2703, %v6465, %v6466
        %v6468 = vrot.slane %v6340, 7
        %v6469 = vrot.slane %v6343, 7
        %v6470 = vsel %vm2703, %v6468, %v6469
        %v6471 = vrot.slane %v6348, 7
        %v6472 = vrot.slane %v6351, 7
        %v6473 = vsel %vm2703, %v6471, %v6472
        %v6474 = vrot.slane %v6356, 7
        %v6475 = vrot.slane %v6359, 7
        %v6476 = vsel %vm2703, %v6474, %v6475
        %v6477 = vrot.slane %v6364, 7
        %v6478 = vrot.slane %v6367, 7
        %v6479 = vsel %vm2703, %v6477, %v6478
        %v6480 = vrot.slane %v6372, 7
        %v6481 = vrot.slane %v6375, 7
        %v6482 = vsel %vm2703, %v6480, %v6481
        %v6483 = vrot.slane %v6380, 7
        %v6484 = vrot.slane %v6383, 7
        %v6485 = vsel %vm2703, %v6483, %v6484
        %v6486 = vrot.slane %v6388, 7
        %v6487 = vrot.slane %v6391, 7
        %v6488 = vsel %vm2703, %v6486, %v6487
        %v6489 = vrot.slane %v6396, 7
        %v6490 = vrot.slane %v6399, 7
        %v6491 = vsel %vm2703, %v6489, %v6490
        %v6492 = vrot.slane %v6404, 7
        %v6493 = vrot.slane %v6407, 7
        %v6494 = vsel %vm2703, %v6492, %v6493
        %v6495 = vrot.slane %v6412, 7
        %v6496 = vrot.slane %v6415, 7
        %v6497 = vsel %vm2703, %v6495, %v6496
        %v6530 = vsel %vm2703, 0.0, %v6450
        %v6531 = vsel %vm2703, 0.0, %v6453
        %v6532 = vsel %vm2703, 0.0, %v6456
        %v6533 = vsel %vm2703, 0.0, %v6459
        %v6534 = vsel %vm2703, 0.0, %v6462
        %v6535 = vsel %vm2703, 0.0, %v6465
        %v6536 = vsel %vm2703, 0.0, %v6468
        %v6537 = vsel %vm2703, 0.0, %v6471
        %v6538 = vsel %vm2703, 0.0, %v6474
        %v6539 = vsel %vm2703, 0.0, %v6477
        %v6540 = vsel %vm2703, 0.0, %v6480
        %v6541 = vsel %vm2703, 0.0, %v6483
        %v6542 = vsel %vm2703, 0.0, %v6486
        %v6543 = vsel %vm2703, 0.0, %v6489
        %v6544 = vsel %vm2703, 0.0, %v6492
        %v6545 = vsel %vm2703, 0.0, %v6495
        %s6546 = scalar_lea.vmem %s17, 24
        %v6547 = vld [vmem:[%s6546] sm:$0xf]
        %v6548 = vld [vmem:[%s6546 + $0x4] sm:$0xf]
        %v6549 = vld [vmem:[%s6546 + $0x8] sm:$0xf]
        %v6550 = vld [vmem:[%s6546 + $0xc] sm:$0xf]
        %v6551 = vld [vmem:[%s6546 + $0x10] sm:$0xf]
        %v6552 = vld [vmem:[%s6546 + $0x14] sm:$0xf]
        %v6559 = vunpack.c.l.b16 %v6547
        %v6560 = vunpack.c.l.b16 %v6548
        %v6561 = vunpack.c.l.b16 %v6549
        %v6562 = vunpack.c.l.b16 %v6550
        %v6563 = vunpack.c.l.b16 %v6551
        %v6564 = vunpack.c.l.b16 %v6552
        %v6565 = vpack.c.b16 %v6560, %v6559
        %v6566 = vpack.c.b16 %v6562, %v6561
        %v6567 = vpack.c.b16 %v6564, %v6563
        %6571 = vmatprep.subr.bf16.mxu0 0
        %6572 = vmatpush1.bf16.msra.mxu0 %v6565
        %6573 = vmatprep.subr.bf16.mxu0 0
        %6574 = vmatpush1.bf16.msra.mxu0 %v6566
        %6575 = vmatprep.subr.bf16.mxu0 0
        %6576 = vmatpush1.bf16.msra.mxu0 %v6567
        %6577 = vmatprep.subr.bf16.mxu0 0
        %6578 = vmatpush1.bf16.msra.mxu0 0
        %6579 = vmatprep.subr.bf16.mxu0 0
        %6580 = vmatpush1.bf16.msra.mxu0 0
        %6581 = vmatprep.subr.bf16.mxu0 0
        %6582 = vmatpush1.bf16.msra.mxu0 0
        %6583 = vmatprep.subr.bf16.mxu0 0
        %6584 = vmatpush1.bf16.msra.mxu0 0
        %6585 = vmatprep.subr.bf16.mxu0 0
        %6586 = vmatpush1.bf16.msra.mxu0 0
        %6587 = vmatprep.subr.bf16.mxu0 0
        %6588 = vmatpush1.bf16.msra.mxu0 0
        %6589 = vmatprep.subr.bf16.mxu0 0
        %6590 = vmatpush1.bf16.msra.mxu0 0
        %6591 = vmatprep.subr.bf16.mxu0 0
        %6592 = vmatpush1.bf16.msra.mxu0 0
        %6593 = vmatprep.subr.bf16.mxu0 0
        %6594 = vmatpush1.bf16.msra.mxu0 0
        %6595 = vmatprep.subr.bf16.mxu0 0
        %6596 = vmatpush1.bf16.msra.mxu0 0
        %6597 = vmatprep.subr.bf16.mxu0 0
        %6598 = vmatpush1.bf16.msra.mxu0 0
        %6599 = vmatprep.subr.bf16.mxu0 0
        %6600 = vmatpush1.bf16.msra.mxu0 0
        %6601 = vmatprep.subr.bf16.mxu0 0
        %6602 = vmatpush1.bf16.msra.mxu0 0
        %6603 = vmatprep.mubr.bf16.mxu0 0
        %6604 = vmatmul.mubr.bf16.gmra.mrb[0].mxu0 %v6210
        %v6605 = vpop.f32.mrb[0].mxu0
        %v6606 = vadd.f32 0.0, %v6605
        %v6607 = vpop.f32.mrb[0].mxu0
        %v6608 = vpop.f32.mrb[0].mxu0
        %v6609 = vadd.f32 0.0, %v6608
        %v6610 = vpop.f32.mrb[0].mxu0
        %6611 = vmatprep.mubr.bf16.mxu0 0
        %6612 = vmatmul.mubr.bf16.gmra.mrb[0].mxu0 %v6213
        %v6613 = vpop.f32.mrb[0].mxu0
        %v6614 = vadd.f32 0.0, %v6613
        %v6615 = vpop.f32.mrb[0].mxu0
        %v6616 = vpop.f32.mrb[0].mxu0
        %v6617 = vadd.f32 0.0, %v6616
        %v6618 = vpop.f32.mrb[0].mxu0
        %6619 = vmatprep.mubr.bf16.mxu0 0
        %6620 = vmatmul.mubr.bf16.gmra.mrb[0].mxu0 %v6216
        %v6621 = vpop.f32.mrb[0].mxu0
        %v6622 = vadd.f32 0.0, %v6621
        %v6623 = vpop.f32.mrb[0].mxu0
        %v6624 = vpop.f32.mrb[0].mxu0
        %v6625 = vadd.f32 0.0, %v6624
        %v6626 = vpop.f32.mrb[0].mxu0
        %6627 = vmatprep.mubr.bf16.mxu0 0
        %6628 = vmatmul.mubr.bf16.gmra.mrb[0].mxu0 %v6219
        %v6629 = vpop.f32.mrb[0].mxu0
        %v6630 = vadd.f32 0.0, %v6629
        %v6631 = vpop.f32.mrb[0].mxu0
        %v6632 = vpop.f32.mrb[0].mxu0
        %v6633 = vadd.f32 0.0, %v6632
        %v6634 = vpop.f32.mrb[0].mxu0
        %6635 = vmatprep.mubr.bf16.mxu0 0
        %6636 = vmatmul.mubr.bf16.gmra.mrb[0].mxu0 %v6222
        %v6637 = vpop.f32.mrb[0].mxu0
        %v6638 = vadd.f32 0.0, %v6637
        %v6639 = vpop.f32.mrb[0].mxu0
        %v6640 = vpop.f32.mrb[0].mxu0
        %v6641 = vadd.f32 0.0, %v6640
        %v6642 = vpop.f32.mrb[0].mxu0
        %6643 = vmatprep.mubr.bf16.mxu0 0
        %6644 = vmatmul.mubr.bf16.gmra.mrb[0].mxu0 %v6225
        %v6645 = vpop.f32.mrb[0].mxu0
        %v6646 = vadd.f32 0.0, %v6645
        %v6647 = vpop.f32.mrb[0].mxu0
        %v6648 = vpop.f32.mrb[0].mxu0
        %v6649 = vadd.f32 0.0, %v6648
        %v6650 = vpop.f32.mrb[0].mxu0
        %6651 = vmatprep.mubr.bf16.mxu0 0
        %6652 = vmatmul.mubr.bf16.gmra.mrb[0].mxu0 %v6228
        %v6653 = vpop.f32.mrb[0].mxu0
        %v6654 = vadd.f32 0.0, %v6653
        %v6655 = vpop.f32.mrb[0].mxu0
        %v6656 = vpop.f32.mrb[0].mxu0
        %v6657 = vadd.f32 0.0, %v6656
        %v6658 = vpop.f32.mrb[0].mxu0
        %6659 = vmatprep.mubr.bf16.mxu0 0
        %6660 = vmatmul.mubr.bf16.gmra.mrb[0].mxu0 %v6231
        %v6661 = vpop.f32.mrb[0].mxu0
        %v6662 = vadd.f32 0.0, %v6661
        %v6663 = vpop.f32.mrb[0].mxu0
        %v6664 = vpop.f32.mrb[0].mxu0
        %v6665 = vadd.f32 0.0, %v6664
        %v6666 = vpop.f32.mrb[0].mxu0
        %6667 = vmatprep.mubr.bf16.mxu0 0
        %6668 = vmatmul.mubr.bf16.gmra.mrb[0].mxu0 %v6234
        %v6669 = vpop.f32.mrb[0].mxu0
        %v6670 = vadd.f32 0.0, %v6669
        %v6671 = vpop.f32.mrb[0].mxu0
        %v6672 = vpop.f32.mrb[0].mxu0
        %v6673 = vadd.f32 0.0, %v6672
        %v6674 = vpop.f32.mrb[0].mxu0
        %6675 = vmatprep.mubr.bf16.mxu0 0
        %6676 = vmatmul.mubr.bf16.gmra.mrb[0].mxu0 %v6237
        %v6677 = vpop.f32.mrb[0].mxu0
        %v6678 = vadd.f32 0.0, %v6677
        %v6679 = vpop.f32.mrb[0].mxu0
        %v6680 = vpop.f32.mrb[0].mxu0
        %v6681 = vadd.f32 0.0, %v6680
        %v6682 = vpop.f32.mrb[0].mxu0
        %6683 = vmatprep.mubr.bf16.mxu0 0
        %6684 = vmatmul.mubr.bf16.gmra.mrb[0].mxu0 %v6240
        %v6685 = vpop.f32.mrb[0].mxu0
        %v6686 = vadd.f32 0.0, %v6685
        %v6687 = vpop.f32.mrb[0].mxu0
        %v6688 = vpop.f32.mrb[0].mxu0
        %v6689 = vadd.f32 0.0, %v6688
        %v6690 = vpop.f32.mrb[0].mxu0
        %6691 = vmatprep.mubr.bf16.mxu0 0
        %6692 = vmatmul.mubr.bf16.gmra.mrb[0].mxu0 %v6243
        %v6693 = vpop.f32.mrb[0].mxu0
        %v6694 = vadd.f32 0.0, %v6693
        %v6695 = vpop.f32.mrb[0].mxu0
        %v6696 = vpop.f32.mrb[0].mxu0
        %v6697 = vadd.f32 0.0, %v6696
        %v6698 = vpop.f32.mrb[0].mxu0
        %6699 = vmatprep.mubr.bf16.mxu0 0
        %6700 = vmatmul.mubr.bf16.gmra.mrb[0].mxu0 %v6246
        %v6701 = vpop.f32.mrb[0].mxu0
        %v6702 = vadd.f32 0.0, %v6701
        %v6703 = vpop.f32.mrb[0].mxu0
        %v6704 = vpop.f32.mrb[0].mxu0
        %v6705 = vadd.f32 0.0, %v6704
        %v6706 = vpop.f32.mrb[0].mxu0
        %6707 = vmatprep.mubr.bf16.mxu0 0
        %6708 = vmatmul.mubr.bf16.gmra.mrb[0].mxu0 %v6249
        %v6709 = vpop.f32.mrb[0].mxu0
        %v6710 = vadd.f32 0.0, %v6709
        %v6711 = vpop.f32.mrb[0].mxu0
        %v6712 = vpop.f32.mrb[0].mxu0
        %v6713 = vadd.f32 0.0, %v6712
        %v6714 = vpop.f32.mrb[0].mxu0
        %6715 = vmatprep.mubr.bf16.mxu0 0
        %6716 = vmatmul.mubr.bf16.gmra.mrb[0].mxu0 %v6252
        %v6717 = vpop.f32.mrb[0].mxu0
        %v6718 = vadd.f32 0.0, %v6717
        %v6719 = vpop.f32.mrb[0].mxu0
        %v6720 = vpop.f32.mrb[0].mxu0
        %v6721 = vadd.f32 0.0, %v6720
        %v6722 = vpop.f32.mrb[0].mxu0
        %6723 = vmatprep.mubr.bf16.mxu0 0
        %6724 = vmatmul.mubr.bf16.gmra.mrb[0].mxu0 %v6255
        %v6725 = vpop.f32.mrb[0].mxu0
        %v6726 = vadd.f32 0.0, %v6725
        %v6727 = vpop.f32.mrb[0].mxu0
        %v6728 = vpop.f32.mrb[0].mxu0
        %v6729 = vadd.f32 0.0, %v6728
        %v6730 = vpop.f32.mrb[0].mxu0
        %6731 = vdwg.mxu0
        %v6732 = vadd.f32 %v6530, %v6606
        %v6733 = vadd.f32 %v6452, %v6609
        %v6734 = vadd.f32 %v6531, %v6614
        %v6735 = vadd.f32 %v6455, %v6617
        %v6736 = vadd.f32 %v6532, %v6622
        %v6737 = vadd.f32 %v6458, %v6625
        %v6738 = vadd.f32 %v6533, %v6630
        %v6739 = vadd.f32 %v6461, %v6633
        %v6740 = vadd.f32 %v6534, %v6638
        %v6741 = vadd.f32 %v6464, %v6641
        %v6742 = vadd.f32 %v6535, %v6646
        %v6743 = vadd.f32 %v6467, %v6649
        %v6744 = vadd.f32 %v6536, %v6654
        %v6745 = vadd.f32 %v6470, %v6657
        %v6746 = vadd.f32 %v6537, %v6662
        %v6747 = vadd.f32 %v6473, %v6665
        %v6748 = vadd.f32 %v6538, %v6670
        %v6749 = vadd.f32 %v6476, %v6673
        %v6750 = vadd.f32 %v6539, %v6678
        %v6751 = vadd.f32 %v6479, %v6681
        %v6752 = vadd.f32 %v6540, %v6686
        %v6753 = vadd.f32 %v6482, %v6689
        %v6754 = vadd.f32 %v6541, %v6694
        %v6755 = vadd.f32 %v6485, %v6697
        %v6756 = vadd.f32 %v6542, %v6702
        %v6757 = vadd.f32 %v6488, %v6705
        %v6758 = vadd.f32 %v6543, %v6710
        %v6759 = vadd.f32 %v6491, %v6713
        %v6760 = vadd.f32 %v6544, %v6718
        %v6761 = vadd.f32 %v6494, %v6721
        %v6762 = vadd.f32 %v6545, %v6726
        %v6763 = vadd.f32 %v6497, %v6729
        %s6764 = scalar_lea.vmem %s17, 48
        %v6765 = vld [vmem:[%s6764] sm:$0xf]
        %v6766 = vld [vmem:[%s6764 + $0x4] sm:$0xf]
        %v6767 = vld [vmem:[%s6764 + $0x8] sm:$0xf]
        %v6768 = vld [vmem:[%s6764 + $0xc] sm:$0xf]
        %v6769 = vld [vmem:[%s6764 + $0x10] sm:$0xf]
        %v6770 = vld [vmem:[%s6764 + $0x14] sm:$0xf]
        %v6777 = vunpack.c.l.b16 %v6765
        %v6778 = vunpack.c.l.b16 %v6766
        %v6779 = vunpack.c.l.b16 %v6767
        %v6780 = vunpack.c.l.b16 %v6768
        %v6781 = vunpack.c.l.b16 %v6769
        %v6782 = vunpack.c.l.b16 %v6770
        %v6783 = vpack.c.b16 %v6778, %v6777
        %v6784 = vpack.c.b16 %v6780, %v6779
        %v6785 = vpack.c.b16 %v6782, %v6781
        %6789 = vmatprep.subr.bf16.mxu0 0
        %6790 = vmatpush1.bf16.msra.mxu0 %v6783
        %6791 = vmatprep.subr.bf16.mxu0 0
        %6792 = vmatpush1.bf16.msra.mxu0 %v6784
        %6793 = vmatprep.subr.bf16.mxu0 0
        %6794 = vmatpush1.bf16.msra.mxu0 %v6785
        %6795 = vmatprep.subr.bf16.mxu0 0
        %6796 = vmatpush1.bf16.msra.mxu0 0
        %6797 = vmatprep.subr.bf16.mxu0 0
        %6798 = vmatpush1.bf16.msra.mxu0 0
        %6799 = vmatprep.subr.bf16.mxu0 0
        %6800 = vmatpush1.bf16.msra.mxu0 0
        %6801 = vmatprep.subr.bf16.mxu0 0
        %6802 = vmatpush1.bf16.msra.mxu0 0
        %6803 = vmatprep.subr.bf16.mxu0 0
        %6804 = vmatpush1.bf16.msra.mxu0 0
        %6805 = vmatprep.subr.bf16.mxu0 0
        %6806 = vmatpush1.bf16.msra.mxu0 0
        %6807 = vmatprep.subr.bf16.mxu0 0
        %6808 = vmatpush1.bf16.msra.mxu0 0
        %6809 = vmatprep.subr.bf16.mxu0 0
        %6810 = vmatpush1.bf16.msra.mxu0 0
        %6811 = vmatprep.subr.bf16.mxu0 0
        %6812 = vmatpush1.bf16.msra.mxu0 0
        %6813 = vmatprep.subr.bf16.mxu0 0
        %6814 = vmatpush1.bf16.msra.mxu0 0
        %6815 = vmatprep.subr.bf16.mxu0 0
        %6816 = vmatpush1.bf16.msra.mxu0 0
        %6817 = vmatprep.subr.bf16.mxu0 0
        %6818 = vmatpush1.bf16.msra.mxu0 0
        %6819 = vmatprep.subr.bf16.mxu0 0
        %6820 = vmatpush1.bf16.msra.mxu0 0
        %6821 = vmatprep.mubr.bf16.mxu0 0
        %6822 = vmatmul.mubr.bf16.gmra.mrb[0].mxu0 %v6210
        %v6823 = vpop.f32.mrb[0].mxu0
        %v6824 = vadd.f32 0.0, %v6823
        %v6825 = vpop.f32.mrb[0].mxu0
        %v6826 = vpop.f32.mrb[0].mxu0
        %v6827 = vadd.f32 0.0, %v6826
        %v6828 = vpop.f32.mrb[0].mxu0
        %6829 = vmatprep.mubr.bf16.mxu0 0
        %6830 = vmatmul.mubr.bf16.gmra.mrb[0].mxu0 %v6213
        %v6831 = vpop.f32.mrb[0].mxu0
        %v6832 = vadd.f32 0.0, %v6831
        %v6833 = vpop.f32.mrb[0].mxu0
        %v6834 = vpop.f32.mrb[0].mxu0
        %v6835 = vadd.f32 0.0, %v6834
        %v6836 = vpop.f32.mrb[0].mxu0
        %6837 = vmatprep.mubr.bf16.mxu0 0
        %6838 = vmatmul.mubr.bf16.gmra.mrb[0].mxu0 %v6216
        %v6839 = vpop.f32.mrb[0].mxu0
        %v6840 = vadd.f32 0.0, %v6839
        %v6841 = vpop.f32.mrb[0].mxu0
        %v6842 = vpop.f32.mrb[0].mxu0
        %v6843 = vadd.f32 0.0, %v6842
        %v6844 = vpop.f32.mrb[0].mxu0
        %6845 = vmatprep.mubr.bf16.mxu0 0
        %6846 = vmatmul.mubr.bf16.gmra.mrb[0].mxu0 %v6219
        %v6847 = vpop.f32.mrb[0].mxu0
        %v6848 = vadd.f32 0.0, %v6847
        %v6849 = vpop.f32.mrb[0].mxu0
        %v6850 = vpop.f32.mrb[0].mxu0
        %v6851 = vadd.f32 0.0, %v6850
        %v6852 = vpop.f32.mrb[0].mxu0
        %6853 = vmatprep.mubr.bf16.mxu0 0
        %6854 = vmatmul.mubr.bf16.gmra.mrb[0].mxu0 %v6222
        %v6855 = vpop.f32.mrb[0].mxu0
        %v6856 = vadd.f32 0.0, %v6855
        %v6857 = vpop.f32.mrb[0].mxu0
        %v6858 = vpop.f32.mrb[0].mxu0
        %v6859 = vadd.f32 0.0, %v6858
        %v6860 = vpop.f32.mrb[0].mxu0
        %6861 = vmatprep.mubr.bf16.mxu0 0
        %6862 = vmatmul.mubr.bf16.gmra.mrb[0].mxu0 %v6225
        %v6863 = vpop.f32.mrb[0].mxu0
        %v6864 = vadd.f32 0.0, %v6863
        %v6865 = vpop.f32.mrb[0].mxu0
        %v6866 = vpop.f32.mrb[0].mxu0
        %v6867 = vadd.f32 0.0, %v6866
        %v6868 = vpop.f32.mrb[0].mxu0
        %6869 = vmatprep.mubr.bf16.mxu0 0
        %6870 = vmatmul.mubr.bf16.gmra.mrb[0].mxu0 %v6228
        %v6871 = vpop.f32.mrb[0].mxu0
        %v6872 = vadd.f32 0.0, %v6871
        %v6873 = vpop.f32.mrb[0].mxu0
        %v6874 = vpop.f32.mrb[0].mxu0
        %v6875 = vadd.f32 0.0, %v6874
        %v6876 = vpop.f32.mrb[0].mxu0
        %6877 = vmatprep.mubr.bf16.mxu0 0
        %6878 = vmatmul.mubr.bf16.gmra.mrb[0].mxu0 %v6231
        %v6879 = vpop.f32.mrb[0].mxu0
        %v6880 = vadd.f32 0.0, %v6879
        %v6881 = vpop.f32.mrb[0].mxu0
        %v6882 = vpop.f32.mrb[0].mxu0
        %v6883 = vadd.f32 0.0, %v6882
        %v6884 = vpop.f32.mrb[0].mxu0
        %6885 = vmatprep.mubr.bf16.mxu0 0
        %6886 = vmatmul.mubr.bf16.gmra.mrb[0].mxu0 %v6234
        %v6887 = vpop.f32.mrb[0].mxu0
        %v6888 = vadd.f32 0.0, %v6887
        %v6889 = vpop.f32.mrb[0].mxu0
        %v6890 = vpop.f32.mrb[0].mxu0
        %v6891 = vadd.f32 0.0, %v6890
        %v6892 = vpop.f32.mrb[0].mxu0
        %6893 = vmatprep.mubr.bf16.mxu0 0
        %6894 = vmatmul.mubr.bf16.gmra.mrb[0].mxu0 %v6237
        %v6895 = vpop.f32.mrb[0].mxu0
        %v6896 = vadd.f32 0.0, %v6895
        %v6897 = vpop.f32.mrb[0].mxu0
        %v6898 = vpop.f32.mrb[0].mxu0
        %v6899 = vadd.f32 0.0, %v6898
        %v6900 = vpop.f32.mrb[0].mxu0
        %6901 = vmatprep.mubr.bf16.mxu0 0
        %6902 = vmatmul.mubr.bf16.gmra.mrb[0].mxu0 %v6240
        %v6903 = vpop.f32.mrb[0].mxu0
        %v6904 = vadd.f32 0.0, %v6903
        %v6905 = vpop.f32.mrb[0].mxu0
        %v6906 = vpop.f32.mrb[0].mxu0
        %v6907 = vadd.f32 0.0, %v6906
        %v6908 = vpop.f32.mrb[0].mxu0
        %6909 = vmatprep.mubr.bf16.mxu0 0
        %6910 = vmatmul.mubr.bf16.gmra.mrb[0].mxu0 %v6243
        %v6911 = vpop.f32.mrb[0].mxu0
        %v6912 = vadd.f32 0.0, %v6911
        %v6913 = vpop.f32.mrb[0].mxu0
        %v6914 = vpop.f32.mrb[0].mxu0
        %v6915 = vadd.f32 0.0, %v6914
        %v6916 = vpop.f32.mrb[0].mxu0
        %6917 = vmatprep.mubr.bf16.mxu0 0
        %6918 = vmatmul.mubr.bf16.gmra.mrb[0].mxu0 %v6246
        %v6919 = vpop.f32.mrb[0].mxu0
        %v6920 = vadd.f32 0.0, %v6919
        %v6921 = vpop.f32.mrb[0].mxu0
        %v6922 = vpop.f32.mrb[0].mxu0
        %v6923 = vadd.f32 0.0, %v6922
        %v6924 = vpop.f32.mrb[0].mxu0
        %6925 = vmatprep.mubr.bf16.mxu0 0
        %6926 = vmatmul.mubr.bf16.gmra.mrb[0].mxu0 %v6249
        %v6927 = vpop.f32.mrb[0].mxu0
        %v6928 = vadd.f32 0.0, %v6927
        %v6929 = vpop.f32.mrb[0].mxu0
        %v6930 = vpop.f32.mrb[0].mxu0
        %v6931 = vadd.f32 0.0, %v6930
        %v6932 = vpop.f32.mrb[0].mxu0
        %6933 = vmatprep.mubr.bf16.mxu0 0
        %6934 = vmatmul.mubr.bf16.gmra.mrb[0].mxu0 %v6252
        %v6935 = vpop.f32.mrb[0].mxu0
        %v6936 = vadd.f32 0.0, %v6935
        %v6937 = vpop.f32.mrb[0].mxu0
        %v6938 = vpop.f32.mrb[0].mxu0
        %v6939 = vadd.f32 0.0, %v6938
        %v6940 = vpop.f32.mrb[0].mxu0
        %6941 = vmatprep.mubr.bf16.mxu0 0
        %6942 = vmatmul.mubr.bf16.gmra.mrb[0].mxu0 %v6255
        %v6943 = vpop.f32.mrb[0].mxu0
        %v6944 = vadd.f32 0.0, %v6943
        %v6945 = vpop.f32.mrb[0].mxu0
        %v6946 = vpop.f32.mrb[0].mxu0
        %v6947 = vadd.f32 0.0, %v6946
        %v6948 = vpop.f32.mrb[0].mxu0
        %6949 = vdwg.mxu0
        %v6982 = vrot.slane %v6824, 1
        %v6983 = vrot.slane %v6827, 1
        %v6984 = vsel %vm3252, %v6982, %v6983
        %v6985 = vrot.slane %v6832, 1
        %v6986 = vrot.slane %v6835, 1
        %v6987 = vsel %vm3252, %v6985, %v6986
        %v6988 = vrot.slane %v6840, 1
        %v6989 = vrot.slane %v6843, 1
        %v6990 = vsel %vm3252, %v6988, %v6989
        %v6991 = vrot.slane %v6848, 1
        %v6992 = vrot.slane %v6851, 1
        %v6993 = vsel %vm3252, %v6991, %v6992
        %v6994 = vrot.slane %v6856, 1
        %v6995 = vrot.slane %v6859, 1
        %v6996 = vsel %vm3252, %v6994, %v6995
        %v6997 = vrot.slane %v6864, 1
        %v6998 = vrot.slane %v6867, 1
        %v6999 = vsel %vm3252, %v6997, %v6998
        %v7000 = vrot.slane %v6872, 1
        %v7001 = vrot.slane %v6875, 1
        %v7002 = vsel %vm3252, %v7000, %v7001
        %v7003 = vrot.slane %v6880, 1
        %v7004 = vrot.slane %v6883, 1
        %v7005 = vsel %vm3252, %v7003, %v7004
        %v7006 = vrot.slane %v6888, 1
        %v7007 = vrot.slane %v6891, 1
        %v7008 = vsel %vm3252, %v7006, %v7007
        %v7009 = vrot.slane %v6896, 1
        %v7010 = vrot.slane %v6899, 1
        %v7011 = vsel %vm3252, %v7009, %v7010
        %v7012 = vrot.slane %v6904, 1
        %v7013 = vrot.slane %v6907, 1
        %v7014 = vsel %vm3252, %v7012, %v7013
        %v7015 = vrot.slane %v6912, 1
        %v7016 = vrot.slane %v6915, 1
        %v7017 = vsel %vm3252, %v7015, %v7016
        %v7018 = vrot.slane %v6920, 1
        %v7019 = vrot.slane %v6923, 1
        %v7020 = vsel %vm3252, %v7018, %v7019
        %v7021 = vrot.slane %v6928, 1
        %v7022 = vrot.slane %v6931, 1
        %v7023 = vsel %vm3252, %v7021, %v7022
        %v7024 = vrot.slane %v6936, 1
        %v7025 = vrot.slane %v6939, 1
        %v7026 = vsel %vm3252, %v7024, %v7025
        %v7027 = vrot.slane %v6944, 1
        %v7028 = vrot.slane %v6947, 1
        %v7029 = vsel %vm3252, %v7027, %v7028
        %v7062 = vsel %vm3252, %v6983, 0.0
        %v7063 = vsel %vm3252, %v6986, 0.0
        %v7064 = vsel %vm3252, %v6989, 0.0
        %v7065 = vsel %vm3252, %v6992, 0.0
        %v7066 = vsel %vm3252, %v6995, 0.0
        %v7067 = vsel %vm3252, %v6998, 0.0
        %v7068 = vsel %vm3252, %v7001, 0.0
        %v7069 = vsel %vm3252, %v7004, 0.0
        %v7070 = vsel %vm3252, %v7007, 0.0
        %v7071 = vsel %vm3252, %v7010, 0.0
        %v7072 = vsel %vm3252, %v7013, 0.0
        %v7073 = vsel %vm3252, %v7016, 0.0
        %v7074 = vsel %vm3252, %v7019, 0.0
        %v7075 = vsel %vm3252, %v7022, 0.0
        %v7076 = vsel %vm3252, %v7025, 0.0
        %v7077 = vsel %vm3252, %v7028, 0.0
        %v7078 = vadd.f32 %v6732, %v6984
        %v7079 = vadd.f32 %v6733, %v7062
        %v7080 = vadd.f32 %v6734, %v6987
        %v7081 = vadd.f32 %v6735, %v7063
        %v7082 = vadd.f32 %v6736, %v6990
        %v7083 = vadd.f32 %v6737, %v7064
        %v7084 = vadd.f32 %v6738, %v6993
        %v7085 = vadd.f32 %v6739, %v7065
        %v7086 = vadd.f32 %v6740, %v6996
        %v7087 = vadd.f32 %v6741, %v7066
        %v7088 = vadd.f32 %v6742, %v6999
        %v7089 = vadd.f32 %v6743, %v7067
        %v7090 = vadd.f32 %v6744, %v7002
        %v7091 = vadd.f32 %v6745, %v7068
        %v7092 = vadd.f32 %v6746, %v7005
        %v7093 = vadd.f32 %v6747, %v7069
        %v7094 = vadd.f32 %v6748, %v7008
        %v7095 = vadd.f32 %v6749, %v7070
        %v7096 = vadd.f32 %v6750, %v7011
        %v7097 = vadd.f32 %v6751, %v7071
        %v7098 = vadd.f32 %v6752, %v7014
        %v7099 = vadd.f32 %v6753, %v7072
        %v7100 = vadd.f32 %v6754, %v7017
        %v7101 = vadd.f32 %v6755, %v7073
        %v7102 = vadd.f32 %v6756, %v7020
        %v7103 = vadd.f32 %v6757, %v7074
        %v7104 = vadd.f32 %v6758, %v7023
        %v7105 = vadd.f32 %v6759, %v7075
        %v7106 = vadd.f32 %v6760, %v7026
        %v7107 = vadd.f32 %v6761, %v7076
        %v7108 = vadd.f32 %v6762, %v7029
        %v7109 = vadd.f32 %v6763, %v7077
        %v7110 = vld [vmem:[%s18] sm:$0x1]
        %v7112 = vlaneseq
        %v7113 = vshrl.u32 %v7112, 7
        %v7114 = vsub.s32 0, %v7113
        %v7115 = vrot.slane %v7110, %v7114
        %v7117 = vadd.f32 %v7078, %v7115
        %v7118 = vadd.f32 %v7079, %v7115
        %v7119 = vadd.f32 %v7080, %v7115
        %v7120 = vadd.f32 %v7081, %v7115
        %v7121 = vadd.f32 %v7082, %v7115
        %v7122 = vadd.f32 %v7083, %v7115
        %v7123 = vadd.f32 %v7084, %v7115
        %v7124 = vadd.f32 %v7085, %v7115
        %v7125 = vadd.f32 %v7086, %v7115
        %v7126 = vadd.f32 %v7087, %v7115
        %v7127 = vadd.f32 %v7088, %v7115
        %v7128 = vadd.f32 %v7089, %v7115
        %v7129 = vadd.f32 %v7090, %v7115
        %v7130 = vadd.f32 %v7091, %v7115
        %v7131 = vadd.f32 %v7092, %v7115
        %v7132 = vadd.f32 %v7093, %v7115
        %v7133 = vadd.f32 %v7094, %v7115
        %v7134 = vadd.f32 %v7095, %v7115
        %v7135 = vadd.f32 %v7096, %v7115
        %v7136 = vadd.f32 %v7097, %v7115
        %v7137 = vadd.f32 %v7098, %v7115
        %v7138 = vadd.f32 %v7099, %v7115
        %v7139 = vadd.f32 %v7100, %v7115
        %v7140 = vadd.f32 %v7101, %v7115
        %v7141 = vadd.f32 %v7102, %v7115
        %v7142 = vadd.f32 %v7103, %v7115
        %v7143 = vadd.f32 %v7104, %v7115
        %v7144 = vadd.f32 %v7105, %v7115
        %v7145 = vadd.f32 %v7106, %v7115
        %v7146 = vadd.f32 %v7107, %v7115
        %v7147 = vadd.f32 %v7108, %v7115
        %v7148 = vadd.f32 %v7109, %v7115
        %v7149 = vmax.f32 %v7117, 0.0
        %v7150 = vmax.f32 %v7118, 0.0
        %v7151 = vmax.f32 %v7119, 0.0
        %v7152 = vmax.f32 %v7120, 0.0
        %v7153 = vmax.f32 %v7121, 0.0
        %v7154 = vmax.f32 %v7122, 0.0
        %v7155 = vmax.f32 %v7123, 0.0
        %v7156 = vmax.f32 %v7124, 0.0
        %v7157 = vmax.f32 %v7125, 0.0
        %v7158 = vmax.f32 %v7126, 0.0
        %v7159 = vmax.f32 %v7127, 0.0
        %v7160 = vmax.f32 %v7128, 0.0
        %v7161 = vmax.f32 %v7129, 0.0
        %v7162 = vmax.f32 %v7130, 0.0
        %v7163 = vmax.f32 %v7131, 0.0
        %v7164 = vmax.f32 %v7132, 0.0
        %v7165 = vmax.f32 %v7133, 0.0
        %v7166 = vmax.f32 %v7134, 0.0
        %v7167 = vmax.f32 %v7135, 0.0
        %v7168 = vmax.f32 %v7136, 0.0
        %v7169 = vmax.f32 %v7137, 0.0
        %v7170 = vmax.f32 %v7138, 0.0
        %v7171 = vmax.f32 %v7139, 0.0
        %v7172 = vmax.f32 %v7140, 0.0
        %v7173 = vmax.f32 %v7141, 0.0
        %v7174 = vmax.f32 %v7142, 0.0
        %v7175 = vmax.f32 %v7143, 0.0
        %v7176 = vmax.f32 %v7144, 0.0
        %v7177 = vmax.f32 %v7145, 0.0
        %v7178 = vmax.f32 %v7146, 0.0
        %v7179 = vmax.f32 %v7147, 0.0
        %v7180 = vmax.f32 %v7148, 0.0
        %v7181 = vpack.c.bf16 %v7150, %v7149
        %v7182 = vpack.c.bf16 %v7152, %v7151
        %v7183 = vpack.c.bf16 %v7154, %v7153
        %v7184 = vpack.c.bf16 %v7156, %v7155
        %v7185 = vpack.c.bf16 %v7158, %v7157
        %v7186 = vpack.c.bf16 %v7160, %v7159
        %v7187 = vpack.c.bf16 %v7162, %v7161
        %v7188 = vpack.c.bf16 %v7164, %v7163
        %v7189 = vpack.c.bf16 %v7166, %v7165
        %v7190 = vpack.c.bf16 %v7168, %v7167
        %v7191 = vpack.c.bf16 %v7170, %v7169
        %v7192 = vpack.c.bf16 %v7172, %v7171
        %v7193 = vpack.c.bf16 %v7174, %v7173
        %v7194 = vpack.c.bf16 %v7176, %v7175
        %v7195 = vpack.c.bf16 %v7178, %v7177
        %v7196 = vpack.c.bf16 %v7180, %v7179
        %v7197 = vld [vmem:[%s19] sm:$0xf]
        %v7198 = vld [vmem:[%s19 + $0x4] sm:$0xf]
        %v7199 = vld [vmem:[%s19 + $0x8] sm:$0xf]
        %v7200 = vld [vmem:[%s19 + $0xc] sm:$0xf]
        %v7201 = vld [vmem:[%s19 + $0x10] sm:$0xf]
        %v7202 = vld [vmem:[%s19 + $0x14] sm:$0xf]
        %v7203 = vld [vmem:[%s19 + $0x18] sm:$0xf]
        %v7204 = vld [vmem:[%s19 + $0x1c] sm:$0xf]
        %v7205 = vld [vmem:[%s19 + $0x20] sm:$0xf]
        %v7206 = vld [vmem:[%s19 + $0x24] sm:$0xf]
        %v7207 = vld [vmem:[%s19 + $0x28] sm:$0xf]
        %v7208 = vld [vmem:[%s19 + $0x2c] sm:$0xf]
        %v7221 = vunpack.c.l.b16 %v7197
        %v7222 = vunpack.c.l.b16 %v7198
        %v7223 = vunpack.c.l.b16 %v7199
        %v7224 = vunpack.c.l.b16 %v7200
        %v7225 = vunpack.c.l.b16 %v7201
        %v7226 = vunpack.c.l.b16 %v7202
        %v7227 = vunpack.c.l.b16 %v7203
        %v7228 = vunpack.c.l.b16 %v7204
        %v7229 = vunpack.c.l.b16 %v7205
        %v7230 = vunpack.c.l.b16 %v7206
        %v7231 = vunpack.c.l.b16 %v7207
        %v7232 = vunpack.c.l.b16 %v7208
        %v7233 = vpack.c.b16 %v7222, %v7221
        %v7234 = vpack.c.b16 %v7224, %v7223
        %v7235 = vpack.c.b16 %v7226, %v7225
        %v7236 = vpack.c.b16 %v7228, %v7227
        %v7237 = vpack.c.b16 %v7230, %v7229
        %v7238 = vpack.c.b16 %v7232, %v7231
        %vm7245 = vcmask 785408
        %v7247 = vsel %vm7245, %v7181, 0
        %v7250 = vsel %vm7245, %v7182, 0
        %v7253 = vsel %vm7245, %v7183, 0
        %v7256 = vsel %vm7245, %v7184, 0
        %v7259 = vsel %vm7245, %v7185, 0
        %v7262 = vsel %vm7245, %v7186, 0
        %v7265 = vsel %vm7245, %v7187, 0
        %v7268 = vsel %vm7245, %v7188, 0
        %v7271 = vsel %vm7245, %v7189, 0
        %v7274 = vsel %vm7245, %v7190, 0
        %v7277 = vsel %vm7245, %v7191, 0
        %v7280 = vsel %vm7245, %v7192, 0
        %v7283 = vsel %vm7245, %v7193, 0
        %v7286 = vsel %vm7245, %v7194, 0
        %v7289 = vsel %vm7245, %v7195, 0
        %v7292 = vsel %vm7245, %v7196, 0
        %7294 = vmatprep.subr.bf16.mxu0 0
        %7295 = vmatpush1.bf16.msra.mxu0 %v7233
        %7296 = vmatprep.subr.bf16.mxu0 0
        %7297 = vmatpush1.bf16.msra.mxu0 %v7234
        %7298 = vmatprep.subr.bf16.mxu0 0
        %7299 = vmatpush1.bf16.msra.mxu0 %v7235
        %7300 = vmatprep.subr.bf16.mxu0 0
        %7301 = vmatpush1.bf16.msra.mxu0 %v7236
        %7302 = vmatprep.subr.bf16.mxu0 0
        %7303 = vmatpush1.bf16.msra.mxu0 %v7237
        %7304 = vmatprep.subr.bf16.mxu0 0
        %7305 = vmatpush1.bf16.msra.mxu0 %v7238
        %7306 = vmatprep.subr.bf16.mxu0 0
        %7307 = vmatpush1.bf16.msra.mxu0 0
        %7308 = vmatprep.subr.bf16.mxu0 0
        %7309 = vmatpush1.bf16.msra.mxu0 0
        %7310 = vmatprep.subr.bf16.mxu0 0
        %7311 = vmatpush1.bf16.msra.mxu0 0
        %7312 = vmatprep.subr.bf16.mxu0 0
        %7313 = vmatpush1.bf16.msra.mxu0 0
        %7314 = vmatprep.subr.bf16.mxu0 0
        %7315 = vmatpush1.bf16.msra.mxu0 0
        %7316 = vmatprep.subr.bf16.mxu0 0
        %7317 = vmatpush1.bf16.msra.mxu0 0
        %7318 = vmatprep.subr.bf16.mxu0 0
        %7319 = vmatpush1.bf16.msra.mxu0 0
        %7320 = vmatprep.subr.bf16.mxu0 0
        %7321 = vmatpush1.bf16.msra.mxu0 0
        %7322 = vmatprep.subr.bf16.mxu0 0
        %7323 = vmatpush1.bf16.msra.mxu0 0
        %7324 = vmatprep.subr.bf16.mxu0 0
        %7325 = vmatpush1.bf16.msra.mxu0 0
        %7326 = vmatprep.mubr.bf16.mxu0 0
        %7327 = vmatmul.mubr.bf16.gmra.mrb[0].mxu0 %v7247
        %v7328 = vpop.f32.mrb[0].mxu0
        %v7329 = vadd.f32 0.0, %v7328
        %v7330 = vpop.f32.mrb[0].mxu0
        %v7331 = vpop.f32.mrb[0].mxu0
        %v7332 = vadd.f32 0.0, %v7331
        %v7333 = vpop.f32.mrb[0].mxu0
        %7334 = vmatprep.mubr.bf16.mxu0 0
        %7335 = vmatmul.mubr.bf16.gmra.mrb[0].mxu0 %v7250
        %v7336 = vpop.f32.mrb[0].mxu0
        %v7337 = vadd.f32 0.0, %v7336
        %v7338 = vpop.f32.mrb[0].mxu0
        %v7339 = vpop.f32.mrb[0].mxu0
        %v7340 = vadd.f32 0.0, %v7339
        %v7341 = vpop.f32.mrb[0].mxu0
        %7342 = vmatprep.mubr.bf16.mxu0 0
        %7343 = vmatmul.mubr.bf16.gmra.mrb[0].mxu0 %v7253
        %v7344 = vpop.f32.mrb[0].mxu0
        %v7345 = vadd.f32 0.0, %v7344
        %v7346 = vpop.f32.mrb[0].mxu0
        %v7347 = vpop.f32.mrb[0].mxu0
        %v7348 = vadd.f32 0.0, %v7347
        %v7349 = vpop.f32.mrb[0].mxu0
        %7350 = vmatprep.mubr.bf16.mxu0 0
        %7351 = vmatmul.mubr.bf16.gmra.mrb[0].mxu0 %v7256
        %v7352 = vpop.f32.mrb[0].mxu0
        %v7353 = vadd.f32 0.0, %v7352
        %v7354 = vpop.f32.mrb[0].mxu0
        %v7355 = vpop.f32.mrb[0].mxu0
        %v7356 = vadd.f32 0.0, %v7355
        %v7357 = vpop.f32.mrb[0].mxu0
        %7358 = vmatprep.mubr.bf16.mxu0 0
        %7359 = vmatmul.mubr.bf16.gmra.mrb[0].mxu0 %v7259
        %v7360 = vpop.f32.mrb[0].mxu0
        %v7361 = vadd.f32 0.0, %v7360
        %v7362 = vpop.f32.mrb[0].mxu0
        %v7363 = vpop.f32.mrb[0].mxu0
        %v7364 = vadd.f32 0.0, %v7363
        %v7365 = vpop.f32.mrb[0].mxu0
        %7366 = vmatprep.mubr.bf16.mxu0 0
        %7367 = vmatmul.mubr.bf16.gmra.mrb[0].mxu0 %v7262
        %v7368 = vpop.f32.mrb[0].mxu0
        %v7369 = vadd.f32 0.0, %v7368
        %v7370 = vpop.f32.mrb[0].mxu0
        %v7371 = vpop.f32.mrb[0].mxu0
        %v7372 = vadd.f32 0.0, %v7371
        %v7373 = vpop.f32.mrb[0].mxu0
        %7374 = vmatprep.mubr.bf16.mxu0 0
        %7375 = vmatmul.mubr.bf16.gmra.mrb[0].mxu0 %v7265
        %v7376 = vpop.f32.mrb[0].mxu0
        %v7377 = vadd.f32 0.0, %v7376
        %v7378 = vpop.f32.mrb[0].mxu0
        %v7379 = vpop.f32.mrb[0].mxu0
        %v7380 = vadd.f32 0.0, %v7379
        %v7381 = vpop.f32.mrb[0].mxu0
        %7382 = vmatprep.mubr.bf16.mxu0 0
        %7383 = vmatmul.mubr.bf16.gmra.mrb[0].mxu0 %v7268
        %v7384 = vpop.f32.mrb[0].mxu0
        %v7385 = vadd.f32 0.0, %v7384
        %v7386 = vpop.f32.mrb[0].mxu0
        %v7387 = vpop.f32.mrb[0].mxu0
        %v7388 = vadd.f32 0.0, %v7387
        %v7389 = vpop.f32.mrb[0].mxu0
        %7390 = vmatprep.mubr.bf16.mxu0 0
        %7391 = vmatmul.mubr.bf16.gmra.mrb[0].mxu0 %v7271
        %v7392 = vpop.f32.mrb[0].mxu0
        %v7393 = vadd.f32 0.0, %v7392
        %v7394 = vpop.f32.mrb[0].mxu0
        %v7395 = vpop.f32.mrb[0].mxu0
        %v7396 = vadd.f32 0.0, %v7395
        %v7397 = vpop.f32.mrb[0].mxu0
        %7398 = vmatprep.mubr.bf16.mxu0 0
        %7399 = vmatmul.mubr.bf16.gmra.mrb[0].mxu0 %v7274
        %v7400 = vpop.f32.mrb[0].mxu0
        %v7401 = vadd.f32 0.0, %v7400
        %v7402 = vpop.f32.mrb[0].mxu0
        %v7403 = vpop.f32.mrb[0].mxu0
        %v7404 = vadd.f32 0.0, %v7403
        %v7405 = vpop.f32.mrb[0].mxu0
        %7406 = vmatprep.mubr.bf16.mxu0 0
        %7407 = vmatmul.mubr.bf16.gmra.mrb[0].mxu0 %v7277
        %v7408 = vpop.f32.mrb[0].mxu0
        %v7409 = vadd.f32 0.0, %v7408
        %v7410 = vpop.f32.mrb[0].mxu0
        %v7411 = vpop.f32.mrb[0].mxu0
        %v7412 = vadd.f32 0.0, %v7411
        %v7413 = vpop.f32.mrb[0].mxu0
        %7414 = vmatprep.mubr.bf16.mxu0 0
        %7415 = vmatmul.mubr.bf16.gmra.mrb[0].mxu0 %v7280
        %v7416 = vpop.f32.mrb[0].mxu0
        %v7417 = vadd.f32 0.0, %v7416
        %v7418 = vpop.f32.mrb[0].mxu0
        %v7419 = vpop.f32.mrb[0].mxu0
        %v7420 = vadd.f32 0.0, %v7419
        %v7421 = vpop.f32.mrb[0].mxu0
        %7422 = vmatprep.mubr.bf16.mxu0 0
        %7423 = vmatmul.mubr.bf16.gmra.mrb[0].mxu0 %v7283
        %v7424 = vpop.f32.mrb[0].mxu0
        %v7425 = vadd.f32 0.0, %v7424
        %v7426 = vpop.f32.mrb[0].mxu0
        %v7427 = vpop.f32.mrb[0].mxu0
        %v7428 = vadd.f32 0.0, %v7427
        %v7429 = vpop.f32.mrb[0].mxu0
        %7430 = vmatprep.mubr.bf16.mxu0 0
        %7431 = vmatmul.mubr.bf16.gmra.mrb[0].mxu0 %v7286
        %v7432 = vpop.f32.mrb[0].mxu0
        %v7433 = vadd.f32 0.0, %v7432
        %v7434 = vpop.f32.mrb[0].mxu0
        %v7435 = vpop.f32.mrb[0].mxu0
        %v7436 = vadd.f32 0.0, %v7435
        %v7437 = vpop.f32.mrb[0].mxu0
        %7438 = vmatprep.mubr.bf16.mxu0 0
        %7439 = vmatmul.mubr.bf16.gmra.mrb[0].mxu0 %v7289
        %v7440 = vpop.f32.mrb[0].mxu0
        %v7441 = vadd.f32 0.0, %v7440
        %v7442 = vpop.f32.mrb[0].mxu0
        %v7443 = vpop.f32.mrb[0].mxu0
        %v7444 = vadd.f32 0.0, %v7443
        %v7445 = vpop.f32.mrb[0].mxu0
        %7446 = vmatprep.mubr.bf16.mxu0 0
        %7447 = vmatmul.mubr.bf16.gmra.mrb[0].mxu0 %v7292
        %v7448 = vpop.f32.mrb[0].mxu0
        %v7449 = vpop.f32.mrb[0].mxu0
        %v7450 = vpop.f32.mrb[0].mxu0
        %v7451 = vpop.f32.mrb[0].mxu0
        %7452 = vdwg.mxu0
        %s7453 = scalar_lea.vmem %s19, 48
        %v7454 = vld [vmem:[%s7453] sm:$0xf]
        %v7455 = vld [vmem:[%s7453 + $0x4] sm:$0xf]
        %v7456 = vld [vmem:[%s7453 + $0x8] sm:$0xf]
        %v7457 = vld [vmem:[%s7453 + $0xc] sm:$0xf]
        %v7458 = vld [vmem:[%s7453 + $0x10] sm:$0xf]
        %v7459 = vld [vmem:[%s7453 + $0x14] sm:$0xf]
        %v7460 = vld [vmem:[%s7453 + $0x18] sm:$0xf]
        %v7461 = vld [vmem:[%s7453 + $0x1c] sm:$0xf]
        %v7462 = vld [vmem:[%s7453 + $0x20] sm:$0xf]
        %v7463 = vld [vmem:[%s7453 + $0x24] sm:$0xf]
        %v7464 = vld [vmem:[%s7453 + $0x28] sm:$0xf]
        %v7465 = vld [vmem:[%s7453 + $0x2c] sm:$0xf]
        %v7478 = vunpack.c.l.b16 %v7454
        %v7479 = vunpack.c.l.b16 %v7455
        %v7480 = vunpack.c.l.b16 %v7456
        %v7481 = vunpack.c.l.b16 %v7457
        %v7482 = vunpack.c.l.b16 %v7458
        %v7483 = vunpack.c.l.b16 %v7459
        %v7484 = vunpack.c.l.b16 %v7460
        %v7485 = vunpack.c.l.b16 %v7461
        %v7486 = vunpack.c.l.b16 %v7462
        %v7487 = vunpack.c.l.b16 %v7463
        %v7488 = vunpack.c.l.b16 %v7464
        %v7489 = vunpack.c.l.b16 %v7465
        %v7490 = vpack.c.b16 %v7479, %v7478
        %v7491 = vpack.c.b16 %v7481, %v7480
        %v7492 = vpack.c.b16 %v7483, %v7482
        %v7493 = vpack.c.b16 %v7485, %v7484
        %v7494 = vpack.c.b16 %v7487, %v7486
        %v7495 = vpack.c.b16 %v7489, %v7488
        %7502 = vmatprep.subr.bf16.mxu0 0
        %7503 = vmatpush1.bf16.msra.mxu0 %v7490
        %7504 = vmatprep.subr.bf16.mxu0 0
        %7505 = vmatpush1.bf16.msra.mxu0 %v7491
        %7506 = vmatprep.subr.bf16.mxu0 0
        %7507 = vmatpush1.bf16.msra.mxu0 %v7492
        %7508 = vmatprep.subr.bf16.mxu0 0
        %7509 = vmatpush1.bf16.msra.mxu0 %v7493
        %7510 = vmatprep.subr.bf16.mxu0 0
        %7511 = vmatpush1.bf16.msra.mxu0 %v7494
        %7512 = vmatprep.subr.bf16.mxu0 0
        %7513 = vmatpush1.bf16.msra.mxu0 %v7495
        %7514 = vmatprep.subr.bf16.mxu0 0
        %7515 = vmatpush1.bf16.msra.mxu0 0
        %7516 = vmatprep.subr.bf16.mxu0 0
        %7517 = vmatpush1.bf16.msra.mxu0 0
        %7518 = vmatprep.subr.bf16.mxu0 0
        %7519 = vmatpush1.bf16.msra.mxu0 0
        %7520 = vmatprep.subr.bf16.mxu0 0
        %7521 = vmatpush1.bf16.msra.mxu0 0
        %7522 = vmatprep.subr.bf16.mxu0 0
        %7523 = vmatpush1.bf16.msra.mxu0 0
        %7524 = vmatprep.subr.bf16.mxu0 0
        %7525 = vmatpush1.bf16.msra.mxu0 0
        %7526 = vmatprep.subr.bf16.mxu0 0
        %7527 = vmatpush1.bf16.msra.mxu0 0
        %7528 = vmatprep.subr.bf16.mxu0 0
        %7529 = vmatpush1.bf16.msra.mxu0 0
        %7530 = vmatprep.subr.bf16.mxu0 0
        %7531 = vmatpush1.bf16.msra.mxu0 0
        %7532 = vmatprep.subr.bf16.mxu0 0
        %7533 = vmatpush1.bf16.msra.mxu0 0
        %7534 = vmatprep.mubr.bf16.mxu0 0
        %7535 = vmatmul.mubr.bf16.gmra.mrb[0].mxu0 %v7247
        %v7536 = vpop.f32.mrb[0].mxu0
        %v7537 = vadd.f32 0.0, %v7536
        %v7538 = vpop.f32.mrb[0].mxu0
        %v7539 = vpop.f32.mrb[0].mxu0
        %v7540 = vadd.f32 0.0, %v7539
        %v7541 = vpop.f32.mrb[0].mxu0
        %7542 = vmatprep.mubr.bf16.mxu0 0
        %7543 = vmatmul.mubr.bf16.gmra.mrb[0].mxu0 %v7250
        %v7544 = vpop.f32.mrb[0].mxu0
        %v7545 = vadd.f32 0.0, %v7544
        %v7546 = vpop.f32.mrb[0].mxu0
        %v7547 = vpop.f32.mrb[0].mxu0
        %v7548 = vadd.f32 0.0, %v7547
        %v7549 = vpop.f32.mrb[0].mxu0
        %7550 = vmatprep.mubr.bf16.mxu0 0
        %7551 = vmatmul.mubr.bf16.gmra.mrb[0].mxu0 %v7253
        %v7552 = vpop.f32.mrb[0].mxu0
        %v7553 = vadd.f32 0.0, %v7552
        %v7554 = vpop.f32.mrb[0].mxu0
        %v7555 = vpop.f32.mrb[0].mxu0
        %v7556 = vadd.f32 0.0, %v7555
        %v7557 = vpop.f32.mrb[0].mxu0
        %7558 = vmatprep.mubr.bf16.mxu0 0
        %7559 = vmatmul.mubr.bf16.gmra.mrb[0].mxu0 %v7256
        %v7560 = vpop.f32.mrb[0].mxu0
        %v7561 = vadd.f32 0.0, %v7560
        %v7562 = vpop.f32.mrb[0].mxu0
        %v7563 = vpop.f32.mrb[0].mxu0
        %v7564 = vadd.f32 0.0, %v7563
        %v7565 = vpop.f32.mrb[0].mxu0
        %7566 = vmatprep.mubr.bf16.mxu0 0
        %7567 = vmatmul.mubr.bf16.gmra.mrb[0].mxu0 %v7259
        %v7568 = vpop.f32.mrb[0].mxu0
        %v7569 = vadd.f32 0.0, %v7568
        %v7570 = vpop.f32.mrb[0].mxu0
        %v7571 = vpop.f32.mrb[0].mxu0
        %v7572 = vadd.f32 0.0, %v7571
        %v7573 = vpop.f32.mrb[0].mxu0
        %7574 = vmatprep.mubr.bf16.mxu0 0
        %7575 = vmatmul.mubr.bf16.gmra.mrb[0].mxu0 %v7262
        %v7576 = vpop.f32.mrb[0].mxu0
        %v7577 = vadd.f32 0.0, %v7576
        %v7578 = vpop.f32.mrb[0].mxu0
        %v7579 = vpop.f32.mrb[0].mxu0
        %v7580 = vadd.f32 0.0, %v7579
        %v7581 = vpop.f32.mrb[0].mxu0
        %7582 = vmatprep.mubr.bf16.mxu0 0
        %7583 = vmatmul.mubr.bf16.gmra.mrb[0].mxu0 %v7265
        %v7584 = vpop.f32.mrb[0].mxu0
        %v7585 = vadd.f32 0.0, %v7584
        %v7586 = vpop.f32.mrb[0].mxu0
        %v7587 = vpop.f32.mrb[0].mxu0
        %v7588 = vadd.f32 0.0, %v7587
        %v7589 = vpop.f32.mrb[0].mxu0
        %7590 = vmatprep.mubr.bf16.mxu0 0
        %7591 = vmatmul.mubr.bf16.gmra.mrb[0].mxu0 %v7268
        %v7592 = vpop.f32.mrb[0].mxu0
        %v7593 = vadd.f32 0.0, %v7592
        %v7594 = vpop.f32.mrb[0].mxu0
        %v7595 = vpop.f32.mrb[0].mxu0
        %v7596 = vadd.f32 0.0, %v7595
        %v7597 = vpop.f32.mrb[0].mxu0
        %7598 = vmatprep.mubr.bf16.mxu0 0
        %7599 = vmatmul.mubr.bf16.gmra.mrb[0].mxu0 %v7271
        %v7600 = vpop.f32.mrb[0].mxu0
        %v7601 = vadd.f32 0.0, %v7600
        %v7602 = vpop.f32.mrb[0].mxu0
        %v7603 = vpop.f32.mrb[0].mxu0
        %v7604 = vadd.f32 0.0, %v7603
        %v7605 = vpop.f32.mrb[0].mxu0
        %7606 = vmatprep.mubr.bf16.mxu0 0
        %7607 = vmatmul.mubr.bf16.gmra.mrb[0].mxu0 %v7274
        %v7608 = vpop.f32.mrb[0].mxu0
        %v7609 = vadd.f32 0.0, %v7608
        %v7610 = vpop.f32.mrb[0].mxu0
        %v7611 = vpop.f32.mrb[0].mxu0
        %v7612 = vadd.f32 0.0, %v7611
        %v7613 = vpop.f32.mrb[0].mxu0
        %7614 = vmatprep.mubr.bf16.mxu0 0
        %7615 = vmatmul.mubr.bf16.gmra.mrb[0].mxu0 %v7277
        %v7616 = vpop.f32.mrb[0].mxu0
        %v7617 = vadd.f32 0.0, %v7616
        %v7618 = vpop.f32.mrb[0].mxu0
        %v7619 = vpop.f32.mrb[0].mxu0
        %v7620 = vadd.f32 0.0, %v7619
        %v7621 = vpop.f32.mrb[0].mxu0
        %7622 = vmatprep.mubr.bf16.mxu0 0
        %7623 = vmatmul.mubr.bf16.gmra.mrb[0].mxu0 %v7280
        %v7624 = vpop.f32.mrb[0].mxu0
        %v7625 = vadd.f32 0.0, %v7624
        %v7626 = vpop.f32.mrb[0].mxu0
        %v7627 = vpop.f32.mrb[0].mxu0
        %v7628 = vadd.f32 0.0, %v7627
        %v7629 = vpop.f32.mrb[0].mxu0
        %7630 = vmatprep.mubr.bf16.mxu0 0
        %7631 = vmatmul.mubr.bf16.gmra.mrb[0].mxu0 %v7283
        %v7632 = vpop.f32.mrb[0].mxu0
        %v7633 = vadd.f32 0.0, %v7632
        %v7634 = vpop.f32.mrb[0].mxu0
        %v7635 = vpop.f32.mrb[0].mxu0
        %v7636 = vadd.f32 0.0, %v7635
        %v7637 = vpop.f32.mrb[0].mxu0
        %7638 = vmatprep.mubr.bf16.mxu0 0
        %7639 = vmatmul.mubr.bf16.gmra.mrb[0].mxu0 %v7286
        %v7640 = vpop.f32.mrb[0].mxu0
        %v7641 = vadd.f32 0.0, %v7640
        %v7642 = vpop.f32.mrb[0].mxu0
        %v7643 = vpop.f32.mrb[0].mxu0
        %v7644 = vadd.f32 0.0, %v7643
        %v7645 = vpop.f32.mrb[0].mxu0
        %7646 = vmatprep.mubr.bf16.mxu0 0
        %7647 = vmatmul.mubr.bf16.gmra.mrb[0].mxu0 %v7289
        %v7648 = vpop.f32.mrb[0].mxu0
        %v7649 = vadd.f32 0.0, %v7648
        %v7650 = vpop.f32.mrb[0].mxu0
        %v7651 = vpop.f32.mrb[0].mxu0
        %v7652 = vadd.f32 0.0, %v7651
        %v7653 = vpop.f32.mrb[0].mxu0
        %7654 = vmatprep.mubr.bf16.mxu0 0
        %7655 = vmatmul.mubr.bf16.gmra.mrb[0].mxu0 %v7292
        %v7656 = vpop.f32.mrb[0].mxu0
        %v7657 = vadd.f32 0.0, %v7656
        %v7658 = vpop.f32.mrb[0].mxu0
        %v7659 = vpop.f32.mrb[0].mxu0
        %v7660 = vadd.f32 0.0, %v7659
        %v7661 = vpop.f32.mrb[0].mxu0
        %7662 = vdwg.mxu0
        %v7663 = vadd.f32 %v7537, 0.0
        %v7664 = vadd.f32 %v7540, 0.0
        %v7665 = vadd.f32 %v7329, %v7545
        %v7666 = vadd.f32 %v7332, %v7548
        %v7667 = vadd.f32 %v7337, %v7553
        %v7668 = vadd.f32 %v7340, %v7556
        %v7669 = vadd.f32 %v7345, %v7561
        %v7670 = vadd.f32 %v7348, %v7564
        %v7671 = vadd.f32 %v7353, %v7569
        %v7672 = vadd.f32 %v7356, %v7572
        %v7673 = vadd.f32 %v7361, %v7577
        %v7674 = vadd.f32 %v7364, %v7580
        %v7675 = vadd.f32 %v7369, %v7585
        %v7676 = vadd.f32 %v7372, %v7588
        %v7677 = vadd.f32 %v7377, %v7593
        %v7678 = vadd.f32 %v7380, %v7596
        %v7679 = vadd.f32 %v7385, %v7601
        %v7680 = vadd.f32 %v7388, %v7604
        %v7681 = vadd.f32 %v7393, %v7609
        %v7682 = vadd.f32 %v7396, %v7612
        %v7683 = vadd.f32 %v7401, %v7617
        %v7684 = vadd.f32 %v7404, %v7620
        %v7685 = vadd.f32 %v7409, %v7625
        %v7686 = vadd.f32 %v7412, %v7628
        %v7687 = vadd.f32 %v7417, %v7633
        %v7688 = vadd.f32 %v7420, %v7636
        %v7689 = vadd.f32 %v7425, %v7641
        %v7690 = vadd.f32 %v7428, %v7644
        %v7691 = vadd.f32 %v7433, %v7649
        %v7692 = vadd.f32 %v7436, %v7652
        %v7693 = vadd.f32 %v7441, %v7657
        %v7694 = vadd.f32 %v7444, %v7660
        %s7695 = scalar_lea.vmem %s19, 96
        %v7696 = vld [vmem:[%s7695] sm:$0xf]
        %v7697 = vld [vmem:[%s7695 + $0x4] sm:$0xf]
        %v7698 = vld [vmem:[%s7695 + $0x8] sm:$0xf]
        %v7699 = vld [vmem:[%s7695 + $0xc] sm:$0xf]
        %v7700 = vld [vmem:[%s7695 + $0x10] sm:$0xf]
        %v7701 = vld [vmem:[%s7695 + $0x14] sm:$0xf]
        %v7702 = vld [vmem:[%s7695 + $0x18] sm:$0xf]
        %v7703 = vld [vmem:[%s7695 + $0x1c] sm:$0xf]
        %v7704 = vld [vmem:[%s7695 + $0x20] sm:$0xf]
        %v7705 = vld [vmem:[%s7695 + $0x24] sm:$0xf]
        %v7706 = vld [vmem:[%s7695 + $0x28] sm:$0xf]
        %v7707 = vld [vmem:[%s7695 + $0x2c] sm:$0xf]
        %v7720 = vunpack.c.l.b16 %v7696
        %v7721 = vunpack.c.l.b16 %v7697
        %v7722 = vunpack.c.l.b16 %v7698
        %v7723 = vunpack.c.l.b16 %v7699
        %v7724 = vunpack.c.l.b16 %v7700
        %v7725 = vunpack.c.l.b16 %v7701
        %v7726 = vunpack.c.l.b16 %v7702
        %v7727 = vunpack.c.l.b16 %v7703
        %v7728 = vunpack.c.l.b16 %v7704
        %v7729 = vunpack.c.l.b16 %v7705
        %v7730 = vunpack.c.l.b16 %v7706
        %v7731 = vunpack.c.l.b16 %v7707
        %v7732 = vpack.c.b16 %v7721, %v7720
        %v7733 = vpack.c.b16 %v7723, %v7722
        %v7734 = vpack.c.b16 %v7725, %v7724
        %v7735 = vpack.c.b16 %v7727, %v7726
        %v7736 = vpack.c.b16 %v7729, %v7728
        %v7737 = vpack.c.b16 %v7731, %v7730
        %7744 = vmatprep.subr.bf16.mxu0 0
        %7745 = vmatpush1.bf16.msra.mxu0 %v7732
        %7746 = vmatprep.subr.bf16.mxu0 0
        %7747 = vmatpush1.bf16.msra.mxu0 %v7733
        %7748 = vmatprep.subr.bf16.mxu0 0
        %7749 = vmatpush1.bf16.msra.mxu0 %v7734
        %7750 = vmatprep.subr.bf16.mxu0 0
        %7751 = vmatpush1.bf16.msra.mxu0 %v7735
        %7752 = vmatprep.subr.bf16.mxu0 0
        %7753 = vmatpush1.bf16.msra.mxu0 %v7736
        %7754 = vmatprep.subr.bf16.mxu0 0
        %7755 = vmatpush1.bf16.msra.mxu0 %v7737
        %7756 = vmatprep.subr.bf16.mxu0 0
        %7757 = vmatpush1.bf16.msra.mxu0 0
        %7758 = vmatprep.subr.bf16.mxu0 0
        %7759 = vmatpush1.bf16.msra.mxu0 0
        %7760 = vmatprep.subr.bf16.mxu0 0
        %7761 = vmatpush1.bf16.msra.mxu0 0
        %7762 = vmatprep.subr.bf16.mxu0 0
        %7763 = vmatpush1.bf16.msra.mxu0 0
        %7764 = vmatprep.subr.bf16.mxu0 0
        %7765 = vmatpush1.bf16.msra.mxu0 0
        %7766 = vmatprep.subr.bf16.mxu0 0
        %7767 = vmatpush1.bf16.msra.mxu0 0
        %7768 = vmatprep.subr.bf16.mxu0 0
        %7769 = vmatpush1.bf16.msra.mxu0 0
        %7770 = vmatprep.subr.bf16.mxu0 0
        %7771 = vmatpush1.bf16.msra.mxu0 0
        %7772 = vmatprep.subr.bf16.mxu0 0
        %7773 = vmatpush1.bf16.msra.mxu0 0
        %7774 = vmatprep.subr.bf16.mxu0 0
        %7775 = vmatpush1.bf16.msra.mxu0 0
        %7776 = vmatprep.mubr.bf16.mxu0 0
        %7777 = vmatmul.mubr.bf16.gmra.mrb[0].mxu0 %v7247
        %v7778 = vpop.f32.mrb[0].mxu0
        %v7779 = vpop.f32.mrb[0].mxu0
        %v7780 = vpop.f32.mrb[0].mxu0
        %v7781 = vpop.f32.mrb[0].mxu0
        %7782 = vmatprep.mubr.bf16.mxu0 0
        %7783 = vmatmul.mubr.bf16.gmra.mrb[0].mxu0 %v7250
        %v7784 = vpop.f32.mrb[0].mxu0
        %v7785 = vadd.f32 0.0, %v7784
        %v7786 = vpop.f32.mrb[0].mxu0
        %v7787 = vpop.f32.mrb[0].mxu0
        %v7788 = vadd.f32 0.0, %v7787
        %v7789 = vpop.f32.mrb[0].mxu0
        %7790 = vmatprep.mubr.bf16.mxu0 0
        %7791 = vmatmul.mubr.bf16.gmra.mrb[0].mxu0 %v7253
        %v7792 = vpop.f32.mrb[0].mxu0
        %v7793 = vadd.f32 0.0, %v7792
        %v7794 = vpop.f32.mrb[0].mxu0
        %v7795 = vpop.f32.mrb[0].mxu0
        %v7796 = vadd.f32 0.0, %v7795
        %v7797 = vpop.f32.mrb[0].mxu0
        %7798 = vmatprep.mubr.bf16.mxu0 0
        %7799 = vmatmul.mubr.bf16.gmra.mrb[0].mxu0 %v7256
        %v7800 = vpop.f32.mrb[0].mxu0
        %v7801 = vadd.f32 0.0, %v7800
        %v7802 = vpop.f32.mrb[0].mxu0
        %v7803 = vpop.f32.mrb[0].mxu0
        %v7804 = vadd.f32 0.0, %v7803
        %v7805 = vpop.f32.mrb[0].mxu0
        %7806 = vmatprep.mubr.bf16.mxu0 0
        %7807 = vmatmul.mubr.bf16.gmra.mrb[0].mxu0 %v7259
        %v7808 = vpop.f32.mrb[0].mxu0
        %v7809 = vadd.f32 0.0, %v7808
        %v7810 = vpop.f32.mrb[0].mxu0
        %v7811 = vpop.f32.mrb[0].mxu0
        %v7812 = vadd.f32 0.0, %v7811
        %v7813 = vpop.f32.mrb[0].mxu0
        %7814 = vmatprep.mubr.bf16.mxu0 0
        %7815 = vmatmul.mubr.bf16.gmra.mrb[0].mxu0 %v7262
        %v7816 = vpop.f32.mrb[0].mxu0
        %v7817 = vadd.f32 0.0, %v7816
        %v7818 = vpop.f32.mrb[0].mxu0
        %v7819 = vpop.f32.mrb[0].mxu0
        %v7820 = vadd.f32 0.0, %v7819
        %v7821 = vpop.f32.mrb[0].mxu0
        %7822 = vmatprep.mubr.bf16.mxu0 0
        %7823 = vmatmul.mubr.bf16.gmra.mrb[0].mxu0 %v7265
        %v7824 = vpop.f32.mrb[0].mxu0
        %v7825 = vadd.f32 0.0, %v7824
        %v7826 = vpop.f32.mrb[0].mxu0
        %v7827 = vpop.f32.mrb[0].mxu0
        %v7828 = vadd.f32 0.0, %v7827
        %v7829 = vpop.f32.mrb[0].mxu0
        %7830 = vmatprep.mubr.bf16.mxu0 0
        %7831 = vmatmul.mubr.bf16.gmra.mrb[0].mxu0 %v7268
        %v7832 = vpop.f32.mrb[0].mxu0
        %v7833 = vadd.f32 0.0, %v7832
        %v7834 = vpop.f32.mrb[0].mxu0
        %v7835 = vpop.f32.mrb[0].mxu0
        %v7836 = vadd.f32 0.0, %v7835
        %v7837 = vpop.f32.mrb[0].mxu0
        %7838 = vmatprep.mubr.bf16.mxu0 0
        %7839 = vmatmul.mubr.bf16.gmra.mrb[0].mxu0 %v7271
        %v7840 = vpop.f32.mrb[0].mxu0
        %v7841 = vadd.f32 0.0, %v7840
        %v7842 = vpop.f32.mrb[0].mxu0
        %v7843 = vpop.f32.mrb[0].mxu0
        %v7844 = vadd.f32 0.0, %v7843
        %v7845 = vpop.f32.mrb[0].mxu0
        %7846 = vmatprep.mubr.bf16.mxu0 0
        %7847 = vmatmul.mubr.bf16.gmra.mrb[0].mxu0 %v7274
        %v7848 = vpop.f32.mrb[0].mxu0
        %v7849 = vadd.f32 0.0, %v7848
        %v7850 = vpop.f32.mrb[0].mxu0
        %v7851 = vpop.f32.mrb[0].mxu0
        %v7852 = vadd.f32 0.0, %v7851
        %v7853 = vpop.f32.mrb[0].mxu0
        %7854 = vmatprep.mubr.bf16.mxu0 0
        %7855 = vmatmul.mubr.bf16.gmra.mrb[0].mxu0 %v7277
        %v7856 = vpop.f32.mrb[0].mxu0
        %v7857 = vadd.f32 0.0, %v7856
        %v7858 = vpop.f32.mrb[0].mxu0
        %v7859 = vpop.f32.mrb[0].mxu0
        %v7860 = vadd.f32 0.0, %v7859
        %v7861 = vpop.f32.mrb[0].mxu0
        %7862 = vmatprep.mubr.bf16.mxu0 0
        %7863 = vmatmul.mubr.bf16.gmra.mrb[0].mxu0 %v7280
        %v7864 = vpop.f32.mrb[0].mxu0
        %v7865 = vadd.f32 0.0, %v7864
        %v7866 = vpop.f32.mrb[0].mxu0
        %v7867 = vpop.f32.mrb[0].mxu0
        %v7868 = vadd.f32 0.0, %v7867
        %v7869 = vpop.f32.mrb[0].mxu0
        %7870 = vmatprep.mubr.bf16.mxu0 0
        %7871 = vmatmul.mubr.bf16.gmra.mrb[0].mxu0 %v7283
        %v7872 = vpop.f32.mrb[0].mxu0
        %v7873 = vadd.f32 0.0, %v7872
        %v7874 = vpop.f32.mrb[0].mxu0
        %v7875 = vpop.f32.mrb[0].mxu0
        %v7876 = vadd.f32 0.0, %v7875
        %v7877 = vpop.f32.mrb[0].mxu0
        %7878 = vmatprep.mubr.bf16.mxu0 0
        %7879 = vmatmul.mubr.bf16.gmra.mrb[0].mxu0 %v7286
        %v7880 = vpop.f32.mrb[0].mxu0
        %v7881 = vadd.f32 0.0, %v7880
        %v7882 = vpop.f32.mrb[0].mxu0
        %v7883 = vpop.f32.mrb[0].mxu0
        %v7884 = vadd.f32 0.0, %v7883
        %v7885 = vpop.f32.mrb[0].mxu0
        %7886 = vmatprep.mubr.bf16.mxu0 0
        %7887 = vmatmul.mubr.bf16.gmra.mrb[0].mxu0 %v7289
        %v7888 = vpop.f32.mrb[0].mxu0
        %v7889 = vadd.f32 0.0, %v7888
        %v7890 = vpop.f32.mrb[0].mxu0
        %v7891 = vpop.f32.mrb[0].mxu0
        %v7892 = vadd.f32 0.0, %v7891
        %v7893 = vpop.f32.mrb[0].mxu0
        %7894 = vmatprep.mubr.bf16.mxu0 0
        %7895 = vmatmul.mubr.bf16.gmra.mrb[0].mxu0 %v7292
        %v7896 = vpop.f32.mrb[0].mxu0
        %v7897 = vadd.f32 0.0, %v7896
        %v7898 = vpop.f32.mrb[0].mxu0
        %v7899 = vpop.f32.mrb[0].mxu0
        %v7900 = vadd.f32 0.0, %v7899
        %v7901 = vpop.f32.mrb[0].mxu0
        %7902 = vdwg.mxu0
        %v7903 = vadd.f32 %v7663, %v7785
        %v7904 = vadd.f32 %v7664, %v7788
        %v7905 = vadd.f32 %v7665, %v7793
        %v7906 = vadd.f32 %v7666, %v7796
        %v7907 = vadd.f32 %v7667, %v7801
        %v7908 = vadd.f32 %v7668, %v7804
        %v7909 = vadd.f32 %v7669, %v7809
        %v7910 = vadd.f32 %v7670, %v7812
        %v7911 = vadd.f32 %v7671, %v7817
        %v7912 = vadd.f32 %v7672, %v7820
        %v7913 = vadd.f32 %v7673, %v7825
        %v7914 = vadd.f32 %v7674, %v7828
        %v7915 = vadd.f32 %v7675, %v7833
        %v7916 = vadd.f32 %v7676, %v7836
        %v7917 = vadd.f32 %v7677, %v7841
        %v7918 = vadd.f32 %v7678, %v7844
        %v7919 = vadd.f32 %v7679, %v7849
        %v7920 = vadd.f32 %v7680, %v7852
        %v7921 = vadd.f32 %v7681, %v7857
        %v7922 = vadd.f32 %v7682, %v7860
        %v7923 = vadd.f32 %v7683, %v7865
        %v7924 = vadd.f32 %v7684, %v7868
        %v7925 = vadd.f32 %v7685, %v7873
        %v7926 = vadd.f32 %v7686, %v7876
        %v7927 = vadd.f32 %v7687, %v7881
        %v7928 = vadd.f32 %v7688, %v7884
        %v7929 = vadd.f32 %v7689, %v7889
        %v7930 = vadd.f32 %v7690, %v7892
        %v7931 = vadd.f32 %v7691, %v7897
        %v7932 = vadd.f32 %v7692, %v7900
        %v7933 = vadd.f32 %v7693, 0.0
        %v7934 = vadd.f32 %v7694, 0.0
        %v7935 = vld [vmem:[%s20] sm:$0x1]
        %v7937 = vlaneseq
        %v7938 = vshrl.u32 %v7937, 7
        %v7939 = vsub.s32 0, %v7938
        %v7940 = vrot.slane %v7935, %v7939
        %v7942 = vadd.f32 %v7903, %v7940
        %v7943 = vadd.f32 %v7904, %v7940
        %v7944 = vadd.f32 %v7905, %v7940
        %v7945 = vadd.f32 %v7906, %v7940
        %v7946 = vadd.f32 %v7907, %v7940
        %v7947 = vadd.f32 %v7908, %v7940
        %v7948 = vadd.f32 %v7909, %v7940
        %v7949 = vadd.f32 %v7910, %v7940
        %v7950 = vadd.f32 %v7911, %v7940
        %v7951 = vadd.f32 %v7912, %v7940
        %v7952 = vadd.f32 %v7913, %v7940
        %v7953 = vadd.f32 %v7914, %v7940
        %v7954 = vadd.f32 %v7915, %v7940
        %v7955 = vadd.f32 %v7916, %v7940
        %v7956 = vadd.f32 %v7917, %v7940
        %v7957 = vadd.f32 %v7918, %v7940
        %v7958 = vadd.f32 %v7919, %v7940
        %v7959 = vadd.f32 %v7920, %v7940
        %v7960 = vadd.f32 %v7921, %v7940
        %v7961 = vadd.f32 %v7922, %v7940
        %v7962 = vadd.f32 %v7923, %v7940
        %v7963 = vadd.f32 %v7924, %v7940
        %v7964 = vadd.f32 %v7925, %v7940
        %v7965 = vadd.f32 %v7926, %v7940
        %v7966 = vadd.f32 %v7927, %v7940
        %v7967 = vadd.f32 %v7928, %v7940
        %v7968 = vadd.f32 %v7929, %v7940
        %v7969 = vadd.f32 %v7930, %v7940
        %v7970 = vadd.f32 %v7931, %v7940
        %v7971 = vadd.f32 %v7932, %v7940
        %v7972 = vadd.f32 %v7933, %v7940
        %v7973 = vadd.f32 %v7934, %v7940
        %v7974 = vmax.f32 %v7942, 0.0
        %v7975 = vmax.f32 %v7943, 0.0
        %v7976 = vmax.f32 %v7944, 0.0
        %v7977 = vmax.f32 %v7945, 0.0
        %v7978 = vmax.f32 %v7946, 0.0
        %v7979 = vmax.f32 %v7947, 0.0
        %v7980 = vmax.f32 %v7948, 0.0
        %v7981 = vmax.f32 %v7949, 0.0
        %v7982 = vmax.f32 %v7950, 0.0
        %v7983 = vmax.f32 %v7951, 0.0
        %v7984 = vmax.f32 %v7952, 0.0
        %v7985 = vmax.f32 %v7953, 0.0
        %v7986 = vmax.f32 %v7954, 0.0
        %v7987 = vmax.f32 %v7955, 0.0
        %v7988 = vmax.f32 %v7956, 0.0
        %v7989 = vmax.f32 %v7957, 0.0
        %v7990 = vmax.f32 %v7958, 0.0
        %v7991 = vmax.f32 %v7959, 0.0
        %v7992 = vmax.f32 %v7960, 0.0
        %v7993 = vmax.f32 %v7961, 0.0
        %v7994 = vmax.f32 %v7962, 0.0
        %v7995 = vmax.f32 %v7963, 0.0
        %v7996 = vmax.f32 %v7964, 0.0
        %v7997 = vmax.f32 %v7965, 0.0
        %v7998 = vmax.f32 %v7966, 0.0
        %v7999 = vmax.f32 %v7967, 0.0
        %v8000 = vmax.f32 %v7968, 0.0
        %v8001 = vmax.f32 %v7969, 0.0
        %v8002 = vmax.f32 %v7970, 0.0
        %v8003 = vmax.f32 %v7971, 0.0
        %v8004 = vmax.f32 %v7972, 0.0
        %v8005 = vmax.f32 %v7973, 0.0
        %v8038 = vrot.slane %v2381, 7
        %v8039 = vrot.slane %v2382, 7
        %v8040 = vsel %vm2703, %v8038, %v8039
        %v8041 = vrot.slane %v2383, 7
        %v8042 = vrot.slane %v2384, 7
        %v8043 = vsel %vm2703, %v8041, %v8042
        %v8044 = vrot.slane %v2385, 7
        %v8045 = vrot.slane %v2386, 7
        %v8046 = vsel %vm2703, %v8044, %v8045
        %v8047 = vrot.slane %v2387, 7
        %v8048 = vrot.slane %v2388, 7
        %v8049 = vsel %vm2703, %v8047, %v8048
        %v8050 = vrot.slane %v2389, 7
        %v8051 = vrot.slane %v2390, 7
        %v8052 = vsel %vm2703, %v8050, %v8051
        %v8053 = vrot.slane %v2391, 7
        %v8054 = vrot.slane %v2392, 7
        %v8055 = vsel %vm2703, %v8053, %v8054
        %v8056 = vrot.slane %v2393, 7
        %v8057 = vrot.slane %v2394, 7
        %v8058 = vsel %vm2703, %v8056, %v8057
        %v8059 = vrot.slane %v2395, 7
        %v8060 = vrot.slane %v2396, 7
        %v8061 = vsel %vm2703, %v8059, %v8060
        %v8062 = vrot.slane %v2397, 7
        %v8063 = vrot.slane %v2398, 7
        %v8064 = vsel %vm2703, %v8062, %v8063
        %v8065 = vrot.slane %v2399, 7
        %v8066 = vrot.slane %v2400, 7
        %v8067 = vsel %vm2703, %v8065, %v8066
        %v8068 = vrot.slane %v2401, 7
        %v8069 = vrot.slane %v2402, 7
        %v8070 = vsel %vm2703, %v8068, %v8069
        %v8071 = vrot.slane %v2403, 7
        %v8072 = vrot.slane %v2404, 7
        %v8073 = vsel %vm2703, %v8071, %v8072
        %v8074 = vrot.slane %v2405, 7
        %v8075 = vrot.slane %v2406, 7
        %v8076 = vsel %vm2703, %v8074, %v8075
        %v8077 = vrot.slane %v2407, 7
        %v8078 = vrot.slane %v2408, 7
        %v8079 = vsel %vm2703, %v8077, %v8078
        %v8080 = vrot.slane %v2409, 7
        %v8081 = vrot.slane %v2410, 7
        %v8082 = vsel %vm2703, %v8080, %v8081
        %v8083 = vrot.slane %v2411, 7
        %v8084 = vrot.slane %v2412, 7
        %v8085 = vsel %vm2703, %v8083, %v8084
        %v8118 = vsel %vm2703, 0.0, %v8038
        %v8119 = vsel %vm2703, 0.0, %v8041
        %v8120 = vsel %vm2703, 0.0, %v8044
        %v8121 = vsel %vm2703, 0.0, %v8047
        %v8122 = vsel %vm2703, 0.0, %v8050
        %v8123 = vsel %vm2703, 0.0, %v8053
        %v8124 = vsel %vm2703, 0.0, %v8056
        %v8125 = vsel %vm2703, 0.0, %v8059
        %v8126 = vsel %vm2703, 0.0, %v8062
        %v8127 = vsel %vm2703, 0.0, %v8065
        %v8128 = vsel %vm2703, 0.0, %v8068
        %v8129 = vsel %vm2703, 0.0, %v8071
        %v8130 = vsel %vm2703, 0.0, %v8074
        %v8131 = vsel %vm2703, 0.0, %v8077
        %v8132 = vsel %vm2703, 0.0, %v8080
        %v8133 = vsel %vm2703, 0.0, %v8083
        %v8134 = vadd.f32 %v8118, %v2381
        %v8135 = vadd.f32 %v8040, %v2382
        %v8136 = vadd.f32 %v8119, %v2383
        %v8137 = vadd.f32 %v8043, %v2384
        %v8138 = vadd.f32 %v8120, %v2385
        %v8139 = vadd.f32 %v8046, %v2386
        %v8140 = vadd.f32 %v8121, %v2387
        %v8141 = vadd.f32 %v8049, %v2388
        %v8142 = vadd.f32 %v8122, %v2389
        %v8143 = vadd.f32 %v8052, %v2390
        %v8144 = vadd.f32 %v8123, %v2391
        %v8145 = vadd.f32 %v8055, %v2392
        %v8146 = vadd.f32 %v8124, %v2393
        %v8147 = vadd.f32 %v8058, %v2394
        %v8148 = vadd.f32 %v8125, %v2395
        %v8149 = vadd.f32 %v8061, %v2396
        %v8150 = vadd.f32 %v8126, %v2397
        %v8151 = vadd.f32 %v8064, %v2398
        %v8152 = vadd.f32 %v8127, %v2399
        %v8153 = vadd.f32 %v8067, %v2400
        %v8154 = vadd.f32 %v8128, %v2401
        %v8155 = vadd.f32 %v8070, %v2402
        %v8156 = vadd.f32 %v8129, %v2403
        %v8157 = vadd.f32 %v8073, %v2404
        %v8158 = vadd.f32 %v8130, %v2405
        %v8159 = vadd.f32 %v8076, %v2406
        %v8160 = vadd.f32 %v8131, %v2407
        %v8161 = vadd.f32 %v8079, %v2408
        %v8162 = vadd.f32 %v8132, %v2409
        %v8163 = vadd.f32 %v8082, %v2410
        %v8164 = vadd.f32 %v8133, %v2411
        %v8165 = vadd.f32 %v8085, %v2412
        %v8166 = vrot.slane %v2381, 1
        %v8167 = vrot.slane %v2382, 1
        %v8168 = vsel %vm3252, %v8166, %v8167
        %v8169 = vrot.slane %v2383, 1
        %v8170 = vrot.slane %v2384, 1
        %v8171 = vsel %vm3252, %v8169, %v8170
        %v8172 = vrot.slane %v2385, 1
        %v8173 = vrot.slane %v2386, 1
        %v8174 = vsel %vm3252, %v8172, %v8173
        %v8175 = vrot.slane %v2387, 1
        %v8176 = vrot.slane %v2388, 1
        %v8177 = vsel %vm3252, %v8175, %v8176
        %v8178 = vrot.slane %v2389, 1
        %v8179 = vrot.slane %v2390, 1
        %v8180 = vsel %vm3252, %v8178, %v8179
        %v8181 = vrot.slane %v2391, 1
        %v8182 = vrot.slane %v2392, 1
        %v8183 = vsel %vm3252, %v8181, %v8182
        %v8184 = vrot.slane %v2393, 1
        %v8185 = vrot.slane %v2394, 1
        %v8186 = vsel %vm3252, %v8184, %v8185
        %v8187 = vrot.slane %v2395, 1
        %v8188 = vrot.slane %v2396, 1
        %v8189 = vsel %vm3252, %v8187, %v8188
        %v8190 = vrot.slane %v2397, 1
        %v8191 = vrot.slane %v2398, 1
        %v8192 = vsel %vm3252, %v8190, %v8191
        %v8193 = vrot.slane %v2399, 1
        %v8194 = vrot.slane %v2400, 1
        %v8195 = vsel %vm3252, %v8193, %v8194
        %v8196 = vrot.slane %v2401, 1
        %v8197 = vrot.slane %v2402, 1
        %v8198 = vsel %vm3252, %v8196, %v8197
        %v8199 = vrot.slane %v2403, 1
        %v8200 = vrot.slane %v2404, 1
        %v8201 = vsel %vm3252, %v8199, %v8200
        %v8202 = vrot.slane %v2405, 1
        %v8203 = vrot.slane %v2406, 1
        %v8204 = vsel %vm3252, %v8202, %v8203
        %v8205 = vrot.slane %v2407, 1
        %v8206 = vrot.slane %v2408, 1
        %v8207 = vsel %vm3252, %v8205, %v8206
        %v8208 = vrot.slane %v2409, 1
        %v8209 = vrot.slane %v2410, 1
        %v8210 = vsel %vm3252, %v8208, %v8209
        %v8211 = vrot.slane %v2411, 1
        %v8212 = vrot.slane %v2412, 1
        %v8213 = vsel %vm3252, %v8211, %v8212
        %v8246 = vsel %vm3252, %v8167, 0.0
        %v8247 = vsel %vm3252, %v8170, 0.0
        %v8248 = vsel %vm3252, %v8173, 0.0
        %v8249 = vsel %vm3252, %v8176, 0.0
        %v8250 = vsel %vm3252, %v8179, 0.0
        %v8251 = vsel %vm3252, %v8182, 0.0
        %v8252 = vsel %vm3252, %v8185, 0.0
        %v8253 = vsel %vm3252, %v8188, 0.0
        %v8254 = vsel %vm3252, %v8191, 0.0
        %v8255 = vsel %vm3252, %v8194, 0.0
        %v8256 = vsel %vm3252, %v8197, 0.0
        %v8257 = vsel %vm3252, %v8200, 0.0
        %v8258 = vsel %vm3252, %v8203, 0.0
        %v8259 = vsel %vm3252, %v8206, 0.0
        %v8260 = vsel %vm3252, %v8209, 0.0
        %v8261 = vsel %vm3252, %v8212, 0.0
        %v8262 = vadd.f32 %v8134, %v8168
        %v8263 = vadd.f32 %v8135, %v8246
        %v8264 = vadd.f32 %v8136, %v8171
        %v8265 = vadd.f32 %v8137, %v8247
        %v8266 = vadd.f32 %v8138, %v8174
        %v8267 = vadd.f32 %v8139, %v8248
        %v8268 = vadd.f32 %v8140, %v8177
        %v8269 = vadd.f32 %v8141, %v8249
        %v8270 = vadd.f32 %v8142, %v8180
        %v8271 = vadd.f32 %v8143, %v8250
        %v8272 = vadd.f32 %v8144, %v8183
        %v8273 = vadd.f32 %v8145, %v8251
        %v8274 = vadd.f32 %v8146, %v8186
        %v8275 = vadd.f32 %v8147, %v8252
        %v8276 = vadd.f32 %v8148, %v8189
        %v8277 = vadd.f32 %v8149, %v8253
        %v8278 = vadd.f32 %v8150, %v8192
        %v8279 = vadd.f32 %v8151, %v8254
        %v8280 = vadd.f32 %v8152, %v8195
        %v8281 = vadd.f32 %v8153, %v8255
        %v8282 = vadd.f32 %v8154, %v8198
        %v8283 = vadd.f32 %v8155, %v8256
        %v8284 = vadd.f32 %v8156, %v8201
        %v8285 = vadd.f32 %v8157, %v8257
        %v8286 = vadd.f32 %v8158, %v8204
        %v8287 = vadd.f32 %v8159, %v8258
        %v8288 = vadd.f32 %v8160, %v8207
        %v8289 = vadd.f32 %v8161, %v8259
        %v8290 = vadd.f32 %v8162, %v8210
        %v8291 = vadd.f32 %v8163, %v8260
        %v8292 = vadd.f32 %v8164, %v8213
        %v8293 = vadd.f32 %v8165, %v8261
        %v8294 = vadd.f32 %v8262, 0.0
        %v8295 = vadd.f32 %v8263, 0.0
        %v8296 = vadd.f32 %v8262, %v8264
        %v8297 = vadd.f32 %v8263, %v8265
        %v8298 = vadd.f32 %v8264, %v8266
        %v8299 = vadd.f32 %v8265, %v8267
        %v8300 = vadd.f32 %v8266, %v8268
        %v8301 = vadd.f32 %v8267, %v8269
        %v8302 = vadd.f32 %v8268, %v8270
        %v8303 = vadd.f32 %v8269, %v8271
        %v8304 = vadd.f32 %v8270, %v8272
        %v8305 = vadd.f32 %v8271, %v8273
        %v8306 = vadd.f32 %v8272, %v8274
        %v8307 = vadd.f32 %v8273, %v8275
        %v8308 = vadd.f32 %v8274, %v8276
        %v8309 = vadd.f32 %v8275, %v8277
        %v8310 = vadd.f32 %v8276, %v8278
        %v8311 = vadd.f32 %v8277, %v8279
        %v8312 = vadd.f32 %v8278, %v8280
        %v8313 = vadd.f32 %v8279, %v8281
        %v8314 = vadd.f32 %v8280, %v8282
        %v8315 = vadd.f32 %v8281, %v8283
        %v8316 = vadd.f32 %v8282, %v8284
        %v8317 = vadd.f32 %v8283, %v8285
        %v8318 = vadd.f32 %v8284, %v8286
        %v8319 = vadd.f32 %v8285, %v8287
        %v8320 = vadd.f32 %v8286, %v8288
        %v8321 = vadd.f32 %v8287, %v8289
        %v8322 = vadd.f32 %v8288, %v8290
        %v8323 = vadd.f32 %v8289, %v8291
        %v8324 = vadd.f32 %v8290, %v8292
        %v8325 = vadd.f32 %v8291, %v8293
        %v8326 = vadd.f32 %v8294, %v8264
        %v8327 = vadd.f32 %v8295, %v8265
        %v8328 = vadd.f32 %v8296, %v8266
        %v8329 = vadd.f32 %v8297, %v8267
        %v8330 = vadd.f32 %v8298, %v8268
        %v8331 = vadd.f32 %v8299, %v8269
        %v8332 = vadd.f32 %v8300, %v8270
        %v8333 = vadd.f32 %v8301, %v8271
        %v8334 = vadd.f32 %v8302, %v8272
        %v8335 = vadd.f32 %v8303, %v8273
        %v8336 = vadd.f32 %v8304, %v8274
        %v8337 = vadd.f32 %v8305, %v8275
        %v8338 = vadd.f32 %v8306, %v8276
        %v8339 = vadd.f32 %v8307, %v8277
        %v8340 = vadd.f32 %v8308, %v8278
        %v8341 = vadd.f32 %v8309, %v8279
        %v8342 = vadd.f32 %v8310, %v8280
        %v8343 = vadd.f32 %v8311, %v8281
        %v8344 = vadd.f32 %v8312, %v8282
        %v8345 = vadd.f32 %v8313, %v8283
        %v8346 = vadd.f32 %v8314, %v8284
        %v8347 = vadd.f32 %v8315, %v8285
        %v8348 = vadd.f32 %v8316, %v8286
        %v8349 = vadd.f32 %v8317, %v8287
        %v8350 = vadd.f32 %v8318, %v8288
        %v8351 = vadd.f32 %v8319, %v8289
        %v8352 = vadd.f32 %v8320, %v8290
        %v8353 = vadd.f32 %v8321, %v8291
        %v8354 = vadd.f32 %v8322, %v8292
        %v8355 = vadd.f32 %v8323, %v8293
        %v8356 = vadd.f32 %v8324, 0.0
        %v8357 = vadd.f32 %v8325, 0.0
        %v8358 = vmul.f32 %v8326, 0.11111111
        %v8359 = vmul.f32 %v8327, 0.11111111
        %v8360 = vmul.f32 %v8328, 0.11111111
        %v8361 = vmul.f32 %v8329, 0.11111111
        %v8362 = vmul.f32 %v8330, 0.11111111
        %v8363 = vmul.f32 %v8331, 0.11111111
        %v8364 = vmul.f32 %v8332, 0.11111111
        %v8365 = vmul.f32 %v8333, 0.11111111
        %v8366 = vmul.f32 %v8334, 0.11111111
        %v8367 = vmul.f32 %v8335, 0.11111111
        %v8368 = vmul.f32 %v8336, 0.11111111
        %v8369 = vmul.f32 %v8337, 0.11111111
        %v8370 = vmul.f32 %v8338, 0.11111111
        %v8371 = vmul.f32 %v8339, 0.11111111
        %v8372 = vmul.f32 %v8340, 0.11111111
        %v8373 = vmul.f32 %v8341, 0.11111111
        %v8374 = vmul.f32 %v8342, 0.11111111
        %v8375 = vmul.f32 %v8343, 0.11111111
        %v8376 = vmul.f32 %v8344, 0.11111111
        %v8377 = vmul.f32 %v8345, 0.11111111
        %v8378 = vmul.f32 %v8346, 0.11111111
        %v8379 = vmul.f32 %v8347, 0.11111111
        %v8380 = vmul.f32 %v8348, 0.11111111
        %v8381 = vmul.f32 %v8349, 0.11111111
        %v8382 = vmul.f32 %v8350, 0.11111111
        %v8383 = vmul.f32 %v8351, 0.11111111
        %v8384 = vmul.f32 %v8352, 0.11111111
        %v8385 = vmul.f32 %v8353, 0.11111111
        %v8386 = vmul.f32 %v8354, 0.11111111
        %v8387 = vmul.f32 %v8355, 0.11111111
        %v8388 = vmul.f32 %v8356, 0.11111111
        %v8389 = vmul.f32 %v8357, 0.11111111
        %v8390 = vld [vmem:[%s8] sm:$0x1]
        %v8392 = vlaneseq
        %v8393 = vshrl.u32 %v8392, 7
        %v8394 = vsub.s32 0, %v8393
        %v8395 = vrot.slane %v8390, %v8394
        %v8397 = vadd.f32 %v8358, %v8395
        %v8398 = vadd.f32 %v8359, %v8395
        %v8399 = vadd.f32 %v8360, %v8395
        %v8400 = vadd.f32 %v8361, %v8395
        %v8401 = vadd.f32 %v8362, %v8395
        %v8402 = vadd.f32 %v8363, %v8395
        %v8403 = vadd.f32 %v8364, %v8395
        %v8404 = vadd.f32 %v8365, %v8395
        %v8405 = vadd.f32 %v8366, %v8395
        %v8406 = vadd.f32 %v8367, %v8395
        %v8407 = vadd.f32 %v8368, %v8395
        %v8408 = vadd.f32 %v8369, %v8395
        %v8409 = vadd.f32 %v8370, %v8395
        %v8410 = vadd.f32 %v8371, %v8395
        %v8411 = vadd.f32 %v8372, %v8395
        %v8412 = vadd.f32 %v8373, %v8395
        %v8413 = vadd.f32 %v8374, %v8395
        %v8414 = vadd.f32 %v8375, %v8395
        %v8415 = vadd.f32 %v8376, %v8395
        %v8416 = vadd.f32 %v8377, %v8395
        %v8417 = vadd.f32 %v8378, %v8395
        %v8418 = vadd.f32 %v8379, %v8395
        %v8419 = vadd.f32 %v8380, %v8395
        %v8420 = vadd.f32 %v8381, %v8395
        %v8421 = vadd.f32 %v8382, %v8395
        %v8422 = vadd.f32 %v8383, %v8395
        %v8423 = vadd.f32 %v8384, %v8395
        %v8424 = vadd.f32 %v8385, %v8395
        %v8425 = vadd.f32 %v8386, %v8395
        %v8426 = vadd.f32 %v8387, %v8395
        %v8427 = vadd.f32 %v8388, %v8395
        %v8428 = vadd.f32 %v8389, %v8395
        %v8429 = vmax.f32 %v8397, 0.0
        %v8430 = vmax.f32 %v8398, 0.0
        %v8431 = vmax.f32 %v8399, 0.0
        %v8432 = vmax.f32 %v8400, 0.0
        %v8433 = vmax.f32 %v8401, 0.0
        %v8434 = vmax.f32 %v8402, 0.0
        %v8435 = vmax.f32 %v8403, 0.0
        %v8436 = vmax.f32 %v8404, 0.0
        %v8437 = vmax.f32 %v8405, 0.0
        %v8438 = vmax.f32 %v8406, 0.0
        %v8439 = vmax.f32 %v8407, 0.0
        %v8440 = vmax.f32 %v8408, 0.0
        %v8441 = vmax.f32 %v8409, 0.0
        %v8442 = vmax.f32 %v8410, 0.0
        %v8443 = vmax.f32 %v8411, 0.0
        %v8444 = vmax.f32 %v8412, 0.0
        %v8445 = vmax.f32 %v8413, 0.0
        %v8446 = vmax.f32 %v8414, 0.0
        %v8447 = vmax.f32 %v8415, 0.0
        %v8448 = vmax.f32 %v8416, 0.0
        %v8449 = vmax.f32 %v8417, 0.0
        %v8450 = vmax.f32 %v8418, 0.0
        %v8451 = vmax.f32 %v8419, 0.0
        %v8452 = vmax.f32 %v8420, 0.0
        %v8453 = vmax.f32 %v8421, 0.0
        %v8454 = vmax.f32 %v8422, 0.0
        %v8455 = vmax.f32 %v8423, 0.0
        %v8456 = vmax.f32 %v8424, 0.0
        %v8457 = vmax.f32 %v8425, 0.0
        %v8458 = vmax.f32 %v8426, 0.0
        %v8459 = vmax.f32 %v8427, 0.0
        %v8460 = vmax.f32 %v8428, 0.0
        %8461 = vst.msk [vmem:[%s649] sm:$0xff] %vm2461, %v1513
        %8462 = vst.msk [vmem:[%s649 + $0x10] sm:$0xff] %vm2461, %v1514
        %8463 = vst.msk [vmem:[%s649 + $0x20] sm:$0xff] %vm2461, %v1515
        %8464 = vst.msk [vmem:[%s649 + $0x30] sm:$0xff] %vm2461, %v1516
        %8465 = vst.msk [vmem:[%s649 + $0x40] sm:$0xff] %vm2461, %v1517
        %8466 = vst.msk [vmem:[%s649 + $0x50] sm:$0xff] %vm2461, %v1518
        %8467 = vst.msk [vmem:[%s649 + $0x60] sm:$0xff] %vm2461, %v1519
        %8468 = vst.msk [vmem:[%s649 + $0x70] sm:$0xff] %vm2461, %v1520
        %8469 = vst.msk [vmem:[%s649 + $0x80] sm:$0xff] %vm2461, %v1521
        %8470 = vst.msk [vmem:[%s649 + $0x90] sm:$0xff] %vm2461, %v1522
        %8471 = vst.msk [vmem:[%s649 + $0xa0] sm:$0xff] %vm2461, %v1523
        %8472 = vst.msk [vmem:[%s649 + $0xb0] sm:$0xff] %vm2461, %v1524
        %8473 = vst.msk [vmem:[%s649 + $0xc0] sm:$0xff] %vm2461, %v1525
        %8474 = vst.msk [vmem:[%s649 + $0xd0] sm:$0xff] %vm2461, %v1526
        %8475 = vst.msk [vmem:[%s649 + $0xe0] sm:$0xff] %vm2461, %v1527
        %8476 = vst.msk [vmem:[%s649 + $0xf0] sm:$0xff] %vm2461, %v1528
        %8477 = vst.msk [vmem:[%s649 + $0x100] sm:$0xff] %vm2461, %v1529
        %8478 = vst.msk [vmem:[%s649 + $0x110] sm:$0xff] %vm2461, %v1530
        %8479 = vst.msk [vmem:[%s649 + $0x120] sm:$0xff] %vm2461, %v1531
        %8480 = vst.msk [vmem:[%s649 + $0x130] sm:$0xff] %vm2461, %v1532
        %8481 = vst.msk [vmem:[%s649 + $0x140] sm:$0xff] %vm2461, %v1533
        %8482 = vst.msk [vmem:[%s649 + $0x150] sm:$0xff] %vm2461, %v1534
        %8483 = vst.msk [vmem:[%s649 + $0x160] sm:$0xff] %vm2461, %v1535
        %8484 = vst.msk [vmem:[%s649 + $0x170] sm:$0xff] %vm2461, %v1536
        %8485 = vst.msk [vmem:[%s649 + $0x180] sm:$0xff] %vm2461, %v1537
        %8486 = vst.msk [vmem:[%s649 + $0x190] sm:$0xff] %vm2461, %v1538
        %8487 = vst.msk [vmem:[%s649 + $0x1a0] sm:$0xff] %vm2461, %v1539
        %8488 = vst.msk [vmem:[%s649 + $0x1b0] sm:$0xff] %vm2461, %v1540
        %8489 = vst.msk [vmem:[%s649 + $0x1c0] sm:$0xff] %vm2461, %v1541
        %8490 = vst.msk [vmem:[%s649 + $0x1d0] sm:$0xff] %vm2461, %v1542
        %8491 = vst.msk [vmem:[%s649 + $0x1e0] sm:$0xff] %vm2461, %v1543
        %8492 = vst.msk [vmem:[%s649 + $0x1f0] sm:$0xff] %vm2461, %v1544
        %8525 = vrot.lane.b32.xlu0 %v6136, 64
        %v8526 = vpop.permute.xlu0 %8525
        %8527 = vrot.lane.b32.xlu0 %v6137, 64
        %v8528 = vpop.permute.xlu0 %8527
        %8529 = vrot.lane.b32.xlu0 %v6138, 64
        %v8530 = vpop.permute.xlu0 %8529
        %8531 = vrot.lane.b32.xlu0 %v6139, 64
        %v8532 = vpop.permute.xlu0 %8531
        %8533 = vrot.lane.b32.xlu0 %v6140, 64
        %v8534 = vpop.permute.xlu0 %8533
        %8535 = vrot.lane.b32.xlu0 %v6141, 64
        %v8536 = vpop.permute.xlu0 %8535
        %8537 = vrot.lane.b32.xlu0 %v6142, 64
        %v8538 = vpop.permute.xlu0 %8537
        %8539 = vrot.lane.b32.xlu0 %v6143, 64
        %v8540 = vpop.permute.xlu0 %8539
        %8541 = vrot.lane.b32.xlu0 %v6144, 64
        %v8542 = vpop.permute.xlu0 %8541
        %8543 = vrot.lane.b32.xlu0 %v6145, 64
        %v8544 = vpop.permute.xlu0 %8543
        %8545 = vrot.lane.b32.xlu0 %v6146, 64
        %v8546 = vpop.permute.xlu0 %8545
        %8547 = vrot.lane.b32.xlu0 %v6147, 64
        %v8548 = vpop.permute.xlu0 %8547
        %8549 = vrot.lane.b32.xlu0 %v6148, 64
        %v8550 = vpop.permute.xlu0 %8549
        %8551 = vrot.lane.b32.xlu0 %v6149, 64
        %v8552 = vpop.permute.xlu0 %8551
        %8553 = vrot.lane.b32.xlu0 %v6150, 64
        %v8554 = vpop.permute.xlu0 %8553
        %8555 = vrot.lane.b32.xlu0 %v6151, 64
        %v8556 = vpop.permute.xlu0 %8555
        %8557 = vrot.lane.b32.xlu0 %v6152, 64
        %v8558 = vpop.permute.xlu0 %8557
        %8559 = vrot.lane.b32.xlu0 %v6153, 64
        %v8560 = vpop.permute.xlu0 %8559
        %8561 = vrot.lane.b32.xlu0 %v6154, 64
        %v8562 = vpop.permute.xlu0 %8561
        %8563 = vrot.lane.b32.xlu0 %v6155, 64
        %v8564 = vpop.permute.xlu0 %8563
        %8565 = vrot.lane.b32.xlu0 %v6156, 64
        %v8566 = vpop.permute.xlu0 %8565
        %8567 = vrot.lane.b32.xlu0 %v6157, 64
        %v8568 = vpop.permute.xlu0 %8567
        %8569 = vrot.lane.b32.xlu0 %v6158, 64
        %v8570 = vpop.permute.xlu0 %8569
        %8571 = vrot.lane.b32.xlu0 %v6159, 64
        %v8572 = vpop.permute.xlu0 %8571
        %8573 = vrot.lane.b32.xlu0 %v6160, 64
        %v8574 = vpop.permute.xlu0 %8573
        %8575 = vrot.lane.b32.xlu0 %v6161, 64
        %v8576 = vpop.permute.xlu0 %8575
        %8577 = vrot.lane.b32.xlu0 %v6162, 64
        %v8578 = vpop.permute.xlu0 %8577
        %8579 = vrot.lane.b32.xlu0 %v6163, 64
        %v8580 = vpop.permute.xlu0 %8579
        %8581 = vrot.lane.b32.xlu0 %v6164, 64
        %v8582 = vpop.permute.xlu0 %8581
        %8583 = vrot.lane.b32.xlu0 %v6165, 64
        %v8584 = vpop.permute.xlu0 %8583
        %8585 = vrot.lane.b32.xlu0 %v6166, 64
        %v8586 = vpop.permute.xlu0 %8585
        %8587 = vrot.lane.b32.xlu0 %v6167, 64
        %v8588 = vpop.permute.xlu0 %8587
        %vm8621 = vcmask 1048064
        %8622 = vst.msk [vmem:[%s649] sm:$0xff] %vm8621, %v8526
        %8623 = vst.msk [vmem:[%s649 + $0x10] sm:$0xff] %vm8621, %v8528
        %8624 = vst.msk [vmem:[%s649 + $0x20] sm:$0xff] %vm8621, %v8530
        %8625 = vst.msk [vmem:[%s649 + $0x30] sm:$0xff] %vm8621, %v8532
        %8626 = vst.msk [vmem:[%s649 + $0x40] sm:$0xff] %vm8621, %v8534
        %8627 = vst.msk [vmem:[%s649 + $0x50] sm:$0xff] %vm8621, %v8536
        %8628 = vst.msk [vmem:[%s649 + $0x60] sm:$0xff] %vm8621, %v8538
        %8629 = vst.msk [vmem:[%s649 + $0x70] sm:$0xff] %vm8621, %v8540
        %8630 = vst.msk [vmem:[%s649 + $0x80] sm:$0xff] %vm8621, %v8542
        %8631 = vst.msk [vmem:[%s649 + $0x90] sm:$0xff] %vm8621, %v8544
        %8632 = vst.msk [vmem:[%s649 + $0xa0] sm:$0xff] %vm8621, %v8546
        %8633 = vst.msk [vmem:[%s649 + $0xb0] sm:$0xff] %vm8621, %v8548
        %8634 = vst.msk [vmem:[%s649 + $0xc0] sm:$0xff] %vm8621, %v8550
        %8635 = vst.msk [vmem:[%s649 + $0xd0] sm:$0xff] %vm8621, %v8552
        %8636 = vst.msk [vmem:[%s649 + $0xe0] sm:$0xff] %vm8621, %v8554
        %8637 = vst.msk [vmem:[%s649 + $0xf0] sm:$0xff] %vm8621, %v8556
        %8638 = vst.msk [vmem:[%s649 + $0x100] sm:$0xff] %vm8621, %v8558
        %8639 = vst.msk [vmem:[%s649 + $0x110] sm:$0xff] %vm8621, %v8560
        %8640 = vst.msk [vmem:[%s649 + $0x120] sm:$0xff] %vm8621, %v8562
        %8641 = vst.msk [vmem:[%s649 + $0x130] sm:$0xff] %vm8621, %v8564
        %8642 = vst.msk [vmem:[%s649 + $0x140] sm:$0xff] %vm8621, %v8566
        %8643 = vst.msk [vmem:[%s649 + $0x150] sm:$0xff] %vm8621, %v8568
        %8644 = vst.msk [vmem:[%s649 + $0x160] sm:$0xff] %vm8621, %v8570
        %8645 = vst.msk [vmem:[%s649 + $0x170] sm:$0xff] %vm8621, %v8572
        %8646 = vst.msk [vmem:[%s649 + $0x180] sm:$0xff] %vm8621, %v8574
        %8647 = vst.msk [vmem:[%s649 + $0x190] sm:$0xff] %vm8621, %v8576
        %8648 = vst.msk [vmem:[%s649 + $0x1a0] sm:$0xff] %vm8621, %v8578
        %8649 = vst.msk [vmem:[%s649 + $0x1b0] sm:$0xff] %vm8621, %v8580
        %8650 = vst.msk [vmem:[%s649 + $0x1c0] sm:$0xff] %vm8621, %v8582
        %8651 = vst.msk [vmem:[%s649 + $0x1d0] sm:$0xff] %vm8621, %v8584
        %8652 = vst.msk [vmem:[%s649 + $0x1e0] sm:$0xff] %vm8621, %v8586
        %8653 = vst.msk [vmem:[%s649 + $0x1f0] sm:$0xff] %vm8621, %v8588
        %8654 = vst.msk [vmem:[%s649 + $0x8] sm:$0xff] %vm7245, %v7974
        %8655 = vst.msk [vmem:[%s649 + $0x18] sm:$0xff] %vm7245, %v7975
        %8656 = vst.msk [vmem:[%s649 + $0x28] sm:$0xff] %vm7245, %v7976
        %8657 = vst.msk [vmem:[%s649 + $0x38] sm:$0xff] %vm7245, %v7977
        %8658 = vst.msk [vmem:[%s649 + $0x48] sm:$0xff] %vm7245, %v7978
        %8659 = vst.msk [vmem:[%s649 + $0x58] sm:$0xff] %vm7245, %v7979
        %8660 = vst.msk [vmem:[%s649 + $0x68] sm:$0xff] %vm7245, %v7980
        %8661 = vst.msk [vmem:[%s649 + $0x78] sm:$0xff] %vm7245, %v7981
        %8662 = vst.msk [vmem:[%s649 + $0x88] sm:$0xff] %vm7245, %v7982
        %8663 = vst.msk [vmem:[%s649 + $0x98] sm:$0xff] %vm7245, %v7983
        %8664 = vst.msk [vmem:[%s649 + $0xa8] sm:$0xff] %vm7245, %v7984
        %8665 = vst.msk [vmem:[%s649 + $0xb8] sm:$0xff] %vm7245, %v7985
        %8666 = vst.msk [vmem:[%s649 + $0xc8] sm:$0xff] %vm7245, %v7986
        %8667 = vst.msk [vmem:[%s649 + $0xd8] sm:$0xff] %vm7245, %v7987
        %8668 = vst.msk [vmem:[%s649 + $0xe8] sm:$0xff] %vm7245, %v7988
        %8669 = vst.msk [vmem:[%s649 + $0xf8] sm:$0xff] %vm7245, %v7989
        %8670 = vst.msk [vmem:[%s649 + $0x108] sm:$0xff] %vm7245, %v7990
        %8671 = vst.msk [vmem:[%s649 + $0x118] sm:$0xff] %vm7245, %v7991
        %8672 = vst.msk [vmem:[%s649 + $0x128] sm:$0xff] %vm7245, %v7992
        %8673 = vst.msk [vmem:[%s649 + $0x138] sm:$0xff] %vm7245, %v7993
        %8674 = vst.msk [vmem:[%s649 + $0x148] sm:$0xff] %vm7245, %v7994
        %8675 = vst.msk [vmem:[%s649 + $0x158] sm:$0xff] %vm7245, %v7995
        %8676 = vst.msk [vmem:[%s649 + $0x168] sm:$0xff] %vm7245, %v7996
        %8677 = vst.msk [vmem:[%s649 + $0x178] sm:$0xff] %vm7245, %v7997
        %8678 = vst.msk [vmem:[%s649 + $0x188] sm:$0xff] %vm7245, %v7998
        %8679 = vst.msk [vmem:[%s649 + $0x198] sm:$0xff] %vm7245, %v7999
        %8680 = vst.msk [vmem:[%s649 + $0x1a8] sm:$0xff] %vm7245, %v8000
        %8681 = vst.msk [vmem:[%s649 + $0x1b8] sm:$0xff] %vm7245, %v8001
        %8682 = vst.msk [vmem:[%s649 + $0x1c8] sm:$0xff] %vm7245, %v8002
        %8683 = vst.msk [vmem:[%s649 + $0x1d8] sm:$0xff] %vm7245, %v8003
        %8684 = vst.msk [vmem:[%s649 + $0x1e8] sm:$0xff] %vm7245, %v8004
        %8685 = vst.msk [vmem:[%s649 + $0x1f8] sm:$0xff] %vm7245, %v8005
        %8718 = vrot.lane.b32.xlu0 %v8429, 96
        %v8719 = vpop.permute.xlu0 %8718
        %8720 = vrot.lane.b32.xlu0 %v8430, 96
        %v8721 = vpop.permute.xlu0 %8720
        %8722 = vrot.lane.b32.xlu0 %v8431, 96
        %v8723 = vpop.permute.xlu0 %8722
        %8724 = vrot.lane.b32.xlu0 %v8432, 96
        %v8725 = vpop.permute.xlu0 %8724
        %8726 = vrot.lane.b32.xlu0 %v8433, 96
        %v8727 = vpop.permute.xlu0 %8726
        %8728 = vrot.lane.b32.xlu0 %v8434, 96
        %v8729 = vpop.permute.xlu0 %8728
        %8730 = vrot.lane.b32.xlu0 %v8435, 96
        %v8731 = vpop.permute.xlu0 %8730
        %8732 = vrot.lane.b32.xlu0 %v8436, 96
        %v8733 = vpop.permute.xlu0 %8732
        %8734 = vrot.lane.b32.xlu0 %v8437, 96
        %v8735 = vpop.permute.xlu0 %8734
        %8736 = vrot.lane.b32.xlu0 %v8438, 96
        %v8737 = vpop.permute.xlu0 %8736
        %8738 = vrot.lane.b32.xlu0 %v8439, 96
        %v8739 = vpop.permute.xlu0 %8738
        %8740 = vrot.lane.b32.xlu0 %v8440, 96
        %v8741 = vpop.permute.xlu0 %8740
        %8742 = vrot.lane.b32.xlu0 %v8441, 96
        %v8743 = vpop.permute.xlu0 %8742
        %8744 = vrot.lane.b32.xlu0 %v8442, 96
        %v8745 = vpop.permute.xlu0 %8744
        %8746 = vrot.lane.b32.xlu0 %v8443, 96
        %v8747 = vpop.permute.xlu0 %8746
        %8748 = vrot.lane.b32.xlu0 %v8444, 96
        %v8749 = vpop.permute.xlu0 %8748
        %8750 = vrot.lane.b32.xlu0 %v8445, 96
        %v8751 = vpop.permute.xlu0 %8750
        %8752 = vrot.lane.b32.xlu0 %v8446, 96
        %v8753 = vpop.permute.xlu0 %8752
        %8754 = vrot.lane.b32.xlu0 %v8447, 96
        %v8755 = vpop.permute.xlu0 %8754
        %8756 = vrot.lane.b32.xlu0 %v8448, 96
        %v8757 = vpop.permute.xlu0 %8756
        %8758 = vrot.lane.b32.xlu0 %v8449, 96
        %v8759 = vpop.permute.xlu0 %8758
        %8760 = vrot.lane.b32.xlu0 %v8450, 96
        %v8761 = vpop.permute.xlu0 %8760
        %8762 = vrot.lane.b32.xlu0 %v8451, 96
        %v8763 = vpop.permute.xlu0 %8762
        %8764 = vrot.lane.b32.xlu0 %v8452, 96
        %v8765 = vpop.permute.xlu0 %8764
        %8766 = vrot.lane.b32.xlu0 %v8453, 96
        %v8767 = vpop.permute.xlu0 %8766
        %8768 = vrot.lane.b32.xlu0 %v8454, 96
        %v8769 = vpop.permute.xlu0 %8768
        %8770 = vrot.lane.b32.xlu0 %v8455, 96
        %v8771 = vpop.permute.xlu0 %8770
        %8772 = vrot.lane.b32.xlu0 %v8456, 96
        %v8773 = vpop.permute.xlu0 %8772
        %8774 = vrot.lane.b32.xlu0 %v8457, 96
        %v8775 = vpop.permute.xlu0 %8774
        %8776 = vrot.lane.b32.xlu0 %v8458, 96
        %v8777 = vpop.permute.xlu0 %8776
        %8778 = vrot.lane.b32.xlu0 %v8459, 96
        %v8779 = vpop.permute.xlu0 %8778
        %8780 = vrot.lane.b32.xlu0 %v8460, 96
        %v8781 = vpop.permute.xlu0 %8780
        %vm8814 = vcmask 1048320
        %8815 = vst.msk [vmem:[%s649 + $0x8] sm:$0xff] %vm8814, %v8719
        %8816 = vst.msk [vmem:[%s649 + $0x18] sm:$0xff] %vm8814, %v8721
        %8817 = vst.msk [vmem:[%s649 + $0x28] sm:$0xff] %vm8814, %v8723
        %8818 = vst.msk [vmem:[%s649 + $0x38] sm:$0xff] %vm8814, %v8725
        %8819 = vst.msk [vmem:[%s649 + $0x48] sm:$0xff] %vm8814, %v8727
        %8820 = vst.msk [vmem:[%s649 + $0x58] sm:$0xff] %vm8814, %v8729
        %8821 = vst.msk [vmem:[%s649 + $0x68] sm:$0xff] %vm8814, %v8731
        %8822 = vst.msk [vmem:[%s649 + $0x78] sm:$0xff] %vm8814, %v8733
        %8823 = vst.msk [vmem:[%s649 + $0x88] sm:$0xff] %vm8814, %v8735
        %8824 = vst.msk [vmem:[%s649 + $0x98] sm:$0xff] %vm8814, %v8737
        %8825 = vst.msk [vmem:[%s649 + $0xa8] sm:$0xff] %vm8814, %v8739
        %8826 = vst.msk [vmem:[%s649 + $0xb8] sm:$0xff] %vm8814, %v8741
        %8827 = vst.msk [vmem:[%s649 + $0xc8] sm:$0xff] %vm8814, %v8743
        %8828 = vst.msk [vmem:[%s649 + $0xd8] sm:$0xff] %vm8814, %v8745
        %8829 = vst.msk [vmem:[%s649 + $0xe8] sm:$0xff] %vm8814, %v8747
        %8830 = vst.msk [vmem:[%s649 + $0xf8] sm:$0xff] %vm8814, %v8749
        %8831 = vst.msk [vmem:[%s649 + $0x108] sm:$0xff] %vm8814, %v8751
        %8832 = vst.msk [vmem:[%s649 + $0x118] sm:$0xff] %vm8814, %v8753
        %8833 = vst.msk [vmem:[%s649 + $0x128] sm:$0xff] %vm8814, %v8755
        %8834 = vst.msk [vmem:[%s649 + $0x138] sm:$0xff] %vm8814, %v8757
        %8835 = vst.msk [vmem:[%s649 + $0x148] sm:$0xff] %vm8814, %v8759
        %8836 = vst.msk [vmem:[%s649 + $0x158] sm:$0xff] %vm8814, %v8761
        %8837 = vst.msk [vmem:[%s649 + $0x168] sm:$0xff] %vm8814, %v8763
        %8838 = vst.msk [vmem:[%s649 + $0x178] sm:$0xff] %vm8814, %v8765
        %8839 = vst.msk [vmem:[%s649 + $0x188] sm:$0xff] %vm8814, %v8767
        %8840 = vst.msk [vmem:[%s649 + $0x198] sm:$0xff] %vm8814, %v8769
        %8841 = vst.msk [vmem:[%s649 + $0x1a8] sm:$0xff] %vm8814, %v8771
        %8842 = vst.msk [vmem:[%s649 + $0x1b8] sm:$0xff] %vm8814, %v8773
        %8843 = vst.msk [vmem:[%s649 + $0x1c8] sm:$0xff] %vm8814, %v8775
        %8844 = vst.msk [vmem:[%s649 + $0x1d8] sm:$0xff] %vm8814, %v8777
        %8845 = vst.msk [vmem:[%s649 + $0x1e8] sm:$0xff] %vm8814, %v8779
        %8846 = vst.msk [vmem:[%s649 + $0x1f8] sm:$0xff] %vm8814, %v8781
        %s8847 = sand.u32 %s489, 1
        %s8848 = scalar_lea.sflag [#allocation3], %s8847
        %s8849 = sand.u32 %s489, 1
        %s8850 = smul.addr %s8849, 512
        %s8851 = scalar_lea.vmem [#allocation2], %s8850
        // Predicated region
        $region105: #{_lambda_.1} parent=103 // pred_check
          %p8852 = pneg %p499
        $region106: #{_lambda_.1} parent=103 // pred_check_branch
          %8854 = sbr.rel (%p8852) target = $region108
        $region107: #{_lambda_.1} parent=103 // pred_region
          %s8856 = ssub.s32 8192, 8192
          %8857 = vsyncadd %s8848, %s8856
          %s8858 = smul.addr %s35, 64
          %s8859 = smul.addr %s8858, 128
          %s8860 = scalar_lea.hbm %s21, %s8859
          %s8861 = sshll.u32 %s8851, 4
          %s8862 = int_to_ptr.vmem [resolvable:$true] %s8861
          %8867 = dma.vmem_to_hbm [thread:$0]  %s8862, 8192, %s8860, %s8848, 256, 256, 16
        $region108: #{_lambda_.1} parent=103 // pred_fallthru
          _
      $region104: #{_lambda_.1} parent=5 // pred_fallthru
        _
      %p8868 = scmp.le.s32.totalorder 2, %s30
      // Predicated region
      $region109: #{_lambda_.1} parent=5 // pred_check
        %p8869 = pneg %p8868
      $region110: #{_lambda_.1} parent=5 // pred_check_branch
        %8871 = sbr.rel (%p8869) target = $region112
      $region111: #{_lambda_.1} parent=5 // pred_region
        %s8872 = ssub.s32 %s30, 2
        // Predicated region
        $region113: #{_lambda_.1} parent=111 // pred_check
          %p8873 = pneg %p505
        $region114: #{_lambda_.1} parent=111 // pred_check_branch
          %8875 = sbr.rel (%p8873) target = $region116
        $region115: #{_lambda_.1} parent=111 // pred_region
          %s8876 = sand.u32 %s490, 1
          %s8877 = scalar_lea.sflag [#allocation3], %s8876
          %s8878 = sand.u32 %s490, 1
          %s8879 = smul.addr %s8878, 512
          %s8880 = scalar_lea.vmem [#allocation2], %s8879
          %8881 = dma.done %s8877, 8192
        $region116: #{_lambda_.1} parent=111 // pred_fallthru
          _
      $region112: #{_lambda_.1} parent=5 // pred_fallthru
        _
    $region6: #{_lambda_.1} parent=1 // loop_footer
      %s34 = sadd.s32 1, %s30
    $region7: #{_lambda_.1} parent=1 // loop_footer_branch
      %29 = sbr.rel target = $region3
    $region8: #{_lambda_.1} parent=1 // loop_exit
      _
    %8882 = vsyncpa [#allocation3], 1
    %s8883 = scalar_lea.sflag [#allocation3], 1
    %8884 = vsyncpa %s8883, 1

</llo_original>
